<compile_context>
chip_gen: v7x
topology: tpu7x:2x2x1
jax: 0.10.0
libtpu: 0.0.40
codegen_flags: <defaults>
</compile_context>

<pallas_src>
import math

import numpy as np
import jax
import jax.numpy as jnp
from jax import lax
from jax.experimental import pallas as pl
from jax.experimental.pallas import tpu as pltpu

# Module configuration (consistent with the hard-coded 3x32x32 input).
CONV_LAYER_INFO = [(4, 2, 0.0), (8, 2, 0.0)]   # (channels, pool_size, pdropout)
DENSE_LAYER_INFO = [(64, 0.0), (32, 0.0)]      # (hidden_size, pdropout)

IN_CH, IN_SIDE = 3, 32
PAD_CH = 4                                     # 3 channels padded to 4 (lane-dense)
C1 = CONV_LAYER_INFO[0][0]                     # 4
C2 = CONV_LAYER_INFO[1][0]                     # 8
SIDE1 = IN_SIDE // CONV_LAYER_INFO[0][1]       # 16
SIDE2 = SIDE1 // CONV_LAYER_INFO[1][1]         # 8
HID1 = DENSE_LAYER_INFO[0][0]                  # 64
HID2 = DENSE_LAYER_INFO[1][0]                  # 32
PRE_LIN = C2 * SIDE2 * SIDE2                   # 512
LANES0 = IN_SIDE * PAD_CH                      # 128
B_TILE = 8                                     # images per grid step


# ----------------------------------------------------------------------------
# The single fused Pallas kernel: whole forward pass for B_TILE images.
# ----------------------------------------------------------------------------
def _autoencoder_kernel(x_ref, cb14_ref, cb2q_ref, cpd_ref, sel1_ref, dup2_ref,
                        w14_ref, w23_ref, g_ref, misc_ref, emask_ref, o_ref):
    f32, bf16 = jnp.float32, jnp.bfloat16
    B = x_ref.shape[0]
    R32, R16, R8 = B * 32, B * 16, B * 8

    def mm(a, b):
        return jnp.dot(a.astype(bf16), b.astype(bf16),
                       preferred_element_type=f32)

    def relu(v):
        return jnp.maximum(v, 0.0)

    # Probe the rotate direction once so the row shifts do not depend on the
    # roll sign convention (blend of the two candidate rotations).
    probe = lax.broadcasted_iota(jnp.int32, (8, 128), 0)
    fwd = (pltpu.roll(probe, 1, 0)[0:1, 0:1] > 4).astype(f32)    # (1,1)

    def shift_down(v):      # out[r] = v[r-1]  (wraps; caller masks edge rows)
        n = v.shape[0]
        return fwd * pltpu.roll(v, 1, 0) + (1.0 - fwd) * pltpu.roll(v, n - 1, 0)

    def shift_up(v):        # out[r] = v[r+1]
        n = v.shape[0]
        return fwd * pltpu.roll(v, n - 1, 0) + (1.0 - fwd) * pltpu.roll(v, 1, 0)

    # Per-image boundary masks (precomputed host-side): 0.0 at the first/last
    # row of each image, 1.0 elsewhere.
    em = emask_ref[...]                     # (B*32, 4) f32
    nf32, nl32 = em[:, 0:1], em[:, 1:2]
    nf16, nl16 = em[0:R16, 2:3], em[0:R16, 3:4]

    misc = misc_ref[...]                    # (16, 512) f32
    bias = lambda row, w: misc[row:row + 1, 0:w]
    mgrp = misc[8:16, :]                    # (8, 512) lane-group mask

    def conv3x3(a, band_ref, base, brow, nf, nl):
        # a: (rows, W*Cin) -> (rows, W*Cout).  Column (dx) taps are folded into
        # the banded matrices; the dy=+-1 taps are sublane rolls + edge masks.
        ab = a.astype(bf16)
        acc = jnp.dot(ab, band_ref[base + 1], preferred_element_type=f32) + brow
        acc = acc + nf * shift_down(
            jnp.dot(ab, band_ref[base], preferred_element_type=f32))
        acc = acc + nl * shift_up(
            jnp.dot(ab, band_ref[base + 2], preferred_element_type=f32))
        return acc

    def maxpool2(a, rowsel, ce, co):
        ym = jnp.maximum(a, shift_up(a))        # row-pair max (valid at even rows)
        rows = mm(rowsel, ym)                   # keep even rows of each image
        return jnp.maximum(mm(rows, ce), mm(rows, co))

    def upsample2(a, rowdup, coldup):
        return mm(mm(rowdup, a), coldup)

    # ---- encoder conv: conv+relu+maxpool, conv+relu+maxpool -----------------
    a = x_ref[...].reshape(R32, 128)                                 # (B*32,128)
    a = relu(conv3x3(a, cb14_ref, 0, bias(0, 128), nf32, nl32))      # (B*32,128)
    a = maxpool2(a, sel1_ref[...], cpd_ref[3], cpd_ref[4])           # (B*16, 64)
    a = relu(conv3x3(a, cb2q_ref, 0, bias(1, 128), nf16, nl16))      # (B*16,128)
    a = maxpool2(a, cb2q_ref[3], cpd_ref[5], cpd_ref[6])             # (B*8,  64)

    # ---- dense chain (torch NCHW flatten folded into packed weights) --------
    p = mm(a, w14_ref[0])                                            # (B*8, 512)
    p = p.reshape(B, SIDE2, 512) * mgrp                              # keep y-group
    s = jnp.sum(p, axis=1)                                           # (B, 512)
    h = relu(mm(s, g_ref[...]) + bias(4, 64))                        # (B, 64)
    h = relu(mm(h, w23_ref[0]) + bias(5, 64))                        # (B, 64) [32 live]
    h = relu(mm(h, w23_ref[1]) + bias(6, 64))                        # (B, 64)
    u = relu(mm(h, w14_ref[1]) + misc[7:8, :])                       # (B, 512)
    u = jnp.broadcast_to(u[:, None, :], (B, SIDE2, 512)) * mgrp
    a = mm(u.reshape(R8, 512), g_ref[...])                           # (B*8, 64)

    # ---- decoder conv: upsample+conv+relu, upsample+conv+sigmoid ------------
    a = upsample2(a, cpd_ref[7], cb2q_ref[4])                        # (B*16,128)
    a = relu(conv3x3(a, cpd_ref, 0, bias(2, 64), nf16, nl16))        # (B*16, 64)
    a = upsample2(a, dup2_ref[...], cb2q_ref[5])                     # (B*32,128)
    z = conv3x3(a, cb14_ref, 3, bias(3, 128), nf32, nl32)            # (B*32,128)
    out = pl.reciprocal(1.0 + jnp.exp(-z), approx=True)              # sigmoid
    o_ref[...] = out.reshape(B, 32, 128)


# ----------------------------------------------------------------------------
# Parameter init (torch-style uniform bounds)
# ----------------------------------------------------------------------------
def _uniform(key, shape, bound):
    return jax.random.uniform(key, shape, jnp.float32, -bound, bound)


def init_params(key):
    params = {"enc_conv": [], "enc_lin": [], "dec_lin": [], "dec_conv": []}
    prev_c, side = IN_CH, IN_SIDE
    for (c, pool, _) in CONV_LAYER_INFO:
        key, kw, kb = jax.random.split(key, 3)
        bound = 1.0 / math.sqrt(prev_c * 9)
        params["enc_conv"].append(
            (_uniform(kw, (3, 3, prev_c, c), bound), _uniform(kb, (c,), bound)))
        prev_c = c
        if pool > 1:
            side //= pool
    pre_lin = prev_c * side * side
    prev = pre_lin
    for (hs, _) in DENSE_LAYER_INFO:
        key, kw, kb = jax.random.split(key, 3)
        bound = 1.0 / math.sqrt(prev)
        params["enc_lin"].append(
            (_uniform(kw, (prev, hs), bound), _uniform(kb, (hs,), bound)))
        prev = hs
    rev_dense = list(reversed(DENSE_LAYER_INFO))
    for i, (hs, _) in enumerate(rev_dense):
        nxt = rev_dense[i + 1][0] if i < len(rev_dense) - 1 else pre_lin
        key, kw, kb = jax.random.split(key, 3)
        bound = 1.0 / math.sqrt(hs)
        params["dec_lin"].append(
            (_uniform(kw, (hs, nxt), bound), _uniform(kb, (nxt,), bound)))
    rev_conv = list(reversed(CONV_LAYER_INFO))
    for i, (c, pool, _) in enumerate(rev_conv):
        nxt = IN_CH if i == len(rev_conv) - 1 else rev_conv[i + 1][0]
        key, kw, kb = jax.random.split(key, 3)
        bound = 1.0 / math.sqrt(c * 9)
        params["dec_conv"].append(
            (_uniform(kw, (3, 3, c, nxt), bound), _uniform(kb, (nxt,), bound)))
    return params


# ----------------------------------------------------------------------------
# One-time host-side repack of torch-style params into kernel constant slabs
# ----------------------------------------------------------------------------
def pack_params(params, b_tile=B_TILE):
    assert b_tile == 8, "constant slabs below are sized for B_TILE == 8"
    npf = lambda a: np.asarray(a, np.float32)
    (wc1, bc1), (wc2, bc2) = [(npf(w), npf(b)) for w, b in params["enc_conv"]]
    (wl1, bl1), (wl2, bl2) = [(npf(w), npf(b)) for w, b in params["enc_lin"]]
    (wl3, bl3), (wl4, bl4) = [(npf(w), npf(b)) for w, b in params["dec_lin"]]
    (wc3, bc3), (wc4, bc4) = [(npf(w), npf(b)) for w, b in params["dec_conv"]]

    def banded(w, width):     # 3x3/pad=1 conv over (rows, W*Cin) -> 3 banded mats
        _, _, cin, cout = w.shape
        band = np.zeros((3, width * cin, width * cout), np.float32)
        for dy in range(3):
            for dx in range(3):
                for x in range(width):
                    xs = x + dx - 1
                    if 0 <= xs < width:
                        band[dy, xs * cin:(xs + 1) * cin,
                             x * cout:(x + 1) * cout] = w[dy, dx]
        return band

    # Channel padding 3->4 for the first conv input and last conv output.
    wc1p = np.zeros((3, 3, PAD_CH, C1), np.float32); wc1p[:, :, :IN_CH, :] = wc1
    wc4p = np.zeros((3, 3, C1, PAD_CH), np.float32); wc4p[:, :, :, :IN_CH] = wc4
    bc4p = np.zeros((PAD_CH,), np.float32); bc4p[:IN_CH] = bc4

    cb1 = banded(wc1p, IN_SIDE)       # (3,128,128)
    cb2 = banded(wc2, SIDE1)          # (3, 64,128)
    cb3 = banded(wc3, SIDE1)          # (3,128, 64)
    cb4 = banded(wc4p, IN_SIDE)       # (3,128,128)

    def row_even(h):                  # even-row selector (h -> h//2)
        m = np.zeros((h // 2, h), np.float32)
        m[np.arange(h // 2), 2 * np.arange(h // 2)] = 1.0
        return m

    def row_dup(h):                   # nearest row duplication (h -> 2h)
        m = np.zeros((2 * h, h), np.float32)
        m[2 * np.arange(h), np.arange(h)] = 1.0
        m[2 * np.arange(h) + 1, np.arange(h)] = 1.0
        return m

    def col_pool(width, c):           # even / odd x-column selectors
        sel = np.zeros((2, width * c, (width // 2) * c), np.float32)
        for xo in range(width // 2):
            for cc in range(c):
                sel[0, (2 * xo) * c + cc, xo * c + cc] = 1.0
                sel[1, (2 * xo + 1) * c + cc, xo * c + cc] = 1.0
        return sel

    def col_dup(width, c):            # nearest x duplication (W*C -> 2W*C)
        up = np.zeros((width * c, 2 * width * c), np.float32)
        for x in range(width):
            for cc in range(c):
                up[x * c + cc, (2 * x) * c + cc] = 1.0
                up[x * c + cc, (2 * x + 1) * c + cc] = 1.0
        return up

    eyeB = np.eye(b_tile, dtype=np.float32)
    sel1 = np.kron(eyeB, row_even(IN_SIDE))   # (128, 256)
    sel2 = np.kron(eyeB, row_even(SIDE1))     # ( 64, 128)
    dup1 = np.kron(eyeB, row_dup(SIDE2))      # (128,  64)
    dup2 = np.kron(eyeB, row_dup(SIDE1))      # (256, 128)
    pc1 = col_pool(IN_SIDE, C1)               # (2,128,64)
    pc2 = col_pool(SIDE1, C2)                 # (2,128,64)
    q1 = col_dup(SIDE2, C2)                   # (64,128)
    q2 = col_dup(SIDE1, C1)                   # (64,128)

    # Dense weights with the torch NCHW flatten / unflatten order folded in.
    w1wide = np.zeros((SIDE2 * C2, SIDE2 * HID1), np.float32)   # (64, 512)
    w4wide = np.zeros((HID1, SIDE2 * SIDE2 * C2), np.float32)   # (64, 512)
    b4wide = np.zeros((SIDE2 * SIDE2 * C2,), np.float32)        # (512,)
    for y in range(SIDE2):
        for x in range(SIDE2):
            for c in range(C2):
                k = c * SIDE2 * SIDE2 + y * SIDE2 + x           # torch flat index
                w1wide[x * C2 + c, y * HID1:(y + 1) * HID1] = wl1[k, :]
                w4wide[:, y * (SIDE2 * C2) + x * C2 + c] = wl4[:, k]
                b4wide[y * (SIDE2 * C2) + x * C2 + c] = bl4[k]

    mgrp = np.kron(np.eye(SIDE2, dtype=np.float32),
                   np.ones((1, 64), np.float32))                # (8, 512)
    gmat = np.tile(np.eye(64, dtype=np.float32), (SIDE2, 1))    # (512, 64)

    w2pad = np.zeros((HID1, HID1), np.float32); w2pad[:, :HID2] = wl2
    b2pad = np.zeros((HID1,), np.float32); b2pad[:HID2] = bl2
    w3pad = np.zeros((HID1, HID1), np.float32); w3pad[:HID2, :] = wl3

    brow = lambda b, width: np.tile(b, width)
    misc = np.zeros((16, 512), np.float32)
    misc[0, :128] = brow(bc1, IN_SIDE)
    misc[1, :128] = brow(bc2, SIDE1)
    misc[2, :64] = brow(bc3, SIDE1)
    misc[3, :128] = brow(bc4p, IN_SIDE)
    misc[4, :64] = bl1
    misc[5, :64] = b2pad
    misc[6, :64] = bl3
    misc[7, :] = b4wide
    misc[8:16, :] = mgrp

    # Per-image boundary masks for the roll-based row shifts.
    emask = np.ones((b_tile * 32, 4), np.float32)
    r32 = np.arange(b_tile * 32)
    emask[:, 0] = (r32 % 32 != 0).astype(np.float32)
    emask[:, 1] = (r32 % 32 != 31).astype(np.float32)
    r16 = np.arange(b_tile * 16)
    emask[:b_tile * 16, 2] = (r16 % 16 != 0).astype(np.float32)
    emask[:b_tile * 16, 3] = (r16 % 16 != 15).astype(np.float32)

    bf = lambda a: jnp.asarray(a, jnp.bfloat16)
    return (
        bf(np.concatenate([cb1, cb4], axis=0)),                        # cb14 (6,128,128)
        bf(np.concatenate([cb2, sel2[None], q1[None], q2[None]], 0)),  # cb2q (6,64,128)
        bf(np.concatenate([cb3, pc1, pc2, dup1[None]], axis=0)),       # cpd  (8,128,64)
        bf(sel1),                                                      # (128,256)
        bf(dup2),                                                      # (256,128)
        bf(np.stack([w1wide, w4wide])),                                # (2,64,512)
        bf(np.stack([w2pad, w3pad])),                                  # (2,64,64)
        bf(gmat),                                                      # (512,64)
        jnp.asarray(misc, jnp.float32),                                # (16,512)
        jnp.asarray(emask, jnp.float32),                               # (B*32,4)
    )


# ----------------------------------------------------------------------------
# Forward pass: one pallas_call for the whole network, B_TILE images per step
# ----------------------------------------------------------------------------
def autoencoder_forward(packed, x_nchw):
    assert x_nchw.shape[1:] == (IN_CH, IN_SIDE, IN_SIDE)
    n = x_nchw.shape[0]
    n_pad = ((n + B_TILE - 1) // B_TILE) * B_TILE

    x = jnp.transpose(x_nchw, (0, 2, 3, 1))                         # NHWC
    x = jnp.pad(x, ((0, n_pad - n), (0, 0), (0, 0), (0, PAD_CH - IN_CH)))
    x = x.reshape(n_pad, IN_SIDE, LANES0).astype(jnp.float32)

    def cspec(arr):
        zeros = (0,) * arr.ndim
        return pl.BlockSpec(arr.shape, lambda i, z=zeros: z)

    in_specs = [pl.BlockSpec((B_TILE, IN_SIDE, LANES0), lambda i: (i, 0, 0))]
    in_specs += [cspec(c) for c in packed]

    cost = pl.CostEstimate(
        flops=13_000_000 * n_pad,
        transcendentals=IN_SIDE * IN_SIDE * PAD_CH * n_pad,
        bytes_accessed=2 * n_pad * IN_SIDE * LANES0 * 4 + 900_000)

    out = pl.pallas_call(
        _autoencoder_kernel,
        out_shape=jax.ShapeDtypeStruct((n_pad, IN_SIDE, LANES0), jnp.float32),
        grid_spec=pltpu.PrefetchScalarGridSpec(
            num_scalar_prefetch=0,
            grid=(n_pad // B_TILE,),
            in_specs=in_specs,
            out_specs=pl.BlockSpec((B_TILE, IN_SIDE, LANES0),
                                   lambda i: (i, 0, 0)),
        ),
        compiler_params=pltpu.CompilerParams(
            dimension_semantics=("parallel",)),
        cost_estimate=cost,
    )(x, *packed)

    out = out.reshape(n_pad, IN_SIDE, IN_SIDE, PAD_CH)[:n, :, :, :IN_CH]
    return jnp.transpose(out, (0, 3, 1, 2))


# ----------------------------------------------------------------------------
# Independent pure-JAX reference (torch semantics) for the correctness check
# ----------------------------------------------------------------------------
def reference_forward(params, x_nchw):
    hp = lax.Precision.HIGHEST
    dn = ("NHWC", "HWIO", "NHWC")
    x = jnp.transpose(x_nchw, (0, 2, 3, 1))
    for (w, b), (_, pool, _) in zip(params["enc_conv"], CONV_LAYER_INFO):
        x = lax.conv_general_dilated(x, w, (1, 1), "SAME",
                                     dimension_numbers=dn, precision=hp) + b
        x = jnp.maximum(x, 0.0)
        if pool > 1:
            n, hh, ww, c = x.shape
            x = x.reshape(n, hh // pool, pool, ww // pool, pool, c).max(axis=(2, 4))
    n, side, _, c = x.shape
    h = jnp.transpose(x, (0, 3, 1, 2)).reshape(n, c * side * side)
    for (w, b) in params["enc_lin"] + params["dec_lin"]:
        h = jnp.maximum(jnp.dot(h, w, precision=hp) + b, 0.0)
    x = jnp.transpose(h.reshape(n, c, side, side), (0, 2, 3, 1))
    rev_conv = list(reversed(CONV_LAYER_INFO))
    for i, ((w, b), (_, pool, _)) in enumerate(zip(params["dec_conv"], rev_conv)):
        if pool > 1:
            x = jnp.repeat(jnp.repeat(x, pool, axis=1), pool, axis=2)
        x = lax.conv_general_dilated(x, w, (1, 1), "SAME",
                                     dimension_numbers=dn, precision=hp) + b
        x = jax.nn.sigmoid(x) if i == len(rev_conv) - 1 else jnp.maximum(x, 0.0)
    return jnp.transpose(x, (0, 3, 1, 2))


if __name__ == "__main__":
    key = jax.random.PRNGKey(0)
    pkey, xkey = jax.random.split(key)
    params = init_params(pkey)
    packed = pack_params(params)

    n = 16                                  # -> grid of 2 steps of 8 images each
    x = jax.random.normal(xkey, (n, IN_CH, IN_SIDE, IN_SIDE), dtype=jnp.float32)

    fwd = jax.jit(autoencoder_forward)
    out = jax.block_until_ready(fwd(packed, x))

    ref = jax.block_until_ready(jax.jit(reference_forward)(params, x))

    assert out.shape == (n, IN_CH, IN_SIDE, IN_SIDE) and out.dtype == jnp.float32
    # Tolerance covers bf16 matmul inputs + approx reciprocal vs the f32 reference.
    err = float(jnp.max(jnp.abs(out - ref)))
    assert bool(jnp.allclose(out, ref, rtol=2e-2, atol=2e-2)), (
        f"Pallas vs JAX reference mismatch: max abs err = {err}")
    print("KERNEL_OK")
</pallas_src>

<mosaic_0001>
module attributes {stable_mosaic.version = 11 : i64} {
  func.func @_autoencoder_kernel(%arg0: i32, %arg1: memref<8x32x128xf32, #tpu.memory_space<vmem>>, %arg2: memref<6x128x128xbf16, #tpu.memory_space<vmem>>, %arg3: memref<6x64x128xbf16, #tpu.memory_space<vmem>>, %arg4: memref<8x128x64xbf16, #tpu.memory_space<vmem>>, %arg5: memref<128x256xbf16, #tpu.memory_space<vmem>>, %arg6: memref<256x128xbf16, #tpu.memory_space<vmem>>, %arg7: memref<2x64x512xbf16, #tpu.memory_space<vmem>>, %arg8: memref<2x64x64xbf16, #tpu.memory_space<vmem>>, %arg9: memref<512x64xbf16, #tpu.memory_space<vmem>>, %arg10: memref<16x512xf32, #tpu.memory_space<vmem>>, %arg11: memref<256x4xf32, #tpu.memory_space<vmem>>, %arg12: memref<8x32x128xf32, #tpu.memory_space<vmem>>) attributes {dimension_semantics = [#tpu.dimension_semantics<parallel>], iteration_bounds = array<i64: 2>, scalar_prefetch = 0 : i64, scratch_operands = 0 : i64, tpu.core_type = #tpu.core_type<tc>, window_params = [{transform_indices = @transform_0, window_bounds = array<i64: 8, 32, 128>}, {pipeline_mode = #tpu.pipeline_mode<synchronous>, transform_indices = @transform_1, window_bounds = array<i64: 6, 128, 128>}, {pipeline_mode = #tpu.pipeline_mode<synchronous>, transform_indices = @transform_2, window_bounds = array<i64: 6, 64, 128>}, {pipeline_mode = #tpu.pipeline_mode<synchronous>, transform_indices = @transform_3, window_bounds = array<i64: 8, 128, 64>}, {pipeline_mode = #tpu.pipeline_mode<synchronous>, transform_indices = @transform_4, window_bounds = array<i64: 128, 256>}, {pipeline_mode = #tpu.pipeline_mode<synchronous>, transform_indices = @transform_5, window_bounds = array<i64: 256, 128>}, {pipeline_mode = #tpu.pipeline_mode<synchronous>, transform_indices = @transform_6, window_bounds = array<i64: 2, 64, 512>}, {pipeline_mode = #tpu.pipeline_mode<synchronous>, transform_indices = @transform_7, window_bounds = array<i64: 2, 64, 64>}, {pipeline_mode = #tpu.pipeline_mode<synchronous>, transform_indices = @transform_8, window_bounds = array<i64: 512, 64>}, {pipeline_mode = #tpu.pipeline_mode<synchronous>, transform_indices = @transform_9, window_bounds = array<i64: 16, 512>}, {pipeline_mode = #tpu.pipeline_mode<synchronous>, transform_indices = @transform_10, window_bounds = array<i64: 256, 4>}, {transform_indices = @transform_11, window_bounds = array<i64: 8, 32, 128>}]} {
    %0 = tpu.iota {dimensions = array<i32: 0>} : vector<8x128xi32>
    %c1_i32 = arith.constant 1 : i32
    %1 = tpu.dynamic_rotate %0 by %c1_i32 dim 0 : vector<8x128xi32>, i32 -> vector<8x128xi32>
    %2 = vector.extract_strided_slice %1 {offsets = [0, 0], sizes = [1, 1], strides = [1, 1]} : vector<8x128xi32> to vector<1x1xi32>
    %c4_i32 = arith.constant 4 : i32
    %3 = vector.broadcast %c4_i32 : i32 to vector<1x1xi32>
    %4 = arith.cmpi sgt, %2, %3 : vector<1x1xi32>
    %5 = arith.extui %4 : vector<1x1xi1> to vector<1x1xi32>
    %6 = arith.sitofp %5 : vector<1x1xi32> to vector<1x1xf32>
    %c0 = arith.constant 0 : index
    %c0_0 = arith.constant 0 : index
    %7 = vector.load %arg11[%c0, %c0_0] : memref<256x4xf32, #tpu.memory_space<vmem>>, vector<256x4xf32>
    %8 = vector.extract_strided_slice %7 {offsets = [0, 0], sizes = [256, 1], strides = [1, 1]} : vector<256x4xf32> to vector<256x1xf32>
    %9 = vector.extract_strided_slice %7 {offsets = [0, 1], sizes = [256, 1], strides = [1, 1]} : vector<256x4xf32> to vector<256x1xf32>
    %10 = vector.extract_strided_slice %7 {offsets = [0, 2], sizes = [128, 1], strides = [1, 1]} : vector<256x4xf32> to vector<128x1xf32>
    %11 = vector.extract_strided_slice %7 {offsets = [0, 3], sizes = [128, 1], strides = [1, 1]} : vector<256x4xf32> to vector<128x1xf32>
    %c0_1 = arith.constant 0 : index
    %c0_2 = arith.constant 0 : index
    %12 = vector.load %arg10[%c0_1, %c0_2] : memref<16x512xf32, #tpu.memory_space<vmem>>, vector<16x512xf32>
    %13 = vector.extract_strided_slice %12 {offsets = [8, 0], sizes = [8, 512], strides = [1, 1]} : vector<16x512xf32> to vector<8x512xf32>
    %c0_3 = arith.constant 0 : index
    %c0_4 = arith.constant 0 : index
    %c0_5 = arith.constant 0 : index
    %14 = vector.load %arg1[%c0_3, %c0_4, %c0_5] : memref<8x32x128xf32, #tpu.memory_space<vmem>>, vector<8x32x128xf32>
    %15 = vector.shape_cast %14 : vector<8x32x128xf32> to vector<256x128xf32>
    %16 = vector.extract_strided_slice %12 {offsets = [0, 0], sizes = [1, 128], strides = [1, 1]} : vector<16x512xf32> to vector<1x128xf32>
    %17 = arith.truncf %15 : vector<256x128xf32> to vector<256x128xbf16>
    %c1 = arith.constant 1 : index
    %c0_6 = arith.constant 0 : index
    %c0_7 = arith.constant 0 : index
    %18 = vector.load %arg2[%c1, %c0_6, %c0_7] : memref<6x128x128xbf16, #tpu.memory_space<vmem>>, vector<1x128x128xbf16>
    %19 = vector.shape_cast %18 : vector<1x128x128xbf16> to vector<128x128xbf16>
    %cst = arith.constant dense<0.000000e+00> : vector<256x128xf32>
    %20 = tpu.matmul %17, %19, %cst {dimension_numbers = #tpu.dot_dimension_numbers<[1], [0], [0], [1], [0, 0, 1, 1], [], []>} : vector<256x128xbf16>, vector<128x128xbf16>, vector<256x128xf32> -> vector<256x128xf32>
    %21 = vector.broadcast %16 : vector<1x128xf32> to vector<256x128xf32>
    %22 = arith.addf %20, %21 : vector<256x128xf32>
    %c0_8 = arith.constant 0 : index
    %c0_9 = arith.constant 0 : index
    %c0_10 = arith.constant 0 : index
    %23 = vector.load %arg2[%c0_8, %c0_9, %c0_10] : memref<6x128x128xbf16, #tpu.memory_space<vmem>>, vector<1x128x128xbf16>
    %24 = vector.shape_cast %23 : vector<1x128x128xbf16> to vector<128x128xbf16>
    %cst_11 = arith.constant dense<0.000000e+00> : vector<256x128xf32>
    %25 = tpu.matmul %17, %24, %cst_11 {dimension_numbers = #tpu.dot_dimension_numbers<[1], [0], [0], [1], [0, 0, 1, 1], [], []>} : vector<256x128xbf16>, vector<128x128xbf16>, vector<256x128xf32> -> vector<256x128xf32>
    %c1_i32_12 = arith.constant 1 : i32
    %26 = tpu.dynamic_rotate %25 by %c1_i32_12 dim 0 : vector<256x128xf32>, i32 -> vector<256x128xf32>
    %27 = vector.broadcast %6 : vector<1x1xf32> to vector<256x128xf32>
    %28 = arith.mulf %27, %26 : vector<256x128xf32>
    %cst_13 = arith.constant 1.000000e+00 : f32
    %29 = vector.broadcast %cst_13 : f32 to vector<1x1xf32>
    %30 = arith.subf %29, %6 : vector<1x1xf32>
    %c255_i32 = arith.constant 255 : i32
    %31 = tpu.dynamic_rotate %25 by %c255_i32 dim 0 : vector<256x128xf32>, i32 -> vector<256x128xf32>
    %32 = vector.broadcast %30 : vector<1x1xf32> to vector<256x128xf32>
    %33 = arith.mulf %32, %31 : vector<256x128xf32>
    %34 = arith.addf %28, %33 : vector<256x128xf32>
    %35 = vector.broadcast %8 : vector<256x1xf32> to vector<256x128xf32>
    %36 = arith.mulf %35, %34 : vector<256x128xf32>
    %37 = arith.addf %22, %36 : vector<256x128xf32>
    %c2 = arith.constant 2 : index
    %c0_14 = arith.constant 0 : index
    %c0_15 = arith.constant 0 : index
    %38 = vector.load %arg2[%c2, %c0_14, %c0_15] : memref<6x128x128xbf16, #tpu.memory_space<vmem>>, vector<1x128x128xbf16>
    %39 = vector.shape_cast %38 : vector<1x128x128xbf16> to vector<128x128xbf16>
    %cst_16 = arith.constant dense<0.000000e+00> : vector<256x128xf32>
    %40 = tpu.matmul %17, %39, %cst_16 {dimension_numbers = #tpu.dot_dimension_numbers<[1], [0], [0], [1], [0, 0, 1, 1], [], []>} : vector<256x128xbf16>, vector<128x128xbf16>, vector<256x128xf32> -> vector<256x128xf32>
    %c255_i32_17 = arith.constant 255 : i32
    %41 = tpu.dynamic_rotate %40 by %c255_i32_17 dim 0 : vector<256x128xf32>, i32 -> vector<256x128xf32>
    %42 = vector.broadcast %6 : vector<1x1xf32> to vector<256x128xf32>
    %43 = arith.mulf %42, %41 : vector<256x128xf32>
    %cst_18 = arith.constant 1.000000e+00 : f32
    %44 = vector.broadcast %cst_18 : f32 to vector<1x1xf32>
    %45 = arith.subf %44, %6 : vector<1x1xf32>
    %c1_i32_19 = arith.constant 1 : i32
    %46 = tpu.dynamic_rotate %40 by %c1_i32_19 dim 0 : vector<256x128xf32>, i32 -> vector<256x128xf32>
    %47 = vector.broadcast %45 : vector<1x1xf32> to vector<256x128xf32>
    %48 = arith.mulf %47, %46 : vector<256x128xf32>
    %49 = arith.addf %43, %48 : vector<256x128xf32>
    %50 = vector.broadcast %9 : vector<256x1xf32> to vector<256x128xf32>
    %51 = arith.mulf %50, %49 : vector<256x128xf32>
    %52 = arith.addf %37, %51 : vector<256x128xf32>
    %cst_20 = arith.constant 0.000000e+00 : f32
    %53 = vector.broadcast %cst_20 : f32 to vector<256x128xf32>
    %54 = arith.maximumf %52, %53 : vector<256x128xf32>
    %c0_21 = arith.constant 0 : index
    %c0_22 = arith.constant 0 : index
    %55 = vector.load %arg5[%c0_21, %c0_22] : memref<128x256xbf16, #tpu.memory_space<vmem>>, vector<128x256xbf16>
    %c3 = arith.constant 3 : index
    %c0_23 = arith.constant 0 : index
    %c0_24 = arith.constant 0 : index
    %56 = vector.load %arg4[%c3, %c0_23, %c0_24] : memref<8x128x64xbf16, #tpu.memory_space<vmem>>, vector<1x128x64xbf16>
    %57 = vector.shape_cast %56 : vector<1x128x64xbf16> to vector<128x64xbf16>
    %c4 = arith.constant 4 : index
    %c0_25 = arith.constant 0 : index
    %c0_26 = arith.constant 0 : index
    %58 = vector.load %arg4[%c4, %c0_25, %c0_26] : memref<8x128x64xbf16, #tpu.memory_space<vmem>>, vector<1x128x64xbf16>
    %59 = vector.shape_cast %58 : vector<1x128x64xbf16> to vector<128x64xbf16>
    %c255_i32_27 = arith.constant 255 : i32
    %60 = tpu.dynamic_rotate %54 by %c255_i32_27 dim 0 : vector<256x128xf32>, i32 -> vector<256x128xf32>
    %61 = vector.broadcast %6 : vector<1x1xf32> to vector<256x128xf32>
    %62 = arith.mulf %61, %60 : vector<256x128xf32>
    %cst_28 = arith.constant 1.000000e+00 : f32
    %63 = vector.broadcast %cst_28 : f32 to vector<1x1xf32>
    %64 = arith.subf %63, %6 : vector<1x1xf32>
    %c1_i32_29 = arith.constant 1 : i32
    %65 = tpu.dynamic_rotate %54 by %c1_i32_29 dim 0 : vector<256x128xf32>, i32 -> vector<256x128xf32>
    %66 = vector.broadcast %64 : vector<1x1xf32> to vector<256x128xf32>
    %67 = arith.mulf %66, %65 : vector<256x128xf32>
    %68 = arith.addf %62, %67 : vector<256x128xf32>
    %69 = arith.maximumf %54, %68 : vector<256x128xf32>
    %70 = arith.truncf %69 : vector<256x128xf32> to vector<256x128xbf16>
    %cst_30 = arith.constant dense<0.000000e+00> : vector<128x128xf32>
    %71 = tpu.matmul %55, %70, %cst_30 {dimension_numbers = #tpu.dot_dimension_numbers<[1], [0], [0], [1], [0, 0, 1, 1], [], []>} : vector<128x256xbf16>, vector<256x128xbf16>, vector<128x128xf32> -> vector<128x128xf32>
    %72 = arith.truncf %71 : vector<128x128xf32> to vector<128x128xbf16>
    %cst_31 = arith.constant dense<0.000000e+00> : vector<128x64xf32>
    %73 = tpu.matmul %72, %57, %cst_31 {dimension_numbers = #tpu.dot_dimension_numbers<[1], [0], [0], [1], [0, 0, 1, 1], [], []>} : vector<128x128xbf16>, vector<128x64xbf16>, vector<128x64xf32> -> vector<128x64xf32>
    %74 = arith.truncf %71 : vector<128x128xf32> to vector<128x128xbf16>
    %cst_32 = arith.constant dense<0.000000e+00> : vector<128x64xf32>
    %75 = tpu.matmul %74, %59, %cst_32 {dimension_numbers = #tpu.dot_dimension_numbers<[1], [0], [0], [1], [0, 0, 1, 1], [], []>} : vector<128x128xbf16>, vector<128x64xbf16>, vector<128x64xf32> -> vector<128x64xf32>
    %76 = arith.maximumf %73, %75 : vector<128x64xf32>
    %77 = vector.extract_strided_slice %12 {offsets = [1, 0], sizes = [1, 128], strides = [1, 1]} : vector<16x512xf32> to vector<1x128xf32>
    %78 = arith.truncf %76 : vector<128x64xf32> to vector<128x64xbf16>
    %c1_33 = arith.constant 1 : index
    %c0_34 = arith.constant 0 : index
    %c0_35 = arith.constant 0 : index
    %79 = vector.load %arg3[%c1_33, %c0_34, %c0_35] : memref<6x64x128xbf16, #tpu.memory_space<vmem>>, vector<1x64x128xbf16>
    %80 = vector.shape_cast %79 : vector<1x64x128xbf16> to vector<64x128xbf16>
    %cst_36 = arith.constant dense<0.000000e+00> : vector<128x128xf32>
    %81 = tpu.matmul %78, %80, %cst_36 {dimension_numbers = #tpu.dot_dimension_numbers<[1], [0], [0], [1], [0, 0, 1, 1], [], []>} : vector<128x64xbf16>, vector<64x128xbf16>, vector<128x128xf32> -> vector<128x128xf32>
    %82 = vector.broadcast %77 : vector<1x128xf32> to vector<128x128xf32>
    %83 = arith.addf %81, %82 : vector<128x128xf32>
    %c0_37 = arith.constant 0 : index
    %c0_38 = arith.constant 0 : index
    %c0_39 = arith.constant 0 : index
    %84 = vector.load %arg3[%c0_37, %c0_38, %c0_39] : memref<6x64x128xbf16, #tpu.memory_space<vmem>>, vector<1x64x128xbf16>
    %85 = vector.shape_cast %84 : vector<1x64x128xbf16> to vector<64x128xbf16>
    %cst_40 = arith.constant dense<0.000000e+00> : vector<128x128xf32>
    %86 = tpu.matmul %78, %85, %cst_40 {dimension_numbers = #tpu.dot_dimension_numbers<[1], [0], [0], [1], [0, 0, 1, 1], [], []>} : vector<128x64xbf16>, vector<64x128xbf16>, vector<128x128xf32> -> vector<128x128xf32>
    %c1_i32_41 = arith.constant 1 : i32
    %87 = tpu.dynamic_rotate %86 by %c1_i32_41 dim 0 : vector<128x128xf32>, i32 -> vector<128x128xf32>
    %88 = vector.broadcast %6 : vector<1x1xf32> to vector<128x128xf32>
    %89 = arith.mulf %88, %87 : vector<128x128xf32>
    %cst_42 = arith.constant 1.000000e+00 : f32
    %90 = vector.broadcast %cst_42 : f32 to vector<1x1xf32>
    %91 = arith.subf %90, %6 : vector<1x1xf32>
    %c127_i32 = arith.constant 127 : i32
    %92 = tpu.dynamic_rotate %86 by %c127_i32 dim 0 : vector<128x128xf32>, i32 -> vector<128x128xf32>
    %93 = vector.broadcast %91 : vector<1x1xf32> to vector<128x128xf32>
    %94 = arith.mulf %93, %92 : vector<128x128xf32>
    %95 = arith.addf %89, %94 : vector<128x128xf32>
    %96 = vector.broadcast %10 : vector<128x1xf32> to vector<128x128xf32>
    %97 = arith.mulf %96, %95 : vector<128x128xf32>
    %98 = arith.addf %83, %97 : vector<128x128xf32>
    %c2_43 = arith.constant 2 : index
    %c0_44 = arith.constant 0 : index
    %c0_45 = arith.constant 0 : index
    %99 = vector.load %arg3[%c2_43, %c0_44, %c0_45] : memref<6x64x128xbf16, #tpu.memory_space<vmem>>, vector<1x64x128xbf16>
    %100 = vector.shape_cast %99 : vector<1x64x128xbf16> to vector<64x128xbf16>
    %cst_46 = arith.constant dense<0.000000e+00> : vector<128x128xf32>
    %101 = tpu.matmul %78, %100, %cst_46 {dimension_numbers = #tpu.dot_dimension_numbers<[1], [0], [0], [1], [0, 0, 1, 1], [], []>} : vector<128x64xbf16>, vector<64x128xbf16>, vector<128x128xf32> -> vector<128x128xf32>
    %c127_i32_47 = arith.constant 127 : i32
    %102 = tpu.dynamic_rotate %101 by %c127_i32_47 dim 0 : vector<128x128xf32>, i32 -> vector<128x128xf32>
    %103 = vector.broadcast %6 : vector<1x1xf32> to vector<128x128xf32>
    %104 = arith.mulf %103, %102 : vector<128x128xf32>
    %cst_48 = arith.constant 1.000000e+00 : f32
    %105 = vector.broadcast %cst_48 : f32 to vector<1x1xf32>
    %106 = arith.subf %105, %6 : vector<1x1xf32>
    %c1_i32_49 = arith.constant 1 : i32
    %107 = tpu.dynamic_rotate %101 by %c1_i32_49 dim 0 : vector<128x128xf32>, i32 -> vector<128x128xf32>
    %108 = vector.broadcast %106 : vector<1x1xf32> to vector<128x128xf32>
    %109 = arith.mulf %108, %107 : vector<128x128xf32>
    %110 = arith.addf %104, %109 : vector<128x128xf32>
    %111 = vector.broadcast %11 : vector<128x1xf32> to vector<128x128xf32>
    %112 = arith.mulf %111, %110 : vector<128x128xf32>
    %113 = arith.addf %98, %112 : vector<128x128xf32>
    %cst_50 = arith.constant 0.000000e+00 : f32
    %114 = vector.broadcast %cst_50 : f32 to vector<128x128xf32>
    %115 = arith.maximumf %113, %114 : vector<128x128xf32>
    %c3_51 = arith.constant 3 : index
    %c0_52 = arith.constant 0 : index
    %c0_53 = arith.constant 0 : index
    %116 = vector.load %arg3[%c3_51, %c0_52, %c0_53] : memref<6x64x128xbf16, #tpu.memory_space<vmem>>, vector<1x64x128xbf16>
    %117 = vector.shape_cast %116 : vector<1x64x128xbf16> to vector<64x128xbf16>
    %c5 = arith.constant 5 : index
    %c0_54 = arith.constant 0 : index
    %c0_55 = arith.constant 0 : index
    %118 = vector.load %arg4[%c5, %c0_54, %c0_55] : memref<8x128x64xbf16, #tpu.memory_space<vmem>>, vector<1x128x64xbf16>
    %119 = vector.shape_cast %118 : vector<1x128x64xbf16> to vector<128x64xbf16>
    %c6 = arith.constant 6 : index
    %c0_56 = arith.constant 0 : index
    %c0_57 = arith.constant 0 : index
    %120 = vector.load %arg4[%c6, %c0_56, %c0_57] : memref<8x128x64xbf16, #tpu.memory_space<vmem>>, vector<1x128x64xbf16>
    %121 = vector.shape_cast %120 : vector<1x128x64xbf16> to vector<128x64xbf16>
    %c127_i32_58 = arith.constant 127 : i32
    %122 = tpu.dynamic_rotate %115 by %c127_i32_58 dim 0 : vector<128x128xf32>, i32 -> vector<128x128xf32>
    %123 = vector.broadcast %6 : vector<1x1xf32> to vector<128x128xf32>
    %124 = arith.mulf %123, %122 : vector<128x128xf32>
    %cst_59 = arith.constant 1.000000e+00 : f32
    %125 = vector.broadcast %cst_59 : f32 to vector<1x1xf32>
    %126 = arith.subf %125, %6 : vector<1x1xf32>
    %c1_i32_60 = arith.constant 1 : i32
    %127 = tpu.dynamic_rotate %115 by %c1_i32_60 dim 0 : vector<128x128xf32>, i32 -> vector<128x128xf32>
    %128 = vector.broadcast %126 : vector<1x1xf32> to vector<128x128xf32>
    %129 = arith.mulf %128, %127 : vector<128x128xf32>
    %130 = arith.addf %124, %129 : vector<128x128xf32>
    %131 = arith.maximumf %115, %130 : vector<128x128xf32>
    %132 = arith.truncf %131 : vector<128x128xf32> to vector<128x128xbf16>
    %cst_61 = arith.constant dense<0.000000e+00> : vector<64x128xf32>
    %133 = tpu.matmul %117, %132, %cst_61 {dimension_numbers = #tpu.dot_dimension_numbers<[1], [0], [0], [1], [0, 0, 1, 1], [], []>} : vector<64x128xbf16>, vector<128x128xbf16>, vector<64x128xf32> -> vector<64x128xf32>
    %134 = arith.truncf %133 : vector<64x128xf32> to vector<64x128xbf16>
    %cst_62 = arith.constant dense<0.000000e+00> : vector<64x64xf32>
    %135 = tpu.matmul %134, %119, %cst_62 {dimension_numbers = #tpu.dot_dimension_numbers<[1], [0], [0], [1], [0, 0, 1, 1], [], []>} : vector<64x128xbf16>, vector<128x64xbf16>, vector<64x64xf32> -> vector<64x64xf32>
    %136 = arith.truncf %133 : vector<64x128xf32> to vector<64x128xbf16>
    %cst_63 = arith.constant dense<0.000000e+00> : vector<64x64xf32>
    %137 = tpu.matmul %136, %121, %cst_63 {dimension_numbers = #tpu.dot_dimension_numbers<[1], [0], [0], [1], [0, 0, 1, 1], [], []>} : vector<64x128xbf16>, vector<128x64xbf16>, vector<64x64xf32> -> vector<64x64xf32>
    %138 = arith.maximumf %135, %137 : vector<64x64xf32>
    %c0_64 = arith.constant 0 : index
    %c0_65 = arith.constant 0 : index
    %c0_66 = arith.constant 0 : index
    %139 = vector.load %arg7[%c0_64, %c0_65, %c0_66] : memref<2x64x512xbf16, #tpu.memory_space<vmem>>, vector<1x64x512xbf16>
    %140 = vector.shape_cast %139 : vector<1x64x512xbf16> to vector<64x512xbf16>
    %141 = arith.truncf %138 : vector<64x64xf32> to vector<64x64xbf16>
    %cst_67 = arith.constant dense<0.000000e+00> : vector<64x512xf32>
    %142 = tpu.matmul %141, %140, %cst_67 {dimension_numbers = #tpu.dot_dimension_numbers<[1], [0], [0], [1], [0, 0, 1, 1], [], []>} : vector<64x64xbf16>, vector<64x512xbf16>, vector<64x512xf32> -> vector<64x512xf32>
    %143 = vector.shape_cast %142 : vector<64x512xf32> to vector<8x8x512xf32>
    %144 = vector.shape_cast %13 : vector<8x512xf32> to vector<1x8x512xf32>
    %145 = vector.broadcast %144 : vector<1x8x512xf32> to vector<8x8x512xf32>
    %146 = arith.mulf %143, %145 : vector<8x8x512xf32>
    %cst_68 = arith.constant dense<0.000000e+00> : vector<8x512xf32>
    %147 = vector.multi_reduction <add>, %146, %cst_68 [1] : vector<8x8x512xf32> to vector<8x512xf32>
    %c0_69 = arith.constant 0 : index
    %c0_70 = arith.constant 0 : index
    %148 = vector.load %arg9[%c0_69, %c0_70] : memref<512x64xbf16, #tpu.memory_space<vmem>>, vector<512x64xbf16>
    %149 = arith.truncf %147 : vector<8x512xf32> to vector<8x512xbf16>
    %cst_71 = arith.constant dense<0.000000e+00> : vector<8x64xf32>
    %150 = tpu.matmul %149, %148, %cst_71 {dimension_numbers = #tpu.dot_dimension_numbers<[1], [0], [0], [1], [0, 0, 1, 1], [], []>} : vector<8x512xbf16>, vector<512x64xbf16>, vector<8x64xf32> -> vector<8x64xf32>
    %151 = vector.extract_strided_slice %12 {offsets = [4, 0], sizes = [1, 64], strides = [1, 1]} : vector<16x512xf32> to vector<1x64xf32>
    %152 = vector.broadcast %151 : vector<1x64xf32> to vector<8x64xf32>
    %153 = arith.addf %150, %152 : vector<8x64xf32>
    %cst_72 = arith.constant 0.000000e+00 : f32
    %154 = vector.broadcast %cst_72 : f32 to vector<8x64xf32>
    %155 = arith.maximumf %153, %154 : vector<8x64xf32>
    %c0_73 = arith.constant 0 : index
    %c0_74 = arith.constant 0 : index
    %c0_75 = arith.constant 0 : index
    %156 = vector.load %arg8[%c0_73, %c0_74, %c0_75] : memref<2x64x64xbf16, #tpu.memory_space<vmem>>, vector<1x64x64xbf16>
    %157 = vector.shape_cast %156 : vector<1x64x64xbf16> to vector<64x64xbf16>
    %158 = arith.truncf %155 : vector<8x64xf32> to vector<8x64xbf16>
    %cst_76 = arith.constant dense<0.000000e+00> : vector<8x64xf32>
    %159 = tpu.matmul %158, %157, %cst_76 {dimension_numbers = #tpu.dot_dimension_numbers<[1], [0], [0], [1], [0, 0, 1, 1], [], []>} : vector<8x64xbf16>, vector<64x64xbf16>, vector<8x64xf32> -> vector<8x64xf32>
    %160 = vector.extract_strided_slice %12 {offsets = [5, 0], sizes = [1, 64], strides = [1, 1]} : vector<16x512xf32> to vector<1x64xf32>
    %161 = vector.broadcast %160 : vector<1x64xf32> to vector<8x64xf32>
    %162 = arith.addf %159, %161 : vector<8x64xf32>
    %cst_77 = arith.constant 0.000000e+00 : f32
    %163 = vector.broadcast %cst_77 : f32 to vector<8x64xf32>
    %164 = arith.maximumf %162, %163 : vector<8x64xf32>
    %c1_78 = arith.constant 1 : index
    %c0_79 = arith.constant 0 : index
    %c0_80 = arith.constant 0 : index
    %165 = vector.load %arg8[%c1_78, %c0_79, %c0_80] : memref<2x64x64xbf16, #tpu.memory_space<vmem>>, vector<1x64x64xbf16>
    %166 = vector.shape_cast %165 : vector<1x64x64xbf16> to vector<64x64xbf16>
    %167 = arith.truncf %164 : vector<8x64xf32> to vector<8x64xbf16>
    %cst_81 = arith.constant dense<0.000000e+00> : vector<8x64xf32>
    %168 = tpu.matmul %167, %166, %cst_81 {dimension_numbers = #tpu.dot_dimension_numbers<[1], [0], [0], [1], [0, 0, 1, 1], [], []>} : vector<8x64xbf16>, vector<64x64xbf16>, vector<8x64xf32> -> vector<8x64xf32>
    %169 = vector.extract_strided_slice %12 {offsets = [6, 0], sizes = [1, 64], strides = [1, 1]} : vector<16x512xf32> to vector<1x64xf32>
    %170 = vector.broadcast %169 : vector<1x64xf32> to vector<8x64xf32>
    %171 = arith.addf %168, %170 : vector<8x64xf32>
    %cst_82 = arith.constant 0.000000e+00 : f32
    %172 = vector.broadcast %cst_82 : f32 to vector<8x64xf32>
    %173 = arith.maximumf %171, %172 : vector<8x64xf32>
    %c1_83 = arith.constant 1 : index
    %c0_84 = arith.constant 0 : index
    %c0_85 = arith.constant 0 : index
    %174 = vector.load %arg7[%c1_83, %c0_84, %c0_85] : memref<2x64x512xbf16, #tpu.memory_space<vmem>>, vector<1x64x512xbf16>
    %175 = vector.shape_cast %174 : vector<1x64x512xbf16> to vector<64x512xbf16>
    %176 = arith.truncf %173 : vector<8x64xf32> to vector<8x64xbf16>
    %cst_86 = arith.constant dense<0.000000e+00> : vector<8x512xf32>
    %177 = tpu.matmul %176, %175, %cst_86 {dimension_numbers = #tpu.dot_dimension_numbers<[1], [0], [0], [1], [0, 0, 1, 1], [], []>} : vector<8x64xbf16>, vector<64x512xbf16>, vector<8x512xf32> -> vector<8x512xf32>
    %178 = vector.extract_strided_slice %12 {offsets = [7, 0], sizes = [1, 512], strides = [1, 1]} : vector<16x512xf32> to vector<1x512xf32>
    %179 = vector.broadcast %178 : vector<1x512xf32> to vector<8x512xf32>
    %180 = arith.addf %177, %179 : vector<8x512xf32>
    %cst_87 = arith.constant 0.000000e+00 : f32
    %181 = vector.broadcast %cst_87 : f32 to vector<8x512xf32>
    %182 = arith.maximumf %180, %181 : vector<8x512xf32>
    %183 = vector.shape_cast %182 : vector<8x512xf32> to vector<8x1x512xf32>
    %184 = vector.shape_cast %183 : vector<8x1x512xf32> to vector<8x1x512xf32>
    %185 = vector.broadcast %184 : vector<8x1x512xf32> to vector<8x8x512xf32>
    %186 = vector.shape_cast %13 : vector<8x512xf32> to vector<1x8x512xf32>
    %187 = vector.broadcast %186 : vector<1x8x512xf32> to vector<8x8x512xf32>
    %188 = arith.mulf %185, %187 : vector<8x8x512xf32>
    %189 = vector.shape_cast %188 : vector<8x8x512xf32> to vector<64x512xf32>
    %c0_88 = arith.constant 0 : index
    %c0_89 = arith.constant 0 : index
    %190 = vector.load %arg9[%c0_88, %c0_89] : memref<512x64xbf16, #tpu.memory_space<vmem>>, vector<512x64xbf16>
    %191 = arith.truncf %189 : vector<64x512xf32> to vector<64x512xbf16>
    %cst_90 = arith.constant dense<0.000000e+00> : vector<64x64xf32>
    %192 = tpu.matmul %191, %190, %cst_90 {dimension_numbers = #tpu.dot_dimension_numbers<[1], [0], [0], [1], [0, 0, 1, 1], [], []>} : vector<64x512xbf16>, vector<512x64xbf16>, vector<64x64xf32> -> vector<64x64xf32>
    %c7 = arith.constant 7 : index
    %c0_91 = arith.constant 0 : index
    %c0_92 = arith.constant 0 : index
    %193 = vector.load %arg4[%c7, %c0_91, %c0_92] : memref<8x128x64xbf16, #tpu.memory_space<vmem>>, vector<1x128x64xbf16>
    %194 = vector.shape_cast %193 : vector<1x128x64xbf16> to vector<128x64xbf16>
    %c4_93 = arith.constant 4 : index
    %c0_94 = arith.constant 0 : index
    %c0_95 = arith.constant 0 : index
    %195 = vector.load %arg3[%c4_93, %c0_94, %c0_95] : memref<6x64x128xbf16, #tpu.memory_space<vmem>>, vector<1x64x128xbf16>
    %196 = vector.shape_cast %195 : vector<1x64x128xbf16> to vector<64x128xbf16>
    %197 = arith.truncf %192 : vector<64x64xf32> to vector<64x64xbf16>
    %cst_96 = arith.constant dense<0.000000e+00> : vector<128x64xf32>
    %198 = tpu.matmul %194, %197, %cst_96 {dimension_numbers = #tpu.dot_dimension_numbers<[1], [0], [0], [1], [0, 0, 1, 1], [], []>} : vector<128x64xbf16>, vector<64x64xbf16>, vector<128x64xf32> -> vector<128x64xf32>
    %199 = arith.truncf %198 : vector<128x64xf32> to vector<128x64xbf16>
    %cst_97 = arith.constant dense<0.000000e+00> : vector<128x128xf32>
    %200 = tpu.matmul %199, %196, %cst_97 {dimension_numbers = #tpu.dot_dimension_numbers<[1], [0], [0], [1], [0, 0, 1, 1], [], []>} : vector<128x64xbf16>, vector<64x128xbf16>, vector<128x128xf32> -> vector<128x128xf32>
    %201 = vector.extract_strided_slice %12 {offsets = [2, 0], sizes = [1, 64], strides = [1, 1]} : vector<16x512xf32> to vector<1x64xf32>
    %202 = arith.truncf %200 : vector<128x128xf32> to vector<128x128xbf16>
    %c1_98 = arith.constant 1 : index
    %c0_99 = arith.constant 0 : index
    %c0_100 = arith.constant 0 : index
    %203 = vector.load %arg4[%c1_98, %c0_99, %c0_100] : memref<8x128x64xbf16, #tpu.memory_space<vmem>>, vector<1x128x64xbf16>
    %204 = vector.shape_cast %203 : vector<1x128x64xbf16> to vector<128x64xbf16>
    %cst_101 = arith.constant dense<0.000000e+00> : vector<128x64xf32>
    %205 = tpu.matmul %202, %204, %cst_101 {dimension_numbers = #tpu.dot_dimension_numbers<[1], [0], [0], [1], [0, 0, 1, 1], [], []>} : vector<128x128xbf16>, vector<128x64xbf16>, vector<128x64xf32> -> vector<128x64xf32>
    %206 = vector.broadcast %201 : vector<1x64xf32> to vector<128x64xf32>
    %207 = arith.addf %205, %206 : vector<128x64xf32>
    %c0_102 = arith.constant 0 : index
    %c0_103 = arith.constant 0 : index
    %c0_104 = arith.constant 0 : index
    %208 = vector.load %arg4[%c0_102, %c0_103, %c0_104] : memref<8x128x64xbf16, #tpu.memory_space<vmem>>, vector<1x128x64xbf16>
    %209 = vector.shape_cast %208 : vector<1x128x64xbf16> to vector<128x64xbf16>
    %cst_105 = arith.constant dense<0.000000e+00> : vector<128x64xf32>
    %210 = tpu.matmul %202, %209, %cst_105 {dimension_numbers = #tpu.dot_dimension_numbers<[1], [0], [0], [1], [0, 0, 1, 1], [], []>} : vector<128x128xbf16>, vector<128x64xbf16>, vector<128x64xf32> -> vector<128x64xf32>
    %c1_i32_106 = arith.constant 1 : i32
    %211 = tpu.dynamic_rotate %210 by %c1_i32_106 dim 0 : vector<128x64xf32>, i32 -> vector<128x64xf32>
    %212 = vector.broadcast %6 : vector<1x1xf32> to vector<128x64xf32>
    %213 = arith.mulf %212, %211 : vector<128x64xf32>
    %cst_107 = arith.constant 1.000000e+00 : f32
    %214 = vector.broadcast %cst_107 : f32 to vector<1x1xf32>
    %215 = arith.subf %214, %6 : vector<1x1xf32>
    %c127_i32_108 = arith.constant 127 : i32
    %216 = tpu.dynamic_rotate %210 by %c127_i32_108 dim 0 : vector<128x64xf32>, i32 -> vector<128x64xf32>
    %217 = vector.broadcast %215 : vector<1x1xf32> to vector<128x64xf32>
    %218 = arith.mulf %217, %216 : vector<128x64xf32>
    %219 = arith.addf %213, %218 : vector<128x64xf32>
    %220 = vector.broadcast %10 : vector<128x1xf32> to vector<128x64xf32>
    %221 = arith.mulf %220, %219 : vector<128x64xf32>
    %222 = arith.addf %207, %221 : vector<128x64xf32>
    %c2_109 = arith.constant 2 : index
    %c0_110 = arith.constant 0 : index
    %c0_111 = arith.constant 0 : index
    %223 = vector.load %arg4[%c2_109, %c0_110, %c0_111] : memref<8x128x64xbf16, #tpu.memory_space<vmem>>, vector<1x128x64xbf16>
    %224 = vector.shape_cast %223 : vector<1x128x64xbf16> to vector<128x64xbf16>
    %cst_112 = arith.constant dense<0.000000e+00> : vector<128x64xf32>
    %225 = tpu.matmul %202, %224, %cst_112 {dimension_numbers = #tpu.dot_dimension_numbers<[1], [0], [0], [1], [0, 0, 1, 1], [], []>} : vector<128x128xbf16>, vector<128x64xbf16>, vector<128x64xf32> -> vector<128x64xf32>
    %c127_i32_113 = arith.constant 127 : i32
    %226 = tpu.dynamic_rotate %225 by %c127_i32_113 dim 0 : vector<128x64xf32>, i32 -> vector<128x64xf32>
    %227 = vector.broadcast %6 : vector<1x1xf32> to vector<128x64xf32>
    %228 = arith.mulf %227, %226 : vector<128x64xf32>
    %cst_114 = arith.constant 1.000000e+00 : f32
    %229 = vector.broadcast %cst_114 : f32 to vector<1x1xf32>
    %230 = arith.subf %229, %6 : vector<1x1xf32>
    %c1_i32_115 = arith.constant 1 : i32
    %231 = tpu.dynamic_rotate %225 by %c1_i32_115 dim 0 : vector<128x64xf32>, i32 -> vector<128x64xf32>
    %232 = vector.broadcast %230 : vector<1x1xf32> to vector<128x64xf32>
    %233 = arith.mulf %232, %231 : vector<128x64xf32>
    %234 = arith.addf %228, %233 : vector<128x64xf32>
    %235 = vector.broadcast %11 : vector<128x1xf32> to vector<128x64xf32>
    %236 = arith.mulf %235, %234 : vector<128x64xf32>
    %237 = arith.addf %222, %236 : vector<128x64xf32>
    %cst_116 = arith.constant 0.000000e+00 : f32
    %238 = vector.broadcast %cst_116 : f32 to vector<128x64xf32>
    %239 = arith.maximumf %237, %238 : vector<128x64xf32>
    %c0_117 = arith.constant 0 : index
    %c0_118 = arith.constant 0 : index
    %240 = vector.load %arg6[%c0_117, %c0_118] : memref<256x128xbf16, #tpu.memory_space<vmem>>, vector<256x128xbf16>
    %c5_119 = arith.constant 5 : index
    %c0_120 = arith.constant 0 : index
    %c0_121 = arith.constant 0 : index
    %241 = vector.load %arg3[%c5_119, %c0_120, %c0_121] : memref<6x64x128xbf16, #tpu.memory_space<vmem>>, vector<1x64x128xbf16>
    %242 = vector.shape_cast %241 : vector<1x64x128xbf16> to vector<64x128xbf16>
    %243 = arith.truncf %239 : vector<128x64xf32> to vector<128x64xbf16>
    %cst_122 = arith.constant dense<0.000000e+00> : vector<256x64xf32>
    %244 = tpu.matmul %240, %243, %cst_122 {dimension_numbers = #tpu.dot_dimension_numbers<[1], [0], [0], [1], [0, 0, 1, 1], [], []>} : vector<256x128xbf16>, vector<128x64xbf16>, vector<256x64xf32> -> vector<256x64xf32>
    %245 = arith.truncf %244 : vector<256x64xf32> to vector<256x64xbf16>
    %cst_123 = arith.constant dense<0.000000e+00> : vector<256x128xf32>
    %246 = tpu.matmul %245, %242, %cst_123 {dimension_numbers = #tpu.dot_dimension_numbers<[1], [0], [0], [1], [0, 0, 1, 1], [], []>} : vector<256x64xbf16>, vector<64x128xbf16>, vector<256x128xf32> -> vector<256x128xf32>
    %247 = vector.extract_strided_slice %12 {offsets = [3, 0], sizes = [1, 128], strides = [1, 1]} : vector<16x512xf32> to vector<1x128xf32>
    %248 = arith.truncf %246 : vector<256x128xf32> to vector<256x128xbf16>
    %c4_124 = arith.constant 4 : index
    %c0_125 = arith.constant 0 : index
    %c0_126 = arith.constant 0 : index
    %249 = vector.load %arg2[%c4_124, %c0_125, %c0_126] : memref<6x128x128xbf16, #tpu.memory_space<vmem>>, vector<1x128x128xbf16>
    %250 = vector.shape_cast %249 : vector<1x128x128xbf16> to vector<128x128xbf16>
    %cst_127 = arith.constant dense<0.000000e+00> : vector<256x128xf32>
    %251 = tpu.matmul %248, %250, %cst_127 {dimension_numbers = #tpu.dot_dimension_numbers<[1], [0], [0], [1], [0, 0, 1, 1], [], []>} : vector<256x128xbf16>, vector<128x128xbf16>, vector<256x128xf32> -> vector<256x128xf32>
    %252 = vector.broadcast %247 : vector<1x128xf32> to vector<256x128xf32>
    %253 = arith.addf %251, %252 : vector<256x128xf32>
    %c3_128 = arith.constant 3 : index
    %c0_129 = arith.constant 0 : index
    %c0_130 = arith.constant 0 : index
    %254 = vector.load %arg2[%c3_128, %c0_129, %c0_130] : memref<6x128x128xbf16, #tpu.memory_space<vmem>>, vector<1x128x128xbf16>
    %255 = vector.shape_cast %254 : vector<1x128x128xbf16> to vector<128x128xbf16>
    %cst_131 = arith.constant dense<0.000000e+00> : vector<256x128xf32>
    %256 = tpu.matmul %248, %255, %cst_131 {dimension_numbers = #tpu.dot_dimension_numbers<[1], [0], [0], [1], [0, 0, 1, 1], [], []>} : vector<256x128xbf16>, vector<128x128xbf16>, vector<256x128xf32> -> vector<256x128xf32>
    %c1_i32_132 = arith.constant 1 : i32
    %257 = tpu.dynamic_rotate %256 by %c1_i32_132 dim 0 : vector<256x128xf32>, i32 -> vector<256x128xf32>
    %258 = vector.broadcast %6 : vector<1x1xf32> to vector<256x128xf32>
    %259 = arith.mulf %258, %257 : vector<256x128xf32>
    %cst_133 = arith.constant 1.000000e+00 : f32
    %260 = vector.broadcast %cst_133 : f32 to vector<1x1xf32>
    %261 = arith.subf %260, %6 : vector<1x1xf32>
    %c255_i32_134 = arith.constant 255 : i32
    %262 = tpu.dynamic_rotate %256 by %c255_i32_134 dim 0 : vector<256x128xf32>, i32 -> vector<256x128xf32>
    %263 = vector.broadcast %261 : vector<1x1xf32> to vector<256x128xf32>
    %264 = arith.mulf %263, %262 : vector<256x128xf32>
    %265 = arith.addf %259, %264 : vector<256x128xf32>
    %266 = vector.broadcast %8 : vector<256x1xf32> to vector<256x128xf32>
    %267 = arith.mulf %266, %265 : vector<256x128xf32>
    %268 = arith.addf %253, %267 : vector<256x128xf32>
    %c5_135 = arith.constant 5 : index
    %c0_136 = arith.constant 0 : index
    %c0_137 = arith.constant 0 : index
    %269 = vector.load %arg2[%c5_135, %c0_136, %c0_137] : memref<6x128x128xbf16, #tpu.memory_space<vmem>>, vector<1x128x128xbf16>
    %270 = vector.shape_cast %269 : vector<1x128x128xbf16> to vector<128x128xbf16>
    %cst_138 = arith.constant dense<0.000000e+00> : vector<256x128xf32>
    %271 = tpu.matmul %248, %270, %cst_138 {dimension_numbers = #tpu.dot_dimension_numbers<[1], [0], [0], [1], [0, 0, 1, 1], [], []>} : vector<256x128xbf16>, vector<128x128xbf16>, vector<256x128xf32> -> vector<256x128xf32>
    %c255_i32_139 = arith.constant 255 : i32
    %272 = tpu.dynamic_rotate %271 by %c255_i32_139 dim 0 : vector<256x128xf32>, i32 -> vector<256x128xf32>
    %273 = vector.broadcast %6 : vector<1x1xf32> to vector<256x128xf32>
    %274 = arith.mulf %273, %272 : vector<256x128xf32>
    %cst_140 = arith.constant 1.000000e+00 : f32
    %275 = vector.broadcast %cst_140 : f32 to vector<1x1xf32>
    %276 = arith.subf %275, %6 : vector<1x1xf32>
    %c1_i32_141 = arith.constant 1 : i32
    %277 = tpu.dynamic_rotate %271 by %c1_i32_141 dim 0 : vector<256x128xf32>, i32 -> vector<256x128xf32>
    %278 = vector.broadcast %276 : vector<1x1xf32> to vector<256x128xf32>
    %279 = arith.mulf %278, %277 : vector<256x128xf32>
    %280 = arith.addf %274, %279 : vector<256x128xf32>
    %281 = vector.broadcast %9 : vector<256x1xf32> to vector<256x128xf32>
    %282 = arith.mulf %281, %280 : vector<256x128xf32>
    %283 = arith.addf %268, %282 : vector<256x128xf32>
    %cst_142 = arith.constant 0.000000e+00 : f32
    %284 = vector.broadcast %cst_142 : f32 to vector<256x128xf32>
    %285 = arith.subf %284, %283 : vector<256x128xf32>
    %286 = math.exp %285 : vector<256x128xf32>
    %cst_143 = arith.constant 1.000000e+00 : f32
    %287 = vector.broadcast %cst_143 : f32 to vector<256x128xf32>
    %288 = arith.addf %287, %286 : vector<256x128xf32>
    %289 = tpu.reciprocal %288 {approx = true} : vector<256x128xf32> -> vector<256x128xf32>
    %290 = vector.shape_cast %289 : vector<256x128xf32> to vector<8x32x128xf32>
    %c0_144 = arith.constant 0 : index
    %c0_145 = arith.constant 0 : index
    %c0_146 = arith.constant 0 : index
    %291 = vector.load %arg12[%c0_144, %c0_145, %c0_146] : memref<8x32x128xf32, #tpu.memory_space<vmem>>, vector<8x32x128xf32>
    tpu.vector_store %arg12[%c0_144, %c0_145, %c0_146], %290 {strides = array<i32>} : memref<8x32x128xf32, #tpu.memory_space<vmem>>, vector<8x32x128xf32>,
    return
  }
  func.func @transform_0(%arg0: i32) -> (i32, i32, i32) {
    %c0_i32 = arith.constant 0 : i32
    %c0_i32_0 = arith.constant 0 : i32
    %c0_i32_1 = arith.constant 0 : i32
    return %arg0, %c0_i32, %c0_i32_0 : i32, i32, i32
  }
  func.func @transform_1(%arg0: i32) -> (i32, i32, i32) {
    %c0_i32 = arith.constant 0 : i32
    %c0_i32_0 = arith.constant 0 : i32
    %c0_i32_1 = arith.constant 0 : i32
    %c0_i32_2 = arith.constant 0 : i32
    return %c0_i32, %c0_i32_0, %c0_i32_1 : i32, i32, i32
  }
  func.func @transform_2(%arg0: i32) -> (i32, i32, i32) {
    %c0_i32 = arith.constant 0 : i32
    %c0_i32_0 = arith.constant 0 : i32
    %c0_i32_1 = arith.constant 0 : i32
    %c0_i32_2 = arith.constant 0 : i32
    return %c0_i32, %c0_i32_0, %c0_i32_1 : i32, i32, i32
  }
  func.func @transform_3(%arg0: i32) -> (i32, i32, i32) {
    %c0_i32 = arith.constant 0 : i32
    %c0_i32_0 = arith.constant 0 : i32
    %c0_i32_1 = arith.constant 0 : i32
    %c0_i32_2 = arith.constant 0 : i32
    return %c0_i32, %c0_i32_0, %c0_i32_1 : i32, i32, i32
  }
  func.func @transform_4(%arg0: i32) -> (i32, i32) {
    %c0_i32 = arith.constant 0 : i32
    %c0_i32_0 = arith.constant 0 : i32
    %c0_i32_1 = arith.constant 0 : i32
    return %c0_i32, %c0_i32_0 : i32, i32
  }
  func.func @transform_5(%arg0: i32) -> (i32, i32) {
    %c0_i32 = arith.constant 0 : i32
    %c0_i32_0 = arith.constant 0 : i32
    %c0_i32_1 = arith.constant 0 : i32
    return %c0_i32, %c0_i32_0 : i32, i32
  }
  func.func @transform_6(%arg0: i32) -> (i32, i32, i32) {
    %c0_i32 = arith.constant 0 : i32
    %c0_i32_0 = arith.constant 0 : i32
    %c0_i32_1 = arith.constant 0 : i32
    %c0_i32_2 = arith.constant 0 : i32
    return %c0_i32, %c0_i32_0, %c0_i32_1 : i32, i32, i32
  }
  func.func @transform_7(%arg0: i32) -> (i32, i32, i32) {
    %c0_i32 = arith.constant 0 : i32
    %c0_i32_0 = arith.constant 0 : i32
    %c0_i32_1 = arith.constant 0 : i32
    %c0_i32_2 = arith.constant 0 : i32
    return %c0_i32, %c0_i32_0, %c0_i32_1 : i32, i32, i32
  }
  func.func @transform_8(%arg0: i32) -> (i32, i32) {
    %c0_i32 = arith.constant 0 : i32
    %c0_i32_0 = arith.constant 0 : i32
    %c0_i32_1 = arith.constant 0 : i32
    return %c0_i32, %c0_i32_0 : i32, i32
  }
  func.func @transform_9(%arg0: i32) -> (i32, i32) {
    %c0_i32 = arith.constant 0 : i32
    %c0_i32_0 = arith.constant 0 : i32
    %c0_i32_1 = arith.constant 0 : i32
    return %c0_i32, %c0_i32_0 : i32, i32
  }
  func.func @transform_10(%arg0: i32) -> (i32, i32) {
    %c0_i32 = arith.constant 0 : i32
    %c0_i32_0 = arith.constant 0 : i32
    %c0_i32_1 = arith.constant 0 : i32
    return %c0_i32, %c0_i32_0 : i32, i32
  }
  func.func @transform_11(%arg0: i32) -> (i32, i32, i32) {
    %c0_i32 = arith.constant 0 : i32
    %c0_i32_0 = arith.constant 0 : i32
    %c0_i32_1 = arith.constant 0 : i32
    return %arg0, %c0_i32, %c0_i32_0 : i32, i32, i32
  }
}

</mosaic_0001>

<llo_original>
// kernel: autoencoder_forward.1
$region0: #{autoencoder_forward.1}
  #allocation0 [shape = 'u32[]', space=smem, size = 0x4, offset = 0x4, fixed_abs, tag = 'smem constant byte address 0x4 - core index']
  #allocation1 [shape = 'u32[144,128]{1,0:T(1,128)}', space=vmem, size = 0x12000, scoped, tag = 'internal scratch']
  %s0 = inlined_call_operand.vmem [shape: f32[16,32,128], index: 0, kind: input, shape index: {}]
  %s1 = inlined_call_operand.vmem [shape: bf16[6,128,128], index: 1, kind: input, shape index: {}]
  %s2 = inlined_call_operand.vmem [shape: bf16[6,64,128], index: 2, kind: input, shape index: {}]
  %s3 = inlined_call_operand.vmem [shape: bf16[8,128,64], index: 3, kind: input, shape index: {}]
  %s4 = inlined_call_operand.vmem [shape: bf16[128,256], index: 4, kind: input, shape index: {}]
  %s5 = inlined_call_operand.vmem [shape: bf16[256,128], index: 5, kind: input, shape index: {}]
  %s6 = inlined_call_operand.vmem [shape: bf16[2,64,512], index: 6, kind: input, shape index: {}]
  %s7 = inlined_call_operand.vmem [shape: bf16[2,64,64], index: 7, kind: input, shape index: {}]
  %s8 = inlined_call_operand.vmem [shape: bf16[512,64], index: 8, kind: input, shape index: {}]
  %s9 = inlined_call_operand.vmem [shape: f32[16,512], index: 9, kind: input, shape index: {}]
  %s10 = inlined_call_operand.vmem [shape: f32[256,4], index: 10, kind: input, shape index: {}]
  %s11 = inlined_call_operand.vmem [shape: f32[16,32,128], index: 11, kind: output, shape index: {}]
  %s12 = sld [smem:[#allocation0]]
  $region77: #{autoencoder_forward.1} parent=0
    _
  %s14 = ssub.s32 1, %s12
  %s15 = scalar_select 0, %s14, %s12
  loop: start=0, step=1, limit=4
  $region2: #{autoencoder_forward.1} parent=0 // loop_pre_header
    _
  $region3: #{autoencoder_forward.1} parent=0 // loop_header
    %s17 = sphi 0, %s21
    %p18 = scmp.ge.s32.totalorder %s17, 4
    %s27 = sphi 0, %s29
    %s30 = sphi 0, %s27
    %s31 = sphi 0, %s30
    %s47 = sphi 0, %s31
    %s51 = sphi 0, %s51
    %s53 = sphi 0, %s51
    %s54 = sphi 0, %s53
    %s68 = sphi 0, %s54
    %s72 = sphi 0, %s72
    %s74 = sphi 0, %s72
    %s75 = sphi 0, %s74
    %s89 = sphi 0, %s75
    %s93 = sphi 0, %s93
    %s95 = sphi 0, %s93
    %s96 = sphi 0, %s95
    %s110 = sphi 0, %s96
    %s114 = sphi 0, %s114
    %s116 = sphi 0, %s114
    %s117 = sphi 0, %s116
    %s131 = sphi 0, %s117
    %s135 = sphi 0, %s135
    %s137 = sphi 0, %s135
    %s138 = sphi 0, %s137
    %s152 = sphi 0, %s138
    %s156 = sphi 0, %s156
    %s158 = sphi 0, %s156
    %s159 = sphi 0, %s158
    %s173 = sphi 0, %s159
    %s177 = sphi 0, %s177
    %s179 = sphi 0, %s177
    %s180 = sphi 0, %s179
    %s194 = sphi 0, %s180
    %s198 = sphi 0, %s198
    %s200 = sphi 0, %s198
    %s201 = sphi 0, %s200
    %s215 = sphi 0, %s201
    %s219 = sphi 0, %s219
    %s221 = sphi 0, %s219
    %s222 = sphi 0, %s221
    %s236 = sphi 0, %s222
    %s240 = sphi 0, %s240
    %s242 = sphi 0, %s240
    %s243 = sphi 0, %s242
    %s257 = sphi 0, %s243
    %s263 = sphi 0, %s265
    %s266 = sphi 0, %s263
    %s267 = sphi 0, %s266
    %s283 = sphi 0, %s267
  $region4: #{autoencoder_forward.1} parent=0 // loop_header_branch
    %20 = sbr.rel (%p18) target = $region8
  $region5: #{autoencoder_forward.1} parent=0 // loop_body
    %s22 = ssub.s32 %s17, 1
    %s23 = ssub.s32 %s17, 2
    %s24 = sadd.s32 %s17, 1
    %s25 = ssub.s32 %s17, %s24
    %p26 = scmp.eq.s32.totalorder %s25, 0
    %s28 = sadd.s32 %s27, 1
    %s29 = scalar_select %p26, %s27, %s28
    %p32 = pneg %p26
    %p33 = scmp.eq.s32.totalorder %s17, 1
    %p34 = por %p32, %p33
    %p35 = scmp.ne.s32.totalorder %s27, %s30
    %p36 = scmp.eq.s32.totalorder %s17, 0
    %p37 = por %p35, %p36
    %p38 = scmp.ne.s32.totalorder %s27, %s30
    %p39 = scmp.eq.s32.totalorder %s22, 1
    %p40 = por %p38, %p39
    %p41 = scmp.ne.s32.totalorder %s30, %s31
    %p42 = scmp.eq.s32.totalorder %s22, 0
    %p43 = por %p41, %p42
    %p44 = scmp.ne.s32.totalorder %s30, %s31
    %p45 = scmp.eq.s32.totalorder %s23, 1
    %p46 = por %p44, %p45
    %p48 = scmp.ne.s32.totalorder %s31, %s47
    %p49 = scmp.eq.s32.totalorder %s23, 0
    %p50 = por %p48, %p49
    %s52 = sadd.s32 %s51, 1
    %p55 = scmp.eq.s32.totalorder %s17, 1
    %p56 = scmp.ne.s32.totalorder %s51, %s53
    %p57 = scmp.eq.s32.totalorder %s17, 0
    %p58 = por %p56, %p57
    %p59 = scmp.ne.s32.totalorder %s51, %s53
    %p60 = scmp.eq.s32.totalorder %s22, 1
    %p61 = por %p59, %p60
    %p62 = scmp.ne.s32.totalorder %s53, %s54
    %p63 = scmp.eq.s32.totalorder %s22, 0
    %p64 = por %p62, %p63
    %p65 = scmp.ne.s32.totalorder %s53, %s54
    %p66 = scmp.eq.s32.totalorder %s23, 1
    %p67 = por %p65, %p66
    %p69 = scmp.ne.s32.totalorder %s54, %s68
    %p70 = scmp.eq.s32.totalorder %s23, 0
    %p71 = por %p69, %p70
    %s73 = sadd.s32 %s72, 1
    %p76 = scmp.eq.s32.totalorder %s17, 1
    %p77 = scmp.ne.s32.totalorder %s72, %s74
    %p78 = scmp.eq.s32.totalorder %s17, 0
    %p79 = por %p77, %p78
    %p80 = scmp.ne.s32.totalorder %s72, %s74
    %p81 = scmp.eq.s32.totalorder %s22, 1
    %p82 = por %p80, %p81
    %p83 = scmp.ne.s32.totalorder %s74, %s75
    %p84 = scmp.eq.s32.totalorder %s22, 0
    %p85 = por %p83, %p84
    %p86 = scmp.ne.s32.totalorder %s74, %s75
    %p87 = scmp.eq.s32.totalorder %s23, 1
    %p88 = por %p86, %p87
    %p90 = scmp.ne.s32.totalorder %s75, %s89
    %p91 = scmp.eq.s32.totalorder %s23, 0
    %p92 = por %p90, %p91
    %s94 = sadd.s32 %s93, 1
    %p97 = scmp.eq.s32.totalorder %s17, 1
    %p98 = scmp.ne.s32.totalorder %s93, %s95
    %p99 = scmp.eq.s32.totalorder %s17, 0
    %p100 = por %p98, %p99
    %p101 = scmp.ne.s32.totalorder %s93, %s95
    %p102 = scmp.eq.s32.totalorder %s22, 1
    %p103 = por %p101, %p102
    %p104 = scmp.ne.s32.totalorder %s95, %s96
    %p105 = scmp.eq.s32.totalorder %s22, 0
    %p106 = por %p104, %p105
    %p107 = scmp.ne.s32.totalorder %s95, %s96
    %p108 = scmp.eq.s32.totalorder %s23, 1
    %p109 = por %p107, %p108
    %p111 = scmp.ne.s32.totalorder %s96, %s110
    %p112 = scmp.eq.s32.totalorder %s23, 0
    %p113 = por %p111, %p112
    %s115 = sadd.s32 %s114, 1
    %p118 = scmp.eq.s32.totalorder %s17, 1
    %p119 = scmp.ne.s32.totalorder %s114, %s116
    %p120 = scmp.eq.s32.totalorder %s17, 0
    %p121 = por %p119, %p120
    %p122 = scmp.ne.s32.totalorder %s114, %s116
    %p123 = scmp.eq.s32.totalorder %s22, 1
    %p124 = por %p122, %p123
    %p125 = scmp.ne.s32.totalorder %s116, %s117
    %p126 = scmp.eq.s32.totalorder %s22, 0
    %p127 = por %p125, %p126
    %p128 = scmp.ne.s32.totalorder %s116, %s117
    %p129 = scmp.eq.s32.totalorder %s23, 1
    %p130 = por %p128, %p129
    %p132 = scmp.ne.s32.totalorder %s117, %s131
    %p133 = scmp.eq.s32.totalorder %s23, 0
    %p134 = por %p132, %p133
    %s136 = sadd.s32 %s135, 1
    %p139 = scmp.eq.s32.totalorder %s17, 1
    %p140 = scmp.ne.s32.totalorder %s135, %s137
    %p141 = scmp.eq.s32.totalorder %s17, 0
    %p142 = por %p140, %p141
    %p143 = scmp.ne.s32.totalorder %s135, %s137
    %p144 = scmp.eq.s32.totalorder %s22, 1
    %p145 = por %p143, %p144
    %p146 = scmp.ne.s32.totalorder %s137, %s138
    %p147 = scmp.eq.s32.totalorder %s22, 0
    %p148 = por %p146, %p147
    %p149 = scmp.ne.s32.totalorder %s137, %s138
    %p150 = scmp.eq.s32.totalorder %s23, 1
    %p151 = por %p149, %p150
    %p153 = scmp.ne.s32.totalorder %s138, %s152
    %p154 = scmp.eq.s32.totalorder %s23, 0
    %p155 = por %p153, %p154
    %s157 = sadd.s32 %s156, 1
    %p160 = scmp.eq.s32.totalorder %s17, 1
    %p161 = scmp.ne.s32.totalorder %s156, %s158
    %p162 = scmp.eq.s32.totalorder %s17, 0
    %p163 = por %p161, %p162
    %p164 = scmp.ne.s32.totalorder %s156, %s158
    %p165 = scmp.eq.s32.totalorder %s22, 1
    %p166 = por %p164, %p165
    %p167 = scmp.ne.s32.totalorder %s158, %s159
    %p168 = scmp.eq.s32.totalorder %s22, 0
    %p169 = por %p167, %p168
    %p170 = scmp.ne.s32.totalorder %s158, %s159
    %p171 = scmp.eq.s32.totalorder %s23, 1
    %p172 = por %p170, %p171
    %p174 = scmp.ne.s32.totalorder %s159, %s173
    %p175 = scmp.eq.s32.totalorder %s23, 0
    %p176 = por %p174, %p175
    %s178 = sadd.s32 %s177, 1
    %p181 = scmp.eq.s32.totalorder %s17, 1
    %p182 = scmp.ne.s32.totalorder %s177, %s179
    %p183 = scmp.eq.s32.totalorder %s17, 0
    %p184 = por %p182, %p183
    %p185 = scmp.ne.s32.totalorder %s177, %s179
    %p186 = scmp.eq.s32.totalorder %s22, 1
    %p187 = por %p185, %p186
    %p188 = scmp.ne.s32.totalorder %s179, %s180
    %p189 = scmp.eq.s32.totalorder %s22, 0
    %p190 = por %p188, %p189
    %p191 = scmp.ne.s32.totalorder %s179, %s180
    %p192 = scmp.eq.s32.totalorder %s23, 1
    %p193 = por %p191, %p192
    %p195 = scmp.ne.s32.totalorder %s180, %s194
    %p196 = scmp.eq.s32.totalorder %s23, 0
    %p197 = por %p195, %p196
    %s199 = sadd.s32 %s198, 1
    %p202 = scmp.eq.s32.totalorder %s17, 1
    %p203 = scmp.ne.s32.totalorder %s198, %s200
    %p204 = scmp.eq.s32.totalorder %s17, 0
    %p205 = por %p203, %p204
    %p206 = scmp.ne.s32.totalorder %s198, %s200
    %p207 = scmp.eq.s32.totalorder %s22, 1
    %p208 = por %p206, %p207
    %p209 = scmp.ne.s32.totalorder %s200, %s201
    %p210 = scmp.eq.s32.totalorder %s22, 0
    %p211 = por %p209, %p210
    %p212 = scmp.ne.s32.totalorder %s200, %s201
    %p213 = scmp.eq.s32.totalorder %s23, 1
    %p214 = por %p212, %p213
    %p216 = scmp.ne.s32.totalorder %s201, %s215
    %p217 = scmp.eq.s32.totalorder %s23, 0
    %p218 = por %p216, %p217
    %s220 = sadd.s32 %s219, 1
    %p223 = scmp.eq.s32.totalorder %s17, 1
    %p224 = scmp.ne.s32.totalorder %s219, %s221
    %p225 = scmp.eq.s32.totalorder %s17, 0
    %p226 = por %p224, %p225
    %p227 = scmp.ne.s32.totalorder %s219, %s221
    %p228 = scmp.eq.s32.totalorder %s22, 1
    %p229 = por %p227, %p228
    %p230 = scmp.ne.s32.totalorder %s221, %s222
    %p231 = scmp.eq.s32.totalorder %s22, 0
    %p232 = por %p230, %p231
    %p233 = scmp.ne.s32.totalorder %s221, %s222
    %p234 = scmp.eq.s32.totalorder %s23, 1
    %p235 = por %p233, %p234
    %p237 = scmp.ne.s32.totalorder %s222, %s236
    %p238 = scmp.eq.s32.totalorder %s23, 0
    %p239 = por %p237, %p238
    %s241 = sadd.s32 %s240, 1
    %p244 = scmp.eq.s32.totalorder %s17, 1
    %p245 = scmp.ne.s32.totalorder %s240, %s242
    %p246 = scmp.eq.s32.totalorder %s17, 0
    %p247 = por %p245, %p246
    %p248 = scmp.ne.s32.totalorder %s240, %s242
    %p249 = scmp.eq.s32.totalorder %s22, 1
    %p250 = por %p248, %p249
    %p251 = scmp.ne.s32.totalorder %s242, %s243
    %p252 = scmp.eq.s32.totalorder %s22, 0
    %p253 = por %p251, %p252
    %p254 = scmp.ne.s32.totalorder %s242, %s243
    %p255 = scmp.eq.s32.totalorder %s23, 1
    %p256 = por %p254, %p255
    %p258 = scmp.ne.s32.totalorder %s243, %s257
    %p259 = scmp.eq.s32.totalorder %s23, 0
    %p260 = por %p258, %p259
    %s261 = ssub.s32 %s17, %s24
    %p262 = scmp.eq.s32.totalorder %s261, 0
    %s264 = sadd.s32 %s263, 1
    %s265 = scalar_select %p262, %s263, %s264
    %p268 = pneg %p262
    %p269 = scmp.eq.s32.totalorder %s17, 1
    %p270 = por %p268, %p269
    %p271 = scmp.ne.s32.totalorder %s263, %s266
    %p272 = scmp.eq.s32.totalorder %s17, 0
    %p273 = por %p271, %p272
    %p274 = scmp.ne.s32.totalorder %s263, %s266
    %p275 = scmp.eq.s32.totalorder %s22, 1
    %p276 = por %p274, %p275
    %p277 = scmp.ne.s32.totalorder %s266, %s267
    %p278 = scmp.eq.s32.totalorder %s22, 0
    %p279 = por %p277, %p278
    %p280 = scmp.ne.s32.totalorder %s266, %s267
    %p281 = scmp.eq.s32.totalorder %s23, 1
    %p282 = por %p280, %p281
    %p284 = scmp.ne.s32.totalorder %s267, %s283
    %p285 = scmp.eq.s32.totalorder %s23, 0
    %p286 = por %p284, %p285
    %p287 = scmp.le.s32.totalorder 1, %s17
    %p288 = scmp.lt.s32.totalorder %s17, 3
    %p289 = pnand %p287, %p288
    %p290 = pneg %p289
    // Predicated region
    $region9: #{autoencoder_forward.1} parent=5 // pred_check
      _
    $region10: #{autoencoder_forward.1} parent=5 // pred_check_branch
      %292 = sbr.rel (%p289) target = $region12
    $region11: #{autoencoder_forward.1} parent=5 // pred_region
      %s293 = ssub.s32 %s17, 1
      // Predicated region
      $region13: #{autoencoder_forward.1} parent=11 // pred_check
        %p294 = pneg %p64
      $region14: #{autoencoder_forward.1} parent=11 // pred_check_branch
        %296 = sbr.rel (%p294) target = $region16
      $region15: #{autoencoder_forward.1} parent=11 // pred_region
        _
      $region16: #{autoencoder_forward.1} parent=11 // pred_fallthru
        _
      // Predicated region
      $region17: #{autoencoder_forward.1} parent=11 // pred_check
        %p297 = pneg %p85
      $region18: #{autoencoder_forward.1} parent=11 // pred_check_branch
        %299 = sbr.rel (%p297) target = $region20
      $region19: #{autoencoder_forward.1} parent=11 // pred_region
        _
      $region20: #{autoencoder_forward.1} parent=11 // pred_fallthru
        _
      // Predicated region
      $region21: #{autoencoder_forward.1} parent=11 // pred_check
        %p300 = pneg %p106
      $region22: #{autoencoder_forward.1} parent=11 // pred_check_branch
        %302 = sbr.rel (%p300) target = $region24
      $region23: #{autoencoder_forward.1} parent=11 // pred_region
        _
      $region24: #{autoencoder_forward.1} parent=11 // pred_fallthru
        _
      // Predicated region
      $region25: #{autoencoder_forward.1} parent=11 // pred_check
        %p303 = pneg %p127
      $region26: #{autoencoder_forward.1} parent=11 // pred_check_branch
        %305 = sbr.rel (%p303) target = $region28
      $region27: #{autoencoder_forward.1} parent=11 // pred_region
        _
      $region28: #{autoencoder_forward.1} parent=11 // pred_fallthru
        _
      // Predicated region
      $region29: #{autoencoder_forward.1} parent=11 // pred_check
        %p306 = pneg %p148
      $region30: #{autoencoder_forward.1} parent=11 // pred_check_branch
        %308 = sbr.rel (%p306) target = $region32
      $region31: #{autoencoder_forward.1} parent=11 // pred_region
        _
      $region32: #{autoencoder_forward.1} parent=11 // pred_fallthru
        _
      // Predicated region
      $region33: #{autoencoder_forward.1} parent=11 // pred_check
        %p309 = pneg %p169
      $region34: #{autoencoder_forward.1} parent=11 // pred_check_branch
        %311 = sbr.rel (%p309) target = $region36
      $region35: #{autoencoder_forward.1} parent=11 // pred_region
        _
      $region36: #{autoencoder_forward.1} parent=11 // pred_fallthru
        _
      // Predicated region
      $region37: #{autoencoder_forward.1} parent=11 // pred_check
        %p312 = pneg %p190
      $region38: #{autoencoder_forward.1} parent=11 // pred_check_branch
        %314 = sbr.rel (%p312) target = $region40
      $region39: #{autoencoder_forward.1} parent=11 // pred_region
        _
      $region40: #{autoencoder_forward.1} parent=11 // pred_fallthru
        _
      // Predicated region
      $region41: #{autoencoder_forward.1} parent=11 // pred_check
        %p315 = pneg %p211
      $region42: #{autoencoder_forward.1} parent=11 // pred_check_branch
        %317 = sbr.rel (%p315) target = $region44
      $region43: #{autoencoder_forward.1} parent=11 // pred_region
        _
      $region44: #{autoencoder_forward.1} parent=11 // pred_fallthru
        _
      // Predicated region
      $region45: #{autoencoder_forward.1} parent=11 // pred_check
        %p318 = pneg %p232
      $region46: #{autoencoder_forward.1} parent=11 // pred_check_branch
        %320 = sbr.rel (%p318) target = $region48
      $region47: #{autoencoder_forward.1} parent=11 // pred_region
        _
      $region48: #{autoencoder_forward.1} parent=11 // pred_fallthru
        _
      // Predicated region
      $region49: #{autoencoder_forward.1} parent=11 // pred_check
        %p321 = pneg %p253
      $region50: #{autoencoder_forward.1} parent=11 // pred_check_branch
        %323 = sbr.rel (%p321) target = $region52
      $region51: #{autoencoder_forward.1} parent=11 // pred_region
        _
      $region52: #{autoencoder_forward.1} parent=11 // pred_fallthru
        _
    $region12: #{autoencoder_forward.1} parent=5 // pred_fallthru
      _
    %p324 = scmp.lt.s32.totalorder %s17, 2
    // Predicated region
    $region53: #{autoencoder_forward.1} parent=5 // pred_check
      %p325 = pneg %p324
    $region54: #{autoencoder_forward.1} parent=5 // pred_check_branch
      %327 = sbr.rel (%p325) target = $region56
    $region55: #{autoencoder_forward.1} parent=5 // pred_region
      // Predicated region
      $region57: #{autoencoder_forward.1} parent=55 // pred_check
        %p328 = pneg %p37
      $region58: #{autoencoder_forward.1} parent=55 // pred_check_branch
        %330 = sbr.rel (%p328) target = $region60
      $region59: #{autoencoder_forward.1} parent=55 // pred_region
        %s331 = smul.u32 8, %s17
        %p332 = scmp.lt.s32.totalorder %s331, 15
        %s333 = scalar_select %p332, %s331, 15
        %s334 = smul.addr %s333, 4
        %s335 = smul.addr %s334, 8
        %s336 = scalar_lea.vmem %s0, %s335
        %s337 = smul.u32 8, %s17
      $region60: #{autoencoder_forward.1} parent=55 // pred_fallthru
        _
    $region56: #{autoencoder_forward.1} parent=5 // pred_fallthru
      _
    %p338 = scmp.le.s32.totalorder 1, %s17
    %p339 = scmp.lt.s32.totalorder %s17, 3
    %p340 = pnand %p338, %p339
    %p341 = pneg %p340
    // Predicated region
    $region61: #{autoencoder_forward.1} parent=5 // pred_check
      _
    $region62: #{autoencoder_forward.1} parent=5 // pred_check_branch
      %343 = sbr.rel (%p340) target = $region64
    $region63: #{autoencoder_forward.1} parent=5 // pred_region
      %s344 = ssub.s32 %s17, 1
      %s345 = smul.u32 8, %s22
      %p346 = scmp.lt.s32.totalorder %s345, 15
      %s347 = scalar_select %p346, %s345, 15
      %s348 = smul.addr %s347, 4
      %s349 = smul.addr %s348, 8
      %s350 = scalar_lea.vmem %s0, %s349
      %p351 = pneg %p43
      %p352 = pneg %p40
      %p353 = pneg %p64
      %p354 = pneg %p61
      %p355 = pneg %p85
      %p356 = pneg %p82
      %p357 = pneg %p106
      %p358 = pneg %p103
      %p359 = pneg %p127
      %p360 = pneg %p124
      %p361 = pneg %p148
      %p362 = pneg %p145
      %p363 = pneg %p169
      %p364 = pneg %p166
      %p365 = pneg %p190
      %p366 = pneg %p187
      %p367 = pneg %p211
      %p368 = pneg %p208
      %p369 = pneg %p232
      %p370 = pneg %p229
      %p371 = pneg %p253
      %p372 = pneg %p250
      %p373 = pneg %p279
      %p374 = pneg %p276
      %s375 = smul.u32 8, %s22
      %p376 = scmp.lt.s32.totalorder %s375, 15
      %s377 = scalar_select %p376, %s375, 15
      %s378 = smul.addr %s377, 4
      %s379 = smul.addr %s378, 8
      %s380 = scalar_lea.vmem %s11, %s379
      %s381 = smul.u32 8, %s22
      %p382 = scmp.lt.s32.totalorder %s381, 15
      %s383 = scalar_select %p382, %s381, 15
      %s384 = smul.addr %s383, 4
      %s385 = smul.addr %s384, 8
      %s386 = scalar_lea.vmem %s0, %s385
      %s387 = smul.u32 8, %s22
      %s388 = smul.u32 8, %s22
      %p389 = scmp.lt.s32.totalorder %s388, 15
      %s390 = scalar_select %p389, %s388, 15
      %s391 = smul.addr %s390, 4
      %s392 = smul.addr %s391, 8
      %s393 = scalar_lea.vmem %s11, %s392
      %s394 = smul.u32 8, %s22
      %v396 = vlaneseq
      %v397 = vshrl.u32 %v396, 7
      %v398 = vrot.slane %v397, 7
      %vm399 = vcmp.gt.s32.totalorder %v398, 4
      %v400 = vsel %vm399, 1, 0
      %v401 = vcvt.s32.f32 %v400
      %v402 = vld [vmem:[%s10] sm:$0xff]
      %v403 = vld [vmem:[%s10 + $0x8] sm:$0xff]
      %v404 = vld [vmem:[%s10 + $0x10] sm:$0xff]
      %v405 = vld [vmem:[%s10 + $0x18] sm:$0xff]
      %v406 = vld [vmem:[%s10 + $0x20] sm:$0xff]
      %v407 = vld [vmem:[%s10 + $0x28] sm:$0xff]
      %v408 = vld [vmem:[%s10 + $0x30] sm:$0xff]
      %v409 = vld [vmem:[%s10 + $0x38] sm:$0xff]
      %v410 = vld [vmem:[%s10 + $0x40] sm:$0xff]
      %v411 = vld [vmem:[%s10 + $0x48] sm:$0xff]
      %v412 = vld [vmem:[%s10 + $0x50] sm:$0xff]
      %v413 = vld [vmem:[%s10 + $0x58] sm:$0xff]
      %v414 = vld [vmem:[%s10 + $0x60] sm:$0xff]
      %v415 = vld [vmem:[%s10 + $0x68] sm:$0xff]
      %v416 = vld [vmem:[%s10 + $0x70] sm:$0xff]
      %v417 = vld [vmem:[%s10 + $0x78] sm:$0xff]
      %v418 = vld [vmem:[%s10 + $0x80] sm:$0xff]
      %v419 = vld [vmem:[%s10 + $0x88] sm:$0xff]
      %v420 = vld [vmem:[%s10 + $0x90] sm:$0xff]
      %v421 = vld [vmem:[%s10 + $0x98] sm:$0xff]
      %v422 = vld [vmem:[%s10 + $0xa0] sm:$0xff]
      %v423 = vld [vmem:[%s10 + $0xa8] sm:$0xff]
      %v424 = vld [vmem:[%s10 + $0xb0] sm:$0xff]
      %v425 = vld [vmem:[%s10 + $0xb8] sm:$0xff]
      %v426 = vld [vmem:[%s10 + $0xc0] sm:$0xff]
      %v427 = vld [vmem:[%s10 + $0xc8] sm:$0xff]
      %v428 = vld [vmem:[%s10 + $0xd0] sm:$0xff]
      %v429 = vld [vmem:[%s10 + $0xd8] sm:$0xff]
      %v430 = vld [vmem:[%s10 + $0xe0] sm:$0xff]
      %v431 = vld [vmem:[%s10 + $0xe8] sm:$0xff]
      %v432 = vld [vmem:[%s10 + $0xf0] sm:$0xff]
      %v433 = vld [vmem:[%s10 + $0xf8] sm:$0xff]
      %v434 = vld [vmem:[%s9] sm:$0xff]
      %v435 = vld [vmem:[%s9 + $0x8] sm:$0xff]
      %v436 = vld [vmem:[%s9 + $0x10] sm:$0xff]
      %v437 = vld [vmem:[%s9 + $0x18] sm:$0xff]
      %v438 = vld [vmem:[%s9 + $0x20] sm:$0xff]
      %v439 = vld [vmem:[%s9 + $0x28] sm:$0xff]
      %v440 = vld [vmem:[%s9 + $0x30] sm:$0xff]
      %v441 = vld [vmem:[%s9 + $0x38] sm:$0xff]
      %v442 = vld [vmem:[%s386] sm:$0xff]
      %v443 = vld [vmem:[%s386 + $0x8] sm:$0xff]
      %v444 = vld [vmem:[%s386 + $0x10] sm:$0xff]
      %v445 = vld [vmem:[%s386 + $0x18] sm:$0xff]
      %v446 = vld [vmem:[%s386 + $0x20] sm:$0xff]
      %v447 = vld [vmem:[%s386 + $0x28] sm:$0xff]
      %v448 = vld [vmem:[%s386 + $0x30] sm:$0xff]
      %v449 = vld [vmem:[%s386 + $0x38] sm:$0xff]
      %v450 = vld [vmem:[%s386 + $0x40] sm:$0xff]
      %v451 = vld [vmem:[%s386 + $0x48] sm:$0xff]
      %v452 = vld [vmem:[%s386 + $0x50] sm:$0xff]
      %v453 = vld [vmem:[%s386 + $0x58] sm:$0xff]
      %v454 = vld [vmem:[%s386 + $0x60] sm:$0xff]
      %v455 = vld [vmem:[%s386 + $0x68] sm:$0xff]
      %v456 = vld [vmem:[%s386 + $0x70] sm:$0xff]
      %v457 = vld [vmem:[%s386 + $0x78] sm:$0xff]
      %v458 = vld [vmem:[%s386 + $0x80] sm:$0xff]
      %v459 = vld [vmem:[%s386 + $0x88] sm:$0xff]
      %v460 = vld [vmem:[%s386 + $0x90] sm:$0xff]
      %v461 = vld [vmem:[%s386 + $0x98] sm:$0xff]
      %v462 = vld [vmem:[%s386 + $0xa0] sm:$0xff]
      %v463 = vld [vmem:[%s386 + $0xa8] sm:$0xff]
      %v464 = vld [vmem:[%s386 + $0xb0] sm:$0xff]
      %v465 = vld [vmem:[%s386 + $0xb8] sm:$0xff]
      %v466 = vld [vmem:[%s386 + $0xc0] sm:$0xff]
      %v467 = vld [vmem:[%s386 + $0xc8] sm:$0xff]
      %v468 = vld [vmem:[%s386 + $0xd0] sm:$0xff]
      %v469 = vld [vmem:[%s386 + $0xd8] sm:$0xff]
      %v470 = vld [vmem:[%s386 + $0xe0] sm:$0xff]
      %v471 = vld [vmem:[%s386 + $0xe8] sm:$0xff]
      %v472 = vld [vmem:[%s386 + $0xf0] sm:$0xff]
      %v473 = vld [vmem:[%s386 + $0xf8] sm:$0xff]
      %v474 = vpack.c.bf16 %v443, %v442
      %v475 = vpack.c.bf16 %v445, %v444
      %v476 = vpack.c.bf16 %v447, %v446
      %v477 = vpack.c.bf16 %v449, %v448
      %v478 = vpack.c.bf16 %v451, %v450
      %v479 = vpack.c.bf16 %v453, %v452
      %v480 = vpack.c.bf16 %v455, %v454
      %v481 = vpack.c.bf16 %v457, %v456
      %v482 = vpack.c.bf16 %v459, %v458
      %v483 = vpack.c.bf16 %v461, %v460
      %v484 = vpack.c.bf16 %v463, %v462
      %v485 = vpack.c.bf16 %v465, %v464
      %v486 = vpack.c.bf16 %v467, %v466
      %v487 = vpack.c.bf16 %v469, %v468
      %v488 = vpack.c.bf16 %v471, %v470
      %v489 = vpack.c.bf16 %v473, %v472
      %s490 = scalar_lea.vmem %s1, 64
      %v491 = vld [vmem:[%s490] sm:$0xf]
      %v492 = vld [vmem:[%s490 + $0x4] sm:$0xf]
      %v493 = vld [vmem:[%s490 + $0x8] sm:$0xf]
      %v494 = vld [vmem:[%s490 + $0xc] sm:$0xf]
      %v495 = vld [vmem:[%s490 + $0x10] sm:$0xf]
      %v496 = vld [vmem:[%s490 + $0x14] sm:$0xf]
      %v497 = vld [vmem:[%s490 + $0x18] sm:$0xf]
      %v498 = vld [vmem:[%s490 + $0x1c] sm:$0xf]
      %v499 = vld [vmem:[%s490 + $0x20] sm:$0xf]
      %v500 = vld [vmem:[%s490 + $0x24] sm:$0xf]
      %v501 = vld [vmem:[%s490 + $0x28] sm:$0xf]
      %v502 = vld [vmem:[%s490 + $0x2c] sm:$0xf]
      %v503 = vld [vmem:[%s490 + $0x30] sm:$0xf]
      %v504 = vld [vmem:[%s490 + $0x34] sm:$0xf]
      %v505 = vld [vmem:[%s490 + $0x38] sm:$0xf]
      %v506 = vld [vmem:[%s490 + $0x3c] sm:$0xf]
      %v507 = vlaneseq
      %v508 = vshrl.u32 %v507, 7
      %v509 = vsub.s32 0, %v508
      %v510 = vrot.slane %v434, %v509
      %v527 = vunpack.c.l.b16 %v491
      %v528 = vunpack.c.l.b16 %v492
      %v529 = vunpack.c.l.b16 %v493
      %v530 = vunpack.c.l.b16 %v494
      %v531 = vunpack.c.l.b16 %v495
      %v532 = vunpack.c.l.b16 %v496
      %v533 = vunpack.c.l.b16 %v497
      %v534 = vunpack.c.l.b16 %v498
      %v535 = vunpack.c.l.b16 %v499
      %v536 = vunpack.c.l.b16 %v500
      %v537 = vunpack.c.l.b16 %v501
      %v538 = vunpack.c.l.b16 %v502
      %v539 = vunpack.c.l.b16 %v503
      %v540 = vunpack.c.l.b16 %v504
      %v541 = vunpack.c.l.b16 %v505
      %v542 = vunpack.c.l.b16 %v506
      %v543 = vpack.c.b16 %v528, %v527
      %v544 = vpack.c.b16 %v530, %v529
      %v545 = vpack.c.b16 %v532, %v531
      %v546 = vpack.c.b16 %v534, %v533
      %v547 = vpack.c.b16 %v536, %v535
      %v548 = vpack.c.b16 %v538, %v537
      %v549 = vpack.c.b16 %v540, %v539
      %v550 = vpack.c.b16 %v542, %v541
      %559 = vmatprep.subr.bf16.mxu0 0
      %560 = vmatpush1.bf16.msra.mxu0 %v543
      %561 = vmatprep.subr.bf16.mxu0 0
      %562 = vmatpush1.bf16.msra.mxu0 %v544
      %563 = vmatprep.subr.bf16.mxu0 0
      %564 = vmatpush1.bf16.msra.mxu0 %v545
      %565 = vmatprep.subr.bf16.mxu0 0
      %566 = vmatpush1.bf16.msra.mxu0 %v546
      %567 = vmatprep.subr.bf16.mxu0 0
      %568 = vmatpush1.bf16.msra.mxu0 %v547
      %569 = vmatprep.subr.bf16.mxu0 0
      %570 = vmatpush1.bf16.msra.mxu0 %v548
      %571 = vmatprep.subr.bf16.mxu0 0
      %572 = vmatpush1.bf16.msra.mxu0 %v549
      %573 = vmatprep.subr.bf16.mxu0 0
      %574 = vmatpush1.bf16.msra.mxu0 %v550
      %575 = vmatprep.subr.bf16.mxu0 0
      %576 = vmatpush1.bf16.msra.mxu0 0
      %577 = vmatprep.subr.bf16.mxu0 0
      %578 = vmatpush1.bf16.msra.mxu0 0
      %579 = vmatprep.subr.bf16.mxu0 0
      %580 = vmatpush1.bf16.msra.mxu0 0
      %581 = vmatprep.subr.bf16.mxu0 0
      %582 = vmatpush1.bf16.msra.mxu0 0
      %583 = vmatprep.subr.bf16.mxu0 0
      %584 = vmatpush1.bf16.msra.mxu0 0
      %585 = vmatprep.subr.bf16.mxu0 0
      %586 = vmatpush1.bf16.msra.mxu0 0
      %587 = vmatprep.subr.bf16.mxu0 0
      %588 = vmatpush1.bf16.msra.mxu0 0
      %589 = vmatprep.subr.bf16.mxu0 0
      %590 = vmatpush1.bf16.msra.mxu0 0
      %591 = vmatprep.mubr.bf16.mxu0 0
      %592 = vmatmul.mubr.bf16.gmra.mrb[0].mxu0 %v474
      %v593 = vpop.f32.mrb[0].mxu0
      %v594 = vadd.f32 %v510, %v593
      %v595 = vpop.f32.mrb[0].mxu0
      %v596 = vpop.f32.mrb[0].mxu0
      %v597 = vadd.f32 %v510, %v596
      %v598 = vpop.f32.mrb[0].mxu0
      %599 = vmatprep.mubr.bf16.mxu0 0
      %600 = vmatmul.mubr.bf16.gmra.mrb[0].mxu0 %v475
      %v601 = vpop.f32.mrb[0].mxu0
      %v602 = vadd.f32 %v510, %v601
      %v603 = vpop.f32.mrb[0].mxu0
      %v604 = vpop.f32.mrb[0].mxu0
      %v605 = vadd.f32 %v510, %v604
      %v606 = vpop.f32.mrb[0].mxu0
      %607 = vmatprep.mubr.bf16.mxu0 0
      %608 = vmatmul.mubr.bf16.gmra.mrb[0].mxu0 %v476
      %v609 = vpop.f32.mrb[0].mxu0
      %v610 = vadd.f32 %v510, %v609
      %v611 = vpop.f32.mrb[0].mxu0
      %v612 = vpop.f32.mrb[0].mxu0
      %v613 = vadd.f32 %v510, %v612
      %v614 = vpop.f32.mrb[0].mxu0
      %615 = vmatprep.mubr.bf16.mxu0 0
      %616 = vmatmul.mubr.bf16.gmra.mrb[0].mxu0 %v477
      %v617 = vpop.f32.mrb[0].mxu0
      %v618 = vadd.f32 %v510, %v617
      %v619 = vpop.f32.mrb[0].mxu0
      %v620 = vpop.f32.mrb[0].mxu0
      %v621 = vadd.f32 %v510, %v620
      %v622 = vpop.f32.mrb[0].mxu0
      %623 = vmatprep.mubr.bf16.mxu0 0
      %624 = vmatmul.mubr.bf16.gmra.mrb[0].mxu0 %v478
      %v625 = vpop.f32.mrb[0].mxu0
      %v626 = vadd.f32 %v510, %v625
      %v627 = vpop.f32.mrb[0].mxu0
      %v628 = vpop.f32.mrb[0].mxu0
      %v629 = vadd.f32 %v510, %v628
      %v630 = vpop.f32.mrb[0].mxu0
      %631 = vmatprep.mubr.bf16.mxu0 0
      %632 = vmatmul.mubr.bf16.gmra.mrb[0].mxu0 %v479
      %v633 = vpop.f32.mrb[0].mxu0
      %v634 = vadd.f32 %v510, %v633
      %v635 = vpop.f32.mrb[0].mxu0
      %v636 = vpop.f32.mrb[0].mxu0
      %v637 = vadd.f32 %v510, %v636
      %v638 = vpop.f32.mrb[0].mxu0
      %639 = vmatprep.mubr.bf16.mxu0 0
      %640 = vmatmul.mubr.bf16.gmra.mrb[0].mxu0 %v480
      %v641 = vpop.f32.mrb[0].mxu0
      %v642 = vadd.f32 %v510, %v641
      %v643 = vpop.f32.mrb[0].mxu0
      %v644 = vpop.f32.mrb[0].mxu0
      %v645 = vadd.f32 %v510, %v644
      %v646 = vpop.f32.mrb[0].mxu0
      %647 = vmatprep.mubr.bf16.mxu0 0
      %648 = vmatmul.mubr.bf16.gmra.mrb[0].mxu0 %v481
      %v649 = vpop.f32.mrb[0].mxu0
      %v650 = vadd.f32 %v510, %v649
      %v651 = vpop.f32.mrb[0].mxu0
      %v652 = vpop.f32.mrb[0].mxu0
      %v653 = vadd.f32 %v510, %v652
      %v654 = vpop.f32.mrb[0].mxu0
      %655 = vmatprep.mubr.bf16.mxu0 0
      %656 = vmatmul.mubr.bf16.gmra.mrb[0].mxu0 %v482
      %v657 = vpop.f32.mrb[0].mxu0
      %v658 = vadd.f32 %v510, %v657
      %v659 = vpop.f32.mrb[0].mxu0
      %v660 = vpop.f32.mrb[0].mxu0
      %v661 = vadd.f32 %v510, %v660
      %v662 = vpop.f32.mrb[0].mxu0
      %663 = vmatprep.mubr.bf16.mxu0 0
      %664 = vmatmul.mubr.bf16.gmra.mrb[0].mxu0 %v483
      %v665 = vpop.f32.mrb[0].mxu0
      %v666 = vadd.f32 %v510, %v665
      %v667 = vpop.f32.mrb[0].mxu0
      %v668 = vpop.f32.mrb[0].mxu0
      %v669 = vadd.f32 %v510, %v668
      %v670 = vpop.f32.mrb[0].mxu0
      %671 = vmatprep.mubr.bf16.mxu0 0
      %672 = vmatmul.mubr.bf16.gmra.mrb[0].mxu0 %v484
      %v673 = vpop.f32.mrb[0].mxu0
      %v674 = vadd.f32 %v510, %v673
      %v675 = vpop.f32.mrb[0].mxu0
      %v676 = vpop.f32.mrb[0].mxu0
      %v677 = vadd.f32 %v510, %v676
      %v678 = vpop.f32.mrb[0].mxu0
      %679 = vmatprep.mubr.bf16.mxu0 0
      %680 = vmatmul.mubr.bf16.gmra.mrb[0].mxu0 %v485
      %v681 = vpop.f32.mrb[0].mxu0
      %v682 = vadd.f32 %v510, %v681
      %v683 = vpop.f32.mrb[0].mxu0
      %v684 = vpop.f32.mrb[0].mxu0
      %v685 = vadd.f32 %v510, %v684
      %v686 = vpop.f32.mrb[0].mxu0
      %687 = vmatprep.mubr.bf16.mxu0 0
      %688 = vmatmul.mubr.bf16.gmra.mrb[0].mxu0 %v486
      %v689 = vpop.f32.mrb[0].mxu0
      %v690 = vadd.f32 %v510, %v689
      %v691 = vpop.f32.mrb[0].mxu0
      %v692 = vpop.f32.mrb[0].mxu0
      %v693 = vadd.f32 %v510, %v692
      %v694 = vpop.f32.mrb[0].mxu0
      %695 = vmatprep.mubr.bf16.mxu0 0
      %696 = vmatmul.mubr.bf16.gmra.mrb[0].mxu0 %v487
      %v697 = vpop.f32.mrb[0].mxu0
      %v698 = vadd.f32 %v510, %v697
      %v699 = vpop.f32.mrb[0].mxu0
      %v700 = vpop.f32.mrb[0].mxu0
      %v701 = vadd.f32 %v510, %v700
      %v702 = vpop.f32.mrb[0].mxu0
      %703 = vmatprep.mubr.bf16.mxu0 0
      %704 = vmatmul.mubr.bf16.gmra.mrb[0].mxu0 %v488
      %v705 = vpop.f32.mrb[0].mxu0
      %v706 = vadd.f32 %v510, %v705
      %v707 = vpop.f32.mrb[0].mxu0
      %v708 = vpop.f32.mrb[0].mxu0
      %v709 = vadd.f32 %v510, %v708
      %v710 = vpop.f32.mrb[0].mxu0
      %711 = vmatprep.mubr.bf16.mxu0 0
      %712 = vmatmul.mubr.bf16.gmra.mrb[0].mxu0 %v489
      %v713 = vpop.f32.mrb[0].mxu0
      %v714 = vadd.f32 %v510, %v713
      %v715 = vpop.f32.mrb[0].mxu0
      %v716 = vpop.f32.mrb[0].mxu0
      %v717 = vadd.f32 %v510, %v716
      %v718 = vpop.f32.mrb[0].mxu0
      %719 = vdwg.mxu0
      %v720 = vld [vmem:[%s1] sm:$0xf]
      %v721 = vld [vmem:[%s1 + $0x4] sm:$0xf]
      %v722 = vld [vmem:[%s1 + $0x8] sm:$0xf]
      %v723 = vld [vmem:[%s1 + $0xc] sm:$0xf]
      %v724 = vld [vmem:[%s1 + $0x10] sm:$0xf]
      %v725 = vld [vmem:[%s1 + $0x14] sm:$0xf]
      %v726 = vld [vmem:[%s1 + $0x18] sm:$0xf]
      %v727 = vld [vmem:[%s1 + $0x1c] sm:$0xf]
      %v728 = vld [vmem:[%s1 + $0x20] sm:$0xf]
      %v729 = vld [vmem:[%s1 + $0x24] sm:$0xf]
      %v730 = vld [vmem:[%s1 + $0x28] sm:$0xf]
      %v731 = vld [vmem:[%s1 + $0x2c] sm:$0xf]
      %v732 = vld [vmem:[%s1 + $0x30] sm:$0xf]
      %v733 = vld [vmem:[%s1 + $0x34] sm:$0xf]
      %v734 = vld [vmem:[%s1 + $0x38] sm:$0xf]
      %v735 = vld [vmem:[%s1 + $0x3c] sm:$0xf]
      %v752 = vunpack.c.l.b16 %v720
      %v753 = vunpack.c.l.b16 %v721
      %v754 = vunpack.c.l.b16 %v722
      %v755 = vunpack.c.l.b16 %v723
      %v756 = vunpack.c.l.b16 %v724
      %v757 = vunpack.c.l.b16 %v725
      %v758 = vunpack.c.l.b16 %v726
      %v759 = vunpack.c.l.b16 %v727
      %v760 = vunpack.c.l.b16 %v728
      %v761 = vunpack.c.l.b16 %v729
      %v762 = vunpack.c.l.b16 %v730
      %v763 = vunpack.c.l.b16 %v731
      %v764 = vunpack.c.l.b16 %v732
      %v765 = vunpack.c.l.b16 %v733
      %v766 = vunpack.c.l.b16 %v734
      %v767 = vunpack.c.l.b16 %v735
      %v768 = vpack.c.b16 %v753, %v752
      %v769 = vpack.c.b16 %v755, %v754
      %v770 = vpack.c.b16 %v757, %v756
      %v771 = vpack.c.b16 %v759, %v758
      %v772 = vpack.c.b16 %v761, %v760
      %v773 = vpack.c.b16 %v763, %v762
      %v774 = vpack.c.b16 %v765, %v764
      %v775 = vpack.c.b16 %v767, %v766
      %784 = vmatprep.subr.bf16.mxu0 0
      %785 = vmatpush1.bf16.msra.mxu0 %v768
      %786 = vmatprep.subr.bf16.mxu0 0
      %787 = vmatpush1.bf16.msra.mxu0 %v769
      %788 = vmatprep.subr.bf16.mxu0 0
      %789 = vmatpush1.bf16.msra.mxu0 %v770
      %790 = vmatprep.subr.bf16.mxu0 0
      %791 = vmatpush1.bf16.msra.mxu0 %v771
      %792 = vmatprep.subr.bf16.mxu0 0
      %793 = vmatpush1.bf16.msra.mxu0 %v772
      %794 = vmatprep.subr.bf16.mxu0 0
      %795 = vmatpush1.bf16.msra.mxu0 %v773
      %796 = vmatprep.subr.bf16.mxu0 0
      %797 = vmatpush1.bf16.msra.mxu0 %v774
      %798 = vmatprep.subr.bf16.mxu0 0
      %799 = vmatpush1.bf16.msra.mxu0 %v775
      %800 = vmatprep.subr.bf16.mxu0 0
      %801 = vmatpush1.bf16.msra.mxu0 0
      %802 = vmatprep.subr.bf16.mxu0 0
      %803 = vmatpush1.bf16.msra.mxu0 0
      %804 = vmatprep.subr.bf16.mxu0 0
      %805 = vmatpush1.bf16.msra.mxu0 0
      %806 = vmatprep.subr.bf16.mxu0 0
      %807 = vmatpush1.bf16.msra.mxu0 0
      %808 = vmatprep.subr.bf16.mxu0 0
      %809 = vmatpush1.bf16.msra.mxu0 0
      %810 = vmatprep.subr.bf16.mxu0 0
      %811 = vmatpush1.bf16.msra.mxu0 0
      %812 = vmatprep.subr.bf16.mxu0 0
      %813 = vmatpush1.bf16.msra.mxu0 0
      %814 = vmatprep.subr.bf16.mxu0 0
      %815 = vmatpush1.bf16.msra.mxu0 0
      %816 = vmatprep.mubr.bf16.mxu0 0
      %817 = vmatmul.mubr.bf16.gmra.mrb[0].mxu0 %v474
      %v818 = vpop.f32.mrb[0].mxu0
      %v819 = vadd.f32 0.0, %v818
      %v820 = vpop.f32.mrb[0].mxu0
      %v821 = vpop.f32.mrb[0].mxu0
      %v822 = vadd.f32 0.0, %v821
      %v823 = vpop.f32.mrb[0].mxu0
      %824 = vmatprep.mubr.bf16.mxu0 0
      %825 = vmatmul.mubr.bf16.gmra.mrb[0].mxu0 %v475
      %v826 = vpop.f32.mrb[0].mxu0
      %v827 = vadd.f32 0.0, %v826
      %v828 = vpop.f32.mrb[0].mxu0
      %v829 = vpop.f32.mrb[0].mxu0
      %v830 = vadd.f32 0.0, %v829
      %v831 = vpop.f32.mrb[0].mxu0
      %832 = vmatprep.mubr.bf16.mxu0 0
      %833 = vmatmul.mubr.bf16.gmra.mrb[0].mxu0 %v476
      %v834 = vpop.f32.mrb[0].mxu0
      %v835 = vadd.f32 0.0, %v834
      %v836 = vpop.f32.mrb[0].mxu0
      %v837 = vpop.f32.mrb[0].mxu0
      %v838 = vadd.f32 0.0, %v837
      %v839 = vpop.f32.mrb[0].mxu0
      %840 = vmatprep.mubr.bf16.mxu0 0
      %841 = vmatmul.mubr.bf16.gmra.mrb[0].mxu0 %v477
      %v842 = vpop.f32.mrb[0].mxu0
      %v843 = vadd.f32 0.0, %v842
      %v844 = vpop.f32.mrb[0].mxu0
      %v845 = vpop.f32.mrb[0].mxu0
      %v846 = vadd.f32 0.0, %v845
      %v847 = vpop.f32.mrb[0].mxu0
      %848 = vmatprep.mubr.bf16.mxu0 0
      %849 = vmatmul.mubr.bf16.gmra.mrb[0].mxu0 %v478
      %v850 = vpop.f32.mrb[0].mxu0
      %v851 = vadd.f32 0.0, %v850
      %v852 = vpop.f32.mrb[0].mxu0
      %v853 = vpop.f32.mrb[0].mxu0
      %v854 = vadd.f32 0.0, %v853
      %v855 = vpop.f32.mrb[0].mxu0
      %856 = vmatprep.mubr.bf16.mxu0 0
      %857 = vmatmul.mubr.bf16.gmra.mrb[0].mxu0 %v479
      %v858 = vpop.f32.mrb[0].mxu0
      %v859 = vadd.f32 0.0, %v858
      %v860 = vpop.f32.mrb[0].mxu0
      %v861 = vpop.f32.mrb[0].mxu0
      %v862 = vadd.f32 0.0, %v861
      %v863 = vpop.f32.mrb[0].mxu0
      %864 = vmatprep.mubr.bf16.mxu0 0
      %865 = vmatmul.mubr.bf16.gmra.mrb[0].mxu0 %v480
      %v866 = vpop.f32.mrb[0].mxu0
      %v867 = vadd.f32 0.0, %v866
      %v868 = vpop.f32.mrb[0].mxu0
      %v869 = vpop.f32.mrb[0].mxu0
      %v870 = vadd.f32 0.0, %v869
      %v871 = vpop.f32.mrb[0].mxu0
      %872 = vmatprep.mubr.bf16.mxu0 0
      %873 = vmatmul.mubr.bf16.gmra.mrb[0].mxu0 %v481
      %v874 = vpop.f32.mrb[0].mxu0
      %v875 = vadd.f32 0.0, %v874
      %v876 = vpop.f32.mrb[0].mxu0
      %v877 = vpop.f32.mrb[0].mxu0
      %v878 = vadd.f32 0.0, %v877
      %v879 = vpop.f32.mrb[0].mxu0
      %880 = vmatprep.mubr.bf16.mxu0 0
      %881 = vmatmul.mubr.bf16.gmra.mrb[0].mxu0 %v482
      %v882 = vpop.f32.mrb[0].mxu0
      %v883 = vadd.f32 0.0, %v882
      %v884 = vpop.f32.mrb[0].mxu0
      %v885 = vpop.f32.mrb[0].mxu0
      %v886 = vadd.f32 0.0, %v885
      %v887 = vpop.f32.mrb[0].mxu0
      %888 = vmatprep.mubr.bf16.mxu0 0
      %889 = vmatmul.mubr.bf16.gmra.mrb[0].mxu0 %v483
      %v890 = vpop.f32.mrb[0].mxu0
      %v891 = vadd.f32 0.0, %v890
      %v892 = vpop.f32.mrb[0].mxu0
      %v893 = vpop.f32.mrb[0].mxu0
      %v894 = vadd.f32 0.0, %v893
      %v895 = vpop.f32.mrb[0].mxu0
      %896 = vmatprep.mubr.bf16.mxu0 0
      %897 = vmatmul.mubr.bf16.gmra.mrb[0].mxu0 %v484
      %v898 = vpop.f32.mrb[0].mxu0
      %v899 = vadd.f32 0.0, %v898
      %v900 = vpop.f32.mrb[0].mxu0
      %v901 = vpop.f32.mrb[0].mxu0
      %v902 = vadd.f32 0.0, %v901
      %v903 = vpop.f32.mrb[0].mxu0
      %904 = vmatprep.mubr.bf16.mxu0 0
      %905 = vmatmul.mubr.bf16.gmra.mrb[0].mxu0 %v485
      %v906 = vpop.f32.mrb[0].mxu0
      %v907 = vadd.f32 0.0, %v906
      %v908 = vpop.f32.mrb[0].mxu0
      %v909 = vpop.f32.mrb[0].mxu0
      %v910 = vadd.f32 0.0, %v909
      %v911 = vpop.f32.mrb[0].mxu0
      %912 = vmatprep.mubr.bf16.mxu0 0
      %913 = vmatmul.mubr.bf16.gmra.mrb[0].mxu0 %v486
      %v914 = vpop.f32.mrb[0].mxu0
      %v915 = vadd.f32 0.0, %v914
      %v916 = vpop.f32.mrb[0].mxu0
      %v917 = vpop.f32.mrb[0].mxu0
      %v918 = vadd.f32 0.0, %v917
      %v919 = vpop.f32.mrb[0].mxu0
      %920 = vmatprep.mubr.bf16.mxu0 0
      %921 = vmatmul.mubr.bf16.gmra.mrb[0].mxu0 %v487
      %v922 = vpop.f32.mrb[0].mxu0
      %v923 = vadd.f32 0.0, %v922
      %v924 = vpop.f32.mrb[0].mxu0
      %v925 = vpop.f32.mrb[0].mxu0
      %v926 = vadd.f32 0.0, %v925
      %v927 = vpop.f32.mrb[0].mxu0
      %928 = vmatprep.mubr.bf16.mxu0 0
      %929 = vmatmul.mubr.bf16.gmra.mrb[0].mxu0 %v488
      %v930 = vpop.f32.mrb[0].mxu0
      %v931 = vadd.f32 0.0, %v930
      %v932 = vpop.f32.mrb[0].mxu0
      %v933 = vpop.f32.mrb[0].mxu0
      %v934 = vadd.f32 0.0, %v933
      %v935 = vpop.f32.mrb[0].mxu0
      %936 = vmatprep.mubr.bf16.mxu0 0
      %937 = vmatmul.mubr.bf16.gmra.mrb[0].mxu0 %v489
      %v938 = vpop.f32.mrb[0].mxu0
      %v939 = vadd.f32 0.0, %v938
      %v940 = vpop.f32.mrb[0].mxu0
      %v941 = vpop.f32.mrb[0].mxu0
      %v942 = vadd.f32 0.0, %v941
      %v943 = vpop.f32.mrb[0].mxu0
      %944 = vdwg.mxu0
      %v945 = vrot.slane %v819, 7
      %v946 = vrot.slane %v822, 7
      %v947 = vrot.slane %v827, 7
      %v948 = vrot.slane %v830, 7
      %v949 = vrot.slane %v835, 7
      %v950 = vrot.slane %v838, 7
      %v951 = vrot.slane %v843, 7
      %v952 = vrot.slane %v846, 7
      %v953 = vrot.slane %v851, 7
      %v954 = vrot.slane %v854, 7
      %v955 = vrot.slane %v859, 7
      %v956 = vrot.slane %v862, 7
      %v957 = vrot.slane %v867, 7
      %v958 = vrot.slane %v870, 7
      %v959 = vrot.slane %v875, 7
      %v960 = vrot.slane %v878, 7
      %v961 = vrot.slane %v883, 7
      %v962 = vrot.slane %v886, 7
      %v963 = vrot.slane %v891, 7
      %v964 = vrot.slane %v894, 7
      %v965 = vrot.slane %v899, 7
      %v966 = vrot.slane %v902, 7
      %v967 = vrot.slane %v907, 7
      %v968 = vrot.slane %v910, 7
      %v969 = vrot.slane %v915, 7
      %v970 = vrot.slane %v918, 7
      %v971 = vrot.slane %v923, 7
      %v972 = vrot.slane %v926, 7
      %v973 = vrot.slane %v931, 7
      %v974 = vrot.slane %v934, 7
      %v975 = vrot.slane %v939, 7
      %v976 = vrot.slane %v942, 7
      %vm977 = vcmp.lt.s32.totalorder %v397, 1
      %v978 = vsel %vm977, %v975, %v976
      %v979 = vsel %vm977, %v974, %v975
      %v980 = vsel %vm977, %v973, %v974
      %v981 = vsel %vm977, %v972, %v973
      %v982 = vsel %vm977, %v971, %v972
      %v983 = vsel %vm977, %v970, %v971
      %v984 = vsel %vm977, %v969, %v970
      %v985 = vsel %vm977, %v968, %v969
      %v986 = vsel %vm977, %v967, %v968
      %v987 = vsel %vm977, %v966, %v967
      %v988 = vsel %vm977, %v965, %v966
      %v989 = vsel %vm977, %v964, %v965
      %v990 = vsel %vm977, %v963, %v964
      %v991 = vsel %vm977, %v962, %v963
      %v992 = vsel %vm977, %v961, %v962
      %v993 = vsel %vm977, %v960, %v961
      %v994 = vsel %vm977, %v959, %v960
      %v995 = vsel %vm977, %v958, %v959
      %v996 = vsel %vm977, %v957, %v958
      %v997 = vsel %vm977, %v956, %v957
      %v998 = vsel %vm977, %v955, %v956
      %v999 = vsel %vm977, %v954, %v955
      %v1000 = vsel %vm977, %v953, %v954
      %v1001 = vsel %vm977, %v952, %v953
      %v1002 = vsel %vm977, %v951, %v952
      %v1003 = vsel %vm977, %v950, %v951
      %v1004 = vsel %vm977, %v949, %v950
      %v1005 = vsel %vm977, %v948, %v949
      %v1006 = vsel %vm977, %v947, %v948
      %v1007 = vsel %vm977, %v946, %v947
      %v1008 = vsel %vm977, %v945, %v946
      %v1009 = vsel %vm977, %v976, %v945
      %s1011 = vtos %v401
      %v1012 = vstv %s1011
      %v1014 = vmul.f32 %v1012, %v1009
      %v1015 = vmul.f32 %v1012, %v1008
      %v1016 = vmul.f32 %v1012, %v1007
      %v1017 = vmul.f32 %v1012, %v1006
      %v1018 = vmul.f32 %v1012, %v1005
      %v1019 = vmul.f32 %v1012, %v1004
      %v1020 = vmul.f32 %v1012, %v1003
      %v1021 = vmul.f32 %v1012, %v1002
      %v1022 = vmul.f32 %v1012, %v1001
      %v1023 = vmul.f32 %v1012, %v1000
      %v1024 = vmul.f32 %v1012, %v999
      %v1025 = vmul.f32 %v1012, %v998
      %v1026 = vmul.f32 %v1012, %v997
      %v1027 = vmul.f32 %v1012, %v996
      %v1028 = vmul.f32 %v1012, %v995
      %v1029 = vmul.f32 %v1012, %v994
      %v1030 = vmul.f32 %v1012, %v993
      %v1031 = vmul.f32 %v1012, %v992
      %v1032 = vmul.f32 %v1012, %v991
      %v1033 = vmul.f32 %v1012, %v990
      %v1034 = vmul.f32 %v1012, %v989
      %v1035 = vmul.f32 %v1012, %v988
      %v1036 = vmul.f32 %v1012, %v987
      %v1037 = vmul.f32 %v1012, %v986
      %v1038 = vmul.f32 %v1012, %v985
      %v1039 = vmul.f32 %v1012, %v984
      %v1040 = vmul.f32 %v1012, %v983
      %v1041 = vmul.f32 %v1012, %v982
      %v1042 = vmul.f32 %v1012, %v981
      %v1043 = vmul.f32 %v1012, %v980
      %v1044 = vmul.f32 %v1012, %v979
      %v1045 = vmul.f32 %v1012, %v978
      %v1046 = vsub.f32 1.0, %v401
      %v1047 = vrot.slane %v819, 1
      %v1048 = vrot.slane %v822, 1
      %v1049 = vrot.slane %v827, 1
      %v1050 = vrot.slane %v830, 1
      %v1051 = vrot.slane %v835, 1
      %v1052 = vrot.slane %v838, 1
      %v1053 = vrot.slane %v843, 1
      %v1054 = vrot.slane %v846, 1
      %v1055 = vrot.slane %v851, 1
      %v1056 = vrot.slane %v854, 1
      %v1057 = vrot.slane %v859, 1
      %v1058 = vrot.slane %v862, 1
      %v1059 = vrot.slane %v867, 1
      %v1060 = vrot.slane %v870, 1
      %v1061 = vrot.slane %v875, 1
      %v1062 = vrot.slane %v878, 1
      %v1063 = vrot.slane %v883, 1
      %v1064 = vrot.slane %v886, 1
      %v1065 = vrot.slane %v891, 1
      %v1066 = vrot.slane %v894, 1
      %v1067 = vrot.slane %v899, 1
      %v1068 = vrot.slane %v902, 1
      %v1069 = vrot.slane %v907, 1
      %v1070 = vrot.slane %v910, 1
      %v1071 = vrot.slane %v915, 1
      %v1072 = vrot.slane %v918, 1
      %v1073 = vrot.slane %v923, 1
      %v1074 = vrot.slane %v926, 1
      %v1075 = vrot.slane %v931, 1
      %v1076 = vrot.slane %v934, 1
      %v1077 = vrot.slane %v939, 1
      %v1078 = vrot.slane %v942, 1
      %vm1079 = vcmp.lt.s32.totalorder %v397, 7
      %v1080 = vsel %vm1079, %v1077, %v1078
      %v1081 = vsel %vm1079, %v1076, %v1077
      %v1082 = vsel %vm1079, %v1075, %v1076
      %v1083 = vsel %vm1079, %v1074, %v1075
      %v1084 = vsel %vm1079, %v1073, %v1074
      %v1085 = vsel %vm1079, %v1072, %v1073
      %v1086 = vsel %vm1079, %v1071, %v1072
      %v1087 = vsel %vm1079, %v1070, %v1071
      %v1088 = vsel %vm1079, %v1069, %v1070
      %v1089 = vsel %vm1079, %v1068, %v1069
      %v1090 = vsel %vm1079, %v1067, %v1068
      %v1091 = vsel %vm1079, %v1066, %v1067
      %v1092 = vsel %vm1079, %v1065, %v1066
      %v1093 = vsel %vm1079, %v1064, %v1065
      %v1094 = vsel %vm1079, %v1063, %v1064
      %v1095 = vsel %vm1079, %v1062, %v1063
      %v1096 = vsel %vm1079, %v1061, %v1062
      %v1097 = vsel %vm1079, %v1060, %v1061
      %v1098 = vsel %vm1079, %v1059, %v1060
      %v1099 = vsel %vm1079, %v1058, %v1059
      %v1100 = vsel %vm1079, %v1057, %v1058
      %v1101 = vsel %vm1079, %v1056, %v1057
      %v1102 = vsel %vm1079, %v1055, %v1056
      %v1103 = vsel %vm1079, %v1054, %v1055
      %v1104 = vsel %vm1079, %v1053, %v1054
      %v1105 = vsel %vm1079, %v1052, %v1053
      %v1106 = vsel %vm1079, %v1051, %v1052
      %v1107 = vsel %vm1079, %v1050, %v1051
      %v1108 = vsel %vm1079, %v1049, %v1050
      %v1109 = vsel %vm1079, %v1048, %v1049
      %v1110 = vsel %vm1079, %v1047, %v1048
      %v1111 = vsel %vm1079, %v1078, %v1047
      %s1113 = vtos %v1046
      %v1114 = vstv %s1113
      %v1116 = vmul.f32 %v1114, %v1110
      %v1117 = vmul.f32 %v1114, %v1109
      %v1118 = vmul.f32 %v1114, %v1108
      %v1119 = vmul.f32 %v1114, %v1107
      %v1120 = vmul.f32 %v1114, %v1106
      %v1121 = vmul.f32 %v1114, %v1105
      %v1122 = vmul.f32 %v1114, %v1104
      %v1123 = vmul.f32 %v1114, %v1103
      %v1124 = vmul.f32 %v1114, %v1102
      %v1125 = vmul.f32 %v1114, %v1101
      %v1126 = vmul.f32 %v1114, %v1100
      %v1127 = vmul.f32 %v1114, %v1099
      %v1128 = vmul.f32 %v1114, %v1098
      %v1129 = vmul.f32 %v1114, %v1097
      %v1130 = vmul.f32 %v1114, %v1096
      %v1131 = vmul.f32 %v1114, %v1095
      %v1132 = vmul.f32 %v1114, %v1094
      %v1133 = vmul.f32 %v1114, %v1093
      %v1134 = vmul.f32 %v1114, %v1092
      %v1135 = vmul.f32 %v1114, %v1091
      %v1136 = vmul.f32 %v1114, %v1090
      %v1137 = vmul.f32 %v1114, %v1089
      %v1138 = vmul.f32 %v1114, %v1088
      %v1139 = vmul.f32 %v1114, %v1087
      %v1140 = vmul.f32 %v1114, %v1086
      %v1141 = vmul.f32 %v1114, %v1085
      %v1142 = vmul.f32 %v1114, %v1084
      %v1143 = vmul.f32 %v1114, %v1083
      %v1144 = vmul.f32 %v1114, %v1082
      %v1145 = vmul.f32 %v1114, %v1081
      %v1146 = vmul.f32 %v1114, %v1080
      %v1147 = vmul.f32 %v1114, %v1111
      %v1148 = vadd.f32 %v1014, %v1116
      %v1149 = vadd.f32 %v1015, %v1117
      %v1150 = vadd.f32 %v1016, %v1118
      %v1151 = vadd.f32 %v1017, %v1119
      %v1152 = vadd.f32 %v1018, %v1120
      %v1153 = vadd.f32 %v1019, %v1121
      %v1154 = vadd.f32 %v1020, %v1122
      %v1155 = vadd.f32 %v1021, %v1123
      %v1156 = vadd.f32 %v1022, %v1124
      %v1157 = vadd.f32 %v1023, %v1125
      %v1158 = vadd.f32 %v1024, %v1126
      %v1159 = vadd.f32 %v1025, %v1127
      %v1160 = vadd.f32 %v1026, %v1128
      %v1161 = vadd.f32 %v1027, %v1129
      %v1162 = vadd.f32 %v1028, %v1130
      %v1163 = vadd.f32 %v1029, %v1131
      %v1164 = vadd.f32 %v1030, %v1132
      %v1165 = vadd.f32 %v1031, %v1133
      %v1166 = vadd.f32 %v1032, %v1134
      %v1167 = vadd.f32 %v1033, %v1135
      %v1168 = vadd.f32 %v1034, %v1136
      %v1169 = vadd.f32 %v1035, %v1137
      %v1170 = vadd.f32 %v1036, %v1138
      %v1171 = vadd.f32 %v1037, %v1139
      %v1172 = vadd.f32 %v1038, %v1140
      %v1173 = vadd.f32 %v1039, %v1141
      %v1174 = vadd.f32 %v1040, %v1142
      %v1175 = vadd.f32 %v1041, %v1143
      %v1176 = vadd.f32 %v1042, %v1144
      %v1177 = vadd.f32 %v1043, %v1145
      %v1178 = vadd.f32 %v1044, %v1146
      %v1179 = vadd.f32 %v1045, %v1147
      %1181 = vset.pattern.permute.xlu0 0
      %1182 = vperm.xlu0 %1181, %v402
      %v1183 = vpop.permute.xlu0 %1182
      %1186 = vset.pattern.permute.xlu0 0
      %1187 = vperm.xlu0 %1186, %v403
      %v1188 = vpop.permute.xlu0 %1187
      %1191 = vset.pattern.permute.xlu0 0
      %1192 = vperm.xlu0 %1191, %v404
      %v1193 = vpop.permute.xlu0 %1192
      %1196 = vset.pattern.permute.xlu0 0
      %1197 = vperm.xlu0 %1196, %v405
      %v1198 = vpop.permute.xlu0 %1197
      %1201 = vset.pattern.permute.xlu0 0
      %1202 = vperm.xlu0 %1201, %v406
      %v1203 = vpop.permute.xlu0 %1202
      %1206 = vset.pattern.permute.xlu0 0
      %1207 = vperm.xlu0 %1206, %v407
      %v1208 = vpop.permute.xlu0 %1207
      %1211 = vset.pattern.permute.xlu0 0
      %1212 = vperm.xlu0 %1211, %v408
      %v1213 = vpop.permute.xlu0 %1212
      %1216 = vset.pattern.permute.xlu0 0
      %1217 = vperm.xlu0 %1216, %v409
      %v1218 = vpop.permute.xlu0 %1217
      %1221 = vset.pattern.permute.xlu0 0
      %1222 = vperm.xlu0 %1221, %v410
      %v1223 = vpop.permute.xlu0 %1222
      %1226 = vset.pattern.permute.xlu0 0
      %1227 = vperm.xlu0 %1226, %v411
      %v1228 = vpop.permute.xlu0 %1227
      %1231 = vset.pattern.permute.xlu0 0
      %1232 = vperm.xlu0 %1231, %v412
      %v1233 = vpop.permute.xlu0 %1232
      %1236 = vset.pattern.permute.xlu0 0
      %1237 = vperm.xlu0 %1236, %v413
      %v1238 = vpop.permute.xlu0 %1237
      %1241 = vset.pattern.permute.xlu0 0
      %1242 = vperm.xlu0 %1241, %v414
      %v1243 = vpop.permute.xlu0 %1242
      %1246 = vset.pattern.permute.xlu0 0
      %1247 = vperm.xlu0 %1246, %v415
      %v1248 = vpop.permute.xlu0 %1247
      %1251 = vset.pattern.permute.xlu0 0
      %1252 = vperm.xlu0 %1251, %v416
      %v1253 = vpop.permute.xlu0 %1252
      %1256 = vset.pattern.permute.xlu0 0
      %1257 = vperm.xlu0 %1256, %v417
      %v1258 = vpop.permute.xlu0 %1257
      %1261 = vset.pattern.permute.xlu0 0
      %1262 = vperm.xlu0 %1261, %v418
      %v1263 = vpop.permute.xlu0 %1262
      %1266 = vset.pattern.permute.xlu0 0
      %1267 = vperm.xlu0 %1266, %v419
      %v1268 = vpop.permute.xlu0 %1267
      %1271 = vset.pattern.permute.xlu0 0
      %1272 = vperm.xlu0 %1271, %v420
      %v1273 = vpop.permute.xlu0 %1272
      %1276 = vset.pattern.permute.xlu0 0
      %1277 = vperm.xlu0 %1276, %v421
      %v1278 = vpop.permute.xlu0 %1277
      %1281 = vset.pattern.permute.xlu0 0
      %1282 = vperm.xlu0 %1281, %v422
      %v1283 = vpop.permute.xlu0 %1282
      %1286 = vset.pattern.permute.xlu0 0
      %1287 = vperm.xlu0 %1286, %v423
      %v1288 = vpop.permute.xlu0 %1287
      %1291 = vset.pattern.permute.xlu0 0
      %1292 = vperm.xlu0 %1291, %v424
      %v1293 = vpop.permute.xlu0 %1292
      %1296 = vset.pattern.permute.xlu0 0
      %1297 = vperm.xlu0 %1296, %v425
      %v1298 = vpop.permute.xlu0 %1297
      %1301 = vset.pattern.permute.xlu0 0
      %1302 = vperm.xlu0 %1301, %v426
      %v1303 = vpop.permute.xlu0 %1302
      %1306 = vset.pattern.permute.xlu0 0
      %1307 = vperm.xlu0 %1306, %v427
      %v1308 = vpop.permute.xlu0 %1307
      %1311 = vset.pattern.permute.xlu0 0
      %1312 = vperm.xlu0 %1311, %v428
      %v1313 = vpop.permute.xlu0 %1312
      %1316 = vset.pattern.permute.xlu0 0
      %1317 = vperm.xlu0 %1316, %v429
      %v1318 = vpop.permute.xlu0 %1317
      %1321 = vset.pattern.permute.xlu0 0
      %1322 = vperm.xlu0 %1321, %v430
      %v1323 = vpop.permute.xlu0 %1322
      %1326 = vset.pattern.permute.xlu0 0
      %1327 = vperm.xlu0 %1326, %v431
      %v1328 = vpop.permute.xlu0 %1327
      %1331 = vset.pattern.permute.xlu0 0
      %1332 = vperm.xlu0 %1331, %v432
      %v1333 = vpop.permute.xlu0 %1332
      %1336 = vset.pattern.permute.xlu0 0
      %1337 = vperm.xlu0 %1336, %v433
      %v1338 = vpop.permute.xlu0 %1337
      %v1340 = vmul.f32 %v1183, %v1148
      %v1341 = vmul.f32 %v1188, %v1149
      %v1342 = vmul.f32 %v1193, %v1150
      %v1343 = vmul.f32 %v1198, %v1151
      %v1344 = vmul.f32 %v1203, %v1152
      %v1345 = vmul.f32 %v1208, %v1153
      %v1346 = vmul.f32 %v1213, %v1154
      %v1347 = vmul.f32 %v1218, %v1155
      %v1348 = vmul.f32 %v1223, %v1156
      %v1349 = vmul.f32 %v1228, %v1157
      %v1350 = vmul.f32 %v1233, %v1158
      %v1351 = vmul.f32 %v1238, %v1159
      %v1352 = vmul.f32 %v1243, %v1160
      %v1353 = vmul.f32 %v1248, %v1161
      %v1354 = vmul.f32 %v1253, %v1162
      %v1355 = vmul.f32 %v1258, %v1163
      %v1356 = vmul.f32 %v1263, %v1164
      %v1357 = vmul.f32 %v1268, %v1165
      %v1358 = vmul.f32 %v1273, %v1166
      %v1359 = vmul.f32 %v1278, %v1167
      %v1360 = vmul.f32 %v1283, %v1168
      %v1361 = vmul.f32 %v1288, %v1169
      %v1362 = vmul.f32 %v1293, %v1170
      %v1363 = vmul.f32 %v1298, %v1171
      %v1364 = vmul.f32 %v1303, %v1172
      %v1365 = vmul.f32 %v1308, %v1173
      %v1366 = vmul.f32 %v1313, %v1174
      %v1367 = vmul.f32 %v1318, %v1175
      %v1368 = vmul.f32 %v1323, %v1176
      %v1369 = vmul.f32 %v1328, %v1177
      %v1370 = vmul.f32 %v1333, %v1178
      %v1371 = vmul.f32 %v1338, %v1179
      %v1372 = vadd.f32 %v594, %v1340
      %v1373 = vadd.f32 %v597, %v1341
      %v1374 = vadd.f32 %v602, %v1342
      %v1375 = vadd.f32 %v605, %v1343
      %v1376 = vadd.f32 %v610, %v1344
      %v1377 = vadd.f32 %v613, %v1345
      %v1378 = vadd.f32 %v618, %v1346
      %v1379 = vadd.f32 %v621, %v1347
      %v1380 = vadd.f32 %v626, %v1348
      %v1381 = vadd.f32 %v629, %v1349
      %v1382 = vadd.f32 %v634, %v1350
      %v1383 = vadd.f32 %v637, %v1351
      %v1384 = vadd.f32 %v642, %v1352
      %v1385 = vadd.f32 %v645, %v1353
      %v1386 = vadd.f32 %v650, %v1354
      %v1387 = vadd.f32 %v653, %v1355
      %v1388 = vadd.f32 %v658, %v1356
      %v1389 = vadd.f32 %v661, %v1357
      %v1390 = vadd.f32 %v666, %v1358
      %v1391 = vadd.f32 %v669, %v1359
      %v1392 = vadd.f32 %v674, %v1360
      %v1393 = vadd.f32 %v677, %v1361
      %v1394 = vadd.f32 %v682, %v1362
      %v1395 = vadd.f32 %v685, %v1363
      %v1396 = vadd.f32 %v690, %v1364
      %v1397 = vadd.f32 %v693, %v1365
      %v1398 = vadd.f32 %v698, %v1366
      %v1399 = vadd.f32 %v701, %v1367
      %v1400 = vadd.f32 %v706, %v1368
      %v1401 = vadd.f32 %v709, %v1369
      %v1402 = vadd.f32 %v714, %v1370
      %v1403 = vadd.f32 %v717, %v1371
      %s1404 = scalar_lea.vmem %s1, 128
      %v1405 = vld [vmem:[%s1404] sm:$0xf]
      %v1406 = vld [vmem:[%s1404 + $0x4] sm:$0xf]
      %v1407 = vld [vmem:[%s1404 + $0x8] sm:$0xf]
      %v1408 = vld [vmem:[%s1404 + $0xc] sm:$0xf]
      %v1409 = vld [vmem:[%s1404 + $0x10] sm:$0xf]
      %v1410 = vld [vmem:[%s1404 + $0x14] sm:$0xf]
      %v1411 = vld [vmem:[%s1404 + $0x18] sm:$0xf]
      %v1412 = vld [vmem:[%s1404 + $0x1c] sm:$0xf]
      %v1413 = vld [vmem:[%s1404 + $0x20] sm:$0xf]
      %v1414 = vld [vmem:[%s1404 + $0x24] sm:$0xf]
      %v1415 = vld [vmem:[%s1404 + $0x28] sm:$0xf]
      %v1416 = vld [vmem:[%s1404 + $0x2c] sm:$0xf]
      %v1417 = vld [vmem:[%s1404 + $0x30] sm:$0xf]
      %v1418 = vld [vmem:[%s1404 + $0x34] sm:$0xf]
      %v1419 = vld [vmem:[%s1404 + $0x38] sm:$0xf]
      %v1420 = vld [vmem:[%s1404 + $0x3c] sm:$0xf]
      %v1437 = vunpack.c.l.b16 %v1405
      %v1438 = vunpack.c.l.b16 %v1406
      %v1439 = vunpack.c.l.b16 %v1407
      %v1440 = vunpack.c.l.b16 %v1408
      %v1441 = vunpack.c.l.b16 %v1409
      %v1442 = vunpack.c.l.b16 %v1410
      %v1443 = vunpack.c.l.b16 %v1411
      %v1444 = vunpack.c.l.b16 %v1412
      %v1445 = vunpack.c.l.b16 %v1413
      %v1446 = vunpack.c.l.b16 %v1414
      %v1447 = vunpack.c.l.b16 %v1415
      %v1448 = vunpack.c.l.b16 %v1416
      %v1449 = vunpack.c.l.b16 %v1417
      %v1450 = vunpack.c.l.b16 %v1418
      %v1451 = vunpack.c.l.b16 %v1419
      %v1452 = vunpack.c.l.b16 %v1420
      %v1453 = vpack.c.b16 %v1438, %v1437
      %v1454 = vpack.c.b16 %v1440, %v1439
      %v1455 = vpack.c.b16 %v1442, %v1441
      %v1456 = vpack.c.b16 %v1444, %v1443
      %v1457 = vpack.c.b16 %v1446, %v1445
      %v1458 = vpack.c.b16 %v1448, %v1447
      %v1459 = vpack.c.b16 %v1450, %v1449
      %v1460 = vpack.c.b16 %v1452, %v1451
      %1469 = vmatprep.subr.bf16.mxu0 0
      %1470 = vmatpush1.bf16.msra.mxu0 %v1453
      %1471 = vmatprep.subr.bf16.mxu0 0
      %1472 = vmatpush1.bf16.msra.mxu0 %v1454
      %1473 = vmatprep.subr.bf16.mxu0 0
      %1474 = vmatpush1.bf16.msra.mxu0 %v1455
      %1475 = vmatprep.subr.bf16.mxu0 0
      %1476 = vmatpush1.bf16.msra.mxu0 %v1456
      %1477 = vmatprep.subr.bf16.mxu0 0
      %1478 = vmatpush1.bf16.msra.mxu0 %v1457
      %1479 = vmatprep.subr.bf16.mxu0 0
      %1480 = vmatpush1.bf16.msra.mxu0 %v1458
      %1481 = vmatprep.subr.bf16.mxu0 0
      %1482 = vmatpush1.bf16.msra.mxu0 %v1459
      %1483 = vmatprep.subr.bf16.mxu0 0
      %1484 = vmatpush1.bf16.msra.mxu0 %v1460
      %1485 = vmatprep.subr.bf16.mxu0 0
      %1486 = vmatpush1.bf16.msra.mxu0 0
      %1487 = vmatprep.subr.bf16.mxu0 0
      %1488 = vmatpush1.bf16.msra.mxu0 0
      %1489 = vmatprep.subr.bf16.mxu0 0
      %1490 = vmatpush1.bf16.msra.mxu0 0
      %1491 = vmatprep.subr.bf16.mxu0 0
      %1492 = vmatpush1.bf16.msra.mxu0 0
      %1493 = vmatprep.subr.bf16.mxu0 0
      %1494 = vmatpush1.bf16.msra.mxu0 0
      %1495 = vmatprep.subr.bf16.mxu0 0
      %1496 = vmatpush1.bf16.msra.mxu0 0
      %1497 = vmatprep.subr.bf16.mxu0 0
      %1498 = vmatpush1.bf16.msra.mxu0 0
      %1499 = vmatprep.subr.bf16.mxu0 0
      %1500 = vmatpush1.bf16.msra.mxu0 0
      %1501 = vmatprep.mubr.bf16.mxu0 0
      %1502 = vmatmul.mubr.bf16.gmra.mrb[0].mxu0 %v474
      %v1503 = vpop.f32.mrb[0].mxu0
      %v1504 = vadd.f32 0.0, %v1503
      %v1505 = vpop.f32.mrb[0].mxu0
      %v1506 = vpop.f32.mrb[0].mxu0
      %v1507 = vadd.f32 0.0, %v1506
      %v1508 = vpop.f32.mrb[0].mxu0
      %1509 = vmatprep.mubr.bf16.mxu0 0
      %1510 = vmatmul.mubr.bf16.gmra.mrb[0].mxu0 %v475
      %v1511 = vpop.f32.mrb[0].mxu0
      %v1512 = vadd.f32 0.0, %v1511
      %v1513 = vpop.f32.mrb[0].mxu0
      %v1514 = vpop.f32.mrb[0].mxu0
      %v1515 = vadd.f32 0.0, %v1514
      %v1516 = vpop.f32.mrb[0].mxu0
      %1517 = vmatprep.mubr.bf16.mxu0 0
      %1518 = vmatmul.mubr.bf16.gmra.mrb[0].mxu0 %v476
      %v1519 = vpop.f32.mrb[0].mxu0
      %v1520 = vadd.f32 0.0, %v1519
      %v1521 = vpop.f32.mrb[0].mxu0
      %v1522 = vpop.f32.mrb[0].mxu0
      %v1523 = vadd.f32 0.0, %v1522
      %v1524 = vpop.f32.mrb[0].mxu0
      %1525 = vmatprep.mubr.bf16.mxu0 0
      %1526 = vmatmul.mubr.bf16.gmra.mrb[0].mxu0 %v477
      %v1527 = vpop.f32.mrb[0].mxu0
      %v1528 = vadd.f32 0.0, %v1527
      %v1529 = vpop.f32.mrb[0].mxu0
      %v1530 = vpop.f32.mrb[0].mxu0
      %v1531 = vadd.f32 0.0, %v1530
      %v1532 = vpop.f32.mrb[0].mxu0
      %1533 = vmatprep.mubr.bf16.mxu0 0
      %1534 = vmatmul.mubr.bf16.gmra.mrb[0].mxu0 %v478
      %v1535 = vpop.f32.mrb[0].mxu0
      %v1536 = vadd.f32 0.0, %v1535
      %v1537 = vpop.f32.mrb[0].mxu0
      %v1538 = vpop.f32.mrb[0].mxu0
      %v1539 = vadd.f32 0.0, %v1538
      %v1540 = vpop.f32.mrb[0].mxu0
      %1541 = vmatprep.mubr.bf16.mxu0 0
      %1542 = vmatmul.mubr.bf16.gmra.mrb[0].mxu0 %v479
      %v1543 = vpop.f32.mrb[0].mxu0
      %v1544 = vadd.f32 0.0, %v1543
      %v1545 = vpop.f32.mrb[0].mxu0
      %v1546 = vpop.f32.mrb[0].mxu0
      %v1547 = vadd.f32 0.0, %v1546
      %v1548 = vpop.f32.mrb[0].mxu0
      %1549 = vmatprep.mubr.bf16.mxu0 0
      %1550 = vmatmul.mubr.bf16.gmra.mrb[0].mxu0 %v480
      %v1551 = vpop.f32.mrb[0].mxu0
      %v1552 = vadd.f32 0.0, %v1551
      %v1553 = vpop.f32.mrb[0].mxu0
      %v1554 = vpop.f32.mrb[0].mxu0
      %v1555 = vadd.f32 0.0, %v1554
      %v1556 = vpop.f32.mrb[0].mxu0
      %1557 = vmatprep.mubr.bf16.mxu0 0
      %1558 = vmatmul.mubr.bf16.gmra.mrb[0].mxu0 %v481
      %v1559 = vpop.f32.mrb[0].mxu0
      %v1560 = vadd.f32 0.0, %v1559
      %v1561 = vpop.f32.mrb[0].mxu0
      %v1562 = vpop.f32.mrb[0].mxu0
      %v1563 = vadd.f32 0.0, %v1562
      %v1564 = vpop.f32.mrb[0].mxu0
      %1565 = vmatprep.mubr.bf16.mxu0 0
      %1566 = vmatmul.mubr.bf16.gmra.mrb[0].mxu0 %v482
      %v1567 = vpop.f32.mrb[0].mxu0
      %v1568 = vadd.f32 0.0, %v1567
      %v1569 = vpop.f32.mrb[0].mxu0
      %v1570 = vpop.f32.mrb[0].mxu0
      %v1571 = vadd.f32 0.0, %v1570
      %v1572 = vpop.f32.mrb[0].mxu0
      %1573 = vmatprep.mubr.bf16.mxu0 0
      %1574 = vmatmul.mubr.bf16.gmra.mrb[0].mxu0 %v483
      %v1575 = vpop.f32.mrb[0].mxu0
      %v1576 = vadd.f32 0.0, %v1575
      %v1577 = vpop.f32.mrb[0].mxu0
      %v1578 = vpop.f32.mrb[0].mxu0
      %v1579 = vadd.f32 0.0, %v1578
      %v1580 = vpop.f32.mrb[0].mxu0
      %1581 = vmatprep.mubr.bf16.mxu0 0
      %1582 = vmatmul.mubr.bf16.gmra.mrb[0].mxu0 %v484
      %v1583 = vpop.f32.mrb[0].mxu0
      %v1584 = vadd.f32 0.0, %v1583
      %v1585 = vpop.f32.mrb[0].mxu0
      %v1586 = vpop.f32.mrb[0].mxu0
      %v1587 = vadd.f32 0.0, %v1586
      %v1588 = vpop.f32.mrb[0].mxu0
      %1589 = vmatprep.mubr.bf16.mxu0 0
      %1590 = vmatmul.mubr.bf16.gmra.mrb[0].mxu0 %v485
      %v1591 = vpop.f32.mrb[0].mxu0
      %v1592 = vadd.f32 0.0, %v1591
      %v1593 = vpop.f32.mrb[0].mxu0
      %v1594 = vpop.f32.mrb[0].mxu0
      %v1595 = vadd.f32 0.0, %v1594
      %v1596 = vpop.f32.mrb[0].mxu0
      %1597 = vmatprep.mubr.bf16.mxu0 0
      %1598 = vmatmul.mubr.bf16.gmra.mrb[0].mxu0 %v486
      %v1599 = vpop.f32.mrb[0].mxu0
      %v1600 = vadd.f32 0.0, %v1599
      %v1601 = vpop.f32.mrb[0].mxu0
      %v1602 = vpop.f32.mrb[0].mxu0
      %v1603 = vadd.f32 0.0, %v1602
      %v1604 = vpop.f32.mrb[0].mxu0
      %1605 = vmatprep.mubr.bf16.mxu0 0
      %1606 = vmatmul.mubr.bf16.gmra.mrb[0].mxu0 %v487
      %v1607 = vpop.f32.mrb[0].mxu0
      %v1608 = vadd.f32 0.0, %v1607
      %v1609 = vpop.f32.mrb[0].mxu0
      %v1610 = vpop.f32.mrb[0].mxu0
      %v1611 = vadd.f32 0.0, %v1610
      %v1612 = vpop.f32.mrb[0].mxu0
      %1613 = vmatprep.mubr.bf16.mxu0 0
      %1614 = vmatmul.mubr.bf16.gmra.mrb[0].mxu0 %v488
      %v1615 = vpop.f32.mrb[0].mxu0
      %v1616 = vadd.f32 0.0, %v1615
      %v1617 = vpop.f32.mrb[0].mxu0
      %v1618 = vpop.f32.mrb[0].mxu0
      %v1619 = vadd.f32 0.0, %v1618
      %v1620 = vpop.f32.mrb[0].mxu0
      %1621 = vmatprep.mubr.bf16.mxu0 0
      %1622 = vmatmul.mubr.bf16.gmra.mrb[0].mxu0 %v489
      %v1623 = vpop.f32.mrb[0].mxu0
      %v1624 = vadd.f32 0.0, %v1623
      %v1625 = vpop.f32.mrb[0].mxu0
      %v1626 = vpop.f32.mrb[0].mxu0
      %v1627 = vadd.f32 0.0, %v1626
      %v1628 = vpop.f32.mrb[0].mxu0
      %1629 = vdwg.mxu0
      %v1630 = vrot.slane %v1504, 1
      %v1631 = vrot.slane %v1507, 1
      %v1632 = vrot.slane %v1512, 1
      %v1633 = vrot.slane %v1515, 1
      %v1634 = vrot.slane %v1520, 1
      %v1635 = vrot.slane %v1523, 1
      %v1636 = vrot.slane %v1528, 1
      %v1637 = vrot.slane %v1531, 1
      %v1638 = vrot.slane %v1536, 1
      %v1639 = vrot.slane %v1539, 1
      %v1640 = vrot.slane %v1544, 1
      %v1641 = vrot.slane %v1547, 1
      %v1642 = vrot.slane %v1552, 1
      %v1643 = vrot.slane %v1555, 1
      %v1644 = vrot.slane %v1560, 1
      %v1645 = vrot.slane %v1563, 1
      %v1646 = vrot.slane %v1568, 1
      %v1647 = vrot.slane %v1571, 1
      %v1648 = vrot.slane %v1576, 1
      %v1649 = vrot.slane %v1579, 1
      %v1650 = vrot.slane %v1584, 1
      %v1651 = vrot.slane %v1587, 1
      %v1652 = vrot.slane %v1592, 1
      %v1653 = vrot.slane %v1595, 1
      %v1654 = vrot.slane %v1600, 1
      %v1655 = vrot.slane %v1603, 1
      %v1656 = vrot.slane %v1608, 1
      %v1657 = vrot.slane %v1611, 1
      %v1658 = vrot.slane %v1616, 1
      %v1659 = vrot.slane %v1619, 1
      %v1660 = vrot.slane %v1624, 1
      %v1661 = vrot.slane %v1627, 1
      %v1662 = vsel %vm1079, %v1660, %v1661
      %v1663 = vsel %vm1079, %v1659, %v1660
      %v1664 = vsel %vm1079, %v1658, %v1659
      %v1665 = vsel %vm1079, %v1657, %v1658
      %v1666 = vsel %vm1079, %v1656, %v1657
      %v1667 = vsel %vm1079, %v1655, %v1656
      %v1668 = vsel %vm1079, %v1654, %v1655
      %v1669 = vsel %vm1079, %v1653, %v1654
      %v1670 = vsel %vm1079, %v1652, %v1653
      %v1671 = vsel %vm1079, %v1651, %v1652
      %v1672 = vsel %vm1079, %v1650, %v1651
      %v1673 = vsel %vm1079, %v1649, %v1650
      %v1674 = vsel %vm1079, %v1648, %v1649
      %v1675 = vsel %vm1079, %v1647, %v1648
      %v1676 = vsel %vm1079, %v1646, %v1647
      %v1677 = vsel %vm1079, %v1645, %v1646
      %v1678 = vsel %vm1079, %v1644, %v1645
      %v1679 = vsel %vm1079, %v1643, %v1644
      %v1680 = vsel %vm1079, %v1642, %v1643
      %v1681 = vsel %vm1079, %v1641, %v1642
      %v1682 = vsel %vm1079, %v1640, %v1641
      %v1683 = vsel %vm1079, %v1639, %v1640
      %v1684 = vsel %vm1079, %v1638, %v1639
      %v1685 = vsel %vm1079, %v1637, %v1638
      %v1686 = vsel %vm1079, %v1636, %v1637
      %v1687 = vsel %vm1079, %v1635, %v1636
      %v1688 = vsel %vm1079, %v1634, %v1635
      %v1689 = vsel %vm1079, %v1633, %v1634
      %v1690 = vsel %vm1079, %v1632, %v1633
      %v1691 = vsel %vm1079, %v1631, %v1632
      %v1692 = vsel %vm1079, %v1630, %v1631
      %v1693 = vsel %vm1079, %v1661, %v1630
      %v1694 = vmul.f32 %v1012, %v1692
      %v1695 = vmul.f32 %v1012, %v1691
      %v1696 = vmul.f32 %v1012, %v1690
      %v1697 = vmul.f32 %v1012, %v1689
      %v1698 = vmul.f32 %v1012, %v1688
      %v1699 = vmul.f32 %v1012, %v1687
      %v1700 = vmul.f32 %v1012, %v1686
      %v1701 = vmul.f32 %v1012, %v1685
      %v1702 = vmul.f32 %v1012, %v1684
      %v1703 = vmul.f32 %v1012, %v1683
      %v1704 = vmul.f32 %v1012, %v1682
      %v1705 = vmul.f32 %v1012, %v1681
      %v1706 = vmul.f32 %v1012, %v1680
      %v1707 = vmul.f32 %v1012, %v1679
      %v1708 = vmul.f32 %v1012, %v1678
      %v1709 = vmul.f32 %v1012, %v1677
      %v1710 = vmul.f32 %v1012, %v1676
      %v1711 = vmul.f32 %v1012, %v1675
      %v1712 = vmul.f32 %v1012, %v1674
      %v1713 = vmul.f32 %v1012, %v1673
      %v1714 = vmul.f32 %v1012, %v1672
      %v1715 = vmul.f32 %v1012, %v1671
      %v1716 = vmul.f32 %v1012, %v1670
      %v1717 = vmul.f32 %v1012, %v1669
      %v1718 = vmul.f32 %v1012, %v1668
      %v1719 = vmul.f32 %v1012, %v1667
      %v1720 = vmul.f32 %v1012, %v1666
      %v1721 = vmul.f32 %v1012, %v1665
      %v1722 = vmul.f32 %v1012, %v1664
      %v1723 = vmul.f32 %v1012, %v1663
      %v1724 = vmul.f32 %v1012, %v1662
      %v1725 = vmul.f32 %v1012, %v1693
      %v1726 = vrot.slane %v1504, 7
      %v1727 = vrot.slane %v1507, 7
      %v1728 = vrot.slane %v1512, 7
      %v1729 = vrot.slane %v1515, 7
      %v1730 = vrot.slane %v1520, 7
      %v1731 = vrot.slane %v1523, 7
      %v1732 = vrot.slane %v1528, 7
      %v1733 = vrot.slane %v1531, 7
      %v1734 = vrot.slane %v1536, 7
      %v1735 = vrot.slane %v1539, 7
      %v1736 = vrot.slane %v1544, 7
      %v1737 = vrot.slane %v1547, 7
      %v1738 = vrot.slane %v1552, 7
      %v1739 = vrot.slane %v1555, 7
      %v1740 = vrot.slane %v1560, 7
      %v1741 = vrot.slane %v1563, 7
      %v1742 = vrot.slane %v1568, 7
      %v1743 = vrot.slane %v1571, 7
      %v1744 = vrot.slane %v1576, 7
      %v1745 = vrot.slane %v1579, 7
      %v1746 = vrot.slane %v1584, 7
      %v1747 = vrot.slane %v1587, 7
      %v1748 = vrot.slane %v1592, 7
      %v1749 = vrot.slane %v1595, 7
      %v1750 = vrot.slane %v1600, 7
      %v1751 = vrot.slane %v1603, 7
      %v1752 = vrot.slane %v1608, 7
      %v1753 = vrot.slane %v1611, 7
      %v1754 = vrot.slane %v1616, 7
      %v1755 = vrot.slane %v1619, 7
      %v1756 = vrot.slane %v1624, 7
      %v1757 = vrot.slane %v1627, 7
      %v1758 = vsel %vm977, %v1756, %v1757
      %v1759 = vsel %vm977, %v1755, %v1756
      %v1760 = vsel %vm977, %v1754, %v1755
      %v1761 = vsel %vm977, %v1753, %v1754
      %v1762 = vsel %vm977, %v1752, %v1753
      %v1763 = vsel %vm977, %v1751, %v1752
      %v1764 = vsel %vm977, %v1750, %v1751
      %v1765 = vsel %vm977, %v1749, %v1750
      %v1766 = vsel %vm977, %v1748, %v1749
      %v1767 = vsel %vm977, %v1747, %v1748
      %v1768 = vsel %vm977, %v1746, %v1747
      %v1769 = vsel %vm977, %v1745, %v1746
      %v1770 = vsel %vm977, %v1744, %v1745
      %v1771 = vsel %vm977, %v1743, %v1744
      %v1772 = vsel %vm977, %v1742, %v1743
      %v1773 = vsel %vm977, %v1741, %v1742
      %v1774 = vsel %vm977, %v1740, %v1741
      %v1775 = vsel %vm977, %v1739, %v1740
      %v1776 = vsel %vm977, %v1738, %v1739
      %v1777 = vsel %vm977, %v1737, %v1738
      %v1778 = vsel %vm977, %v1736, %v1737
      %v1779 = vsel %vm977, %v1735, %v1736
      %v1780 = vsel %vm977, %v1734, %v1735
      %v1781 = vsel %vm977, %v1733, %v1734
      %v1782 = vsel %vm977, %v1732, %v1733
      %v1783 = vsel %vm977, %v1731, %v1732
      %v1784 = vsel %vm977, %v1730, %v1731
      %v1785 = vsel %vm977, %v1729, %v1730
      %v1786 = vsel %vm977, %v1728, %v1729
      %v1787 = vsel %vm977, %v1727, %v1728
      %v1788 = vsel %vm977, %v1726, %v1727
      %v1789 = vsel %vm977, %v1757, %v1726
      %v1790 = vmul.f32 %v1114, %v1789
      %v1791 = vmul.f32 %v1114, %v1788
      %v1792 = vmul.f32 %v1114, %v1787
      %v1793 = vmul.f32 %v1114, %v1786
      %v1794 = vmul.f32 %v1114, %v1785
      %v1795 = vmul.f32 %v1114, %v1784
      %v1796 = vmul.f32 %v1114, %v1783
      %v1797 = vmul.f32 %v1114, %v1782
      %v1798 = vmul.f32 %v1114, %v1781
      %v1799 = vmul.f32 %v1114, %v1780
      %v1800 = vmul.f32 %v1114, %v1779
      %v1801 = vmul.f32 %v1114, %v1778
      %v1802 = vmul.f32 %v1114, %v1777
      %v1803 = vmul.f32 %v1114, %v1776
      %v1804 = vmul.f32 %v1114, %v1775
      %v1805 = vmul.f32 %v1114, %v1774
      %v1806 = vmul.f32 %v1114, %v1773
      %v1807 = vmul.f32 %v1114, %v1772
      %v1808 = vmul.f32 %v1114, %v1771
      %v1809 = vmul.f32 %v1114, %v1770
      %v1810 = vmul.f32 %v1114, %v1769
      %v1811 = vmul.f32 %v1114, %v1768
      %v1812 = vmul.f32 %v1114, %v1767
      %v1813 = vmul.f32 %v1114, %v1766
      %v1814 = vmul.f32 %v1114, %v1765
      %v1815 = vmul.f32 %v1114, %v1764
      %v1816 = vmul.f32 %v1114, %v1763
      %v1817 = vmul.f32 %v1114, %v1762
      %v1818 = vmul.f32 %v1114, %v1761
      %v1819 = vmul.f32 %v1114, %v1760
      %v1820 = vmul.f32 %v1114, %v1759
      %v1821 = vmul.f32 %v1114, %v1758
      %v1822 = vadd.f32 %v1694, %v1790
      %v1823 = vadd.f32 %v1695, %v1791
      %v1824 = vadd.f32 %v1696, %v1792
      %v1825 = vadd.f32 %v1697, %v1793
      %v1826 = vadd.f32 %v1698, %v1794
      %v1827 = vadd.f32 %v1699, %v1795
      %v1828 = vadd.f32 %v1700, %v1796
      %v1829 = vadd.f32 %v1701, %v1797
      %v1830 = vadd.f32 %v1702, %v1798
      %v1831 = vadd.f32 %v1703, %v1799
      %v1832 = vadd.f32 %v1704, %v1800
      %v1833 = vadd.f32 %v1705, %v1801
      %v1834 = vadd.f32 %v1706, %v1802
      %v1835 = vadd.f32 %v1707, %v1803
      %v1836 = vadd.f32 %v1708, %v1804
      %v1837 = vadd.f32 %v1709, %v1805
      %v1838 = vadd.f32 %v1710, %v1806
      %v1839 = vadd.f32 %v1711, %v1807
      %v1840 = vadd.f32 %v1712, %v1808
      %v1841 = vadd.f32 %v1713, %v1809
      %v1842 = vadd.f32 %v1714, %v1810
      %v1843 = vadd.f32 %v1715, %v1811
      %v1844 = vadd.f32 %v1716, %v1812
      %v1845 = vadd.f32 %v1717, %v1813
      %v1846 = vadd.f32 %v1718, %v1814
      %v1847 = vadd.f32 %v1719, %v1815
      %v1848 = vadd.f32 %v1720, %v1816
      %v1849 = vadd.f32 %v1721, %v1817
      %v1850 = vadd.f32 %v1722, %v1818
      %v1851 = vadd.f32 %v1723, %v1819
      %v1852 = vadd.f32 %v1724, %v1820
      %v1853 = vadd.f32 %v1725, %v1821
      %1854 = vset.pattern.permute.xlu0 1
      %1855 = vperm.xlu0 %1854, %v402
      %v1856 = vpop.permute.xlu0 %1855
      %1858 = vset.pattern.permute.xlu0 1
      %1859 = vperm.xlu0 %1858, %v403
      %v1860 = vpop.permute.xlu0 %1859
      %1862 = vset.pattern.permute.xlu0 1
      %1863 = vperm.xlu0 %1862, %v404
      %v1864 = vpop.permute.xlu0 %1863
      %1866 = vset.pattern.permute.xlu0 1
      %1867 = vperm.xlu0 %1866, %v405
      %v1868 = vpop.permute.xlu0 %1867
      %1870 = vset.pattern.permute.xlu0 1
      %1871 = vperm.xlu0 %1870, %v406
      %v1872 = vpop.permute.xlu0 %1871
      %1874 = vset.pattern.permute.xlu0 1
      %1875 = vperm.xlu0 %1874, %v407
      %v1876 = vpop.permute.xlu0 %1875
      %1878 = vset.pattern.permute.xlu0 1
      %1879 = vperm.xlu0 %1878, %v408
      %v1880 = vpop.permute.xlu0 %1879
      %1882 = vset.pattern.permute.xlu0 1
      %1883 = vperm.xlu0 %1882, %v409
      %v1884 = vpop.permute.xlu0 %1883
      %1886 = vset.pattern.permute.xlu0 1
      %1887 = vperm.xlu0 %1886, %v410
      %v1888 = vpop.permute.xlu0 %1887
      %1890 = vset.pattern.permute.xlu0 1
      %1891 = vperm.xlu0 %1890, %v411
      %v1892 = vpop.permute.xlu0 %1891
      %1894 = vset.pattern.permute.xlu0 1
      %1895 = vperm.xlu0 %1894, %v412
      %v1896 = vpop.permute.xlu0 %1895
      %1898 = vset.pattern.permute.xlu0 1
      %1899 = vperm.xlu0 %1898, %v413
      %v1900 = vpop.permute.xlu0 %1899
      %1902 = vset.pattern.permute.xlu0 1
      %1903 = vperm.xlu0 %1902, %v414
      %v1904 = vpop.permute.xlu0 %1903
      %1906 = vset.pattern.permute.xlu0 1
      %1907 = vperm.xlu0 %1906, %v415
      %v1908 = vpop.permute.xlu0 %1907
      %1910 = vset.pattern.permute.xlu0 1
      %1911 = vperm.xlu0 %1910, %v416
      %v1912 = vpop.permute.xlu0 %1911
      %1914 = vset.pattern.permute.xlu0 1
      %1915 = vperm.xlu0 %1914, %v417
      %v1916 = vpop.permute.xlu0 %1915
      %1918 = vset.pattern.permute.xlu0 1
      %1919 = vperm.xlu0 %1918, %v418
      %v1920 = vpop.permute.xlu0 %1919
      %1922 = vset.pattern.permute.xlu0 1
      %1923 = vperm.xlu0 %1922, %v419
      %v1924 = vpop.permute.xlu0 %1923
      %1926 = vset.pattern.permute.xlu0 1
      %1927 = vperm.xlu0 %1926, %v420
      %v1928 = vpop.permute.xlu0 %1927
      %1930 = vset.pattern.permute.xlu0 1
      %1931 = vperm.xlu0 %1930, %v421
      %v1932 = vpop.permute.xlu0 %1931
      %1934 = vset.pattern.permute.xlu0 1
      %1935 = vperm.xlu0 %1934, %v422
      %v1936 = vpop.permute.xlu0 %1935
      %1938 = vset.pattern.permute.xlu0 1
      %1939 = vperm.xlu0 %1938, %v423
      %v1940 = vpop.permute.xlu0 %1939
      %1942 = vset.pattern.permute.xlu0 1
      %1943 = vperm.xlu0 %1942, %v424
      %v1944 = vpop.permute.xlu0 %1943
      %1946 = vset.pattern.permute.xlu0 1
      %1947 = vperm.xlu0 %1946, %v425
      %v1948 = vpop.permute.xlu0 %1947
      %1950 = vset.pattern.permute.xlu0 1
      %1951 = vperm.xlu0 %1950, %v426
      %v1952 = vpop.permute.xlu0 %1951
      %1954 = vset.pattern.permute.xlu0 1
      %1955 = vperm.xlu0 %1954, %v427
      %v1956 = vpop.permute.xlu0 %1955
      %1958 = vset.pattern.permute.xlu0 1
      %1959 = vperm.xlu0 %1958, %v428
      %v1960 = vpop.permute.xlu0 %1959
      %1962 = vset.pattern.permute.xlu0 1
      %1963 = vperm.xlu0 %1962, %v429
      %v1964 = vpop.permute.xlu0 %1963
      %1966 = vset.pattern.permute.xlu0 1
      %1967 = vperm.xlu0 %1966, %v430
      %v1968 = vpop.permute.xlu0 %1967
      %1970 = vset.pattern.permute.xlu0 1
      %1971 = vperm.xlu0 %1970, %v431
      %v1972 = vpop.permute.xlu0 %1971
      %1974 = vset.pattern.permute.xlu0 1
      %1975 = vperm.xlu0 %1974, %v432
      %v1976 = vpop.permute.xlu0 %1975
      %1978 = vset.pattern.permute.xlu0 1
      %1979 = vperm.xlu0 %1978, %v433
      %v1980 = vpop.permute.xlu0 %1979
      %v1982 = vmul.f32 %v1856, %v1822
      %v1983 = vmul.f32 %v1860, %v1823
      %v1984 = vmul.f32 %v1864, %v1824
      %v1985 = vmul.f32 %v1868, %v1825
      %v1986 = vmul.f32 %v1872, %v1826
      %v1987 = vmul.f32 %v1876, %v1827
      %v1988 = vmul.f32 %v1880, %v1828
      %v1989 = vmul.f32 %v1884, %v1829
      %v1990 = vmul.f32 %v1888, %v1830
      %v1991 = vmul.f32 %v1892, %v1831
      %v1992 = vmul.f32 %v1896, %v1832
      %v1993 = vmul.f32 %v1900, %v1833
      %v1994 = vmul.f32 %v1904, %v1834
      %v1995 = vmul.f32 %v1908, %v1835
      %v1996 = vmul.f32 %v1912, %v1836
      %v1997 = vmul.f32 %v1916, %v1837
      %v1998 = vmul.f32 %v1920, %v1838
      %v1999 = vmul.f32 %v1924, %v1839
      %v2000 = vmul.f32 %v1928, %v1840
      %v2001 = vmul.f32 %v1932, %v1841
      %v2002 = vmul.f32 %v1936, %v1842
      %v2003 = vmul.f32 %v1940, %v1843
      %v2004 = vmul.f32 %v1944, %v1844
      %v2005 = vmul.f32 %v1948, %v1845
      %v2006 = vmul.f32 %v1952, %v1846
      %v2007 = vmul.f32 %v1956, %v1847
      %v2008 = vmul.f32 %v1960, %v1848
      %v2009 = vmul.f32 %v1964, %v1849
      %v2010 = vmul.f32 %v1968, %v1850
      %v2011 = vmul.f32 %v1972, %v1851
      %v2012 = vmul.f32 %v1976, %v1852
      %v2013 = vmul.f32 %v1980, %v1853
      %v2014 = vadd.f32 %v1372, %v1982
      %v2015 = vadd.f32 %v1373, %v1983
      %v2016 = vadd.f32 %v1374, %v1984
      %v2017 = vadd.f32 %v1375, %v1985
      %v2018 = vadd.f32 %v1376, %v1986
      %v2019 = vadd.f32 %v1377, %v1987
      %v2020 = vadd.f32 %v1378, %v1988
      %v2021 = vadd.f32 %v1379, %v1989
      %v2022 = vadd.f32 %v1380, %v1990
      %v2023 = vadd.f32 %v1381, %v1991
      %v2024 = vadd.f32 %v1382, %v1992
      %v2025 = vadd.f32 %v1383, %v1993
      %v2026 = vadd.f32 %v1384, %v1994
      %v2027 = vadd.f32 %v1385, %v1995
      %v2028 = vadd.f32 %v1386, %v1996
      %v2029 = vadd.f32 %v1387, %v1997
      %v2030 = vadd.f32 %v1388, %v1998
      %v2031 = vadd.f32 %v1389, %v1999
      %v2032 = vadd.f32 %v1390, %v2000
      %v2033 = vadd.f32 %v1391, %v2001
      %v2034 = vadd.f32 %v1392, %v2002
      %v2035 = vadd.f32 %v1393, %v2003
      %v2036 = vadd.f32 %v1394, %v2004
      %v2037 = vadd.f32 %v1395, %v2005
      %v2038 = vadd.f32 %v1396, %v2006
      %v2039 = vadd.f32 %v1397, %v2007
      %v2040 = vadd.f32 %v1398, %v2008
      %v2041 = vadd.f32 %v1399, %v2009
      %v2042 = vadd.f32 %v1400, %v2010
      %v2043 = vadd.f32 %v1401, %v2011
      %v2044 = vadd.f32 %v1402, %v2012
      %v2045 = vadd.f32 %v1403, %v2013
      %v2046 = vmax.f32 %v2014, 0.0
      %v2047 = vmax.f32 %v2015, 0.0
      %v2048 = vmax.f32 %v2016, 0.0
      %v2049 = vmax.f32 %v2017, 0.0
      %v2050 = vmax.f32 %v2018, 0.0
      %v2051 = vmax.f32 %v2019, 0.0
      %v2052 = vmax.f32 %v2020, 0.0
      %v2053 = vmax.f32 %v2021, 0.0
      %v2054 = vmax.f32 %v2022, 0.0
      %v2055 = vmax.f32 %v2023, 0.0
      %v2056 = vmax.f32 %v2024, 0.0
      %v2057 = vmax.f32 %v2025, 0.0
      %v2058 = vmax.f32 %v2026, 0.0
      %v2059 = vmax.f32 %v2027, 0.0
      %v2060 = vmax.f32 %v2028, 0.0
      %v2061 = vmax.f32 %v2029, 0.0
      %v2062 = vmax.f32 %v2030, 0.0
      %v2063 = vmax.f32 %v2031, 0.0
      %v2064 = vmax.f32 %v2032, 0.0
      %v2065 = vmax.f32 %v2033, 0.0
      %v2066 = vmax.f32 %v2034, 0.0
      %v2067 = vmax.f32 %v2035, 0.0
      %v2068 = vmax.f32 %v2036, 0.0
      %v2069 = vmax.f32 %v2037, 0.0
      %v2070 = vmax.f32 %v2038, 0.0
      %v2071 = vmax.f32 %v2039, 0.0
      %v2072 = vmax.f32 %v2040, 0.0
      %v2073 = vmax.f32 %v2041, 0.0
      %v2074 = vmax.f32 %v2042, 0.0
      %v2075 = vmax.f32 %v2043, 0.0
      %v2076 = vmax.f32 %v2044, 0.0
      %v2077 = vmax.f32 %v2045, 0.0
      %v2078 = vld [vmem:[%s4] sm:$0xff]
      %v2079 = vld [vmem:[%s4 + $0x8] sm:$0xff]
      %v2080 = vld [vmem:[%s4 + $0x10] sm:$0xff]
      %v2081 = vld [vmem:[%s4 + $0x18] sm:$0xff]
      %v2082 = vld [vmem:[%s4 + $0x20] sm:$0xff]
      %v2083 = vld [vmem:[%s4 + $0x28] sm:$0xff]
      %v2084 = vld [vmem:[%s4 + $0x30] sm:$0xff]
      %v2085 = vld [vmem:[%s4 + $0x38] sm:$0xff]
      %v2086 = vld [vmem:[%s4 + $0x40] sm:$0xff]
      %v2087 = vld [vmem:[%s4 + $0x48] sm:$0xff]
      %v2088 = vld [vmem:[%s4 + $0x50] sm:$0xff]
      %v2089 = vld [vmem:[%s4 + $0x58] sm:$0xff]
      %v2090 = vld [vmem:[%s4 + $0x60] sm:$0xff]
      %v2091 = vld [vmem:[%s4 + $0x68] sm:$0xff]
      %v2092 = vld [vmem:[%s4 + $0x70] sm:$0xff]
      %v2093 = vld [vmem:[%s4 + $0x78] sm:$0xff]
      %s2094 = scalar_lea.vmem %s3, 192
      %v2095 = vld [vmem:[%s2094] sm:$0xf]
      %v2096 = vld [vmem:[%s2094 + $0x4] sm:$0xf]
      %v2097 = vld [vmem:[%s2094 + $0x8] sm:$0xf]
      %v2098 = vld [vmem:[%s2094 + $0xc] sm:$0xf]
      %v2099 = vld [vmem:[%s2094 + $0x10] sm:$0xf]
      %v2100 = vld [vmem:[%s2094 + $0x14] sm:$0xf]
      %v2101 = vld [vmem:[%s2094 + $0x18] sm:$0xf]
      %v2102 = vld [vmem:[%s2094 + $0x1c] sm:$0xf]
      %v2103 = vld [vmem:[%s2094 + $0x20] sm:$0xf]
      %v2104 = vld [vmem:[%s2094 + $0x24] sm:$0xf]
      %v2105 = vld [vmem:[%s2094 + $0x28] sm:$0xf]
      %v2106 = vld [vmem:[%s2094 + $0x2c] sm:$0xf]
      %v2107 = vld [vmem:[%s2094 + $0x30] sm:$0xf]
      %v2108 = vld [vmem:[%s2094 + $0x34] sm:$0xf]
      %v2109 = vld [vmem:[%s2094 + $0x38] sm:$0xf]
      %v2110 = vld [vmem:[%s2094 + $0x3c] sm:$0xf]
      %s2111 = scalar_lea.vmem %s3, 256
      %v2112 = vld [vmem:[%s2111] sm:$0xf]
      %v2113 = vld [vmem:[%s2111 + $0x4] sm:$0xf]
      %v2114 = vld [vmem:[%s2111 + $0x8] sm:$0xf]
      %v2115 = vld [vmem:[%s2111 + $0xc] sm:$0xf]
      %v2116 = vld [vmem:[%s2111 + $0x10] sm:$0xf]
      %v2117 = vld [vmem:[%s2111 + $0x14] sm:$0xf]
      %v2118 = vld [vmem:[%s2111 + $0x18] sm:$0xf]
      %v2119 = vld [vmem:[%s2111 + $0x1c] sm:$0xf]
      %v2120 = vld [vmem:[%s2111 + $0x20] sm:$0xf]
      %v2121 = vld [vmem:[%s2111 + $0x24] sm:$0xf]
      %v2122 = vld [vmem:[%s2111 + $0x28] sm:$0xf]
      %v2123 = vld [vmem:[%s2111 + $0x2c] sm:$0xf]
      %v2124 = vld [vmem:[%s2111 + $0x30] sm:$0xf]
      %v2125 = vld [vmem:[%s2111 + $0x34] sm:$0xf]
      %v2126 = vld [vmem:[%s2111 + $0x38] sm:$0xf]
      %v2127 = vld [vmem:[%s2111 + $0x3c] sm:$0xf]
      %v2128 = vrot.slane %v2046, 1
      %v2129 = vrot.slane %v2047, 1
      %v2130 = vrot.slane %v2048, 1
      %v2131 = vrot.slane %v2049, 1
      %v2132 = vrot.slane %v2050, 1
      %v2133 = vrot.slane %v2051, 1
      %v2134 = vrot.slane %v2052, 1
      %v2135 = vrot.slane %v2053, 1
      %v2136 = vrot.slane %v2054, 1
      %v2137 = vrot.slane %v2055, 1
      %v2138 = vrot.slane %v2056, 1
      %v2139 = vrot.slane %v2057, 1
      %v2140 = vrot.slane %v2058, 1
      %v2141 = vrot.slane %v2059, 1
      %v2142 = vrot.slane %v2060, 1
      %v2143 = vrot.slane %v2061, 1
      %v2144 = vrot.slane %v2062, 1
      %v2145 = vrot.slane %v2063, 1
      %v2146 = vrot.slane %v2064, 1
      %v2147 = vrot.slane %v2065, 1
      %v2148 = vrot.slane %v2066, 1
      %v2149 = vrot.slane %v2067, 1
      %v2150 = vrot.slane %v2068, 1
      %v2151 = vrot.slane %v2069, 1
      %v2152 = vrot.slane %v2070, 1
      %v2153 = vrot.slane %v2071, 1
      %v2154 = vrot.slane %v2072, 1
      %v2155 = vrot.slane %v2073, 1
      %v2156 = vrot.slane %v2074, 1
      %v2157 = vrot.slane %v2075, 1
      %v2158 = vrot.slane %v2076, 1
      %v2159 = vrot.slane %v2077, 1
      %v2160 = vsel %vm1079, %v2158, %v2159
      %v2161 = vsel %vm1079, %v2157, %v2158
      %v2162 = vsel %vm1079, %v2156, %v2157
      %v2163 = vsel %vm1079, %v2155, %v2156
      %v2164 = vsel %vm1079, %v2154, %v2155
      %v2165 = vsel %vm1079, %v2153, %v2154
      %v2166 = vsel %vm1079, %v2152, %v2153
      %v2167 = vsel %vm1079, %v2151, %v2152
      %v2168 = vsel %vm1079, %v2150, %v2151
      %v2169 = vsel %vm1079, %v2149, %v2150
      %v2170 = vsel %vm1079, %v2148, %v2149
      %v2171 = vsel %vm1079, %v2147, %v2148
      %v2172 = vsel %vm1079, %v2146, %v2147
      %v2173 = vsel %vm1079, %v2145, %v2146
      %v2174 = vsel %vm1079, %v2144, %v2145
      %v2175 = vsel %vm1079, %v2143, %v2144
      %v2176 = vsel %vm1079, %v2142, %v2143
      %v2177 = vsel %vm1079, %v2141, %v2142
      %v2178 = vsel %vm1079, %v2140, %v2141
      %v2179 = vsel %vm1079, %v2139, %v2140
      %v2180 = vsel %vm1079, %v2138, %v2139
      %v2181 = vsel %vm1079, %v2137, %v2138
      %v2182 = vsel %vm1079, %v2136, %v2137
      %v2183 = vsel %vm1079, %v2135, %v2136
      %v2184 = vsel %vm1079, %v2134, %v2135
      %v2185 = vsel %vm1079, %v2133, %v2134
      %v2186 = vsel %vm1079, %v2132, %v2133
      %v2187 = vsel %vm1079, %v2131, %v2132
      %v2188 = vsel %vm1079, %v2130, %v2131
      %v2189 = vsel %vm1079, %v2129, %v2130
      %v2190 = vsel %vm1079, %v2128, %v2129
      %v2191 = vsel %vm1079, %v2159, %v2128
      %v2192 = vmul.f32 %v1012, %v2190
      %v2193 = vmul.f32 %v1012, %v2189
      %v2194 = vmul.f32 %v1012, %v2188
      %v2195 = vmul.f32 %v1012, %v2187
      %v2196 = vmul.f32 %v1012, %v2186
      %v2197 = vmul.f32 %v1012, %v2185
      %v2198 = vmul.f32 %v1012, %v2184
      %v2199 = vmul.f32 %v1012, %v2183
      %v2200 = vmul.f32 %v1012, %v2182
      %v2201 = vmul.f32 %v1012, %v2181
      %v2202 = vmul.f32 %v1012, %v2180
      %v2203 = vmul.f32 %v1012, %v2179
      %v2204 = vmul.f32 %v1012, %v2178
      %v2205 = vmul.f32 %v1012, %v2177
      %v2206 = vmul.f32 %v1012, %v2176
      %v2207 = vmul.f32 %v1012, %v2175
      %v2208 = vmul.f32 %v1012, %v2174
      %v2209 = vmul.f32 %v1012, %v2173
      %v2210 = vmul.f32 %v1012, %v2172
      %v2211 = vmul.f32 %v1012, %v2171
      %v2212 = vmul.f32 %v1012, %v2170
      %v2213 = vmul.f32 %v1012, %v2169
      %v2214 = vmul.f32 %v1012, %v2168
      %v2215 = vmul.f32 %v1012, %v2167
      %v2216 = vmul.f32 %v1012, %v2166
      %v2217 = vmul.f32 %v1012, %v2165
      %v2218 = vmul.f32 %v1012, %v2164
      %v2219 = vmul.f32 %v1012, %v2163
      %v2220 = vmul.f32 %v1012, %v2162
      %v2221 = vmul.f32 %v1012, %v2161
      %v2222 = vmul.f32 %v1012, %v2160
      %v2223 = vmul.f32 %v1012, %v2191
      %v2224 = vrot.slane %v2046, 7
      %v2225 = vrot.slane %v2047, 7
      %v2226 = vrot.slane %v2048, 7
      %v2227 = vrot.slane %v2049, 7
      %v2228 = vrot.slane %v2050, 7
      %v2229 = vrot.slane %v2051, 7
      %v2230 = vrot.slane %v2052, 7
      %v2231 = vrot.slane %v2053, 7
      %v2232 = vrot.slane %v2054, 7
      %v2233 = vrot.slane %v2055, 7
      %v2234 = vrot.slane %v2056, 7
      %v2235 = vrot.slane %v2057, 7
      %v2236 = vrot.slane %v2058, 7
      %v2237 = vrot.slane %v2059, 7
      %v2238 = vrot.slane %v2060, 7
      %v2239 = vrot.slane %v2061, 7
      %v2240 = vrot.slane %v2062, 7
      %v2241 = vrot.slane %v2063, 7
      %v2242 = vrot.slane %v2064, 7
      %v2243 = vrot.slane %v2065, 7
      %v2244 = vrot.slane %v2066, 7
      %v2245 = vrot.slane %v2067, 7
      %v2246 = vrot.slane %v2068, 7
      %v2247 = vrot.slane %v2069, 7
      %v2248 = vrot.slane %v2070, 7
      %v2249 = vrot.slane %v2071, 7
      %v2250 = vrot.slane %v2072, 7
      %v2251 = vrot.slane %v2073, 7
      %v2252 = vrot.slane %v2074, 7
      %v2253 = vrot.slane %v2075, 7
      %v2254 = vrot.slane %v2076, 7
      %v2255 = vrot.slane %v2077, 7
      %v2256 = vsel %vm977, %v2254, %v2255
      %v2257 = vsel %vm977, %v2253, %v2254
      %v2258 = vsel %vm977, %v2252, %v2253
      %v2259 = vsel %vm977, %v2251, %v2252
      %v2260 = vsel %vm977, %v2250, %v2251
      %v2261 = vsel %vm977, %v2249, %v2250
      %v2262 = vsel %vm977, %v2248, %v2249
      %v2263 = vsel %vm977, %v2247, %v2248
      %v2264 = vsel %vm977, %v2246, %v2247
      %v2265 = vsel %vm977, %v2245, %v2246
      %v2266 = vsel %vm977, %v2244, %v2245
      %v2267 = vsel %vm977, %v2243, %v2244
      %v2268 = vsel %vm977, %v2242, %v2243
      %v2269 = vsel %vm977, %v2241, %v2242
      %v2270 = vsel %vm977, %v2240, %v2241
      %v2271 = vsel %vm977, %v2239, %v2240
      %v2272 = vsel %vm977, %v2238, %v2239
      %v2273 = vsel %vm977, %v2237, %v2238
      %v2274 = vsel %vm977, %v2236, %v2237
      %v2275 = vsel %vm977, %v2235, %v2236
      %v2276 = vsel %vm977, %v2234, %v2235
      %v2277 = vsel %vm977, %v2233, %v2234
      %v2278 = vsel %vm977, %v2232, %v2233
      %v2279 = vsel %vm977, %v2231, %v2232
      %v2280 = vsel %vm977, %v2230, %v2231
      %v2281 = vsel %vm977, %v2229, %v2230
      %v2282 = vsel %vm977, %v2228, %v2229
      %v2283 = vsel %vm977, %v2227, %v2228
      %v2284 = vsel %vm977, %v2226, %v2227
      %v2285 = vsel %vm977, %v2225, %v2226
      %v2286 = vsel %vm977, %v2224, %v2225
      %v2287 = vsel %vm977, %v2255, %v2224
      %v2288 = vmul.f32 %v1114, %v2287
      %v2289 = vmul.f32 %v1114, %v2286
      %v2290 = vmul.f32 %v1114, %v2285
      %v2291 = vmul.f32 %v1114, %v2284
      %v2292 = vmul.f32 %v1114, %v2283
      %v2293 = vmul.f32 %v1114, %v2282
      %v2294 = vmul.f32 %v1114, %v2281
      %v2295 = vmul.f32 %v1114, %v2280
      %v2296 = vmul.f32 %v1114, %v2279
      %v2297 = vmul.f32 %v1114, %v2278
      %v2298 = vmul.f32 %v1114, %v2277
      %v2299 = vmul.f32 %v1114, %v2276
      %v2300 = vmul.f32 %v1114, %v2275
      %v2301 = vmul.f32 %v1114, %v2274
      %v2302 = vmul.f32 %v1114, %v2273
      %v2303 = vmul.f32 %v1114, %v2272
      %v2304 = vmul.f32 %v1114, %v2271
      %v2305 = vmul.f32 %v1114, %v2270
      %v2306 = vmul.f32 %v1114, %v2269
      %v2307 = vmul.f32 %v1114, %v2268
      %v2308 = vmul.f32 %v1114, %v2267
      %v2309 = vmul.f32 %v1114, %v2266
      %v2310 = vmul.f32 %v1114, %v2265
      %v2311 = vmul.f32 %v1114, %v2264
      %v2312 = vmul.f32 %v1114, %v2263
      %v2313 = vmul.f32 %v1114, %v2262
      %v2314 = vmul.f32 %v1114, %v2261
      %v2315 = vmul.f32 %v1114, %v2260
      %v2316 = vmul.f32 %v1114, %v2259
      %v2317 = vmul.f32 %v1114, %v2258
      %v2318 = vmul.f32 %v1114, %v2257
      %v2319 = vmul.f32 %v1114, %v2256
      %v2320 = vadd.f32 %v2192, %v2288
      %v2321 = vadd.f32 %v2193, %v2289
      %v2322 = vadd.f32 %v2194, %v2290
      %v2323 = vadd.f32 %v2195, %v2291
      %v2324 = vadd.f32 %v2196, %v2292
      %v2325 = vadd.f32 %v2197, %v2293
      %v2326 = vadd.f32 %v2198, %v2294
      %v2327 = vadd.f32 %v2199, %v2295
      %v2328 = vadd.f32 %v2200, %v2296
      %v2329 = vadd.f32 %v2201, %v2297
      %v2330 = vadd.f32 %v2202, %v2298
      %v2331 = vadd.f32 %v2203, %v2299
      %v2332 = vadd.f32 %v2204, %v2300
      %v2333 = vadd.f32 %v2205, %v2301
      %v2334 = vadd.f32 %v2206, %v2302
      %v2335 = vadd.f32 %v2207, %v2303
      %v2336 = vadd.f32 %v2208, %v2304
      %v2337 = vadd.f32 %v2209, %v2305
      %v2338 = vadd.f32 %v2210, %v2306
      %v2339 = vadd.f32 %v2211, %v2307
      %v2340 = vadd.f32 %v2212, %v2308
      %v2341 = vadd.f32 %v2213, %v2309
      %v2342 = vadd.f32 %v2214, %v2310
      %v2343 = vadd.f32 %v2215, %v2311
      %v2344 = vadd.f32 %v2216, %v2312
      %v2345 = vadd.f32 %v2217, %v2313
      %v2346 = vadd.f32 %v2218, %v2314
      %v2347 = vadd.f32 %v2219, %v2315
      %v2348 = vadd.f32 %v2220, %v2316
      %v2349 = vadd.f32 %v2221, %v2317
      %v2350 = vadd.f32 %v2222, %v2318
      %v2351 = vadd.f32 %v2223, %v2319
      %v2352 = vmax.f32 %v2046, %v2320
      %v2353 = vmax.f32 %v2047, %v2321
      %v2354 = vmax.f32 %v2048, %v2322
      %v2355 = vmax.f32 %v2049, %v2323
      %v2356 = vmax.f32 %v2050, %v2324
      %v2357 = vmax.f32 %v2051, %v2325
      %v2358 = vmax.f32 %v2052, %v2326
      %v2359 = vmax.f32 %v2053, %v2327
      %v2360 = vmax.f32 %v2054, %v2328
      %v2361 = vmax.f32 %v2055, %v2329
      %v2362 = vmax.f32 %v2056, %v2330
      %v2363 = vmax.f32 %v2057, %v2331
      %v2364 = vmax.f32 %v2058, %v2332
      %v2365 = vmax.f32 %v2059, %v2333
      %v2366 = vmax.f32 %v2060, %v2334
      %v2367 = vmax.f32 %v2061, %v2335
      %v2368 = vmax.f32 %v2062, %v2336
      %v2369 = vmax.f32 %v2063, %v2337
      %v2370 = vmax.f32 %v2064, %v2338
      %v2371 = vmax.f32 %v2065, %v2339
      %v2372 = vmax.f32 %v2066, %v2340
      %v2373 = vmax.f32 %v2067, %v2341
      %v2374 = vmax.f32 %v2068, %v2342
      %v2375 = vmax.f32 %v2069, %v2343
      %v2376 = vmax.f32 %v2070, %v2344
      %v2377 = vmax.f32 %v2071, %v2345
      %v2378 = vmax.f32 %v2072, %v2346
      %v2379 = vmax.f32 %v2073, %v2347
      %v2380 = vmax.f32 %v2074, %v2348
      %v2381 = vmax.f32 %v2075, %v2349
      %v2382 = vmax.f32 %v2076, %v2350
      %v2383 = vmax.f32 %v2077, %v2351
      %v2384 = vpack.c.bf16 %v2353, %v2352
      %v2385 = vpack.c.bf16 %v2355, %v2354
      %v2386 = vpack.c.bf16 %v2357, %v2356
      %v2387 = vpack.c.bf16 %v2359, %v2358
      %v2388 = vpack.c.bf16 %v2361, %v2360
      %v2389 = vpack.c.bf16 %v2363, %v2362
      %v2390 = vpack.c.bf16 %v2365, %v2364
      %v2391 = vpack.c.bf16 %v2367, %v2366
      %v2392 = vpack.c.bf16 %v2369, %v2368
      %v2393 = vpack.c.bf16 %v2371, %v2370
      %v2394 = vpack.c.bf16 %v2373, %v2372
      %v2395 = vpack.c.bf16 %v2375, %v2374
      %v2396 = vpack.c.bf16 %v2377, %v2376
      %v2397 = vpack.c.bf16 %v2379, %v2378
      %v2398 = vpack.c.bf16 %v2381, %v2380
      %v2399 = vpack.c.bf16 %v2383, %v2382
      %v2416 = vunpack.c.l.b16 %v2078
      %v2417 = vunpack.c.h.b16 %v2078
      %v2418 = vunpack.c.l.b16 %v2079
      %v2419 = vunpack.c.h.b16 %v2079
      %v2420 = vunpack.c.l.b16 %v2080
      %v2421 = vunpack.c.h.b16 %v2080
      %v2422 = vunpack.c.l.b16 %v2081
      %v2423 = vunpack.c.h.b16 %v2081
      %v2424 = vunpack.c.l.b16 %v2082
      %v2425 = vunpack.c.h.b16 %v2082
      %v2426 = vunpack.c.l.b16 %v2083
      %v2427 = vunpack.c.h.b16 %v2083
      %v2428 = vunpack.c.l.b16 %v2084
      %v2429 = vunpack.c.h.b16 %v2084
      %v2430 = vunpack.c.l.b16 %v2085
      %v2431 = vunpack.c.h.b16 %v2085
      %v2432 = vunpack.c.l.b16 %v2086
      %v2433 = vunpack.c.h.b16 %v2086
      %v2434 = vunpack.c.l.b16 %v2087
      %v2435 = vunpack.c.h.b16 %v2087
      %v2436 = vunpack.c.l.b16 %v2088
      %v2437 = vunpack.c.h.b16 %v2088
      %v2438 = vunpack.c.l.b16 %v2089
      %v2439 = vunpack.c.h.b16 %v2089
      %v2440 = vunpack.c.l.b16 %v2090
      %v2441 = vunpack.c.h.b16 %v2090
      %v2442 = vunpack.c.l.b16 %v2091
      %v2443 = vunpack.c.h.b16 %v2091
      %v2444 = vunpack.c.l.b16 %v2092
      %v2445 = vunpack.c.h.b16 %v2092
      %v2446 = vunpack.c.l.b16 %v2093
      %v2447 = vunpack.c.h.b16 %v2093
      %v2448 = vpack.c.b16 %v2418, %v2416
      %v2449 = vpack.c.b16 %v2419, %v2417
      %v2450 = vpack.c.b16 %v2422, %v2420
      %v2451 = vpack.c.b16 %v2423, %v2421
      %v2452 = vpack.c.b16 %v2426, %v2424
      %v2453 = vpack.c.b16 %v2427, %v2425
      %v2454 = vpack.c.b16 %v2430, %v2428
      %v2455 = vpack.c.b16 %v2431, %v2429
      %v2456 = vpack.c.b16 %v2434, %v2432
      %v2457 = vpack.c.b16 %v2435, %v2433
      %v2458 = vpack.c.b16 %v2438, %v2436
      %v2459 = vpack.c.b16 %v2439, %v2437
      %v2460 = vpack.c.b16 %v2442, %v2440
      %v2461 = vpack.c.b16 %v2443, %v2441
      %v2462 = vpack.c.b16 %v2446, %v2444
      %v2463 = vpack.c.b16 %v2447, %v2445
      %2480 = vmatprep.subr.bf16.mxu0 0
      %2481 = vmatpush1.bf16.msra.mxu0 %v2384
      %2482 = vmatprep.subr.bf16.mxu0 0
      %2483 = vmatpush1.bf16.msra.mxu0 %v2385
      %2484 = vmatprep.subr.bf16.mxu0 0
      %2485 = vmatpush1.bf16.msra.mxu0 %v2386
      %2486 = vmatprep.subr.bf16.mxu0 0
      %2487 = vmatpush1.bf16.msra.mxu0 %v2387
      %2488 = vmatprep.subr.bf16.mxu0 0
      %2489 = vmatpush1.bf16.msra.mxu0 %v2388
      %2490 = vmatprep.subr.bf16.mxu0 0
      %2491 = vmatpush1.bf16.msra.mxu0 %v2389
      %2492 = vmatprep.subr.bf16.mxu0 0
      %2493 = vmatpush1.bf16.msra.mxu0 %v2390
      %2494 = vmatprep.subr.bf16.mxu0 0
      %2495 = vmatpush1.bf16.msra.mxu0 %v2391
      %2496 = vmatprep.subr.bf16.mxu0 0
      %2497 = vmatpush1.bf16.msra.mxu0 %v2392
      %2498 = vmatprep.subr.bf16.mxu0 0
      %2499 = vmatpush1.bf16.msra.mxu0 %v2393
      %2500 = vmatprep.subr.bf16.mxu0 0
      %2501 = vmatpush1.bf16.msra.mxu0 %v2394
      %2502 = vmatprep.subr.bf16.mxu0 0
      %2503 = vmatpush1.bf16.msra.mxu0 %v2395
      %2504 = vmatprep.subr.bf16.mxu0 0
      %2505 = vmatpush1.bf16.msra.mxu0 %v2396
      %2506 = vmatprep.subr.bf16.mxu0 0
      %2507 = vmatpush1.bf16.msra.mxu0 %v2397
      %2508 = vmatprep.subr.bf16.mxu0 0
      %2509 = vmatpush1.bf16.msra.mxu0 %v2398
      %2510 = vmatprep.subr.bf16.mxu0 0
      %2511 = vmatpush1.bf16.msra.mxu0 %v2399
      %2512 = vmatprep.mubr.bf16.mxu0 %v2449
      %2513 = vmatmul.mubr.bf16.gmra.mrb[0].mxu0 %v2448
      %v2514 = vpop.f32.mrb[0].mxu0
      %v2515 = vadd.f32 0.0, %v2514
      %v2516 = vpop.f32.mrb[0].mxu0
      %v2517 = vpop.f32.mrb[0].mxu0
      %v2518 = vadd.f32 0.0, %v2517
      %v2519 = vpop.f32.mrb[0].mxu0
      %2520 = vmatprep.mubr.bf16.mxu0 %v2451
      %2521 = vmatmul.mubr.bf16.gmra.mrb[0].mxu0 %v2450
      %v2522 = vpop.f32.mrb[0].mxu0
      %v2523 = vadd.f32 0.0, %v2522
      %v2524 = vpop.f32.mrb[0].mxu0
      %v2525 = vpop.f32.mrb[0].mxu0
      %v2526 = vadd.f32 0.0, %v2525
      %v2527 = vpop.f32.mrb[0].mxu0
      %2528 = vmatprep.mubr.bf16.mxu0 %v2453
      %2529 = vmatmul.mubr.bf16.gmra.mrb[0].mxu0 %v2452
      %v2530 = vpop.f32.mrb[0].mxu0
      %v2531 = vadd.f32 0.0, %v2530
      %v2532 = vpop.f32.mrb[0].mxu0
      %v2533 = vpop.f32.mrb[0].mxu0
      %v2534 = vadd.f32 0.0, %v2533
      %v2535 = vpop.f32.mrb[0].mxu0
      %2536 = vmatprep.mubr.bf16.mxu0 %v2455
      %2537 = vmatmul.mubr.bf16.gmra.mrb[0].mxu0 %v2454
      %v2538 = vpop.f32.mrb[0].mxu0
      %v2539 = vadd.f32 0.0, %v2538
      %v2540 = vpop.f32.mrb[0].mxu0
      %v2541 = vpop.f32.mrb[0].mxu0
      %v2542 = vadd.f32 0.0, %v2541
      %v2543 = vpop.f32.mrb[0].mxu0
      %2544 = vmatprep.mubr.bf16.mxu0 %v2457
      %2545 = vmatmul.mubr.bf16.gmra.mrb[0].mxu0 %v2456
      %v2546 = vpop.f32.mrb[0].mxu0
      %v2547 = vadd.f32 0.0, %v2546
      %v2548 = vpop.f32.mrb[0].mxu0
      %v2549 = vpop.f32.mrb[0].mxu0
      %v2550 = vadd.f32 0.0, %v2549
      %v2551 = vpop.f32.mrb[0].mxu0
      %2552 = vmatprep.mubr.bf16.mxu0 %v2459
      %2553 = vmatmul.mubr.bf16.gmra.mrb[0].mxu0 %v2458
      %v2554 = vpop.f32.mrb[0].mxu0
      %v2555 = vadd.f32 0.0, %v2554
      %v2556 = vpop.f32.mrb[0].mxu0
      %v2557 = vpop.f32.mrb[0].mxu0
      %v2558 = vadd.f32 0.0, %v2557
      %v2559 = vpop.f32.mrb[0].mxu0
      %2560 = vmatprep.mubr.bf16.mxu0 %v2461
      %2561 = vmatmul.mubr.bf16.gmra.mrb[0].mxu0 %v2460
      %v2562 = vpop.f32.mrb[0].mxu0
      %v2563 = vadd.f32 0.0, %v2562
      %v2564 = vpop.f32.mrb[0].mxu0
      %v2565 = vpop.f32.mrb[0].mxu0
      %v2566 = vadd.f32 0.0, %v2565
      %v2567 = vpop.f32.mrb[0].mxu0
      %2568 = vmatprep.mubr.bf16.mxu0 %v2463
      %2569 = vmatmul.mubr.bf16.gmra.mrb[0].mxu0 %v2462
      %v2570 = vpop.f32.mrb[0].mxu0
      %v2571 = vadd.f32 0.0, %v2570
      %v2572 = vpop.f32.mrb[0].mxu0
      %v2573 = vpop.f32.mrb[0].mxu0
      %v2574 = vadd.f32 0.0, %v2573
      %v2575 = vpop.f32.mrb[0].mxu0
      %2576 = vdwg.mxu0
      %v2577 = vpack.c.bf16 %v2518, %v2515
      %v2578 = vpack.c.bf16 %v2526, %v2523
      %v2579 = vpack.c.bf16 %v2534, %v2531
      %v2580 = vpack.c.bf16 %v2542, %v2539
      %v2581 = vpack.c.bf16 %v2550, %v2547
      %v2582 = vpack.c.bf16 %v2558, %v2555
      %v2583 = vpack.c.bf16 %v2566, %v2563
      %v2584 = vpack.c.bf16 %v2574, %v2571
      %v2601 = vunpack.c.l.b16 %v2095
      %v2602 = vunpack.c.l.b16 %v2096
      %v2603 = vunpack.c.l.b16 %v2097
      %v2604 = vunpack.c.l.b16 %v2098
      %v2605 = vunpack.c.l.b16 %v2099
      %v2606 = vunpack.c.l.b16 %v2100
      %v2607 = vunpack.c.l.b16 %v2101
      %v2608 = vunpack.c.l.b16 %v2102
      %v2609 = vunpack.c.l.b16 %v2103
      %v2610 = vunpack.c.l.b16 %v2104
      %v2611 = vunpack.c.l.b16 %v2105
      %v2612 = vunpack.c.l.b16 %v2106
      %v2613 = vunpack.c.l.b16 %v2107
      %v2614 = vunpack.c.l.b16 %v2108
      %v2615 = vunpack.c.l.b16 %v2109
      %v2616 = vunpack.c.l.b16 %v2110
      %v2617 = vpack.c.b16 %v2602, %v2601
      %v2618 = vpack.c.b16 %v2604, %v2603
      %v2619 = vpack.c.b16 %v2606, %v2605
      %v2620 = vpack.c.b16 %v2608, %v2607
      %v2621 = vpack.c.b16 %v2610, %v2609
      %v2622 = vpack.c.b16 %v2612, %v2611
      %v2623 = vpack.c.b16 %v2614, %v2613
      %v2624 = vpack.c.b16 %v2616, %v2615
      %2633 = vmatprep.subr.bf16.mxu0 0
      %2634 = vmatpush1.bf16.msra.mxu0 %v2617
      %2635 = vmatprep.subr.bf16.mxu0 0
      %2636 = vmatpush1.bf16.msra.mxu0 %v2618
      %2637 = vmatprep.subr.bf16.mxu0 0
      %2638 = vmatpush1.bf16.msra.mxu0 %v2619
      %2639 = vmatprep.subr.bf16.mxu0 0
      %2640 = vmatpush1.bf16.msra.mxu0 %v2620
      %2641 = vmatprep.subr.bf16.mxu0 0
      %2642 = vmatpush1.bf16.msra.mxu0 %v2621
      %2643 = vmatprep.subr.bf16.mxu0 0
      %2644 = vmatpush1.bf16.msra.mxu0 %v2622
      %2645 = vmatprep.subr.bf16.mxu0 0
      %2646 = vmatpush1.bf16.msra.mxu0 %v2623
      %2647 = vmatprep.subr.bf16.mxu0 0
      %2648 = vmatpush1.bf16.msra.mxu0 %v2624
      %2649 = vmatprep.subr.bf16.mxu0 0
      %2650 = vmatpush1.bf16.msra.mxu0 0
      %2651 = vmatprep.subr.bf16.mxu0 0
      %2652 = vmatpush1.bf16.msra.mxu0 0
      %2653 = vmatprep.subr.bf16.mxu0 0
      %2654 = vmatpush1.bf16.msra.mxu0 0
      %2655 = vmatprep.subr.bf16.mxu0 0
      %2656 = vmatpush1.bf16.msra.mxu0 0
      %2657 = vmatprep.subr.bf16.mxu0 0
      %2658 = vmatpush1.bf16.msra.mxu0 0
      %2659 = vmatprep.subr.bf16.mxu0 0
      %2660 = vmatpush1.bf16.msra.mxu0 0
      %2661 = vmatprep.subr.bf16.mxu0 0
      %2662 = vmatpush1.bf16.msra.mxu0 0
      %2663 = vmatprep.subr.bf16.mxu0 0
      %2664 = vmatpush1.bf16.msra.mxu0 0
      %2665 = vmatprep.mubr.bf16.mxu0 0
      %2666 = vmatmul.mubr.bf16.gmra.mrb[0].mxu0 %v2577
      %v2667 = vpop.f32.mrb[0].mxu0
      %v2668 = vadd.f32 0.0, %v2667
      %v2669 = vpop.f32.mrb[0].mxu0
      %v2670 = vpop.f32.mrb[0].mxu0
      %v2671 = vadd.f32 0.0, %v2670
      %v2672 = vpop.f32.mrb[0].mxu0
      %2673 = vmatprep.mubr.bf16.mxu0 0
      %2674 = vmatmul.mubr.bf16.gmra.mrb[0].mxu0 %v2578
      %v2675 = vpop.f32.mrb[0].mxu0
      %v2676 = vadd.f32 0.0, %v2675
      %v2677 = vpop.f32.mrb[0].mxu0
      %v2678 = vpop.f32.mrb[0].mxu0
      %v2679 = vadd.f32 0.0, %v2678
      %v2680 = vpop.f32.mrb[0].mxu0
      %2681 = vmatprep.mubr.bf16.mxu0 0
      %2682 = vmatmul.mubr.bf16.gmra.mrb[0].mxu0 %v2579
      %v2683 = vpop.f32.mrb[0].mxu0
      %v2684 = vadd.f32 0.0, %v2683
      %v2685 = vpop.f32.mrb[0].mxu0
      %v2686 = vpop.f32.mrb[0].mxu0
      %v2687 = vadd.f32 0.0, %v2686
      %v2688 = vpop.f32.mrb[0].mxu0
      %2689 = vmatprep.mubr.bf16.mxu0 0
      %2690 = vmatmul.mubr.bf16.gmra.mrb[0].mxu0 %v2580
      %v2691 = vpop.f32.mrb[0].mxu0
      %v2692 = vadd.f32 0.0, %v2691
      %v2693 = vpop.f32.mrb[0].mxu0
      %v2694 = vpop.f32.mrb[0].mxu0
      %v2695 = vadd.f32 0.0, %v2694
      %v2696 = vpop.f32.mrb[0].mxu0
      %2697 = vmatprep.mubr.bf16.mxu0 0
      %2698 = vmatmul.mubr.bf16.gmra.mrb[0].mxu0 %v2581
      %v2699 = vpop.f32.mrb[0].mxu0
      %v2700 = vadd.f32 0.0, %v2699
      %v2701 = vpop.f32.mrb[0].mxu0
      %v2702 = vpop.f32.mrb[0].mxu0
      %v2703 = vadd.f32 0.0, %v2702
      %v2704 = vpop.f32.mrb[0].mxu0
      %2705 = vmatprep.mubr.bf16.mxu0 0
      %2706 = vmatmul.mubr.bf16.gmra.mrb[0].mxu0 %v2582
      %v2707 = vpop.f32.mrb[0].mxu0
      %v2708 = vadd.f32 0.0, %v2707
      %v2709 = vpop.f32.mrb[0].mxu0
      %v2710 = vpop.f32.mrb[0].mxu0
      %v2711 = vadd.f32 0.0, %v2710
      %v2712 = vpop.f32.mrb[0].mxu0
      %2713 = vmatprep.mubr.bf16.mxu0 0
      %2714 = vmatmul.mubr.bf16.gmra.mrb[0].mxu0 %v2583
      %v2715 = vpop.f32.mrb[0].mxu0
      %v2716 = vadd.f32 0.0, %v2715
      %v2717 = vpop.f32.mrb[0].mxu0
      %v2718 = vpop.f32.mrb[0].mxu0
      %v2719 = vadd.f32 0.0, %v2718
      %v2720 = vpop.f32.mrb[0].mxu0
      %2721 = vmatprep.mubr.bf16.mxu0 0
      %2722 = vmatmul.mubr.bf16.gmra.mrb[0].mxu0 %v2584
      %v2723 = vpop.f32.mrb[0].mxu0
      %v2724 = vadd.f32 0.0, %v2723
      %v2725 = vpop.f32.mrb[0].mxu0
      %v2726 = vpop.f32.mrb[0].mxu0
      %v2727 = vadd.f32 0.0, %v2726
      %v2728 = vpop.f32.mrb[0].mxu0
      %2729 = vdwg.mxu0
      %v2746 = vunpack.c.l.b16 %v2112
      %v2747 = vunpack.c.l.b16 %v2113
      %v2748 = vunpack.c.l.b16 %v2114
      %v2749 = vunpack.c.l.b16 %v2115
      %v2750 = vunpack.c.l.b16 %v2116
      %v2751 = vunpack.c.l.b16 %v2117
      %v2752 = vunpack.c.l.b16 %v2118
      %v2753 = vunpack.c.l.b16 %v2119
      %v2754 = vunpack.c.l.b16 %v2120
      %v2755 = vunpack.c.l.b16 %v2121
      %v2756 = vunpack.c.l.b16 %v2122
      %v2757 = vunpack.c.l.b16 %v2123
      %v2758 = vunpack.c.l.b16 %v2124
      %v2759 = vunpack.c.l.b16 %v2125
      %v2760 = vunpack.c.l.b16 %v2126
      %v2761 = vunpack.c.l.b16 %v2127
      %v2762 = vpack.c.b16 %v2747, %v2746
      %v2763 = vpack.c.b16 %v2749, %v2748
      %v2764 = vpack.c.b16 %v2751, %v2750
      %v2765 = vpack.c.b16 %v2753, %v2752
      %v2766 = vpack.c.b16 %v2755, %v2754
      %v2767 = vpack.c.b16 %v2757, %v2756
      %v2768 = vpack.c.b16 %v2759, %v2758
      %v2769 = vpack.c.b16 %v2761, %v2760
      %2778 = vmatprep.subr.bf16.mxu0 0
      %2779 = vmatpush1.bf16.msra.mxu0 %v2762
      %2780 = vmatprep.subr.bf16.mxu0 0
      %2781 = vmatpush1.bf16.msra.mxu0 %v2763
      %2782 = vmatprep.subr.bf16.mxu0 0
      %2783 = vmatpush1.bf16.msra.mxu0 %v2764
      %2784 = vmatprep.subr.bf16.mxu0 0
      %2785 = vmatpush1.bf16.msra.mxu0 %v2765
      %2786 = vmatprep.subr.bf16.mxu0 0
      %2787 = vmatpush1.bf16.msra.mxu0 %v2766
      %2788 = vmatprep.subr.bf16.mxu0 0
      %2789 = vmatpush1.bf16.msra.mxu0 %v2767
      %2790 = vmatprep.subr.bf16.mxu0 0
      %2791 = vmatpush1.bf16.msra.mxu0 %v2768
      %2792 = vmatprep.subr.bf16.mxu0 0
      %2793 = vmatpush1.bf16.msra.mxu0 %v2769
      %2794 = vmatprep.subr.bf16.mxu0 0
      %2795 = vmatpush1.bf16.msra.mxu0 0
      %2796 = vmatprep.subr.bf16.mxu0 0
      %2797 = vmatpush1.bf16.msra.mxu0 0
      %2798 = vmatprep.subr.bf16.mxu0 0
      %2799 = vmatpush1.bf16.msra.mxu0 0
      %2800 = vmatprep.subr.bf16.mxu0 0
      %2801 = vmatpush1.bf16.msra.mxu0 0
      %2802 = vmatprep.subr.bf16.mxu0 0
      %2803 = vmatpush1.bf16.msra.mxu0 0
      %2804 = vmatprep.subr.bf16.mxu0 0
      %2805 = vmatpush1.bf16.msra.mxu0 0
      %2806 = vmatprep.subr.bf16.mxu0 0
      %2807 = vmatpush1.bf16.msra.mxu0 0
      %2808 = vmatprep.subr.bf16.mxu0 0
      %2809 = vmatpush1.bf16.msra.mxu0 0
      %2810 = vmatprep.mubr.bf16.mxu0 0
      %2811 = vmatmul.mubr.bf16.gmra.mrb[0].mxu0 %v2577
      %v2812 = vpop.f32.mrb[0].mxu0
      %v2813 = vadd.f32 0.0, %v2812
      %v2814 = vpop.f32.mrb[0].mxu0
      %v2815 = vpop.f32.mrb[0].mxu0
      %v2816 = vadd.f32 0.0, %v2815
      %v2817 = vpop.f32.mrb[0].mxu0
      %2818 = vmatprep.mubr.bf16.mxu0 0
      %2819 = vmatmul.mubr.bf16.gmra.mrb[0].mxu0 %v2578
      %v2820 = vpop.f32.mrb[0].mxu0
      %v2821 = vadd.f32 0.0, %v2820
      %v2822 = vpop.f32.mrb[0].mxu0
      %v2823 = vpop.f32.mrb[0].mxu0
      %v2824 = vadd.f32 0.0, %v2823
      %v2825 = vpop.f32.mrb[0].mxu0
      %2826 = vmatprep.mubr.bf16.mxu0 0
      %2827 = vmatmul.mubr.bf16.gmra.mrb[0].mxu0 %v2579
      %v2828 = vpop.f32.mrb[0].mxu0
      %v2829 = vadd.f32 0.0, %v2828
      %v2830 = vpop.f32.mrb[0].mxu0
      %v2831 = vpop.f32.mrb[0].mxu0
      %v2832 = vadd.f32 0.0, %v2831
      %v2833 = vpop.f32.mrb[0].mxu0
      %2834 = vmatprep.mubr.bf16.mxu0 0
      %2835 = vmatmul.mubr.bf16.gmra.mrb[0].mxu0 %v2580
      %v2836 = vpop.f32.mrb[0].mxu0
      %v2837 = vadd.f32 0.0, %v2836
      %v2838 = vpop.f32.mrb[0].mxu0
      %v2839 = vpop.f32.mrb[0].mxu0
      %v2840 = vadd.f32 0.0, %v2839
      %v2841 = vpop.f32.mrb[0].mxu0
      %2842 = vmatprep.mubr.bf16.mxu0 0
      %2843 = vmatmul.mubr.bf16.gmra.mrb[0].mxu0 %v2581
      %v2844 = vpop.f32.mrb[0].mxu0
      %v2845 = vadd.f32 0.0, %v2844
      %v2846 = vpop.f32.mrb[0].mxu0
      %v2847 = vpop.f32.mrb[0].mxu0
      %v2848 = vadd.f32 0.0, %v2847
      %v2849 = vpop.f32.mrb[0].mxu0
      %2850 = vmatprep.mubr.bf16.mxu0 0
      %2851 = vmatmul.mubr.bf16.gmra.mrb[0].mxu0 %v2582
      %v2852 = vpop.f32.mrb[0].mxu0
      %v2853 = vadd.f32 0.0, %v2852
      %v2854 = vpop.f32.mrb[0].mxu0
      %v2855 = vpop.f32.mrb[0].mxu0
      %v2856 = vadd.f32 0.0, %v2855
      %v2857 = vpop.f32.mrb[0].mxu0
      %2858 = vmatprep.mubr.bf16.mxu0 0
      %2859 = vmatmul.mubr.bf16.gmra.mrb[0].mxu0 %v2583
      %v2860 = vpop.f32.mrb[0].mxu0
      %v2861 = vadd.f32 0.0, %v2860
      %v2862 = vpop.f32.mrb[0].mxu0
      %v2863 = vpop.f32.mrb[0].mxu0
      %v2864 = vadd.f32 0.0, %v2863
      %v2865 = vpop.f32.mrb[0].mxu0
      %2866 = vmatprep.mubr.bf16.mxu0 0
      %2867 = vmatmul.mubr.bf16.gmra.mrb[0].mxu0 %v2584
      %v2868 = vpop.f32.mrb[0].mxu0
      %v2869 = vadd.f32 0.0, %v2868
      %v2870 = vpop.f32.mrb[0].mxu0
      %v2871 = vpop.f32.mrb[0].mxu0
      %v2872 = vadd.f32 0.0, %v2871
      %v2873 = vpop.f32.mrb[0].mxu0
      %2874 = vdwg.mxu0
      %v2875 = vmax.f32 %v2668, %v2813
      %v2876 = vmax.f32 %v2671, %v2816
      %v2877 = vmax.f32 %v2676, %v2821
      %v2878 = vmax.f32 %v2679, %v2824
      %v2879 = vmax.f32 %v2684, %v2829
      %v2880 = vmax.f32 %v2687, %v2832
      %v2881 = vmax.f32 %v2692, %v2837
      %v2882 = vmax.f32 %v2695, %v2840
      %v2883 = vmax.f32 %v2700, %v2845
      %v2884 = vmax.f32 %v2703, %v2848
      %v2885 = vmax.f32 %v2708, %v2853
      %v2886 = vmax.f32 %v2711, %v2856
      %v2887 = vmax.f32 %v2716, %v2861
      %v2888 = vmax.f32 %v2719, %v2864
      %v2889 = vmax.f32 %v2724, %v2869
      %v2890 = vmax.f32 %v2727, %v2872
      %v2891 = vpack.c.bf16 %v2876, %v2875
      %v2892 = vpack.c.bf16 %v2878, %v2877
      %v2893 = vpack.c.bf16 %v2880, %v2879
      %v2894 = vpack.c.bf16 %v2882, %v2881
      %v2895 = vpack.c.bf16 %v2884, %v2883
      %v2896 = vpack.c.bf16 %v2886, %v2885
      %v2897 = vpack.c.bf16 %v2888, %v2887
      %v2898 = vpack.c.bf16 %v2890, %v2889
      %s2899 = scalar_lea.vmem %s2, 32
      %v2900 = vld [vmem:[%s2899] sm:$0xf]
      %v2901 = vld [vmem:[%s2899 + $0x4] sm:$0xf]
      %v2902 = vld [vmem:[%s2899 + $0x8] sm:$0xf]
      %v2903 = vld [vmem:[%s2899 + $0xc] sm:$0xf]
      %v2904 = vld [vmem:[%s2899 + $0x10] sm:$0xf]
      %v2905 = vld [vmem:[%s2899 + $0x14] sm:$0xf]
      %v2906 = vld [vmem:[%s2899 + $0x18] sm:$0xf]
      %v2907 = vld [vmem:[%s2899 + $0x1c] sm:$0xf]
      %v2908 = vlaneseq
      %v2909 = vshrl.u32 %v2908, 7
      %v2910 = vsub.s32 1, %v2909
      %v2911 = vrot.slane %v434, %v2910
      %v2920 = vunpack.c.l.b16 %v2900
      %v2921 = vunpack.c.l.b16 %v2901
      %v2922 = vunpack.c.l.b16 %v2902
      %v2923 = vunpack.c.l.b16 %v2903
      %v2924 = vunpack.c.l.b16 %v2904
      %v2925 = vunpack.c.l.b16 %v2905
      %v2926 = vunpack.c.l.b16 %v2906
      %v2927 = vunpack.c.l.b16 %v2907
      %v2928 = vpack.c.b16 %v2921, %v2920
      %v2929 = vpack.c.b16 %v2923, %v2922
      %v2930 = vpack.c.b16 %v2925, %v2924
      %v2931 = vpack.c.b16 %v2927, %v2926
      %vm2936 = vcmask 523264
      %v2938 = vsel %vm2936, %v2891, 0
      %v2941 = vsel %vm2936, %v2892, 0
      %v2944 = vsel %vm2936, %v2893, 0
      %v2947 = vsel %vm2936, %v2894, 0
      %v2950 = vsel %vm2936, %v2895, 0
      %v2953 = vsel %vm2936, %v2896, 0
      %v2956 = vsel %vm2936, %v2897, 0
      %v2959 = vsel %vm2936, %v2898, 0
      %2961 = vmatprep.subr.bf16.mxu0 0
      %2962 = vmatpush1.bf16.msra.mxu0 %v2928
      %2963 = vmatprep.subr.bf16.mxu0 0
      %2964 = vmatpush1.bf16.msra.mxu0 %v2929
      %2965 = vmatprep.subr.bf16.mxu0 0
      %2966 = vmatpush1.bf16.msra.mxu0 %v2930
      %2967 = vmatprep.subr.bf16.mxu0 0
      %2968 = vmatpush1.bf16.msra.mxu0 %v2931
      %2969 = vmatprep.subr.bf16.mxu0 0
      %2970 = vmatpush1.bf16.msra.mxu0 0
      %2971 = vmatprep.subr.bf16.mxu0 0
      %2972 = vmatpush1.bf16.msra.mxu0 0
      %2973 = vmatprep.subr.bf16.mxu0 0
      %2974 = vmatpush1.bf16.msra.mxu0 0
      %2975 = vmatprep.subr.bf16.mxu0 0
      %2976 = vmatpush1.bf16.msra.mxu0 0
      %2977 = vmatprep.subr.bf16.mxu0 0
      %2978 = vmatpush1.bf16.msra.mxu0 0
      %2979 = vmatprep.subr.bf16.mxu0 0
      %2980 = vmatpush1.bf16.msra.mxu0 0
      %2981 = vmatprep.subr.bf16.mxu0 0
      %2982 = vmatpush1.bf16.msra.mxu0 0
      %2983 = vmatprep.subr.bf16.mxu0 0
      %2984 = vmatpush1.bf16.msra.mxu0 0
      %2985 = vmatprep.subr.bf16.mxu0 0
      %2986 = vmatpush1.bf16.msra.mxu0 0
      %2987 = vmatprep.subr.bf16.mxu0 0
      %2988 = vmatpush1.bf16.msra.mxu0 0
      %2989 = vmatprep.subr.bf16.mxu0 0
      %2990 = vmatpush1.bf16.msra.mxu0 0
      %2991 = vmatprep.subr.bf16.mxu0 0
      %2992 = vmatpush1.bf16.msra.mxu0 0
      %2993 = vmatprep.mubr.bf16.mxu0 0
      %2994 = vmatmul.mubr.bf16.gmra.mrb[0].mxu0 %v2938
      %v2995 = vpop.f32.mrb[0].mxu0
      %v2996 = vadd.f32 %v2911, %v2995
      %v2997 = vpop.f32.mrb[0].mxu0
      %v2998 = vpop.f32.mrb[0].mxu0
      %v2999 = vadd.f32 %v2911, %v2998
      %v3000 = vpop.f32.mrb[0].mxu0
      %3001 = vmatprep.mubr.bf16.mxu0 0
      %3002 = vmatmul.mubr.bf16.gmra.mrb[0].mxu0 %v2941
      %v3003 = vpop.f32.mrb[0].mxu0
      %v3004 = vadd.f32 %v2911, %v3003
      %v3005 = vpop.f32.mrb[0].mxu0
      %v3006 = vpop.f32.mrb[0].mxu0
      %v3007 = vadd.f32 %v2911, %v3006
      %v3008 = vpop.f32.mrb[0].mxu0
      %3009 = vmatprep.mubr.bf16.mxu0 0
      %3010 = vmatmul.mubr.bf16.gmra.mrb[0].mxu0 %v2944
      %v3011 = vpop.f32.mrb[0].mxu0
      %v3012 = vadd.f32 %v2911, %v3011
      %v3013 = vpop.f32.mrb[0].mxu0
      %v3014 = vpop.f32.mrb[0].mxu0
      %v3015 = vadd.f32 %v2911, %v3014
      %v3016 = vpop.f32.mrb[0].mxu0
      %3017 = vmatprep.mubr.bf16.mxu0 0
      %3018 = vmatmul.mubr.bf16.gmra.mrb[0].mxu0 %v2947
      %v3019 = vpop.f32.mrb[0].mxu0
      %v3020 = vadd.f32 %v2911, %v3019
      %v3021 = vpop.f32.mrb[0].mxu0
      %v3022 = vpop.f32.mrb[0].mxu0
      %v3023 = vadd.f32 %v2911, %v3022
      %v3024 = vpop.f32.mrb[0].mxu0
      %3025 = vmatprep.mubr.bf16.mxu0 0
      %3026 = vmatmul.mubr.bf16.gmra.mrb[0].mxu0 %v2950
      %v3027 = vpop.f32.mrb[0].mxu0
      %v3028 = vadd.f32 %v2911, %v3027
      %v3029 = vpop.f32.mrb[0].mxu0
      %v3030 = vpop.f32.mrb[0].mxu0
      %v3031 = vadd.f32 %v2911, %v3030
      %v3032 = vpop.f32.mrb[0].mxu0
      %3033 = vmatprep.mubr.bf16.mxu0 0
      %3034 = vmatmul.mubr.bf16.gmra.mrb[0].mxu0 %v2953
      %v3035 = vpop.f32.mrb[0].mxu0
      %v3036 = vadd.f32 %v2911, %v3035
      %v3037 = vpop.f32.mrb[0].mxu0
      %v3038 = vpop.f32.mrb[0].mxu0
      %v3039 = vadd.f32 %v2911, %v3038
      %v3040 = vpop.f32.mrb[0].mxu0
      %3041 = vmatprep.mubr.bf16.mxu0 0
      %3042 = vmatmul.mubr.bf16.gmra.mrb[0].mxu0 %v2956
      %v3043 = vpop.f32.mrb[0].mxu0
      %v3044 = vadd.f32 %v2911, %v3043
      %v3045 = vpop.f32.mrb[0].mxu0
      %v3046 = vpop.f32.mrb[0].mxu0
      %v3047 = vadd.f32 %v2911, %v3046
      %v3048 = vpop.f32.mrb[0].mxu0
      %3049 = vmatprep.mubr.bf16.mxu0 0
      %3050 = vmatmul.mubr.bf16.gmra.mrb[0].mxu0 %v2959
      %v3051 = vpop.f32.mrb[0].mxu0
      %v3052 = vadd.f32 %v2911, %v3051
      %v3053 = vpop.f32.mrb[0].mxu0
      %v3054 = vpop.f32.mrb[0].mxu0
      %v3055 = vadd.f32 %v2911, %v3054
      %v3056 = vpop.f32.mrb[0].mxu0
      %3057 = vdwg.mxu0
      %v3058 = vld [vmem:[%s2] sm:$0xf]
      %v3059 = vld [vmem:[%s2 + $0x4] sm:$0xf]
      %v3060 = vld [vmem:[%s2 + $0x8] sm:$0xf]
      %v3061 = vld [vmem:[%s2 + $0xc] sm:$0xf]
      %v3062 = vld [vmem:[%s2 + $0x10] sm:$0xf]
      %v3063 = vld [vmem:[%s2 + $0x14] sm:$0xf]
      %v3064 = vld [vmem:[%s2 + $0x18] sm:$0xf]
      %v3065 = vld [vmem:[%s2 + $0x1c] sm:$0xf]
      %v3074 = vunpack.c.l.b16 %v3058
      %v3075 = vunpack.c.l.b16 %v3059
      %v3076 = vunpack.c.l.b16 %v3060
      %v3077 = vunpack.c.l.b16 %v3061
      %v3078 = vunpack.c.l.b16 %v3062
      %v3079 = vunpack.c.l.b16 %v3063
      %v3080 = vunpack.c.l.b16 %v3064
      %v3081 = vunpack.c.l.b16 %v3065
      %v3082 = vpack.c.b16 %v3075, %v3074
      %v3083 = vpack.c.b16 %v3077, %v3076
      %v3084 = vpack.c.b16 %v3079, %v3078
      %v3085 = vpack.c.b16 %v3081, %v3080
      %3090 = vmatprep.subr.bf16.mxu0 0
      %3091 = vmatpush1.bf16.msra.mxu0 %v3082
      %3092 = vmatprep.subr.bf16.mxu0 0
      %3093 = vmatpush1.bf16.msra.mxu0 %v3083
      %3094 = vmatprep.subr.bf16.mxu0 0
      %3095 = vmatpush1.bf16.msra.mxu0 %v3084
      %3096 = vmatprep.subr.bf16.mxu0 0
      %3097 = vmatpush1.bf16.msra.mxu0 %v3085
      %3098 = vmatprep.subr.bf16.mxu0 0
      %3099 = vmatpush1.bf16.msra.mxu0 0
      %3100 = vmatprep.subr.bf16.mxu0 0
      %3101 = vmatpush1.bf16.msra.mxu0 0
      %3102 = vmatprep.subr.bf16.mxu0 0
      %3103 = vmatpush1.bf16.msra.mxu0 0
      %3104 = vmatprep.subr.bf16.mxu0 0
      %3105 = vmatpush1.bf16.msra.mxu0 0
      %3106 = vmatprep.subr.bf16.mxu0 0
      %3107 = vmatpush1.bf16.msra.mxu0 0
      %3108 = vmatprep.subr.bf16.mxu0 0
      %3109 = vmatpush1.bf16.msra.mxu0 0
      %3110 = vmatprep.subr.bf16.mxu0 0
      %3111 = vmatpush1.bf16.msra.mxu0 0
      %3112 = vmatprep.subr.bf16.mxu0 0
      %3113 = vmatpush1.bf16.msra.mxu0 0
      %3114 = vmatprep.subr.bf16.mxu0 0
      %3115 = vmatpush1.bf16.msra.mxu0 0
      %3116 = vmatprep.subr.bf16.mxu0 0
      %3117 = vmatpush1.bf16.msra.mxu0 0
      %3118 = vmatprep.subr.bf16.mxu0 0
      %3119 = vmatpush1.bf16.msra.mxu0 0
      %3120 = vmatprep.subr.bf16.mxu0 0
      %3121 = vmatpush1.bf16.msra.mxu0 0
      %3122 = vmatprep.mubr.bf16.mxu0 0
      %3123 = vmatmul.mubr.bf16.gmra.mrb[0].mxu0 %v2938
      %v3124 = vpop.f32.mrb[0].mxu0
      %v3125 = vadd.f32 0.0, %v3124
      %v3126 = vpop.f32.mrb[0].mxu0
      %v3127 = vpop.f32.mrb[0].mxu0
      %v3128 = vadd.f32 0.0, %v3127
      %v3129 = vpop.f32.mrb[0].mxu0
      %3130 = vmatprep.mubr.bf16.mxu0 0
      %3131 = vmatmul.mubr.bf16.gmra.mrb[0].mxu0 %v2941
      %v3132 = vpop.f32.mrb[0].mxu0
      %v3133 = vadd.f32 0.0, %v3132
      %v3134 = vpop.f32.mrb[0].mxu0
      %v3135 = vpop.f32.mrb[0].mxu0
      %v3136 = vadd.f32 0.0, %v3135
      %v3137 = vpop.f32.mrb[0].mxu0
      %3138 = vmatprep.mubr.bf16.mxu0 0
      %3139 = vmatmul.mubr.bf16.gmra.mrb[0].mxu0 %v2944
      %v3140 = vpop.f32.mrb[0].mxu0
      %v3141 = vadd.f32 0.0, %v3140
      %v3142 = vpop.f32.mrb[0].mxu0
      %v3143 = vpop.f32.mrb[0].mxu0
      %v3144 = vadd.f32 0.0, %v3143
      %v3145 = vpop.f32.mrb[0].mxu0
      %3146 = vmatprep.mubr.bf16.mxu0 0
      %3147 = vmatmul.mubr.bf16.gmra.mrb[0].mxu0 %v2947
      %v3148 = vpop.f32.mrb[0].mxu0
      %v3149 = vadd.f32 0.0, %v3148
      %v3150 = vpop.f32.mrb[0].mxu0
      %v3151 = vpop.f32.mrb[0].mxu0
      %v3152 = vadd.f32 0.0, %v3151
      %v3153 = vpop.f32.mrb[0].mxu0
      %3154 = vmatprep.mubr.bf16.mxu0 0
      %3155 = vmatmul.mubr.bf16.gmra.mrb[0].mxu0 %v2950
      %v3156 = vpop.f32.mrb[0].mxu0
      %v3157 = vadd.f32 0.0, %v3156
      %v3158 = vpop.f32.mrb[0].mxu0
      %v3159 = vpop.f32.mrb[0].mxu0
      %v3160 = vadd.f32 0.0, %v3159
      %v3161 = vpop.f32.mrb[0].mxu0
      %3162 = vmatprep.mubr.bf16.mxu0 0
      %3163 = vmatmul.mubr.bf16.gmra.mrb[0].mxu0 %v2953
      %v3164 = vpop.f32.mrb[0].mxu0
      %v3165 = vadd.f32 0.0, %v3164
      %v3166 = vpop.f32.mrb[0].mxu0
      %v3167 = vpop.f32.mrb[0].mxu0
      %v3168 = vadd.f32 0.0, %v3167
      %v3169 = vpop.f32.mrb[0].mxu0
      %3170 = vmatprep.mubr.bf16.mxu0 0
      %3171 = vmatmul.mubr.bf16.gmra.mrb[0].mxu0 %v2956
      %v3172 = vpop.f32.mrb[0].mxu0
      %v3173 = vadd.f32 0.0, %v3172
      %v3174 = vpop.f32.mrb[0].mxu0
      %v3175 = vpop.f32.mrb[0].mxu0
      %v3176 = vadd.f32 0.0, %v3175
      %v3177 = vpop.f32.mrb[0].mxu0
      %3178 = vmatprep.mubr.bf16.mxu0 0
      %3179 = vmatmul.mubr.bf16.gmra.mrb[0].mxu0 %v2959
      %v3180 = vpop.f32.mrb[0].mxu0
      %v3181 = vadd.f32 0.0, %v3180
      %v3182 = vpop.f32.mrb[0].mxu0
      %v3183 = vpop.f32.mrb[0].mxu0
      %v3184 = vadd.f32 0.0, %v3183
      %v3185 = vpop.f32.mrb[0].mxu0
      %3186 = vdwg.mxu0
      %v3187 = vrot.slane %v3125, 7
      %v3188 = vrot.slane %v3128, 7
      %v3189 = vrot.slane %v3133, 7
      %v3190 = vrot.slane %v3136, 7
      %v3191 = vrot.slane %v3141, 7
      %v3192 = vrot.slane %v3144, 7
      %v3193 = vrot.slane %v3149, 7
      %v3194 = vrot.slane %v3152, 7
      %v3195 = vrot.slane %v3157, 7
      %v3196 = vrot.slane %v3160, 7
      %v3197 = vrot.slane %v3165, 7
      %v3198 = vrot.slane %v3168, 7
      %v3199 = vrot.slane %v3173, 7
      %v3200 = vrot.slane %v3176, 7
      %v3201 = vrot.slane %v3181, 7
      %v3202 = vrot.slane %v3184, 7
      %v3203 = vsel %vm977, %v3201, %v3202
      %v3204 = vsel %vm977, %v3200, %v3201
      %v3205 = vsel %vm977, %v3199, %v3200
      %v3206 = vsel %vm977, %v3198, %v3199
      %v3207 = vsel %vm977, %v3197, %v3198
      %v3208 = vsel %vm977, %v3196, %v3197
      %v3209 = vsel %vm977, %v3195, %v3196
      %v3210 = vsel %vm977, %v3194, %v3195
      %v3211 = vsel %vm977, %v3193, %v3194
      %v3212 = vsel %vm977, %v3192, %v3193
      %v3213 = vsel %vm977, %v3191, %v3192
      %v3214 = vsel %vm977, %v3190, %v3191
      %v3215 = vsel %vm977, %v3189, %v3190
      %v3216 = vsel %vm977, %v3188, %v3189
      %v3217 = vsel %vm977, %v3187, %v3188
      %v3218 = vsel %vm977, %v3202, %v3187
      %v3219 = vmul.f32 %v1012, %v3218
      %v3220 = vmul.f32 %v1012, %v3217
      %v3221 = vmul.f32 %v1012, %v3216
      %v3222 = vmul.f32 %v1012, %v3215
      %v3223 = vmul.f32 %v1012, %v3214
      %v3224 = vmul.f32 %v1012, %v3213
      %v3225 = vmul.f32 %v1012, %v3212
      %v3226 = vmul.f32 %v1012, %v3211
      %v3227 = vmul.f32 %v1012, %v3210
      %v3228 = vmul.f32 %v1012, %v3209
      %v3229 = vmul.f32 %v1012, %v3208
      %v3230 = vmul.f32 %v1012, %v3207
      %v3231 = vmul.f32 %v1012, %v3206
      %v3232 = vmul.f32 %v1012, %v3205
      %v3233 = vmul.f32 %v1012, %v3204
      %v3234 = vmul.f32 %v1012, %v3203
      %v3235 = vrot.slane %v3125, 1
      %v3236 = vrot.slane %v3128, 1
      %v3237 = vrot.slane %v3133, 1
      %v3238 = vrot.slane %v3136, 1
      %v3239 = vrot.slane %v3141, 1
      %v3240 = vrot.slane %v3144, 1
      %v3241 = vrot.slane %v3149, 1
      %v3242 = vrot.slane %v3152, 1
      %v3243 = vrot.slane %v3157, 1
      %v3244 = vrot.slane %v3160, 1
      %v3245 = vrot.slane %v3165, 1
      %v3246 = vrot.slane %v3168, 1
      %v3247 = vrot.slane %v3173, 1
      %v3248 = vrot.slane %v3176, 1
      %v3249 = vrot.slane %v3181, 1
      %v3250 = vrot.slane %v3184, 1
      %v3251 = vsel %vm1079, %v3249, %v3250
      %v3252 = vsel %vm1079, %v3248, %v3249
      %v3253 = vsel %vm1079, %v3247, %v3248
      %v3254 = vsel %vm1079, %v3246, %v3247
      %v3255 = vsel %vm1079, %v3245, %v3246
      %v3256 = vsel %vm1079, %v3244, %v3245
      %v3257 = vsel %vm1079, %v3243, %v3244
      %v3258 = vsel %vm1079, %v3242, %v3243
      %v3259 = vsel %vm1079, %v3241, %v3242
      %v3260 = vsel %vm1079, %v3240, %v3241
      %v3261 = vsel %vm1079, %v3239, %v3240
      %v3262 = vsel %vm1079, %v3238, %v3239
      %v3263 = vsel %vm1079, %v3237, %v3238
      %v3264 = vsel %vm1079, %v3236, %v3237
      %v3265 = vsel %vm1079, %v3235, %v3236
      %v3266 = vsel %vm1079, %v3250, %v3235
      %v3267 = vmul.f32 %v1114, %v3265
      %v3268 = vmul.f32 %v1114, %v3264
      %v3269 = vmul.f32 %v1114, %v3263
      %v3270 = vmul.f32 %v1114, %v3262
      %v3271 = vmul.f32 %v1114, %v3261
      %v3272 = vmul.f32 %v1114, %v3260
      %v3273 = vmul.f32 %v1114, %v3259
      %v3274 = vmul.f32 %v1114, %v3258
      %v3275 = vmul.f32 %v1114, %v3257
      %v3276 = vmul.f32 %v1114, %v3256
      %v3277 = vmul.f32 %v1114, %v3255
      %v3278 = vmul.f32 %v1114, %v3254
      %v3279 = vmul.f32 %v1114, %v3253
      %v3280 = vmul.f32 %v1114, %v3252
      %v3281 = vmul.f32 %v1114, %v3251
      %v3282 = vmul.f32 %v1114, %v3266
      %v3283 = vadd.f32 %v3219, %v3267
      %v3284 = vadd.f32 %v3220, %v3268
      %v3285 = vadd.f32 %v3221, %v3269
      %v3286 = vadd.f32 %v3222, %v3270
      %v3287 = vadd.f32 %v3223, %v3271
      %v3288 = vadd.f32 %v3224, %v3272
      %v3289 = vadd.f32 %v3225, %v3273
      %v3290 = vadd.f32 %v3226, %v3274
      %v3291 = vadd.f32 %v3227, %v3275
      %v3292 = vadd.f32 %v3228, %v3276
      %v3293 = vadd.f32 %v3229, %v3277
      %v3294 = vadd.f32 %v3230, %v3278
      %v3295 = vadd.f32 %v3231, %v3279
      %v3296 = vadd.f32 %v3232, %v3280
      %v3297 = vadd.f32 %v3233, %v3281
      %v3298 = vadd.f32 %v3234, %v3282
      %3299 = vset.pattern.permute.xlu0 2
      %3300 = vperm.xlu0 %3299, %v402
      %v3301 = vpop.permute.xlu0 %3300
      %3303 = vset.pattern.permute.xlu0 2
      %3304 = vperm.xlu0 %3303, %v403
      %v3305 = vpop.permute.xlu0 %3304
      %3307 = vset.pattern.permute.xlu0 2
      %3308 = vperm.xlu0 %3307, %v404
      %v3309 = vpop.permute.xlu0 %3308
      %3311 = vset.pattern.permute.xlu0 2
      %3312 = vperm.xlu0 %3311, %v405
      %v3313 = vpop.permute.xlu0 %3312
      %3315 = vset.pattern.permute.xlu0 2
      %3316 = vperm.xlu0 %3315, %v406
      %v3317 = vpop.permute.xlu0 %3316
      %3319 = vset.pattern.permute.xlu0 2
      %3320 = vperm.xlu0 %3319, %v407
      %v3321 = vpop.permute.xlu0 %3320
      %3323 = vset.pattern.permute.xlu0 2
      %3324 = vperm.xlu0 %3323, %v408
      %v3325 = vpop.permute.xlu0 %3324
      %3327 = vset.pattern.permute.xlu0 2
      %3328 = vperm.xlu0 %3327, %v409
      %v3329 = vpop.permute.xlu0 %3328
      %3331 = vset.pattern.permute.xlu0 2
      %3332 = vperm.xlu0 %3331, %v410
      %v3333 = vpop.permute.xlu0 %3332
      %3335 = vset.pattern.permute.xlu0 2
      %3336 = vperm.xlu0 %3335, %v411
      %v3337 = vpop.permute.xlu0 %3336
      %3339 = vset.pattern.permute.xlu0 2
      %3340 = vperm.xlu0 %3339, %v412
      %v3341 = vpop.permute.xlu0 %3340
      %3343 = vset.pattern.permute.xlu0 2
      %3344 = vperm.xlu0 %3343, %v413
      %v3345 = vpop.permute.xlu0 %3344
      %3347 = vset.pattern.permute.xlu0 2
      %3348 = vperm.xlu0 %3347, %v414
      %v3349 = vpop.permute.xlu0 %3348
      %3351 = vset.pattern.permute.xlu0 2
      %3352 = vperm.xlu0 %3351, %v415
      %v3353 = vpop.permute.xlu0 %3352
      %3355 = vset.pattern.permute.xlu0 2
      %3356 = vperm.xlu0 %3355, %v416
      %v3357 = vpop.permute.xlu0 %3356
      %3359 = vset.pattern.permute.xlu0 2
      %3360 = vperm.xlu0 %3359, %v417
      %v3361 = vpop.permute.xlu0 %3360
      %v3363 = vmul.f32 %v3301, %v3283
      %v3364 = vmul.f32 %v3305, %v3284
      %v3365 = vmul.f32 %v3309, %v3285
      %v3366 = vmul.f32 %v3313, %v3286
      %v3367 = vmul.f32 %v3317, %v3287
      %v3368 = vmul.f32 %v3321, %v3288
      %v3369 = vmul.f32 %v3325, %v3289
      %v3370 = vmul.f32 %v3329, %v3290
      %v3371 = vmul.f32 %v3333, %v3291
      %v3372 = vmul.f32 %v3337, %v3292
      %v3373 = vmul.f32 %v3341, %v3293
      %v3374 = vmul.f32 %v3345, %v3294
      %v3375 = vmul.f32 %v3349, %v3295
      %v3376 = vmul.f32 %v3353, %v3296
      %v3377 = vmul.f32 %v3357, %v3297
      %v3378 = vmul.f32 %v3361, %v3298
      %v3379 = vadd.f32 %v2996, %v3363
      %v3380 = vadd.f32 %v2999, %v3364
      %v3381 = vadd.f32 %v3004, %v3365
      %v3382 = vadd.f32 %v3007, %v3366
      %v3383 = vadd.f32 %v3012, %v3367
      %v3384 = vadd.f32 %v3015, %v3368
      %v3385 = vadd.f32 %v3020, %v3369
      %v3386 = vadd.f32 %v3023, %v3370
      %v3387 = vadd.f32 %v3028, %v3371
      %v3388 = vadd.f32 %v3031, %v3372
      %v3389 = vadd.f32 %v3036, %v3373
      %v3390 = vadd.f32 %v3039, %v3374
      %v3391 = vadd.f32 %v3044, %v3375
      %v3392 = vadd.f32 %v3047, %v3376
      %v3393 = vadd.f32 %v3052, %v3377
      %v3394 = vadd.f32 %v3055, %v3378
      %s3395 = scalar_lea.vmem %s2, 64
      %v3396 = vld [vmem:[%s3395] sm:$0xf]
      %v3397 = vld [vmem:[%s3395 + $0x4] sm:$0xf]
      %v3398 = vld [vmem:[%s3395 + $0x8] sm:$0xf]
      %v3399 = vld [vmem:[%s3395 + $0xc] sm:$0xf]
      %v3400 = vld [vmem:[%s3395 + $0x10] sm:$0xf]
      %v3401 = vld [vmem:[%s3395 + $0x14] sm:$0xf]
      %v3402 = vld [vmem:[%s3395 + $0x18] sm:$0xf]
      %v3403 = vld [vmem:[%s3395 + $0x1c] sm:$0xf]
      %v3412 = vunpack.c.l.b16 %v3396
      %v3413 = vunpack.c.l.b16 %v3397
      %v3414 = vunpack.c.l.b16 %v3398
      %v3415 = vunpack.c.l.b16 %v3399
      %v3416 = vunpack.c.l.b16 %v3400
      %v3417 = vunpack.c.l.b16 %v3401
      %v3418 = vunpack.c.l.b16 %v3402
      %v3419 = vunpack.c.l.b16 %v3403
      %v3420 = vpack.c.b16 %v3413, %v3412
      %v3421 = vpack.c.b16 %v3415, %v3414
      %v3422 = vpack.c.b16 %v3417, %v3416
      %v3423 = vpack.c.b16 %v3419, %v3418
      %3428 = vmatprep.subr.bf16.mxu0 0
      %3429 = vmatpush1.bf16.msra.mxu0 %v3420
      %3430 = vmatprep.subr.bf16.mxu0 0
      %3431 = vmatpush1.bf16.msra.mxu0 %v3421
      %3432 = vmatprep.subr.bf16.mxu0 0
      %3433 = vmatpush1.bf16.msra.mxu0 %v3422
      %3434 = vmatprep.subr.bf16.mxu0 0
      %3435 = vmatpush1.bf16.msra.mxu0 %v3423
      %3436 = vmatprep.subr.bf16.mxu0 0
      %3437 = vmatpush1.bf16.msra.mxu0 0
      %3438 = vmatprep.subr.bf16.mxu0 0
      %3439 = vmatpush1.bf16.msra.mxu0 0
      %3440 = vmatprep.subr.bf16.mxu0 0
      %3441 = vmatpush1.bf16.msra.mxu0 0
      %3442 = vmatprep.subr.bf16.mxu0 0
      %3443 = vmatpush1.bf16.msra.mxu0 0
      %3444 = vmatprep.subr.bf16.mxu0 0
      %3445 = vmatpush1.bf16.msra.mxu0 0
      %3446 = vmatprep.subr.bf16.mxu0 0
      %3447 = vmatpush1.bf16.msra.mxu0 0
      %3448 = vmatprep.subr.bf16.mxu0 0
      %3449 = vmatpush1.bf16.msra.mxu0 0
      %3450 = vmatprep.subr.bf16.mxu0 0
      %3451 = vmatpush1.bf16.msra.mxu0 0
      %3452 = vmatprep.subr.bf16.mxu0 0
      %3453 = vmatpush1.bf16.msra.mxu0 0
      %3454 = vmatprep.subr.bf16.mxu0 0
      %3455 = vmatpush1.bf16.msra.mxu0 0
      %3456 = vmatprep.subr.bf16.mxu0 0
      %3457 = vmatpush1.bf16.msra.mxu0 0
      %3458 = vmatprep.subr.bf16.mxu0 0
      %3459 = vmatpush1.bf16.msra.mxu0 0
      %3460 = vmatprep.mubr.bf16.mxu0 0
      %3461 = vmatmul.mubr.bf16.gmra.mrb[0].mxu0 %v2938
      %v3462 = vpop.f32.mrb[0].mxu0
      %v3463 = vadd.f32 0.0, %v3462
      %v3464 = vpop.f32.mrb[0].mxu0
      %v3465 = vpop.f32.mrb[0].mxu0
      %v3466 = vadd.f32 0.0, %v3465
      %v3467 = vpop.f32.mrb[0].mxu0
      %3468 = vmatprep.mubr.bf16.mxu0 0
      %3469 = vmatmul.mubr.bf16.gmra.mrb[0].mxu0 %v2941
      %v3470 = vpop.f32.mrb[0].mxu0
      %v3471 = vadd.f32 0.0, %v3470
      %v3472 = vpop.f32.mrb[0].mxu0
      %v3473 = vpop.f32.mrb[0].mxu0
      %v3474 = vadd.f32 0.0, %v3473
      %v3475 = vpop.f32.mrb[0].mxu0
      %3476 = vmatprep.mubr.bf16.mxu0 0
      %3477 = vmatmul.mubr.bf16.gmra.mrb[0].mxu0 %v2944
      %v3478 = vpop.f32.mrb[0].mxu0
      %v3479 = vadd.f32 0.0, %v3478
      %v3480 = vpop.f32.mrb[0].mxu0
      %v3481 = vpop.f32.mrb[0].mxu0
      %v3482 = vadd.f32 0.0, %v3481
      %v3483 = vpop.f32.mrb[0].mxu0
      %3484 = vmatprep.mubr.bf16.mxu0 0
      %3485 = vmatmul.mubr.bf16.gmra.mrb[0].mxu0 %v2947
      %v3486 = vpop.f32.mrb[0].mxu0
      %v3487 = vadd.f32 0.0, %v3486
      %v3488 = vpop.f32.mrb[0].mxu0
      %v3489 = vpop.f32.mrb[0].mxu0
      %v3490 = vadd.f32 0.0, %v3489
      %v3491 = vpop.f32.mrb[0].mxu0
      %3492 = vmatprep.mubr.bf16.mxu0 0
      %3493 = vmatmul.mubr.bf16.gmra.mrb[0].mxu0 %v2950
      %v3494 = vpop.f32.mrb[0].mxu0
      %v3495 = vadd.f32 0.0, %v3494
      %v3496 = vpop.f32.mrb[0].mxu0
      %v3497 = vpop.f32.mrb[0].mxu0
      %v3498 = vadd.f32 0.0, %v3497
      %v3499 = vpop.f32.mrb[0].mxu0
      %3500 = vmatprep.mubr.bf16.mxu0 0
      %3501 = vmatmul.mubr.bf16.gmra.mrb[0].mxu0 %v2953
      %v3502 = vpop.f32.mrb[0].mxu0
      %v3503 = vadd.f32 0.0, %v3502
      %v3504 = vpop.f32.mrb[0].mxu0
      %v3505 = vpop.f32.mrb[0].mxu0
      %v3506 = vadd.f32 0.0, %v3505
      %v3507 = vpop.f32.mrb[0].mxu0
      %3508 = vmatprep.mubr.bf16.mxu0 0
      %3509 = vmatmul.mubr.bf16.gmra.mrb[0].mxu0 %v2956
      %v3510 = vpop.f32.mrb[0].mxu0
      %v3511 = vadd.f32 0.0, %v3510
      %v3512 = vpop.f32.mrb[0].mxu0
      %v3513 = vpop.f32.mrb[0].mxu0
      %v3514 = vadd.f32 0.0, %v3513
      %v3515 = vpop.f32.mrb[0].mxu0
      %3516 = vmatprep.mubr.bf16.mxu0 0
      %3517 = vmatmul.mubr.bf16.gmra.mrb[0].mxu0 %v2959
      %v3518 = vpop.f32.mrb[0].mxu0
      %v3519 = vadd.f32 0.0, %v3518
      %v3520 = vpop.f32.mrb[0].mxu0
      %v3521 = vpop.f32.mrb[0].mxu0
      %v3522 = vadd.f32 0.0, %v3521
      %v3523 = vpop.f32.mrb[0].mxu0
      %3524 = vdwg.mxu0
      %v3525 = vrot.slane %v3463, 1
      %v3526 = vrot.slane %v3466, 1
      %v3527 = vrot.slane %v3471, 1
      %v3528 = vrot.slane %v3474, 1
      %v3529 = vrot.slane %v3479, 1
      %v3530 = vrot.slane %v3482, 1
      %v3531 = vrot.slane %v3487, 1
      %v3532 = vrot.slane %v3490, 1
      %v3533 = vrot.slane %v3495, 1
      %v3534 = vrot.slane %v3498, 1
      %v3535 = vrot.slane %v3503, 1
      %v3536 = vrot.slane %v3506, 1
      %v3537 = vrot.slane %v3511, 1
      %v3538 = vrot.slane %v3514, 1
      %v3539 = vrot.slane %v3519, 1
      %v3540 = vrot.slane %v3522, 1
      %v3541 = vsel %vm1079, %v3539, %v3540
      %v3542 = vsel %vm1079, %v3538, %v3539
      %v3543 = vsel %vm1079, %v3537, %v3538
      %v3544 = vsel %vm1079, %v3536, %v3537
      %v3545 = vsel %vm1079, %v3535, %v3536
      %v3546 = vsel %vm1079, %v3534, %v3535
      %v3547 = vsel %vm1079, %v3533, %v3534
      %v3548 = vsel %vm1079, %v3532, %v3533
      %v3549 = vsel %vm1079, %v3531, %v3532
      %v3550 = vsel %vm1079, %v3530, %v3531
      %v3551 = vsel %vm1079, %v3529, %v3530
      %v3552 = vsel %vm1079, %v3528, %v3529
      %v3553 = vsel %vm1079, %v3527, %v3528
      %v3554 = vsel %vm1079, %v3526, %v3527
      %v3555 = vsel %vm1079, %v3525, %v3526
      %v3556 = vsel %vm1079, %v3540, %v3525
      %v3557 = vmul.f32 %v1012, %v3555
      %v3558 = vmul.f32 %v1012, %v3554
      %v3559 = vmul.f32 %v1012, %v3553
      %v3560 = vmul.f32 %v1012, %v3552
      %v3561 = vmul.f32 %v1012, %v3551
      %v3562 = vmul.f32 %v1012, %v3550
      %v3563 = vmul.f32 %v1012, %v3549
      %v3564 = vmul.f32 %v1012, %v3548
      %v3565 = vmul.f32 %v1012, %v3547
      %v3566 = vmul.f32 %v1012, %v3546
      %v3567 = vmul.f32 %v1012, %v3545
      %v3568 = vmul.f32 %v1012, %v3544
      %v3569 = vmul.f32 %v1012, %v3543
      %v3570 = vmul.f32 %v1012, %v3542
      %v3571 = vmul.f32 %v1012, %v3541
      %v3572 = vmul.f32 %v1012, %v3556
      %v3573 = vrot.slane %v3463, 7
      %v3574 = vrot.slane %v3466, 7
      %v3575 = vrot.slane %v3471, 7
      %v3576 = vrot.slane %v3474, 7
      %v3577 = vrot.slane %v3479, 7
      %v3578 = vrot.slane %v3482, 7
      %v3579 = vrot.slane %v3487, 7
      %v3580 = vrot.slane %v3490, 7
      %v3581 = vrot.slane %v3495, 7
      %v3582 = vrot.slane %v3498, 7
      %v3583 = vrot.slane %v3503, 7
      %v3584 = vrot.slane %v3506, 7
      %v3585 = vrot.slane %v3511, 7
      %v3586 = vrot.slane %v3514, 7
      %v3587 = vrot.slane %v3519, 7
      %v3588 = vrot.slane %v3522, 7
      %v3589 = vsel %vm977, %v3587, %v3588
      %v3590 = vsel %vm977, %v3586, %v3587
      %v3591 = vsel %vm977, %v3585, %v3586
      %v3592 = vsel %vm977, %v3584, %v3585
      %v3593 = vsel %vm977, %v3583, %v3584
      %v3594 = vsel %vm977, %v3582, %v3583
      %v3595 = vsel %vm977, %v3581, %v3582
      %v3596 = vsel %vm977, %v3580, %v3581
      %v3597 = vsel %vm977, %v3579, %v3580
      %v3598 = vsel %vm977, %v3578, %v3579
      %v3599 = vsel %vm977, %v3577, %v3578
      %v3600 = vsel %vm977, %v3576, %v3577
      %v3601 = vsel %vm977, %v3575, %v3576
      %v3602 = vsel %vm977, %v3574, %v3575
      %v3603 = vsel %vm977, %v3573, %v3574
      %v3604 = vsel %vm977, %v3588, %v3573
      %v3605 = vmul.f32 %v1114, %v3604
      %v3606 = vmul.f32 %v1114, %v3603
      %v3607 = vmul.f32 %v1114, %v3602
      %v3608 = vmul.f32 %v1114, %v3601
      %v3609 = vmul.f32 %v1114, %v3600
      %v3610 = vmul.f32 %v1114, %v3599
      %v3611 = vmul.f32 %v1114, %v3598
      %v3612 = vmul.f32 %v1114, %v3597
      %v3613 = vmul.f32 %v1114, %v3596
      %v3614 = vmul.f32 %v1114, %v3595
      %v3615 = vmul.f32 %v1114, %v3594
      %v3616 = vmul.f32 %v1114, %v3593
      %v3617 = vmul.f32 %v1114, %v3592
      %v3618 = vmul.f32 %v1114, %v3591
      %v3619 = vmul.f32 %v1114, %v3590
      %v3620 = vmul.f32 %v1114, %v3589
      %v3621 = vadd.f32 %v3557, %v3605
      %v3622 = vadd.f32 %v3558, %v3606
      %v3623 = vadd.f32 %v3559, %v3607
      %v3624 = vadd.f32 %v3560, %v3608
      %v3625 = vadd.f32 %v3561, %v3609
      %v3626 = vadd.f32 %v3562, %v3610
      %v3627 = vadd.f32 %v3563, %v3611
      %v3628 = vadd.f32 %v3564, %v3612
      %v3629 = vadd.f32 %v3565, %v3613
      %v3630 = vadd.f32 %v3566, %v3614
      %v3631 = vadd.f32 %v3567, %v3615
      %v3632 = vadd.f32 %v3568, %v3616
      %v3633 = vadd.f32 %v3569, %v3617
      %v3634 = vadd.f32 %v3570, %v3618
      %v3635 = vadd.f32 %v3571, %v3619
      %v3636 = vadd.f32 %v3572, %v3620
      %3637 = vset.pattern.permute.xlu0 3
      %3638 = vperm.xlu0 %3637, %v402
      %v3639 = vpop.permute.xlu0 %3638
      %3641 = vset.pattern.permute.xlu0 3
      %3642 = vperm.xlu0 %3641, %v403
      %v3643 = vpop.permute.xlu0 %3642
      %3645 = vset.pattern.permute.xlu0 3
      %3646 = vperm.xlu0 %3645, %v404
      %v3647 = vpop.permute.xlu0 %3646
      %3649 = vset.pattern.permute.xlu0 3
      %3650 = vperm.xlu0 %3649, %v405
      %v3651 = vpop.permute.xlu0 %3650
      %3653 = vset.pattern.permute.xlu0 3
      %3654 = vperm.xlu0 %3653, %v406
      %v3655 = vpop.permute.xlu0 %3654
      %3657 = vset.pattern.permute.xlu0 3
      %3658 = vperm.xlu0 %3657, %v407
      %v3659 = vpop.permute.xlu0 %3658
      %3661 = vset.pattern.permute.xlu0 3
      %3662 = vperm.xlu0 %3661, %v408
      %v3663 = vpop.permute.xlu0 %3662
      %3665 = vset.pattern.permute.xlu0 3
      %3666 = vperm.xlu0 %3665, %v409
      %v3667 = vpop.permute.xlu0 %3666
      %3669 = vset.pattern.permute.xlu0 3
      %3670 = vperm.xlu0 %3669, %v410
      %v3671 = vpop.permute.xlu0 %3670
      %3673 = vset.pattern.permute.xlu0 3
      %3674 = vperm.xlu0 %3673, %v411
      %v3675 = vpop.permute.xlu0 %3674
      %3677 = vset.pattern.permute.xlu0 3
      %3678 = vperm.xlu0 %3677, %v412
      %v3679 = vpop.permute.xlu0 %3678
      %3681 = vset.pattern.permute.xlu0 3
      %3682 = vperm.xlu0 %3681, %v413
      %v3683 = vpop.permute.xlu0 %3682
      %3685 = vset.pattern.permute.xlu0 3
      %3686 = vperm.xlu0 %3685, %v414
      %v3687 = vpop.permute.xlu0 %3686
      %3689 = vset.pattern.permute.xlu0 3
      %3690 = vperm.xlu0 %3689, %v415
      %v3691 = vpop.permute.xlu0 %3690
      %3693 = vset.pattern.permute.xlu0 3
      %3694 = vperm.xlu0 %3693, %v416
      %v3695 = vpop.permute.xlu0 %3694
      %3697 = vset.pattern.permute.xlu0 3
      %3698 = vperm.xlu0 %3697, %v417
      %v3699 = vpop.permute.xlu0 %3698
      %v3701 = vmul.f32 %v3639, %v3621
      %v3702 = vmul.f32 %v3643, %v3622
      %v3703 = vmul.f32 %v3647, %v3623
      %v3704 = vmul.f32 %v3651, %v3624
      %v3705 = vmul.f32 %v3655, %v3625
      %v3706 = vmul.f32 %v3659, %v3626
      %v3707 = vmul.f32 %v3663, %v3627
      %v3708 = vmul.f32 %v3667, %v3628
      %v3709 = vmul.f32 %v3671, %v3629
      %v3710 = vmul.f32 %v3675, %v3630
      %v3711 = vmul.f32 %v3679, %v3631
      %v3712 = vmul.f32 %v3683, %v3632
      %v3713 = vmul.f32 %v3687, %v3633
      %v3714 = vmul.f32 %v3691, %v3634
      %v3715 = vmul.f32 %v3695, %v3635
      %v3716 = vmul.f32 %v3699, %v3636
      %v3717 = vadd.f32 %v3379, %v3701
      %v3718 = vadd.f32 %v3380, %v3702
      %v3719 = vadd.f32 %v3381, %v3703
      %v3720 = vadd.f32 %v3382, %v3704
      %v3721 = vadd.f32 %v3383, %v3705
      %v3722 = vadd.f32 %v3384, %v3706
      %v3723 = vadd.f32 %v3385, %v3707
      %v3724 = vadd.f32 %v3386, %v3708
      %v3725 = vadd.f32 %v3387, %v3709
      %v3726 = vadd.f32 %v3388, %v3710
      %v3727 = vadd.f32 %v3389, %v3711
      %v3728 = vadd.f32 %v3390, %v3712
      %v3729 = vadd.f32 %v3391, %v3713
      %v3730 = vadd.f32 %v3392, %v3714
      %v3731 = vadd.f32 %v3393, %v3715
      %v3732 = vadd.f32 %v3394, %v3716
      %v3733 = vmax.f32 %v3717, 0.0
      %v3734 = vmax.f32 %v3718, 0.0
      %v3735 = vmax.f32 %v3719, 0.0
      %v3736 = vmax.f32 %v3720, 0.0
      %v3737 = vmax.f32 %v3721, 0.0
      %v3738 = vmax.f32 %v3722, 0.0
      %v3739 = vmax.f32 %v3723, 0.0
      %v3740 = vmax.f32 %v3724, 0.0
      %v3741 = vmax.f32 %v3725, 0.0
      %v3742 = vmax.f32 %v3726, 0.0
      %v3743 = vmax.f32 %v3727, 0.0
      %v3744 = vmax.f32 %v3728, 0.0
      %v3745 = vmax.f32 %v3729, 0.0
      %v3746 = vmax.f32 %v3730, 0.0
      %v3747 = vmax.f32 %v3731, 0.0
      %v3748 = vmax.f32 %v3732, 0.0
      %s3749 = scalar_lea.vmem %s2, 96
      %v3750 = vld [vmem:[%s3749] sm:$0xf]
      %v3751 = vld [vmem:[%s3749 + $0x4] sm:$0xf]
      %v3752 = vld [vmem:[%s3749 + $0x8] sm:$0xf]
      %v3753 = vld [vmem:[%s3749 + $0xc] sm:$0xf]
      %v3754 = vld [vmem:[%s3749 + $0x10] sm:$0xf]
      %v3755 = vld [vmem:[%s3749 + $0x14] sm:$0xf]
      %v3756 = vld [vmem:[%s3749 + $0x18] sm:$0xf]
      %v3757 = vld [vmem:[%s3749 + $0x1c] sm:$0xf]
      %s3758 = scalar_lea.vmem %s3, 320
      %v3759 = vld [vmem:[%s3758] sm:$0xf]
      %v3760 = vld [vmem:[%s3758 + $0x4] sm:$0xf]
      %v3761 = vld [vmem:[%s3758 + $0x8] sm:$0xf]
      %v3762 = vld [vmem:[%s3758 + $0xc] sm:$0xf]
      %v3763 = vld [vmem:[%s3758 + $0x10] sm:$0xf]
      %v3764 = vld [vmem:[%s3758 + $0x14] sm:$0xf]
      %v3765 = vld [vmem:[%s3758 + $0x18] sm:$0xf]
      %v3766 = vld [vmem:[%s3758 + $0x1c] sm:$0xf]
      %v3767 = vld [vmem:[%s3758 + $0x20] sm:$0xf]
      %v3768 = vld [vmem:[%s3758 + $0x24] sm:$0xf]
      %v3769 = vld [vmem:[%s3758 + $0x28] sm:$0xf]
      %v3770 = vld [vmem:[%s3758 + $0x2c] sm:$0xf]
      %v3771 = vld [vmem:[%s3758 + $0x30] sm:$0xf]
      %v3772 = vld [vmem:[%s3758 + $0x34] sm:$0xf]
      %v3773 = vld [vmem:[%s3758 + $0x38] sm:$0xf]
      %v3774 = vld [vmem:[%s3758 + $0x3c] sm:$0xf]
      %s3775 = scalar_lea.vmem %s3, 384
      %v3776 = vld [vmem:[%s3775] sm:$0xf]
      %v3777 = vld [vmem:[%s3775 + $0x4] sm:$0xf]
      %v3778 = vld [vmem:[%s3775 + $0x8] sm:$0xf]
      %v3779 = vld [vmem:[%s3775 + $0xc] sm:$0xf]
      %v3780 = vld [vmem:[%s3775 + $0x10] sm:$0xf]
      %v3781 = vld [vmem:[%s3775 + $0x14] sm:$0xf]
      %v3782 = vld [vmem:[%s3775 + $0x18] sm:$0xf]
      %v3783 = vld [vmem:[%s3775 + $0x1c] sm:$0xf]
      %v3784 = vld [vmem:[%s3775 + $0x20] sm:$0xf]
      %v3785 = vld [vmem:[%s3775 + $0x24] sm:$0xf]
      %v3786 = vld [vmem:[%s3775 + $0x28] sm:$0xf]
      %v3787 = vld [vmem:[%s3775 + $0x2c] sm:$0xf]
      %v3788 = vld [vmem:[%s3775 + $0x30] sm:$0xf]
      %v3789 = vld [vmem:[%s3775 + $0x34] sm:$0xf]
      %v3790 = vld [vmem:[%s3775 + $0x38] sm:$0xf]
      %v3791 = vld [vmem:[%s3775 + $0x3c] sm:$0xf]
      %v3792 = vrot.slane %v3733, 1
      %v3793 = vrot.slane %v3734, 1
      %v3794 = vrot.slane %v3735, 1
      %v3795 = vrot.slane %v3736, 1
      %v3796 = vrot.slane %v3737, 1
      %v3797 = vrot.slane %v3738, 1
      %v3798 = vrot.slane %v3739, 1
      %v3799 = vrot.slane %v3740, 1
      %v3800 = vrot.slane %v3741, 1
      %v3801 = vrot.slane %v3742, 1
      %v3802 = vrot.slane %v3743, 1
      %v3803 = vrot.slane %v3744, 1
      %v3804 = vrot.slane %v3745, 1
      %v3805 = vrot.slane %v3746, 1
      %v3806 = vrot.slane %v3747, 1
      %v3807 = vrot.slane %v3748, 1
      %v3808 = vsel %vm1079, %v3806, %v3807
      %v3809 = vsel %vm1079, %v3805, %v3806
      %v3810 = vsel %vm1079, %v3804, %v3805
      %v3811 = vsel %vm1079, %v3803, %v3804
      %v3812 = vsel %vm1079, %v3802, %v3803
      %v3813 = vsel %vm1079, %v3801, %v3802
      %v3814 = vsel %vm1079, %v3800, %v3801
      %v3815 = vsel %vm1079, %v3799, %v3800
      %v3816 = vsel %vm1079, %v3798, %v3799
      %v3817 = vsel %vm1079, %v3797, %v3798
      %v3818 = vsel %vm1079, %v3796, %v3797
      %v3819 = vsel %vm1079, %v3795, %v3796
      %v3820 = vsel %vm1079, %v3794, %v3795
      %v3821 = vsel %vm1079, %v3793, %v3794
      %v3822 = vsel %vm1079, %v3792, %v3793
      %v3823 = vsel %vm1079, %v3807, %v3792
      %v3824 = vmul.f32 %v1012, %v3822
      %v3825 = vmul.f32 %v1012, %v3821
      %v3826 = vmul.f32 %v1012, %v3820
      %v3827 = vmul.f32 %v1012, %v3819
      %v3828 = vmul.f32 %v1012, %v3818
      %v3829 = vmul.f32 %v1012, %v3817
      %v3830 = vmul.f32 %v1012, %v3816
      %v3831 = vmul.f32 %v1012, %v3815
      %v3832 = vmul.f32 %v1012, %v3814
      %v3833 = vmul.f32 %v1012, %v3813
      %v3834 = vmul.f32 %v1012, %v3812
      %v3835 = vmul.f32 %v1012, %v3811
      %v3836 = vmul.f32 %v1012, %v3810
      %v3837 = vmul.f32 %v1012, %v3809
      %v3838 = vmul.f32 %v1012, %v3808
      %v3839 = vmul.f32 %v1012, %v3823
      %v3840 = vrot.slane %v3733, 7
      %v3841 = vrot.slane %v3734, 7
      %v3842 = vrot.slane %v3735, 7
      %v3843 = vrot.slane %v3736, 7
      %v3844 = vrot.slane %v3737, 7
      %v3845 = vrot.slane %v3738, 7
      %v3846 = vrot.slane %v3739, 7
      %v3847 = vrot.slane %v3740, 7
      %v3848 = vrot.slane %v3741, 7
      %v3849 = vrot.slane %v3742, 7
      %v3850 = vrot.slane %v3743, 7
      %v3851 = vrot.slane %v3744, 7
      %v3852 = vrot.slane %v3745, 7
      %v3853 = vrot.slane %v3746, 7
      %v3854 = vrot.slane %v3747, 7
      %v3855 = vrot.slane %v3748, 7
      %v3856 = vsel %vm977, %v3854, %v3855
      %v3857 = vsel %vm977, %v3853, %v3854
      %v3858 = vsel %vm977, %v3852, %v3853
      %v3859 = vsel %vm977, %v3851, %v3852
      %v3860 = vsel %vm977, %v3850, %v3851
      %v3861 = vsel %vm977, %v3849, %v3850
      %v3862 = vsel %vm977, %v3848, %v3849
      %v3863 = vsel %vm977, %v3847, %v3848
      %v3864 = vsel %vm977, %v3846, %v3847
      %v3865 = vsel %vm977, %v3845, %v3846
      %v3866 = vsel %vm977, %v3844, %v3845
      %v3867 = vsel %vm977, %v3843, %v3844
      %v3868 = vsel %vm977, %v3842, %v3843
      %v3869 = vsel %vm977, %v3841, %v3842
      %v3870 = vsel %vm977, %v3840, %v3841
      %v3871 = vsel %vm977, %v3855, %v3840
      %v3872 = vmul.f32 %v1114, %v3871
      %v3873 = vmul.f32 %v1114, %v3870
      %v3874 = vmul.f32 %v1114, %v3869
      %v3875 = vmul.f32 %v1114, %v3868
      %v3876 = vmul.f32 %v1114, %v3867
      %v3877 = vmul.f32 %v1114, %v3866
      %v3878 = vmul.f32 %v1114, %v3865
      %v3879 = vmul.f32 %v1114, %v3864
      %v3880 = vmul.f32 %v1114, %v3863
      %v3881 = vmul.f32 %v1114, %v3862
      %v3882 = vmul.f32 %v1114, %v3861
      %v3883 = vmul.f32 %v1114, %v3860
      %v3884 = vmul.f32 %v1114, %v3859
      %v3885 = vmul.f32 %v1114, %v3858
      %v3886 = vmul.f32 %v1114, %v3857
      %v3887 = vmul.f32 %v1114, %v3856
      %v3888 = vadd.f32 %v3824, %v3872
      %v3889 = vadd.f32 %v3825, %v3873
      %v3890 = vadd.f32 %v3826, %v3874
      %v3891 = vadd.f32 %v3827, %v3875
      %v3892 = vadd.f32 %v3828, %v3876
      %v3893 = vadd.f32 %v3829, %v3877
      %v3894 = vadd.f32 %v3830, %v3878
      %v3895 = vadd.f32 %v3831, %v3879
      %v3896 = vadd.f32 %v3832, %v3880
      %v3897 = vadd.f32 %v3833, %v3881
      %v3898 = vadd.f32 %v3834, %v3882
      %v3899 = vadd.f32 %v3835, %v3883
      %v3900 = vadd.f32 %v3836, %v3884
      %v3901 = vadd.f32 %v3837, %v3885
      %v3902 = vadd.f32 %v3838, %v3886
      %v3903 = vadd.f32 %v3839, %v3887
      %v3904 = vmax.f32 %v3733, %v3888
      %v3905 = vmax.f32 %v3734, %v3889
      %v3906 = vmax.f32 %v3735, %v3890
      %v3907 = vmax.f32 %v3736, %v3891
      %v3908 = vmax.f32 %v3737, %v3892
      %v3909 = vmax.f32 %v3738, %v3893
      %v3910 = vmax.f32 %v3739, %v3894
      %v3911 = vmax.f32 %v3740, %v3895
      %v3912 = vmax.f32 %v3741, %v3896
      %v3913 = vmax.f32 %v3742, %v3897
      %v3914 = vmax.f32 %v3743, %v3898
      %v3915 = vmax.f32 %v3744, %v3899
      %v3916 = vmax.f32 %v3745, %v3900
      %v3917 = vmax.f32 %v3746, %v3901
      %v3918 = vmax.f32 %v3747, %v3902
      %v3919 = vmax.f32 %v3748, %v3903
      %v3920 = vpack.c.bf16 %v3905, %v3904
      %v3921 = vpack.c.bf16 %v3907, %v3906
      %v3922 = vpack.c.bf16 %v3909, %v3908
      %v3923 = vpack.c.bf16 %v3911, %v3910
      %v3924 = vpack.c.bf16 %v3913, %v3912
      %v3925 = vpack.c.bf16 %v3915, %v3914
      %v3926 = vpack.c.bf16 %v3917, %v3916
      %v3927 = vpack.c.bf16 %v3919, %v3918
      %v3936 = vunpack.c.l.b16 %v3750
      %v3937 = vunpack.c.l.b16 %v3751
      %v3938 = vunpack.c.l.b16 %v3752
      %v3939 = vunpack.c.l.b16 %v3753
      %v3940 = vunpack.c.l.b16 %v3754
      %v3941 = vunpack.c.l.b16 %v3755
      %v3942 = vunpack.c.l.b16 %v3756
      %v3943 = vunpack.c.l.b16 %v3757
      %v3944 = vpack.c.b16 %v3937, %v3936
      %v3945 = vpack.c.b16 %v3939, %v3938
      %v3946 = vpack.c.b16 %v3941, %v3940
      %v3947 = vpack.c.b16 %v3943, %v3942
      %3952 = vmatprep.subr.bf16.mxu0 0
      %3953 = vmatpush1.bf16.msra.mxu0 %v3920
      %3954 = vmatprep.subr.bf16.mxu0 0
      %3955 = vmatpush1.bf16.msra.mxu0 %v3921
      %3956 = vmatprep.subr.bf16.mxu0 0
      %3957 = vmatpush1.bf16.msra.mxu0 %v3922
      %3958 = vmatprep.subr.bf16.mxu0 0
      %3959 = vmatpush1.bf16.msra.mxu0 %v3923
      %3960 = vmatprep.subr.bf16.mxu0 0
      %3961 = vmatpush1.bf16.msra.mxu0 %v3924
      %3962 = vmatprep.subr.bf16.mxu0 0
      %3963 = vmatpush1.bf16.msra.mxu0 %v3925
      %3964 = vmatprep.subr.bf16.mxu0 0
      %3965 = vmatpush1.bf16.msra.mxu0 %v3926
      %3966 = vmatprep.subr.bf16.mxu0 0
      %3967 = vmatpush1.bf16.msra.mxu0 %v3927
      %3968 = vmatprep.subr.bf16.mxu0 0
      %3969 = vmatpush1.bf16.msra.mxu0 0
      %3970 = vmatprep.subr.bf16.mxu0 0
      %3971 = vmatpush1.bf16.msra.mxu0 0
      %3972 = vmatprep.subr.bf16.mxu0 0
      %3973 = vmatpush1.bf16.msra.mxu0 0
      %3974 = vmatprep.subr.bf16.mxu0 0
      %3975 = vmatpush1.bf16.msra.mxu0 0
      %3976 = vmatprep.subr.bf16.mxu0 0
      %3977 = vmatpush1.bf16.msra.mxu0 0
      %3978 = vmatprep.subr.bf16.mxu0 0
      %3979 = vmatpush1.bf16.msra.mxu0 0
      %3980 = vmatprep.subr.bf16.mxu0 0
      %3981 = vmatpush1.bf16.msra.mxu0 0
      %3982 = vmatprep.subr.bf16.mxu0 0
      %3983 = vmatpush1.bf16.msra.mxu0 0
      %3984 = vmatprep.mubr.bf16.mxu0 0
      %3985 = vmatmul.mubr.bf16.gmra.mrb[0].mxu0 %v3944
      %v3986 = vpop.f32.mrb[0].mxu0
      %v3987 = vadd.f32 0.0, %v3986
      %v3988 = vpop.f32.mrb[0].mxu0
      %v3989 = vpop.f32.mrb[0].mxu0
      %v3990 = vadd.f32 0.0, %v3989
      %v3991 = vpop.f32.mrb[0].mxu0
      %3992 = vmatprep.mubr.bf16.mxu0 0
      %3993 = vmatmul.mubr.bf16.gmra.mrb[0].mxu0 %v3945
      %v3994 = vpop.f32.mrb[0].mxu0
      %v3995 = vadd.f32 0.0, %v3994
      %v3996 = vpop.f32.mrb[0].mxu0
      %v3997 = vpop.f32.mrb[0].mxu0
      %v3998 = vadd.f32 0.0, %v3997
      %v3999 = vpop.f32.mrb[0].mxu0
      %4000 = vmatprep.mubr.bf16.mxu0 0
      %4001 = vmatmul.mubr.bf16.gmra.mrb[0].mxu0 %v3946
      %v4002 = vpop.f32.mrb[0].mxu0
      %v4003 = vadd.f32 0.0, %v4002
      %v4004 = vpop.f32.mrb[0].mxu0
      %v4005 = vpop.f32.mrb[0].mxu0
      %v4006 = vadd.f32 0.0, %v4005
      %v4007 = vpop.f32.mrb[0].mxu0
      %4008 = vmatprep.mubr.bf16.mxu0 0
      %4009 = vmatmul.mubr.bf16.gmra.mrb[0].mxu0 %v3947
      %v4010 = vpop.f32.mrb[0].mxu0
      %v4011 = vadd.f32 0.0, %v4010
      %v4012 = vpop.f32.mrb[0].mxu0
      %v4013 = vpop.f32.mrb[0].mxu0
      %v4014 = vadd.f32 0.0, %v4013
      %v4015 = vpop.f32.mrb[0].mxu0
      %4016 = vdwg.mxu0
      %v4017 = vpack.c.bf16 %v3990, %v3987
      %v4018 = vpack.c.bf16 %v3998, %v3995
      %v4019 = vpack.c.bf16 %v4006, %v4003
      %v4020 = vpack.c.bf16 %v4014, %v4011
      %v4037 = vunpack.c.l.b16 %v3759
      %v4038 = vunpack.c.l.b16 %v3760
      %v4039 = vunpack.c.l.b16 %v3761
      %v4040 = vunpack.c.l.b16 %v3762
      %v4041 = vunpack.c.l.b16 %v3763
      %v4042 = vunpack.c.l.b16 %v3764
      %v4043 = vunpack.c.l.b16 %v3765
      %v4044 = vunpack.c.l.b16 %v3766
      %v4045 = vunpack.c.l.b16 %v3767
      %v4046 = vunpack.c.l.b16 %v3768
      %v4047 = vunpack.c.l.b16 %v3769
      %v4048 = vunpack.c.l.b16 %v3770
      %v4049 = vunpack.c.l.b16 %v3771
      %v4050 = vunpack.c.l.b16 %v3772
      %v4051 = vunpack.c.l.b16 %v3773
      %v4052 = vunpack.c.l.b16 %v3774
      %v4053 = vpack.c.b16 %v4038, %v4037
      %v4054 = vpack.c.b16 %v4040, %v4039
      %v4055 = vpack.c.b16 %v4042, %v4041
      %v4056 = vpack.c.b16 %v4044, %v4043
      %v4057 = vpack.c.b16 %v4046, %v4045
      %v4058 = vpack.c.b16 %v4048, %v4047
      %v4059 = vpack.c.b16 %v4050, %v4049
      %v4060 = vpack.c.b16 %v4052, %v4051
      %4069 = vmatprep.subr.bf16.mxu0 0
      %4070 = vmatpush1.bf16.msra.mxu0 %v4053
      %4071 = vmatprep.subr.bf16.mxu0 0
      %4072 = vmatpush1.bf16.msra.mxu0 %v4054
      %4073 = vmatprep.subr.bf16.mxu0 0
      %4074 = vmatpush1.bf16.msra.mxu0 %v4055
      %4075 = vmatprep.subr.bf16.mxu0 0
      %4076 = vmatpush1.bf16.msra.mxu0 %v4056
      %4077 = vmatprep.subr.bf16.mxu0 0
      %4078 = vmatpush1.bf16.msra.mxu0 %v4057
      %4079 = vmatprep.subr.bf16.mxu0 0
      %4080 = vmatpush1.bf16.msra.mxu0 %v4058
      %4081 = vmatprep.subr.bf16.mxu0 0
      %4082 = vmatpush1.bf16.msra.mxu0 %v4059
      %4083 = vmatprep.subr.bf16.mxu0 0
      %4084 = vmatpush1.bf16.msra.mxu0 %v4060
      %4085 = vmatprep.subr.bf16.mxu0 0
      %4086 = vmatpush1.bf16.msra.mxu0 0
      %4087 = vmatprep.subr.bf16.mxu0 0
      %4088 = vmatpush1.bf16.msra.mxu0 0
      %4089 = vmatprep.subr.bf16.mxu0 0
      %4090 = vmatpush1.bf16.msra.mxu0 0
      %4091 = vmatprep.subr.bf16.mxu0 0
      %4092 = vmatpush1.bf16.msra.mxu0 0
      %4093 = vmatprep.subr.bf16.mxu0 0
      %4094 = vmatpush1.bf16.msra.mxu0 0
      %4095 = vmatprep.subr.bf16.mxu0 0
      %4096 = vmatpush1.bf16.msra.mxu0 0
      %4097 = vmatprep.subr.bf16.mxu0 0
      %4098 = vmatpush1.bf16.msra.mxu0 0
      %4099 = vmatprep.subr.bf16.mxu0 0
      %4100 = vmatpush1.bf16.msra.mxu0 0
      %4101 = vmatprep.mubr.bf16.mxu0 0
      %4102 = vmatmul.mubr.bf16.gmra.mrb[0].mxu0 %v4017
      %v4103 = vpop.f32.mrb[0].mxu0
      %v4104 = vadd.f32 0.0, %v4103
      %v4105 = vpop.f32.mrb[0].mxu0
      %v4106 = vpop.f32.mrb[0].mxu0
      %v4107 = vadd.f32 0.0, %v4106
      %v4108 = vpop.f32.mrb[0].mxu0
      %4109 = vmatprep.mubr.bf16.mxu0 0
      %4110 = vmatmul.mubr.bf16.gmra.mrb[0].mxu0 %v4018
      %v4111 = vpop.f32.mrb[0].mxu0
      %v4112 = vadd.f32 0.0, %v4111
      %v4113 = vpop.f32.mrb[0].mxu0
      %v4114 = vpop.f32.mrb[0].mxu0
      %v4115 = vadd.f32 0.0, %v4114
      %v4116 = vpop.f32.mrb[0].mxu0
      %4117 = vmatprep.mubr.bf16.mxu0 0
      %4118 = vmatmul.mubr.bf16.gmra.mrb[0].mxu0 %v4019
      %v4119 = vpop.f32.mrb[0].mxu0
      %v4120 = vadd.f32 0.0, %v4119
      %v4121 = vpop.f32.mrb[0].mxu0
      %v4122 = vpop.f32.mrb[0].mxu0
      %v4123 = vadd.f32 0.0, %v4122
      %v4124 = vpop.f32.mrb[0].mxu0
      %4125 = vmatprep.mubr.bf16.mxu0 0
      %4126 = vmatmul.mubr.bf16.gmra.mrb[0].mxu0 %v4020
      %v4127 = vpop.f32.mrb[0].mxu0
      %v4128 = vadd.f32 0.0, %v4127
      %v4129 = vpop.f32.mrb[0].mxu0
      %v4130 = vpop.f32.mrb[0].mxu0
      %v4131 = vadd.f32 0.0, %v4130
      %v4132 = vpop.f32.mrb[0].mxu0
      %4133 = vdwg.mxu0
      %v4150 = vunpack.c.l.b16 %v3776
      %v4151 = vunpack.c.l.b16 %v3777
      %v4152 = vunpack.c.l.b16 %v3778
      %v4153 = vunpack.c.l.b16 %v3779
      %v4154 = vunpack.c.l.b16 %v3780
      %v4155 = vunpack.c.l.b16 %v3781
      %v4156 = vunpack.c.l.b16 %v3782
      %v4157 = vunpack.c.l.b16 %v3783
      %v4158 = vunpack.c.l.b16 %v3784
      %v4159 = vunpack.c.l.b16 %v3785
      %v4160 = vunpack.c.l.b16 %v3786
      %v4161 = vunpack.c.l.b16 %v3787
      %v4162 = vunpack.c.l.b16 %v3788
      %v4163 = vunpack.c.l.b16 %v3789
      %v4164 = vunpack.c.l.b16 %v3790
      %v4165 = vunpack.c.l.b16 %v3791
      %v4166 = vpack.c.b16 %v4151, %v4150
      %v4167 = vpack.c.b16 %v4153, %v4152
      %v4168 = vpack.c.b16 %v4155, %v4154
      %v4169 = vpack.c.b16 %v4157, %v4156
      %v4170 = vpack.c.b16 %v4159, %v4158
      %v4171 = vpack.c.b16 %v4161, %v4160
      %v4172 = vpack.c.b16 %v4163, %v4162
      %v4173 = vpack.c.b16 %v4165, %v4164
      %4182 = vmatprep.subr.bf16.mxu0 0
      %4183 = vmatpush1.bf16.msra.mxu0 %v4166
      %4184 = vmatprep.subr.bf16.mxu0 0
      %4185 = vmatpush1.bf16.msra.mxu0 %v4167
      %4186 = vmatprep.subr.bf16.mxu0 0
      %4187 = vmatpush1.bf16.msra.mxu0 %v4168
      %4188 = vmatprep.subr.bf16.mxu0 0
      %4189 = vmatpush1.bf16.msra.mxu0 %v4169
      %4190 = vmatprep.subr.bf16.mxu0 0
      %4191 = vmatpush1.bf16.msra.mxu0 %v4170
      %4192 = vmatprep.subr.bf16.mxu0 0
      %4193 = vmatpush1.bf16.msra.mxu0 %v4171
      %4194 = vmatprep.subr.bf16.mxu0 0
      %4195 = vmatpush1.bf16.msra.mxu0 %v4172
      %4196 = vmatprep.subr.bf16.mxu0 0
      %4197 = vmatpush1.bf16.msra.mxu0 %v4173
      %4198 = vmatprep.subr.bf16.mxu0 0
      %4199 = vmatpush1.bf16.msra.mxu0 0
      %4200 = vmatprep.subr.bf16.mxu0 0
      %4201 = vmatpush1.bf16.msra.mxu0 0
      %4202 = vmatprep.subr.bf16.mxu0 0
      %4203 = vmatpush1.bf16.msra.mxu0 0
      %4204 = vmatprep.subr.bf16.mxu0 0
      %4205 = vmatpush1.bf16.msra.mxu0 0
      %4206 = vmatprep.subr.bf16.mxu0 0
      %4207 = vmatpush1.bf16.msra.mxu0 0
      %4208 = vmatprep.subr.bf16.mxu0 0
      %4209 = vmatpush1.bf16.msra.mxu0 0
      %4210 = vmatprep.subr.bf16.mxu0 0
      %4211 = vmatpush1.bf16.msra.mxu0 0
      %4212 = vmatprep.subr.bf16.mxu0 0
      %4213 = vmatpush1.bf16.msra.mxu0 0
      %4214 = vmatprep.mubr.bf16.mxu0 0
      %4215 = vmatmul.mubr.bf16.gmra.mrb[0].mxu0 %v4017
      %v4216 = vpop.f32.mrb[0].mxu0
      %v4217 = vadd.f32 0.0, %v4216
      %v4218 = vpop.f32.mrb[0].mxu0
      %v4219 = vpop.f32.mrb[0].mxu0
      %v4220 = vadd.f32 0.0, %v4219
      %v4221 = vpop.f32.mrb[0].mxu0
      %4222 = vmatprep.mubr.bf16.mxu0 0
      %4223 = vmatmul.mubr.bf16.gmra.mrb[0].mxu0 %v4018
      %v4224 = vpop.f32.mrb[0].mxu0
      %v4225 = vadd.f32 0.0, %v4224
      %v4226 = vpop.f32.mrb[0].mxu0
      %v4227 = vpop.f32.mrb[0].mxu0
      %v4228 = vadd.f32 0.0, %v4227
      %v4229 = vpop.f32.mrb[0].mxu0
      %4230 = vmatprep.mubr.bf16.mxu0 0
      %4231 = vmatmul.mubr.bf16.gmra.mrb[0].mxu0 %v4019
      %v4232 = vpop.f32.mrb[0].mxu0
      %v4233 = vadd.f32 0.0, %v4232
      %v4234 = vpop.f32.mrb[0].mxu0
      %v4235 = vpop.f32.mrb[0].mxu0
      %v4236 = vadd.f32 0.0, %v4235
      %v4237 = vpop.f32.mrb[0].mxu0
      %4238 = vmatprep.mubr.bf16.mxu0 0
      %4239 = vmatmul.mubr.bf16.gmra.mrb[0].mxu0 %v4020
      %v4240 = vpop.f32.mrb[0].mxu0
      %v4241 = vadd.f32 0.0, %v4240
      %v4242 = vpop.f32.mrb[0].mxu0
      %v4243 = vpop.f32.mrb[0].mxu0
      %v4244 = vadd.f32 0.0, %v4243
      %v4245 = vpop.f32.mrb[0].mxu0
      %4246 = vdwg.mxu0
      %v4247 = vmax.f32 %v4104, %v4217
      %v4248 = vmax.f32 %v4107, %v4220
      %v4249 = vmax.f32 %v4112, %v4225
      %v4250 = vmax.f32 %v4115, %v4228
      %v4251 = vmax.f32 %v4120, %v4233
      %v4252 = vmax.f32 %v4123, %v4236
      %v4253 = vmax.f32 %v4128, %v4241
      %v4254 = vmax.f32 %v4131, %v4244
      %v4255 = vld [vmem:[%s6] sm:$0xff]
      %v4256 = vld [vmem:[%s6 + $0x8] sm:$0xff]
      %v4257 = vld [vmem:[%s6 + $0x10] sm:$0xff]
      %v4258 = vld [vmem:[%s6 + $0x18] sm:$0xff]
      %v4259 = vld [vmem:[%s6 + $0x20] sm:$0xff]
      %v4260 = vld [vmem:[%s6 + $0x28] sm:$0xff]
      %v4261 = vld [vmem:[%s6 + $0x30] sm:$0xff]
      %v4262 = vld [vmem:[%s6 + $0x38] sm:$0xff]
      %v4263 = vld [vmem:[%s6 + $0x40] sm:$0xff]
      %v4264 = vld [vmem:[%s6 + $0x48] sm:$0xff]
      %v4265 = vld [vmem:[%s6 + $0x50] sm:$0xff]
      %v4266 = vld [vmem:[%s6 + $0x58] sm:$0xff]
      %v4267 = vld [vmem:[%s6 + $0x60] sm:$0xff]
      %v4268 = vld [vmem:[%s6 + $0x68] sm:$0xff]
      %v4269 = vld [vmem:[%s6 + $0x70] sm:$0xff]
      %v4270 = vld [vmem:[%s6 + $0x78] sm:$0xff]
      %v4271 = vpack.c.bf16 %v4248, %v4247
      %v4272 = vpack.c.bf16 %v4250, %v4249
      %v4273 = vpack.c.bf16 %v4252, %v4251
      %v4274 = vpack.c.bf16 %v4254, %v4253
      %v4291 = vunpack.c.l.b16 %v4255
      %v4292 = vunpack.c.h.b16 %v4255
      %v4293 = vunpack.c.l.b16 %v4256
      %v4294 = vunpack.c.h.b16 %v4256
      %v4295 = vunpack.c.l.b16 %v4257
      %v4296 = vunpack.c.h.b16 %v4257
      %v4297 = vunpack.c.l.b16 %v4258
      %v4298 = vunpack.c.h.b16 %v4258
      %v4299 = vunpack.c.l.b16 %v4259
      %v4300 = vunpack.c.h.b16 %v4259
      %v4301 = vunpack.c.l.b16 %v4260
      %v4302 = vunpack.c.h.b16 %v4260
      %v4303 = vunpack.c.l.b16 %v4261
      %v4304 = vunpack.c.h.b16 %v4261
      %v4305 = vunpack.c.l.b16 %v4262
      %v4306 = vunpack.c.h.b16 %v4262
      %v4307 = vunpack.c.l.b16 %v4263
      %v4308 = vunpack.c.h.b16 %v4263
      %v4309 = vunpack.c.l.b16 %v4264
      %v4310 = vunpack.c.h.b16 %v4264
      %v4311 = vunpack.c.l.b16 %v4265
      %v4312 = vunpack.c.h.b16 %v4265
      %v4313 = vunpack.c.l.b16 %v4266
      %v4314 = vunpack.c.h.b16 %v4266
      %v4315 = vunpack.c.l.b16 %v4267
      %v4316 = vunpack.c.h.b16 %v4267
      %v4317 = vunpack.c.l.b16 %v4268
      %v4318 = vunpack.c.h.b16 %v4268
      %v4319 = vunpack.c.l.b16 %v4269
      %v4320 = vunpack.c.h.b16 %v4269
      %v4321 = vunpack.c.l.b16 %v4270
      %v4322 = vunpack.c.h.b16 %v4270
      %v4323 = vpack.c.b16 %v4295, %v4291
      %v4324 = vpack.c.b16 %v4296, %v4292
      %v4325 = vpack.c.b16 %v4297, %v4293
      %v4326 = vpack.c.b16 %v4298, %v4294
      %v4327 = vpack.c.b16 %v4303, %v4299
      %v4328 = vpack.c.b16 %v4304, %v4300
      %v4329 = vpack.c.b16 %v4305, %v4301
      %v4330 = vpack.c.b16 %v4306, %v4302
      %v4331 = vpack.c.b16 %v4311, %v4307
      %v4332 = vpack.c.b16 %v4312, %v4308
      %v4333 = vpack.c.b16 %v4313, %v4309
      %v4334 = vpack.c.b16 %v4314, %v4310
      %v4335 = vpack.c.b16 %v4319, %v4315
      %v4336 = vpack.c.b16 %v4320, %v4316
      %v4337 = vpack.c.b16 %v4321, %v4317
      %v4338 = vpack.c.b16 %v4322, %v4318
      %v4356 = vsel %vm2936, %v4271, 0
      %v4359 = vsel %vm2936, %v4272, 0
      %v4362 = vsel %vm2936, %v4273, 0
      %v4365 = vsel %vm2936, %v4274, 0
      %4367 = vmatprep.subr.bf16.mxu0 %v4324
      %4368 = vmatpush1.bf16.msra.mxu0 %v4323
      %4369 = vmatprep.subr.bf16.mxu0 %v4328
      %4370 = vmatpush1.bf16.msra.mxu0 %v4327
      %4371 = vmatprep.subr.bf16.mxu0 %v4332
      %4372 = vmatpush1.bf16.msra.mxu0 %v4331
      %4373 = vmatprep.subr.bf16.mxu0 %v4336
      %4374 = vmatpush1.bf16.msra.mxu0 %v4335
      %4375 = vmatprep.subr.bf16.mxu0 0
      %4376 = vmatpush1.bf16.msra.mxu0 0
      %4377 = vmatprep.subr.bf16.mxu0 0
      %4378 = vmatpush1.bf16.msra.mxu0 0
      %4379 = vmatprep.subr.bf16.mxu0 0
      %4380 = vmatpush1.bf16.msra.mxu0 0
      %4381 = vmatprep.subr.bf16.mxu0 0
      %4382 = vmatpush1.bf16.msra.mxu0 0
      %4383 = vmatprep.subr.bf16.mxu0 0
      %4384 = vmatpush1.bf16.msra.mxu0 0
      %4385 = vmatprep.subr.bf16.mxu0 0
      %4386 = vmatpush1.bf16.msra.mxu0 0
      %4387 = vmatprep.subr.bf16.mxu0 0
      %4388 = vmatpush1.bf16.msra.mxu0 0
      %4389 = vmatprep.subr.bf16.mxu0 0
      %4390 = vmatpush1.bf16.msra.mxu0 0
      %4391 = vmatprep.subr.bf16.mxu0 0
      %4392 = vmatpush1.bf16.msra.mxu0 0
      %4393 = vmatprep.subr.bf16.mxu0 0
      %4394 = vmatpush1.bf16.msra.mxu0 0
      %4395 = vmatprep.subr.bf16.mxu0 0
      %4396 = vmatpush1.bf16.msra.mxu0 0
      %4397 = vmatprep.subr.bf16.mxu0 0
      %4398 = vmatpush1.bf16.msra.mxu0 0
      %4399 = vmatprep.mubr.bf16.mxu0 0
      %4400 = vmatmul.mubr.bf16.gmra.mrb[0].mxu0 %v4356
      %v4401 = vpop.f32.mrb[0].mxu0
      %v4402 = vadd.f32 0.0, %v4401
      %v4403 = vpop.f32.mrb[0].mxu0
      %v4404 = vadd.f32 0.0, %v4403
      %v4405 = vpop.f32.mrb[0].mxu0
      %v4406 = vadd.f32 0.0, %v4405
      %v4407 = vpop.f32.mrb[0].mxu0
      %v4408 = vadd.f32 0.0, %v4407
      %4409 = vmatprep.mubr.bf16.mxu0 0
      %4410 = vmatmul.mubr.bf16.gmra.mrb[0].mxu0 %v4359
      %v4411 = vpop.f32.mrb[0].mxu0
      %v4412 = vadd.f32 0.0, %v4411
      %v4413 = vpop.f32.mrb[0].mxu0
      %v4414 = vadd.f32 0.0, %v4413
      %v4415 = vpop.f32.mrb[0].mxu0
      %v4416 = vadd.f32 0.0, %v4415
      %v4417 = vpop.f32.mrb[0].mxu0
      %v4418 = vadd.f32 0.0, %v4417
      %4419 = vmatprep.mubr.bf16.mxu0 0
      %4420 = vmatmul.mubr.bf16.gmra.mrb[0].mxu0 %v4362
      %v4421 = vpop.f32.mrb[0].mxu0
      %v4422 = vadd.f32 0.0, %v4421
      %v4423 = vpop.f32.mrb[0].mxu0
      %v4424 = vadd.f32 0.0, %v4423
      %v4425 = vpop.f32.mrb[0].mxu0
      %v4426 = vadd.f32 0.0, %v4425
      %v4427 = vpop.f32.mrb[0].mxu0
      %v4428 = vadd.f32 0.0, %v4427
      %4429 = vmatprep.mubr.bf16.mxu0 0
      %4430 = vmatmul.mubr.bf16.gmra.mrb[0].mxu0 %v4365
      %v4431 = vpop.f32.mrb[0].mxu0
      %v4432 = vadd.f32 0.0, %v4431
      %v4433 = vpop.f32.mrb[0].mxu0
      %v4434 = vadd.f32 0.0, %v4433
      %v4435 = vpop.f32.mrb[0].mxu0
      %v4436 = vadd.f32 0.0, %v4435
      %v4437 = vpop.f32.mrb[0].mxu0
      %v4438 = vadd.f32 0.0, %v4437
      %4439 = vdwg.mxu0
      %4440 = vmatprep.subr.bf16.mxu0 %v4326
      %4441 = vmatpush1.bf16.msra.mxu0 %v4325
      %4442 = vmatprep.subr.bf16.mxu0 %v4330
      %4443 = vmatpush1.bf16.msra.mxu0 %v4329
      %4444 = vmatprep.subr.bf16.mxu0 %v4334
      %4445 = vmatpush1.bf16.msra.mxu0 %v4333
      %4446 = vmatprep.subr.bf16.mxu0 %v4338
      %4447 = vmatpush1.bf16.msra.mxu0 %v4337
      %4448 = vmatprep.subr.bf16.mxu0 0
      %4449 = vmatpush1.bf16.msra.mxu0 0
      %4450 = vmatprep.subr.bf16.mxu0 0
      %4451 = vmatpush1.bf16.msra.mxu0 0
      %4452 = vmatprep.subr.bf16.mxu0 0
      %4453 = vmatpush1.bf16.msra.mxu0 0
      %4454 = vmatprep.subr.bf16.mxu0 0
      %4455 = vmatpush1.bf16.msra.mxu0 0
      %4456 = vmatprep.subr.bf16.mxu0 0
      %4457 = vmatpush1.bf16.msra.mxu0 0
      %4458 = vmatprep.subr.bf16.mxu0 0
      %4459 = vmatpush1.bf16.msra.mxu0 0
      %4460 = vmatprep.subr.bf16.mxu0 0
      %4461 = vmatpush1.bf16.msra.mxu0 0
      %4462 = vmatprep.subr.bf16.mxu0 0
      %4463 = vmatpush1.bf16.msra.mxu0 0
      %4464 = vmatprep.subr.bf16.mxu0 0
      %4465 = vmatpush1.bf16.msra.mxu0 0
      %4466 = vmatprep.subr.bf16.mxu0 0
      %4467 = vmatpush1.bf16.msra.mxu0 0
      %4468 = vmatprep.subr.bf16.mxu0 0
      %4469 = vmatpush1.bf16.msra.mxu0 0
      %4470 = vmatprep.subr.bf16.mxu0 0
      %4471 = vmatpush1.bf16.msra.mxu0 0
      %4472 = vmatprep.mubr.bf16.mxu0 0
      %4473 = vmatmul.mubr.bf16.gmra.mrb[0].mxu0 %v4356
      %v4474 = vpop.f32.mrb[0].mxu0
      %v4475 = vadd.f32 0.0, %v4474
      %v4476 = vpop.f32.mrb[0].mxu0
      %v4477 = vadd.f32 0.0, %v4476
      %v4478 = vpop.f32.mrb[0].mxu0
      %v4479 = vadd.f32 0.0, %v4478
      %v4480 = vpop.f32.mrb[0].mxu0
      %v4481 = vadd.f32 0.0, %v4480
      %4482 = vmatprep.mubr.bf16.mxu0 0
      %4483 = vmatmul.mubr.bf16.gmra.mrb[0].mxu0 %v4359
      %v4484 = vpop.f32.mrb[0].mxu0
      %v4485 = vadd.f32 0.0, %v4484
      %v4486 = vpop.f32.mrb[0].mxu0
      %v4487 = vadd.f32 0.0, %v4486
      %v4488 = vpop.f32.mrb[0].mxu0
      %v4489 = vadd.f32 0.0, %v4488
      %v4490 = vpop.f32.mrb[0].mxu0
      %v4491 = vadd.f32 0.0, %v4490
      %4492 = vmatprep.mubr.bf16.mxu0 0
      %4493 = vmatmul.mubr.bf16.gmra.mrb[0].mxu0 %v4362
      %v4494 = vpop.f32.mrb[0].mxu0
      %v4495 = vadd.f32 0.0, %v4494
      %v4496 = vpop.f32.mrb[0].mxu0
      %v4497 = vadd.f32 0.0, %v4496
      %v4498 = vpop.f32.mrb[0].mxu0
      %v4499 = vadd.f32 0.0, %v4498
      %v4500 = vpop.f32.mrb[0].mxu0
      %v4501 = vadd.f32 0.0, %v4500
      %4502 = vmatprep.mubr.bf16.mxu0 0
      %4503 = vmatmul.mubr.bf16.gmra.mrb[0].mxu0 %v4365
      %v4504 = vpop.f32.mrb[0].mxu0
      %v4505 = vadd.f32 0.0, %v4504
      %v4506 = vpop.f32.mrb[0].mxu0
      %v4507 = vadd.f32 0.0, %v4506
      %v4508 = vpop.f32.mrb[0].mxu0
      %v4509 = vadd.f32 0.0, %v4508
      %v4510 = vpop.f32.mrb[0].mxu0
      %v4511 = vadd.f32 0.0, %v4510
      %4512 = vdwg.mxu0
      %v4513 = vmul.f32 %v4402, %v438
      %v4514 = vmul.f32 %v4404, %v439
      %v4515 = vmul.f32 %v4475, %v440
      %v4516 = vmul.f32 %v4477, %v441
      %v4517 = vmul.f32 %v4406, %v438
      %v4518 = vmul.f32 %v4408, %v439
      %v4519 = vmul.f32 %v4479, %v440
      %v4520 = vmul.f32 %v4481, %v441
      %v4521 = vmul.f32 %v4412, %v438
      %v4522 = vmul.f32 %v4414, %v439
      %v4523 = vmul.f32 %v4485, %v440
      %v4524 = vmul.f32 %v4487, %v441
      %v4525 = vmul.f32 %v4416, %v438
      %v4526 = vmul.f32 %v4418, %v439
      %v4527 = vmul.f32 %v4489, %v440
      %v4528 = vmul.f32 %v4491, %v441
      %v4529 = vmul.f32 %v4422, %v438
      %v4530 = vmul.f32 %v4424, %v439
      %v4531 = vmul.f32 %v4495, %v440
      %v4532 = vmul.f32 %v4497, %v441
      %v4533 = vmul.f32 %v4426, %v438
      %v4534 = vmul.f32 %v4428, %v439
      %v4535 = vmul.f32 %v4499, %v440
      %v4536 = vmul.f32 %v4501, %v441
      %v4537 = vmul.f32 %v4432, %v438
      %v4538 = vmul.f32 %v4434, %v439
      %v4539 = vmul.f32 %v4505, %v440
      %v4540 = vmul.f32 %v4507, %v441
      %v4541 = vmul.f32 %v4436, %v438
      %v4542 = vmul.f32 %v4438, %v439
      %v4543 = vmul.f32 %v4509, %v440
      %v4544 = vmul.f32 %v4511, %v441
      %v4545 = vrot.slane %v4513, 4
      %v4546 = vadd.f32 %v4513, %v4545
      %v4547 = vrot.slane %v4546, 2
      %v4548 = vadd.f32 %v4546, %v4547
      %v4549 = vrot.slane %v4548, 1
      %v4550 = vadd.f32 %v4548, %v4549
      %v4551 = vrot.slane %v4514, 4
      %v4552 = vadd.f32 %v4514, %v4551
      %v4553 = vrot.slane %v4552, 2
      %v4554 = vadd.f32 %v4552, %v4553
      %v4555 = vrot.slane %v4554, 1
      %v4556 = vadd.f32 %v4554, %v4555
      %v4557 = vrot.slane %v4515, 4
      %v4558 = vadd.f32 %v4515, %v4557
      %v4559 = vrot.slane %v4558, 2
      %v4560 = vadd.f32 %v4558, %v4559
      %v4561 = vrot.slane %v4560, 1
      %v4562 = vadd.f32 %v4560, %v4561
      %v4563 = vrot.slane %v4516, 4
      %v4564 = vadd.f32 %v4516, %v4563
      %v4565 = vrot.slane %v4564, 2
      %v4566 = vadd.f32 %v4564, %v4565
      %v4567 = vrot.slane %v4566, 1
      %v4568 = vadd.f32 %v4566, %v4567
      %v4569 = vrot.slane %v4517, 4
      %v4570 = vadd.f32 %v4517, %v4569
      %v4571 = vrot.slane %v4570, 2
      %v4572 = vadd.f32 %v4570, %v4571
      %v4573 = vrot.slane %v4572, 1
      %v4574 = vadd.f32 %v4572, %v4573
      %v4575 = vrot.slane %v4518, 4
      %v4576 = vadd.f32 %v4518, %v4575
      %v4577 = vrot.slane %v4576, 2
      %v4578 = vadd.f32 %v4576, %v4577
      %v4579 = vrot.slane %v4578, 1
      %v4580 = vadd.f32 %v4578, %v4579
      %v4581 = vrot.slane %v4519, 4
      %v4582 = vadd.f32 %v4519, %v4581
      %v4583 = vrot.slane %v4582, 2
      %v4584 = vadd.f32 %v4582, %v4583
      %v4585 = vrot.slane %v4584, 1
      %v4586 = vadd.f32 %v4584, %v4585
      %v4587 = vrot.slane %v4520, 4
      %v4588 = vadd.f32 %v4520, %v4587
      %v4589 = vrot.slane %v4588, 2
      %v4590 = vadd.f32 %v4588, %v4589
      %v4591 = vrot.slane %v4590, 1
      %v4592 = vadd.f32 %v4590, %v4591
      %v4593 = vrot.slane %v4521, 4
      %v4594 = vadd.f32 %v4521, %v4593
      %v4595 = vrot.slane %v4594, 2
      %v4596 = vadd.f32 %v4594, %v4595
      %v4597 = vrot.slane %v4596, 1
      %v4598 = vadd.f32 %v4596, %v4597
      %v4599 = vrot.slane %v4522, 4
      %v4600 = vadd.f32 %v4522, %v4599
      %v4601 = vrot.slane %v4600, 2
      %v4602 = vadd.f32 %v4600, %v4601
      %v4603 = vrot.slane %v4602, 1
      %v4604 = vadd.f32 %v4602, %v4603
      %v4605 = vrot.slane %v4523, 4
      %v4606 = vadd.f32 %v4523, %v4605
      %v4607 = vrot.slane %v4606, 2
      %v4608 = vadd.f32 %v4606, %v4607
      %v4609 = vrot.slane %v4608, 1
      %v4610 = vadd.f32 %v4608, %v4609
      %v4611 = vrot.slane %v4524, 4
      %v4612 = vadd.f32 %v4524, %v4611
      %v4613 = vrot.slane %v4612, 2
      %v4614 = vadd.f32 %v4612, %v4613
      %v4615 = vrot.slane %v4614, 1
      %v4616 = vadd.f32 %v4614, %v4615
      %v4617 = vrot.slane %v4525, 4
      %v4618 = vadd.f32 %v4525, %v4617
      %v4619 = vrot.slane %v4618, 2
      %v4620 = vadd.f32 %v4618, %v4619
      %v4621 = vrot.slane %v4620, 1
      %v4622 = vadd.f32 %v4620, %v4621
      %v4623 = vrot.slane %v4526, 4
      %v4624 = vadd.f32 %v4526, %v4623
      %v4625 = vrot.slane %v4624, 2
      %v4626 = vadd.f32 %v4624, %v4625
      %v4627 = vrot.slane %v4626, 1
      %v4628 = vadd.f32 %v4626, %v4627
      %v4629 = vrot.slane %v4527, 4
      %v4630 = vadd.f32 %v4527, %v4629
      %v4631 = vrot.slane %v4630, 2
      %v4632 = vadd.f32 %v4630, %v4631
      %v4633 = vrot.slane %v4632, 1
      %v4634 = vadd.f32 %v4632, %v4633
      %v4635 = vrot.slane %v4528, 4
      %v4636 = vadd.f32 %v4528, %v4635
      %v4637 = vrot.slane %v4636, 2
      %v4638 = vadd.f32 %v4636, %v4637
      %v4639 = vrot.slane %v4638, 1
      %v4640 = vadd.f32 %v4638, %v4639
      %v4641 = vrot.slane %v4529, 4
      %v4642 = vadd.f32 %v4529, %v4641
      %v4643 = vrot.slane %v4642, 2
      %v4644 = vadd.f32 %v4642, %v4643
      %v4645 = vrot.slane %v4644, 1
      %v4646 = vadd.f32 %v4644, %v4645
      %v4647 = vrot.slane %v4530, 4
      %v4648 = vadd.f32 %v4530, %v4647
      %v4649 = vrot.slane %v4648, 2
      %v4650 = vadd.f32 %v4648, %v4649
      %v4651 = vrot.slane %v4650, 1
      %v4652 = vadd.f32 %v4650, %v4651
      %v4653 = vrot.slane %v4531, 4
      %v4654 = vadd.f32 %v4531, %v4653
      %v4655 = vrot.slane %v4654, 2
      %v4656 = vadd.f32 %v4654, %v4655
      %v4657 = vrot.slane %v4656, 1
      %v4658 = vadd.f32 %v4656, %v4657
      %v4659 = vrot.slane %v4532, 4
      %v4660 = vadd.f32 %v4532, %v4659
      %v4661 = vrot.slane %v4660, 2
      %v4662 = vadd.f32 %v4660, %v4661
      %v4663 = vrot.slane %v4662, 1
      %v4664 = vadd.f32 %v4662, %v4663
      %v4665 = vrot.slane %v4533, 4
      %v4666 = vadd.f32 %v4533, %v4665
      %v4667 = vrot.slane %v4666, 2
      %v4668 = vadd.f32 %v4666, %v4667
      %v4669 = vrot.slane %v4668, 1
      %v4670 = vadd.f32 %v4668, %v4669
      %v4671 = vrot.slane %v4534, 4
      %v4672 = vadd.f32 %v4534, %v4671
      %v4673 = vrot.slane %v4672, 2
      %v4674 = vadd.f32 %v4672, %v4673
      %v4675 = vrot.slane %v4674, 1
      %v4676 = vadd.f32 %v4674, %v4675
      %v4677 = vrot.slane %v4535, 4
      %v4678 = vadd.f32 %v4535, %v4677
      %v4679 = vrot.slane %v4678, 2
      %v4680 = vadd.f32 %v4678, %v4679
      %v4681 = vrot.slane %v4680, 1
      %v4682 = vadd.f32 %v4680, %v4681
      %v4683 = vrot.slane %v4536, 4
      %v4684 = vadd.f32 %v4536, %v4683
      %v4685 = vrot.slane %v4684, 2
      %v4686 = vadd.f32 %v4684, %v4685
      %v4687 = vrot.slane %v4686, 1
      %v4688 = vadd.f32 %v4686, %v4687
      %v4689 = vrot.slane %v4537, 4
      %v4690 = vadd.f32 %v4537, %v4689
      %v4691 = vrot.slane %v4690, 2
      %v4692 = vadd.f32 %v4690, %v4691
      %v4693 = vrot.slane %v4692, 1
      %v4694 = vadd.f32 %v4692, %v4693
      %v4695 = vrot.slane %v4538, 4
      %v4696 = vadd.f32 %v4538, %v4695
      %v4697 = vrot.slane %v4696, 2
      %v4698 = vadd.f32 %v4696, %v4697
      %v4699 = vrot.slane %v4698, 1
      %v4700 = vadd.f32 %v4698, %v4699
      %v4701 = vrot.slane %v4539, 4
      %v4702 = vadd.f32 %v4539, %v4701
      %v4703 = vrot.slane %v4702, 2
      %v4704 = vadd.f32 %v4702, %v4703
      %v4705 = vrot.slane %v4704, 1
      %v4706 = vadd.f32 %v4704, %v4705
      %v4707 = vrot.slane %v4540, 4
      %v4708 = vadd.f32 %v4540, %v4707
      %v4709 = vrot.slane %v4708, 2
      %v4710 = vadd.f32 %v4708, %v4709
      %v4711 = vrot.slane %v4710, 1
      %v4712 = vadd.f32 %v4710, %v4711
      %v4713 = vrot.slane %v4541, 4
      %v4714 = vadd.f32 %v4541, %v4713
      %v4715 = vrot.slane %v4714, 2
      %v4716 = vadd.f32 %v4714, %v4715
      %v4717 = vrot.slane %v4716, 1
      %v4718 = vadd.f32 %v4716, %v4717
      %v4719 = vrot.slane %v4542, 4
      %v4720 = vadd.f32 %v4542, %v4719
      %v4721 = vrot.slane %v4720, 2
      %v4722 = vadd.f32 %v4720, %v4721
      %v4723 = vrot.slane %v4722, 1
      %v4724 = vadd.f32 %v4722, %v4723
      %v4725 = vrot.slane %v4543, 4
      %v4726 = vadd.f32 %v4543, %v4725
      %v4727 = vrot.slane %v4726, 2
      %v4728 = vadd.f32 %v4726, %v4727
      %v4729 = vrot.slane %v4728, 1
      %v4730 = vadd.f32 %v4728, %v4729
      %v4731 = vrot.slane %v4544, 4
      %v4732 = vadd.f32 %v4544, %v4731
      %v4733 = vrot.slane %v4732, 2
      %v4734 = vadd.f32 %v4732, %v4733
      %v4735 = vrot.slane %v4734, 1
      %v4736 = vadd.f32 %v4734, %v4735
      %v4737 = vld [vmem:[%s8] sm:$0xf]
      %v4738 = vld [vmem:[%s8 + $0x4] sm:$0xf]
      %v4739 = vld [vmem:[%s8 + $0x8] sm:$0xf]
      %v4740 = vld [vmem:[%s8 + $0xc] sm:$0xf]
      %v4741 = vld [vmem:[%s8 + $0x10] sm:$0xf]
      %v4742 = vld [vmem:[%s8 + $0x14] sm:$0xf]
      %v4743 = vld [vmem:[%s8 + $0x18] sm:$0xf]
      %v4744 = vld [vmem:[%s8 + $0x1c] sm:$0xf]
      %v4745 = vld [vmem:[%s8 + $0x20] sm:$0xf]
      %v4746 = vld [vmem:[%s8 + $0x24] sm:$0xf]
      %v4747 = vld [vmem:[%s8 + $0x28] sm:$0xf]
      %v4748 = vld [vmem:[%s8 + $0x2c] sm:$0xf]
      %v4749 = vld [vmem:[%s8 + $0x30] sm:$0xf]
      %v4750 = vld [vmem:[%s8 + $0x34] sm:$0xf]
      %v4751 = vld [vmem:[%s8 + $0x38] sm:$0xf]
      %v4752 = vld [vmem:[%s8 + $0x3c] sm:$0xf]
      %v4753 = vld [vmem:[%s8 + $0x40] sm:$0xf]
      %v4754 = vld [vmem:[%s8 + $0x44] sm:$0xf]
      %v4755 = vld [vmem:[%s8 + $0x48] sm:$0xf]
      %v4756 = vld [vmem:[%s8 + $0x4c] sm:$0xf]
      %v4757 = vld [vmem:[%s8 + $0x50] sm:$0xf]
      %v4758 = vld [vmem:[%s8 + $0x54] sm:$0xf]
      %v4759 = vld [vmem:[%s8 + $0x58] sm:$0xf]
      %v4760 = vld [vmem:[%s8 + $0x5c] sm:$0xf]
      %v4761 = vld [vmem:[%s8 + $0x60] sm:$0xf]
      %v4762 = vld [vmem:[%s8 + $0x64] sm:$0xf]
      %v4763 = vld [vmem:[%s8 + $0x68] sm:$0xf]
      %v4764 = vld [vmem:[%s8 + $0x6c] sm:$0xf]
      %v4765 = vld [vmem:[%s8 + $0x70] sm:$0xf]
      %v4766 = vld [vmem:[%s8 + $0x74] sm:$0xf]
      %v4767 = vld [vmem:[%s8 + $0x78] sm:$0xf]
      %v4768 = vld [vmem:[%s8 + $0x7c] sm:$0xf]
      %v4769 = vld [vmem:[%s8 + $0x80] sm:$0xf]
      %v4770 = vld [vmem:[%s8 + $0x84] sm:$0xf]
      %v4771 = vld [vmem:[%s8 + $0x88] sm:$0xf]
      %v4772 = vld [vmem:[%s8 + $0x8c] sm:$0xf]
      %v4773 = vld [vmem:[%s8 + $0x90] sm:$0xf]
      %v4774 = vld [vmem:[%s8 + $0x94] sm:$0xf]
      %v4775 = vld [vmem:[%s8 + $0x98] sm:$0xf]
      %v4776 = vld [vmem:[%s8 + $0x9c] sm:$0xf]
      %v4777 = vld [vmem:[%s8 + $0xa0] sm:$0xf]
      %v4778 = vld [vmem:[%s8 + $0xa4] sm:$0xf]
      %v4779 = vld [vmem:[%s8 + $0xa8] sm:$0xf]
      %v4780 = vld [vmem:[%s8 + $0xac] sm:$0xf]
      %v4781 = vld [vmem:[%s8 + $0xb0] sm:$0xf]
      %v4782 = vld [vmem:[%s8 + $0xb4] sm:$0xf]
      %v4783 = vld [vmem:[%s8 + $0xb8] sm:$0xf]
      %v4784 = vld [vmem:[%s8 + $0xbc] sm:$0xf]
      %v4785 = vld [vmem:[%s8 + $0xc0] sm:$0xf]
      %v4786 = vld [vmem:[%s8 + $0xc4] sm:$0xf]
      %v4787 = vld [vmem:[%s8 + $0xc8] sm:$0xf]
      %v4788 = vld [vmem:[%s8 + $0xcc] sm:$0xf]
      %v4789 = vld [vmem:[%s8 + $0xd0] sm:$0xf]
      %v4790 = vld [vmem:[%s8 + $0xd4] sm:$0xf]
      %v4791 = vld [vmem:[%s8 + $0xd8] sm:$0xf]
      %v4792 = vld [vmem:[%s8 + $0xdc] sm:$0xf]
      %v4793 = vld [vmem:[%s8 + $0xe0] sm:$0xf]
      %v4794 = vld [vmem:[%s8 + $0xe4] sm:$0xf]
      %v4795 = vld [vmem:[%s8 + $0xe8] sm:$0xf]
      %v4796 = vld [vmem:[%s8 + $0xec] sm:$0xf]
      %v4797 = vld [vmem:[%s8 + $0xf0] sm:$0xf]
      %v4798 = vld [vmem:[%s8 + $0xf4] sm:$0xf]
      %v4799 = vld [vmem:[%s8 + $0xf8] sm:$0xf]
      %v4800 = vld [vmem:[%s8 + $0xfc] sm:$0xf]
      %v4801 = vpack.c.bf16 %v4550, %v4550
      %v4802 = vpack.c.bf16 %v4556, %v4556
      %v4803 = vpack.c.bf16 %v4562, %v4562
      %v4804 = vpack.c.bf16 %v4568, %v4568
      %v4805 = vpack.c.bf16 %v4574, %v4574
      %v4806 = vpack.c.bf16 %v4580, %v4580
      %v4807 = vpack.c.bf16 %v4586, %v4586
      %v4808 = vpack.c.bf16 %v4592, %v4592
      %v4809 = vpack.c.bf16 %v4598, %v4598
      %v4810 = vpack.c.bf16 %v4604, %v4604
      %v4811 = vpack.c.bf16 %v4610, %v4610
      %v4812 = vpack.c.bf16 %v4616, %v4616
      %v4813 = vpack.c.bf16 %v4622, %v4622
      %v4814 = vpack.c.bf16 %v4628, %v4628
      %v4815 = vpack.c.bf16 %v4634, %v4634
      %v4816 = vpack.c.bf16 %v4640, %v4640
      %v4817 = vpack.c.bf16 %v4646, %v4646
      %v4818 = vpack.c.bf16 %v4652, %v4652
      %v4819 = vpack.c.bf16 %v4658, %v4658
      %v4820 = vpack.c.bf16 %v4664, %v4664
      %v4821 = vpack.c.bf16 %v4670, %v4670
      %v4822 = vpack.c.bf16 %v4676, %v4676
      %v4823 = vpack.c.bf16 %v4682, %v4682
      %v4824 = vpack.c.bf16 %v4688, %v4688
      %v4825 = vpack.c.bf16 %v4694, %v4694
      %v4826 = vpack.c.bf16 %v4700, %v4700
      %v4827 = vpack.c.bf16 %v4706, %v4706
      %v4828 = vpack.c.bf16 %v4712, %v4712
      %v4829 = vpack.c.bf16 %v4718, %v4718
      %v4830 = vpack.c.bf16 %v4724, %v4724
      %v4831 = vpack.c.bf16 %v4730, %v4730
      %v4832 = vpack.c.bf16 %v4736, %v4736
      %v4833 = vlaneseq
      %v4834 = vshrl.u32 %v4833, 7
      %v4835 = vsub.s32 4, %v4834
      %v4836 = vrot.slane %v434, %v4835
      %v4869 = vunpack.c.l.b16 %v4801
      %v4870 = vunpack.c.l.b16 %v4802
      %v4871 = vunpack.c.l.b16 %v4803
      %v4872 = vunpack.c.l.b16 %v4804
      %v4873 = vunpack.c.l.b16 %v4805
      %v4874 = vunpack.c.l.b16 %v4806
      %v4875 = vunpack.c.l.b16 %v4807
      %v4876 = vunpack.c.l.b16 %v4808
      %v4877 = vunpack.c.l.b16 %v4809
      %v4878 = vunpack.c.l.b16 %v4810
      %v4879 = vunpack.c.l.b16 %v4811
      %v4880 = vunpack.c.l.b16 %v4812
      %v4881 = vunpack.c.l.b16 %v4813
      %v4882 = vunpack.c.l.b16 %v4814
      %v4883 = vunpack.c.l.b16 %v4815
      %v4884 = vunpack.c.l.b16 %v4816
      %v4885 = vunpack.c.l.b16 %v4817
      %v4886 = vunpack.c.l.b16 %v4818
      %v4887 = vunpack.c.l.b16 %v4819
      %v4888 = vunpack.c.l.b16 %v4820
      %v4889 = vunpack.c.l.b16 %v4821
      %v4890 = vunpack.c.l.b16 %v4822
      %v4891 = vunpack.c.l.b16 %v4823
      %v4892 = vunpack.c.l.b16 %v4824
      %v4893 = vunpack.c.l.b16 %v4825
      %v4894 = vunpack.c.l.b16 %v4826
      %v4895 = vunpack.c.l.b16 %v4827
      %v4896 = vunpack.c.l.b16 %v4828
      %v4897 = vunpack.c.l.b16 %v4829
      %v4898 = vunpack.c.l.b16 %v4830
      %v4899 = vunpack.c.l.b16 %v4831
      %v4900 = vunpack.c.l.b16 %v4832
      %vm4901 = vcmask 1041409
      %v4902 = vsel %vm4901, %v4873, %v4869
      %vm4903 = vcmask 1042434
      %v4904 = vsel %vm4903, %v4877, %v4902
      %vm4905 = vcmask 1043459
      %v4906 = vsel %vm4905, %v4881, %v4904
      %vm4907 = vcmask 1044484
      %v4908 = vsel %vm4907, %v4885, %v4906
      %vm4909 = vcmask 1045509
      %v4910 = vsel %vm4909, %v4889, %v4908
      %vm4911 = vcmask 1046534
      %v4912 = vsel %vm4911, %v4893, %v4910
      %vm4913 = vcmask 1047559
      %v4914 = vsel %vm4913, %v4897, %v4912
      %v4915 = vsel %vm4901, %v4874, %v4870
      %v4916 = vsel %vm4903, %v4878, %v4915
      %v4917 = vsel %vm4905, %v4882, %v4916
      %v4918 = vsel %vm4907, %v4886, %v4917
      %v4919 = vsel %vm4909, %v4890, %v4918
      %v4920 = vsel %vm4911, %v4894, %v4919
      %v4921 = vsel %vm4913, %v4898, %v4920
      %v4922 = vsel %vm4901, %v4875, %v4871
      %v4923 = vsel %vm4903, %v4879, %v4922
      %v4924 = vsel %vm4905, %v4883, %v4923
      %v4925 = vsel %vm4907, %v4887, %v4924
      %v4926 = vsel %vm4909, %v4891, %v4925
      %v4927 = vsel %vm4911, %v4895, %v4926
      %v4928 = vsel %vm4913, %v4899, %v4927
      %v4929 = vsel %vm4901, %v4876, %v4872
      %v4930 = vsel %vm4903, %v4880, %v4929
      %v4931 = vsel %vm4905, %v4884, %v4930
      %v4932 = vsel %vm4907, %v4888, %v4931
      %v4933 = vsel %vm4909, %v4892, %v4932
      %v4934 = vsel %vm4911, %v4896, %v4933
      %v4935 = vsel %vm4913, %v4900, %v4934
      %v4936 = vpack.c.b16 %v4914, %v4914
      %v4937 = vpack.c.b16 %v4921, %v4921
      %v4938 = vpack.c.b16 %v4928, %v4928
      %v4939 = vpack.c.b16 %v4935, %v4935
      %v5008 = vunpack.c.l.b16 %v4737
      %v5009 = vunpack.c.l.b16 %v4738
      %v5010 = vunpack.c.l.b16 %v4739
      %v5011 = vunpack.c.l.b16 %v4740
      %v5012 = vunpack.c.l.b16 %v4741
      %v5013 = vunpack.c.l.b16 %v4742
      %v5014 = vunpack.c.l.b16 %v4743
      %v5015 = vunpack.c.l.b16 %v4744
      %v5016 = vunpack.c.l.b16 %v4745
      %v5017 = vunpack.c.l.b16 %v4746
      %v5018 = vunpack.c.l.b16 %v4747
      %v5019 = vunpack.c.l.b16 %v4748
      %v5020 = vunpack.c.l.b16 %v4749
      %v5021 = vunpack.c.l.b16 %v4750
      %v5022 = vunpack.c.l.b16 %v4751
      %v5023 = vunpack.c.l.b16 %v4752
      %v5024 = vunpack.c.l.b16 %v4753
      %v5025 = vunpack.c.l.b16 %v4754
      %v5026 = vunpack.c.l.b16 %v4755
      %v5027 = vunpack.c.l.b16 %v4756
      %v5028 = vunpack.c.l.b16 %v4757
      %v5029 = vunpack.c.l.b16 %v4758
      %v5030 = vunpack.c.l.b16 %v4759
      %v5031 = vunpack.c.l.b16 %v4760
      %v5032 = vunpack.c.l.b16 %v4761
      %v5033 = vunpack.c.l.b16 %v4762
      %v5034 = vunpack.c.l.b16 %v4763
      %v5035 = vunpack.c.l.b16 %v4764
      %v5036 = vunpack.c.l.b16 %v4765
      %v5037 = vunpack.c.l.b16 %v4766
      %v5038 = vunpack.c.l.b16 %v4767
      %v5039 = vunpack.c.l.b16 %v4768
      %v5040 = vunpack.c.l.b16 %v4769
      %v5041 = vunpack.c.l.b16 %v4770
      %v5042 = vunpack.c.l.b16 %v4771
      %v5043 = vunpack.c.l.b16 %v4772
      %v5044 = vunpack.c.l.b16 %v4773
      %v5045 = vunpack.c.l.b16 %v4774
      %v5046 = vunpack.c.l.b16 %v4775
      %v5047 = vunpack.c.l.b16 %v4776
      %v5048 = vunpack.c.l.b16 %v4777
      %v5049 = vunpack.c.l.b16 %v4778
      %v5050 = vunpack.c.l.b16 %v4779
      %v5051 = vunpack.c.l.b16 %v4780
      %v5052 = vunpack.c.l.b16 %v4781
      %v5053 = vunpack.c.l.b16 %v4782
      %v5054 = vunpack.c.l.b16 %v4783
      %v5055 = vunpack.c.l.b16 %v4784
      %v5056 = vunpack.c.l.b16 %v4785
      %v5057 = vunpack.c.l.b16 %v4786
      %v5058 = vunpack.c.l.b16 %v4787
      %v5059 = vunpack.c.l.b16 %v4788
      %v5060 = vunpack.c.l.b16 %v4789
      %v5061 = vunpack.c.l.b16 %v4790
      %v5062 = vunpack.c.l.b16 %v4791
      %v5063 = vunpack.c.l.b16 %v4792
      %v5064 = vunpack.c.l.b16 %v4793
      %v5065 = vunpack.c.l.b16 %v4794
      %v5066 = vunpack.c.l.b16 %v4795
      %v5067 = vunpack.c.l.b16 %v4796
      %v5068 = vunpack.c.l.b16 %v4797
      %v5069 = vunpack.c.l.b16 %v4798
      %v5070 = vunpack.c.l.b16 %v4799
      %v5071 = vunpack.c.l.b16 %v4800
      %v5072 = vpack.c.b16 %v5009, %v5008
      %v5073 = vpack.c.b16 %v5011, %v5010
      %v5074 = vpack.c.b16 %v5013, %v5012
      %v5075 = vpack.c.b16 %v5015, %v5014
      %v5076 = vpack.c.b16 %v5017, %v5016
      %v5077 = vpack.c.b16 %v5019, %v5018
      %v5078 = vpack.c.b16 %v5021, %v5020
      %v5079 = vpack.c.b16 %v5023, %v5022
      %v5080 = vpack.c.b16 %v5025, %v5024
      %v5081 = vpack.c.b16 %v5027, %v5026
      %v5082 = vpack.c.b16 %v5029, %v5028
      %v5083 = vpack.c.b16 %v5031, %v5030
      %v5084 = vpack.c.b16 %v5033, %v5032
      %v5085 = vpack.c.b16 %v5035, %v5034
      %v5086 = vpack.c.b16 %v5037, %v5036
      %v5087 = vpack.c.b16 %v5039, %v5038
      %v5088 = vpack.c.b16 %v5041, %v5040
      %v5089 = vpack.c.b16 %v5043, %v5042
      %v5090 = vpack.c.b16 %v5045, %v5044
      %v5091 = vpack.c.b16 %v5047, %v5046
      %v5092 = vpack.c.b16 %v5049, %v5048
      %v5093 = vpack.c.b16 %v5051, %v5050
      %v5094 = vpack.c.b16 %v5053, %v5052
      %v5095 = vpack.c.b16 %v5055, %v5054
      %v5096 = vpack.c.b16 %v5057, %v5056
      %v5097 = vpack.c.b16 %v5059, %v5058
      %v5098 = vpack.c.b16 %v5061, %v5060
      %v5099 = vpack.c.b16 %v5063, %v5062
      %v5100 = vpack.c.b16 %v5065, %v5064
      %v5101 = vpack.c.b16 %v5067, %v5066
      %v5102 = vpack.c.b16 %v5069, %v5068
      %v5103 = vpack.c.b16 %v5071, %v5070
      %5136 = vmatprep.subr.bf16.mxu0 0
      %5137 = vmatpush1.bf16.msra.mxu0 %v5072
      %5138 = vmatprep.subr.bf16.mxu0 0
      %5139 = vmatpush1.bf16.msra.mxu0 %v5073
      %5140 = vmatprep.subr.bf16.mxu0 0
      %5141 = vmatpush1.bf16.msra.mxu0 %v5074
      %5142 = vmatprep.subr.bf16.mxu0 0
      %5143 = vmatpush1.bf16.msra.mxu0 %v5075
      %5144 = vmatprep.subr.bf16.mxu0 0
      %5145 = vmatpush1.bf16.msra.mxu0 %v5076
      %5146 = vmatprep.subr.bf16.mxu0 0
      %5147 = vmatpush1.bf16.msra.mxu0 %v5077
      %5148 = vmatprep.subr.bf16.mxu0 0
      %5149 = vmatpush1.bf16.msra.mxu0 %v5078
      %5150 = vmatprep.subr.bf16.mxu0 0
      %5151 = vmatpush1.bf16.msra.mxu0 %v5079
      %5152 = vmatprep.subr.bf16.mxu0 0
      %5153 = vmatpush1.bf16.msra.mxu0 %v5080
      %5154 = vmatprep.subr.bf16.mxu0 0
      %5155 = vmatpush1.bf16.msra.mxu0 %v5081
      %5156 = vmatprep.subr.bf16.mxu0 0
      %5157 = vmatpush1.bf16.msra.mxu0 %v5082
      %5158 = vmatprep.subr.bf16.mxu0 0
      %5159 = vmatpush1.bf16.msra.mxu0 %v5083
      %5160 = vmatprep.subr.bf16.mxu0 0
      %5161 = vmatpush1.bf16.msra.mxu0 %v5084
      %5162 = vmatprep.subr.bf16.mxu0 0
      %5163 = vmatpush1.bf16.msra.mxu0 %v5085
      %5164 = vmatprep.subr.bf16.mxu0 0
      %5165 = vmatpush1.bf16.msra.mxu0 %v5086
      %5166 = vmatprep.subr.bf16.mxu0 0
      %5167 = vmatpush1.bf16.msra.mxu0 %v5087
      %5168 = vmatprep.mubr.bf16.mxu0 %v4937
      %5169 = vmatmul.mubr.bf16.gmra.mrb[0].mxu0 %v4936
      %v5170 = vpop.f32.mrb[0].mxu0
      %v5171 = vadd.f32 %v4836, %v5170
      %v5172 = vpop.f32.mrb[0].mxu0
      %v5173 = vpop.f32.mrb[0].mxu0
      %v5174 = vpop.f32.mrb[0].mxu0
      %5175 = vdwg.mxu0
      %5176 = vmatprep.subr.bf16.mxu0 0
      %5177 = vmatpush1.bf16.msra.mxu0 %v5088
      %5178 = vmatprep.subr.bf16.mxu0 0
      %5179 = vmatpush1.bf16.msra.mxu0 %v5089
      %5180 = vmatprep.subr.bf16.mxu0 0
      %5181 = vmatpush1.bf16.msra.mxu0 %v5090
      %5182 = vmatprep.subr.bf16.mxu0 0
      %5183 = vmatpush1.bf16.msra.mxu0 %v5091
      %5184 = vmatprep.subr.bf16.mxu0 0
      %5185 = vmatpush1.bf16.msra.mxu0 %v5092
      %5186 = vmatprep.subr.bf16.mxu0 0
      %5187 = vmatpush1.bf16.msra.mxu0 %v5093
      %5188 = vmatprep.subr.bf16.mxu0 0
      %5189 = vmatpush1.bf16.msra.mxu0 %v5094
      %5190 = vmatprep.subr.bf16.mxu0 0
      %5191 = vmatpush1.bf16.msra.mxu0 %v5095
      %5192 = vmatprep.subr.bf16.mxu0 0
      %5193 = vmatpush1.bf16.msra.mxu0 %v5096
      %5194 = vmatprep.subr.bf16.mxu0 0
      %5195 = vmatpush1.bf16.msra.mxu0 %v5097
      %5196 = vmatprep.subr.bf16.mxu0 0
      %5197 = vmatpush1.bf16.msra.mxu0 %v5098
      %5198 = vmatprep.subr.bf16.mxu0 0
      %5199 = vmatpush1.bf16.msra.mxu0 %v5099
      %5200 = vmatprep.subr.bf16.mxu0 0
      %5201 = vmatpush1.bf16.msra.mxu0 %v5100
      %5202 = vmatprep.subr.bf16.mxu0 0
      %5203 = vmatpush1.bf16.msra.mxu0 %v5101
      %5204 = vmatprep.subr.bf16.mxu0 0
      %5205 = vmatpush1.bf16.msra.mxu0 %v5102
      %5206 = vmatprep.subr.bf16.mxu0 0
      %5207 = vmatpush1.bf16.msra.mxu0 %v5103
      %5208 = vmatprep.mubr.bf16.mxu0 %v4939
      %5209 = vmatmul.mubr.bf16.gmra.mrb[0].mxu0 %v4938
      %v5210 = vpop.f32.mrb[0].mxu0
      %v5211 = vadd.f32 %v5171, %v5210
      %v5212 = vpop.f32.mrb[0].mxu0
      %v5213 = vpop.f32.mrb[0].mxu0
      %v5214 = vpop.f32.mrb[0].mxu0
      %5215 = vdwg.mxu0
      %v5216 = vmax.f32 %v5211, 0.0
      %v5217 = vld [vmem:[%s7] sm:$0xf]
      %v5218 = vld [vmem:[%s7 + $0x4] sm:$0xf]
      %v5219 = vld [vmem:[%s7 + $0x8] sm:$0xf]
      %v5220 = vld [vmem:[%s7 + $0xc] sm:$0xf]
      %v5221 = vld [vmem:[%s7 + $0x10] sm:$0xf]
      %v5222 = vld [vmem:[%s7 + $0x14] sm:$0xf]
      %v5223 = vld [vmem:[%s7 + $0x18] sm:$0xf]
      %v5224 = vld [vmem:[%s7 + $0x1c] sm:$0xf]
      %v5225 = vpack.c.bf16 %v5216, %v5216
      %v5226 = vlaneseq
      %v5227 = vshrl.u32 %v5226, 7
      %v5228 = vsub.s32 5, %v5227
      %v5229 = vrot.slane %v434, %v5228
      %v5238 = vunpack.c.l.b16 %v5217
      %v5239 = vunpack.c.l.b16 %v5218
      %v5240 = vunpack.c.l.b16 %v5219
      %v5241 = vunpack.c.l.b16 %v5220
      %v5242 = vunpack.c.l.b16 %v5221
      %v5243 = vunpack.c.l.b16 %v5222
      %v5244 = vunpack.c.l.b16 %v5223
      %v5245 = vunpack.c.l.b16 %v5224
      %v5246 = vpack.c.b16 %v5239, %v5238
      %v5247 = vpack.c.b16 %v5241, %v5240
      %v5248 = vpack.c.b16 %v5243, %v5242
      %v5249 = vpack.c.b16 %v5245, %v5244
      %v5255 = vsel %vm2936, %v5225, 0
      %5257 = vmatprep.subr.bf16.mxu0 0
      %5258 = vmatpush1.bf16.msra.mxu0 %v5246
      %5259 = vmatprep.subr.bf16.mxu0 0
      %5260 = vmatpush1.bf16.msra.mxu0 %v5247
      %5261 = vmatprep.subr.bf16.mxu0 0
      %5262 = vmatpush1.bf16.msra.mxu0 %v5248
      %5263 = vmatprep.subr.bf16.mxu0 0
      %5264 = vmatpush1.bf16.msra.mxu0 %v5249
      %5265 = vmatprep.subr.bf16.mxu0 0
      %5266 = vmatpush1.bf16.msra.mxu0 0
      %5267 = vmatprep.subr.bf16.mxu0 0
      %5268 = vmatpush1.bf16.msra.mxu0 0
      %5269 = vmatprep.subr.bf16.mxu0 0
      %5270 = vmatpush1.bf16.msra.mxu0 0
      %5271 = vmatprep.subr.bf16.mxu0 0
      %5272 = vmatpush1.bf16.msra.mxu0 0
      %5273 = vmatprep.subr.bf16.mxu0 0
      %5274 = vmatpush1.bf16.msra.mxu0 0
      %5275 = vmatprep.subr.bf16.mxu0 0
      %5276 = vmatpush1.bf16.msra.mxu0 0
      %5277 = vmatprep.subr.bf16.mxu0 0
      %5278 = vmatpush1.bf16.msra.mxu0 0
      %5279 = vmatprep.subr.bf16.mxu0 0
      %5280 = vmatpush1.bf16.msra.mxu0 0
      %5281 = vmatprep.subr.bf16.mxu0 0
      %5282 = vmatpush1.bf16.msra.mxu0 0
      %5283 = vmatprep.subr.bf16.mxu0 0
      %5284 = vmatpush1.bf16.msra.mxu0 0
      %5285 = vmatprep.subr.bf16.mxu0 0
      %5286 = vmatpush1.bf16.msra.mxu0 0
      %5287 = vmatprep.subr.bf16.mxu0 0
      %5288 = vmatpush1.bf16.msra.mxu0 0
      %5289 = vmatprep.mubr.bf16.mxu0 0
      %5290 = vmatmul.mubr.bf16.gmra.mrb[0].mxu0 %v5255
      %v5291 = vpop.f32.mrb[0].mxu0
      %v5292 = vadd.f32 %v5229, %v5291
      %v5293 = vpop.f32.mrb[0].mxu0
      %v5294 = vpop.f32.mrb[0].mxu0
      %v5295 = vpop.f32.mrb[0].mxu0
      %5296 = vdwg.mxu0
      %v5297 = vmax.f32 %v5292, 0.0
      %s5298 = scalar_lea.vmem %s7, 32
      %v5299 = vld [vmem:[%s5298] sm:$0xf]
      %v5300 = vld [vmem:[%s5298 + $0x4] sm:$0xf]
      %v5301 = vld [vmem:[%s5298 + $0x8] sm:$0xf]
      %v5302 = vld [vmem:[%s5298 + $0xc] sm:$0xf]
      %v5303 = vld [vmem:[%s5298 + $0x10] sm:$0xf]
      %v5304 = vld [vmem:[%s5298 + $0x14] sm:$0xf]
      %v5305 = vld [vmem:[%s5298 + $0x18] sm:$0xf]
      %v5306 = vld [vmem:[%s5298 + $0x1c] sm:$0xf]
      %v5307 = vpack.c.bf16 %v5297, %v5297
      %v5308 = vlaneseq
      %v5309 = vshrl.u32 %v5308, 7
      %v5310 = vsub.s32 6, %v5309
      %v5311 = vrot.slane %v434, %v5310
      %v5320 = vunpack.c.l.b16 %v5299
      %v5321 = vunpack.c.l.b16 %v5300
      %v5322 = vunpack.c.l.b16 %v5301
      %v5323 = vunpack.c.l.b16 %v5302
      %v5324 = vunpack.c.l.b16 %v5303
      %v5325 = vunpack.c.l.b16 %v5304
      %v5326 = vunpack.c.l.b16 %v5305
      %v5327 = vunpack.c.l.b16 %v5306
      %v5328 = vpack.c.b16 %v5321, %v5320
      %v5329 = vpack.c.b16 %v5323, %v5322
      %v5330 = vpack.c.b16 %v5325, %v5324
      %v5331 = vpack.c.b16 %v5327, %v5326
      %v5337 = vsel %vm2936, %v5307, 0
      %5339 = vmatprep.subr.bf16.mxu0 0
      %5340 = vmatpush1.bf16.msra.mxu0 %v5328
      %5341 = vmatprep.subr.bf16.mxu0 0
      %5342 = vmatpush1.bf16.msra.mxu0 %v5329
      %5343 = vmatprep.subr.bf16.mxu0 0
      %5344 = vmatpush1.bf16.msra.mxu0 %v5330
      %5345 = vmatprep.subr.bf16.mxu0 0
      %5346 = vmatpush1.bf16.msra.mxu0 %v5331
      %5347 = vmatprep.subr.bf16.mxu0 0
      %5348 = vmatpush1.bf16.msra.mxu0 0
      %5349 = vmatprep.subr.bf16.mxu0 0
      %5350 = vmatpush1.bf16.msra.mxu0 0
      %5351 = vmatprep.subr.bf16.mxu0 0
      %5352 = vmatpush1.bf16.msra.mxu0 0
      %5353 = vmatprep.subr.bf16.mxu0 0
      %5354 = vmatpush1.bf16.msra.mxu0 0
      %5355 = vmatprep.subr.bf16.mxu0 0
      %5356 = vmatpush1.bf16.msra.mxu0 0
      %5357 = vmatprep.subr.bf16.mxu0 0
      %5358 = vmatpush1.bf16.msra.mxu0 0
      %5359 = vmatprep.subr.bf16.mxu0 0
      %5360 = vmatpush1.bf16.msra.mxu0 0
      %5361 = vmatprep.subr.bf16.mxu0 0
      %5362 = vmatpush1.bf16.msra.mxu0 0
      %5363 = vmatprep.subr.bf16.mxu0 0
      %5364 = vmatpush1.bf16.msra.mxu0 0
      %5365 = vmatprep.subr.bf16.mxu0 0
      %5366 = vmatpush1.bf16.msra.mxu0 0
      %5367 = vmatprep.subr.bf16.mxu0 0
      %5368 = vmatpush1.bf16.msra.mxu0 0
      %5369 = vmatprep.subr.bf16.mxu0 0
      %5370 = vmatpush1.bf16.msra.mxu0 0
      %5371 = vmatprep.mubr.bf16.mxu0 0
      %5372 = vmatmul.mubr.bf16.gmra.mrb[0].mxu0 %v5337
      %v5373 = vpop.f32.mrb[0].mxu0
      %v5374 = vadd.f32 %v5311, %v5373
      %v5375 = vpop.f32.mrb[0].mxu0
      %v5376 = vpop.f32.mrb[0].mxu0
      %v5377 = vpop.f32.mrb[0].mxu0
      %5378 = vdwg.mxu0
      %v5379 = vmax.f32 %v5374, 0.0
      %s5380 = scalar_lea.vmem %s6, 128
      %v5381 = vld [vmem:[%s5380] sm:$0xff]
      %v5382 = vld [vmem:[%s5380 + $0x8] sm:$0xff]
      %v5383 = vld [vmem:[%s5380 + $0x10] sm:$0xff]
      %v5384 = vld [vmem:[%s5380 + $0x18] sm:$0xff]
      %v5385 = vld [vmem:[%s5380 + $0x20] sm:$0xff]
      %v5386 = vld [vmem:[%s5380 + $0x28] sm:$0xff]
      %v5387 = vld [vmem:[%s5380 + $0x30] sm:$0xff]
      %v5388 = vld [vmem:[%s5380 + $0x38] sm:$0xff]
      %v5389 = vld [vmem:[%s5380 + $0x40] sm:$0xff]
      %v5390 = vld [vmem:[%s5380 + $0x48] sm:$0xff]
      %v5391 = vld [vmem:[%s5380 + $0x50] sm:$0xff]
      %v5392 = vld [vmem:[%s5380 + $0x58] sm:$0xff]
      %v5393 = vld [vmem:[%s5380 + $0x60] sm:$0xff]
      %v5394 = vld [vmem:[%s5380 + $0x68] sm:$0xff]
      %v5395 = vld [vmem:[%s5380 + $0x70] sm:$0xff]
      %v5396 = vld [vmem:[%s5380 + $0x78] sm:$0xff]
      %v5397 = vpack.c.bf16 %v5379, %v5379
      %v5398 = vlaneseq
      %v5399 = vshrl.u32 %v5398, 7
      %v5400 = vsub.s32 7, %v5399
      %v5401 = vrot.slane %v434, %v5400
      %v5402 = vlaneseq
      %v5403 = vshrl.u32 %v5402, 7
      %v5404 = vsub.s32 7, %v5403
      %v5405 = vrot.slane %v435, %v5404
      %v5406 = vlaneseq
      %v5407 = vshrl.u32 %v5406, 7
      %v5408 = vsub.s32 7, %v5407
      %v5409 = vrot.slane %v436, %v5408
      %v5410 = vlaneseq
      %v5411 = vshrl.u32 %v5410, 7
      %v5412 = vsub.s32 7, %v5411
      %v5413 = vrot.slane %v437, %v5412
      %v5430 = vunpack.c.l.b16 %v5381
      %v5431 = vunpack.c.h.b16 %v5381
      %v5432 = vunpack.c.l.b16 %v5382
      %v5433 = vunpack.c.h.b16 %v5382
      %v5434 = vunpack.c.l.b16 %v5383
      %v5435 = vunpack.c.h.b16 %v5383
      %v5436 = vunpack.c.l.b16 %v5384
      %v5437 = vunpack.c.h.b16 %v5384
      %v5438 = vunpack.c.l.b16 %v5385
      %v5439 = vunpack.c.h.b16 %v5385
      %v5440 = vunpack.c.l.b16 %v5386
      %v5441 = vunpack.c.h.b16 %v5386
      %v5442 = vunpack.c.l.b16 %v5387
      %v5443 = vunpack.c.h.b16 %v5387
      %v5444 = vunpack.c.l.b16 %v5388
      %v5445 = vunpack.c.h.b16 %v5388
      %v5446 = vunpack.c.l.b16 %v5389
      %v5447 = vunpack.c.h.b16 %v5389
      %v5448 = vunpack.c.l.b16 %v5390
      %v5449 = vunpack.c.h.b16 %v5390
      %v5450 = vunpack.c.l.b16 %v5391
      %v5451 = vunpack.c.h.b16 %v5391
      %v5452 = vunpack.c.l.b16 %v5392
      %v5453 = vunpack.c.h.b16 %v5392
      %v5454 = vunpack.c.l.b16 %v5393
      %v5455 = vunpack.c.h.b16 %v5393
      %v5456 = vunpack.c.l.b16 %v5394
      %v5457 = vunpack.c.h.b16 %v5394
      %v5458 = vunpack.c.l.b16 %v5395
      %v5459 = vunpack.c.h.b16 %v5395
      %v5460 = vunpack.c.l.b16 %v5396
      %v5461 = vunpack.c.h.b16 %v5396
      %v5462 = vpack.c.b16 %v5434, %v5430
      %v5463 = vpack.c.b16 %v5435, %v5431
      %v5464 = vpack.c.b16 %v5436, %v5432
      %v5465 = vpack.c.b16 %v5437, %v5433
      %v5466 = vpack.c.b16 %v5442, %v5438
      %v5467 = vpack.c.b16 %v5443, %v5439
      %v5468 = vpack.c.b16 %v5444, %v5440
      %v5469 = vpack.c.b16 %v5445, %v5441
      %v5470 = vpack.c.b16 %v5450, %v5446
      %v5471 = vpack.c.b16 %v5451, %v5447
      %v5472 = vpack.c.b16 %v5452, %v5448
      %v5473 = vpack.c.b16 %v5453, %v5449
      %v5474 = vpack.c.b16 %v5458, %v5454
      %v5475 = vpack.c.b16 %v5459, %v5455
      %v5476 = vpack.c.b16 %v5460, %v5456
      %v5477 = vpack.c.b16 %v5461, %v5457
      %v5495 = vsel %vm2936, %v5397, 0
      %5497 = vmatprep.subr.bf16.mxu0 %v5463
      %5498 = vmatpush1.bf16.msra.mxu0 %v5462
      %5499 = vmatprep.subr.bf16.mxu0 %v5467
      %5500 = vmatpush1.bf16.msra.mxu0 %v5466
      %5501 = vmatprep.subr.bf16.mxu0 %v5471
      %5502 = vmatpush1.bf16.msra.mxu0 %v5470
      %5503 = vmatprep.subr.bf16.mxu0 %v5475
      %5504 = vmatpush1.bf16.msra.mxu0 %v5474
      %5505 = vmatprep.subr.bf16.mxu0 0
      %5506 = vmatpush1.bf16.msra.mxu0 0
      %5507 = vmatprep.subr.bf16.mxu0 0
      %5508 = vmatpush1.bf16.msra.mxu0 0
      %5509 = vmatprep.subr.bf16.mxu0 0
      %5510 = vmatpush1.bf16.msra.mxu0 0
      %5511 = vmatprep.subr.bf16.mxu0 0
      %5512 = vmatpush1.bf16.msra.mxu0 0
      %5513 = vmatprep.subr.bf16.mxu0 0
      %5514 = vmatpush1.bf16.msra.mxu0 0
      %5515 = vmatprep.subr.bf16.mxu0 0
      %5516 = vmatpush1.bf16.msra.mxu0 0
      %5517 = vmatprep.subr.bf16.mxu0 0
      %5518 = vmatpush1.bf16.msra.mxu0 0
      %5519 = vmatprep.subr.bf16.mxu0 0
      %5520 = vmatpush1.bf16.msra.mxu0 0
      %5521 = vmatprep.subr.bf16.mxu0 0
      %5522 = vmatpush1.bf16.msra.mxu0 0
      %5523 = vmatprep.subr.bf16.mxu0 0
      %5524 = vmatpush1.bf16.msra.mxu0 0
      %5525 = vmatprep.subr.bf16.mxu0 0
      %5526 = vmatpush1.bf16.msra.mxu0 0
      %5527 = vmatprep.subr.bf16.mxu0 0
      %5528 = vmatpush1.bf16.msra.mxu0 0
      %5529 = vmatprep.mubr.bf16.mxu0 0
      %5530 = vmatmul.mubr.bf16.gmra.mrb[0].mxu0 %v5495
      %v5531 = vpop.f32.mrb[0].mxu0
      %v5532 = vadd.f32 %v5401, %v5531
      %v5533 = vpop.f32.mrb[0].mxu0
      %v5534 = vadd.f32 %v5405, %v5533
      %v5535 = vpop.f32.mrb[0].mxu0
      %v5536 = vpop.f32.mrb[0].mxu0
      %5537 = vdwg.mxu0
      %5538 = vmatprep.subr.bf16.mxu0 %v5465
      %5539 = vmatpush1.bf16.msra.mxu0 %v5464
      %5540 = vmatprep.subr.bf16.mxu0 %v5469
      %5541 = vmatpush1.bf16.msra.mxu0 %v5468
      %5542 = vmatprep.subr.bf16.mxu0 %v5473
      %5543 = vmatpush1.bf16.msra.mxu0 %v5472
      %5544 = vmatprep.subr.bf16.mxu0 %v5477
      %5545 = vmatpush1.bf16.msra.mxu0 %v5476
      %5546 = vmatprep.subr.bf16.mxu0 0
      %5547 = vmatpush1.bf16.msra.mxu0 0
      %5548 = vmatprep.subr.bf16.mxu0 0
      %5549 = vmatpush1.bf16.msra.mxu0 0
      %5550 = vmatprep.subr.bf16.mxu0 0
      %5551 = vmatpush1.bf16.msra.mxu0 0
      %5552 = vmatprep.subr.bf16.mxu0 0
      %5553 = vmatpush1.bf16.msra.mxu0 0
      %5554 = vmatprep.subr.bf16.mxu0 0
      %5555 = vmatpush1.bf16.msra.mxu0 0
      %5556 = vmatprep.subr.bf16.mxu0 0
      %5557 = vmatpush1.bf16.msra.mxu0 0
      %5558 = vmatprep.subr.bf16.mxu0 0
      %5559 = vmatpush1.bf16.msra.mxu0 0
      %5560 = vmatprep.subr.bf16.mxu0 0
      %5561 = vmatpush1.bf16.msra.mxu0 0
      %5562 = vmatprep.subr.bf16.mxu0 0
      %5563 = vmatpush1.bf16.msra.mxu0 0
      %5564 = vmatprep.subr.bf16.mxu0 0
      %5565 = vmatpush1.bf16.msra.mxu0 0
      %5566 = vmatprep.subr.bf16.mxu0 0
      %5567 = vmatpush1.bf16.msra.mxu0 0
      %5568 = vmatprep.subr.bf16.mxu0 0
      %5569 = vmatpush1.bf16.msra.mxu0 0
      %5570 = vmatprep.mubr.bf16.mxu0 0
      %5571 = vmatmul.mubr.bf16.gmra.mrb[0].mxu0 %v5495
      %v5572 = vpop.f32.mrb[0].mxu0
      %v5573 = vadd.f32 %v5409, %v5572
      %v5574 = vpop.f32.mrb[0].mxu0
      %v5575 = vadd.f32 %v5413, %v5574
      %v5576 = vpop.f32.mrb[0].mxu0
      %v5577 = vpop.f32.mrb[0].mxu0
      %5578 = vdwg.mxu0
      %v5579 = vmax.f32 %v5532, 0.0
      %v5580 = vmax.f32 %v5534, 0.0
      %v5581 = vmax.f32 %v5573, 0.0
      %v5582 = vmax.f32 %v5575, 0.0
      %v5587 = vcombine.low %v5579, %v5580
      %v5588 = vcombine.high %v5579, %v5580
      %v5589 = vcombine.low %v5581, %v5582
      %v5590 = vcombine.high %v5581, %v5582
      %v5592 = vunpack.c.l.s4 1966171168
      %v5593 = vunpack.c.0.s8 %v5592
      %v5594 = vlaneseq
      %v5595 = vshrl.u32 %v5594, 7
      %v5596 = vsub.s32 %v5593, %v5595
      %v5597 = vrot.slane %v5587, %v5596
      %v5599 = vunpack.c.l.s4 1966171168
      %v5600 = vunpack.c.0.s8 %v5599
      %v5601 = vlaneseq
      %v5602 = vshrl.u32 %v5601, 7
      %v5603 = vsub.s32 %v5600, %v5602
      %v5604 = vrot.slane %v5588, %v5603
      %v5606 = vunpack.c.l.s4 1966171168
      %v5607 = vunpack.c.0.s8 %v5606
      %v5608 = vlaneseq
      %v5609 = vshrl.u32 %v5608, 7
      %v5610 = vsub.s32 %v5607, %v5609
      %v5611 = vrot.slane %v5589, %v5610
      %v5613 = vunpack.c.l.s4 1966171168
      %v5614 = vunpack.c.0.s8 %v5613
      %v5615 = vlaneseq
      %v5616 = vshrl.u32 %v5615, 7
      %v5617 = vsub.s32 %v5614, %v5616
      %v5618 = vrot.slane %v5590, %v5617
      %v5619 = vcombine.low %v5597, %v5611
      %v5620 = vcombine.high %v5597, %v5611
      %v5621 = vcombine.low %v5604, %v5618
      %v5622 = vcombine.high %v5604, %v5618
      %v5624 = vunpack.c.l.s4 1966171168
      %v5625 = vunpack.c.0.s8 %v5624
      %v5626 = vlaneseq
      %v5627 = vshrl.u32 %v5626, 7
      %v5628 = vsub.s32 %v5625, %v5627
      %v5629 = vrot.slane %v5619, %v5628
      %v5631 = vunpack.c.l.s4 1966171168
      %v5632 = vunpack.c.0.s8 %v5631
      %v5633 = vlaneseq
      %v5634 = vshrl.u32 %v5633, 7
      %v5635 = vsub.s32 %v5632, %v5634
      %v5636 = vrot.slane %v5621, %v5635
      %v5638 = vunpack.c.l.s4 1966171168
      %v5639 = vunpack.c.0.s8 %v5638
      %v5640 = vlaneseq
      %v5641 = vshrl.u32 %v5640, 7
      %v5642 = vsub.s32 %v5639, %v5641
      %v5643 = vrot.slane %v5620, %v5642
      %v5645 = vunpack.c.l.s4 1966171168
      %v5646 = vunpack.c.0.s8 %v5645
      %v5647 = vlaneseq
      %v5648 = vshrl.u32 %v5647, 7
      %v5649 = vsub.s32 %v5646, %v5648
      %v5650 = vrot.slane %v5622, %v5649
      %v5651 = vcombine.high %v5629, %v5629
      %v5652 = vcombine.high %v5636, %v5636
      %v5653 = vcombine.high %v5643, %v5643
      %v5654 = vcombine.high %v5650, %v5650
      %v5655 = vlaneseq
      %v5656 = vshrl.u32 %v5655, 7
      %v5657 = vsub.s32 0, %v5656
      %v5658 = vrot.slane %v5629, %v5657
      %v5659 = vlaneseq
      %v5660 = vshrl.u32 %v5659, 7
      %v5661 = vsub.s32 1, %v5660
      %v5662 = vrot.slane %v5629, %v5661
      %v5663 = vlaneseq
      %v5664 = vshrl.u32 %v5663, 7
      %v5665 = vsub.s32 2, %v5664
      %v5666 = vrot.slane %v5629, %v5665
      %v5667 = vlaneseq
      %v5668 = vshrl.u32 %v5667, 7
      %v5669 = vsub.s32 3, %v5668
      %v5670 = vrot.slane %v5629, %v5669
      %v5671 = vlaneseq
      %v5672 = vshrl.u32 %v5671, 7
      %v5673 = vsub.s32 0, %v5672
      %v5674 = vrot.slane %v5643, %v5673
      %v5675 = vlaneseq
      %v5676 = vshrl.u32 %v5675, 7
      %v5677 = vsub.s32 1, %v5676
      %v5678 = vrot.slane %v5643, %v5677
      %v5679 = vlaneseq
      %v5680 = vshrl.u32 %v5679, 7
      %v5681 = vsub.s32 2, %v5680
      %v5682 = vrot.slane %v5643, %v5681
      %v5683 = vlaneseq
      %v5684 = vshrl.u32 %v5683, 7
      %v5685 = vsub.s32 3, %v5684
      %v5686 = vrot.slane %v5643, %v5685
      %v5687 = vlaneseq
      %v5688 = vshrl.u32 %v5687, 7
      %v5689 = vsub.s32 0, %v5688
      %v5690 = vrot.slane %v5651, %v5689
      %v5691 = vlaneseq
      %v5692 = vshrl.u32 %v5691, 7
      %v5693 = vsub.s32 1, %v5692
      %v5694 = vrot.slane %v5651, %v5693
      %v5695 = vlaneseq
      %v5696 = vshrl.u32 %v5695, 7
      %v5697 = vsub.s32 2, %v5696
      %v5698 = vrot.slane %v5651, %v5697
      %v5699 = vlaneseq
      %v5700 = vshrl.u32 %v5699, 7
      %v5701 = vsub.s32 3, %v5700
      %v5702 = vrot.slane %v5651, %v5701
      %v5703 = vlaneseq
      %v5704 = vshrl.u32 %v5703, 7
      %v5705 = vsub.s32 0, %v5704
      %v5706 = vrot.slane %v5653, %v5705
      %v5707 = vlaneseq
      %v5708 = vshrl.u32 %v5707, 7
      %v5709 = vsub.s32 1, %v5708
      %v5710 = vrot.slane %v5653, %v5709
      %v5711 = vlaneseq
      %v5712 = vshrl.u32 %v5711, 7
      %v5713 = vsub.s32 2, %v5712
      %v5714 = vrot.slane %v5653, %v5713
      %v5715 = vlaneseq
      %v5716 = vshrl.u32 %v5715, 7
      %v5717 = vsub.s32 3, %v5716
      %v5718 = vrot.slane %v5653, %v5717
      %v5719 = vlaneseq
      %v5720 = vshrl.u32 %v5719, 7
      %v5721 = vsub.s32 0, %v5720
      %v5722 = vrot.slane %v5636, %v5721
      %v5723 = vlaneseq
      %v5724 = vshrl.u32 %v5723, 7
      %v5725 = vsub.s32 1, %v5724
      %v5726 = vrot.slane %v5636, %v5725
      %v5727 = vlaneseq
      %v5728 = vshrl.u32 %v5727, 7
      %v5729 = vsub.s32 2, %v5728
      %v5730 = vrot.slane %v5636, %v5729
      %v5731 = vlaneseq
      %v5732 = vshrl.u32 %v5731, 7
      %v5733 = vsub.s32 3, %v5732
      %v5734 = vrot.slane %v5636, %v5733
      %v5735 = vlaneseq
      %v5736 = vshrl.u32 %v5735, 7
      %v5737 = vsub.s32 0, %v5736
      %v5738 = vrot.slane %v5650, %v5737
      %v5739 = vlaneseq
      %v5740 = vshrl.u32 %v5739, 7
      %v5741 = vsub.s32 1, %v5740
      %v5742 = vrot.slane %v5650, %v5741
      %v5743 = vlaneseq
      %v5744 = vshrl.u32 %v5743, 7
      %v5745 = vsub.s32 2, %v5744
      %v5746 = vrot.slane %v5650, %v5745
      %v5747 = vlaneseq
      %v5748 = vshrl.u32 %v5747, 7
      %v5749 = vsub.s32 3, %v5748
      %v5750 = vrot.slane %v5650, %v5749
      %v5751 = vlaneseq
      %v5752 = vshrl.u32 %v5751, 7
      %v5753 = vsub.s32 0, %v5752
      %v5754 = vrot.slane %v5652, %v5753
      %v5755 = vlaneseq
      %v5756 = vshrl.u32 %v5755, 7
      %v5757 = vsub.s32 1, %v5756
      %v5758 = vrot.slane %v5652, %v5757
      %v5759 = vlaneseq
      %v5760 = vshrl.u32 %v5759, 7
      %v5761 = vsub.s32 2, %v5760
      %v5762 = vrot.slane %v5652, %v5761
      %v5763 = vlaneseq
      %v5764 = vshrl.u32 %v5763, 7
      %v5765 = vsub.s32 3, %v5764
      %v5766 = vrot.slane %v5652, %v5765
      %v5767 = vlaneseq
      %v5768 = vshrl.u32 %v5767, 7
      %v5769 = vsub.s32 0, %v5768
      %v5770 = vrot.slane %v5654, %v5769
      %v5771 = vlaneseq
      %v5772 = vshrl.u32 %v5771, 7
      %v5773 = vsub.s32 1, %v5772
      %v5774 = vrot.slane %v5654, %v5773
      %v5775 = vlaneseq
      %v5776 = vshrl.u32 %v5775, 7
      %v5777 = vsub.s32 2, %v5776
      %v5778 = vrot.slane %v5654, %v5777
      %v5779 = vlaneseq
      %v5780 = vshrl.u32 %v5779, 7
      %v5781 = vsub.s32 3, %v5780
      %v5782 = vrot.slane %v5654, %v5781
      %v5815 = vmul.f32 %v5658, %v438
      %v5816 = vmul.f32 %v5662, %v439
      %v5817 = vmul.f32 %v5666, %v440
      %v5818 = vmul.f32 %v5670, %v441
      %v5819 = vmul.f32 %v5674, %v438
      %v5820 = vmul.f32 %v5678, %v439
      %v5821 = vmul.f32 %v5682, %v440
      %v5822 = vmul.f32 %v5686, %v441
      %v5823 = vmul.f32 %v5690, %v438
      %v5824 = vmul.f32 %v5694, %v439
      %v5825 = vmul.f32 %v5698, %v440
      %v5826 = vmul.f32 %v5702, %v441
      %v5827 = vmul.f32 %v5706, %v438
      %v5828 = vmul.f32 %v5710, %v439
      %v5829 = vmul.f32 %v5714, %v440
      %v5830 = vmul.f32 %v5718, %v441
      %v5831 = vmul.f32 %v5722, %v438
      %v5832 = vmul.f32 %v5726, %v439
      %v5833 = vmul.f32 %v5730, %v440
      %v5834 = vmul.f32 %v5734, %v441
      %v5835 = vmul.f32 %v5738, %v438
      %v5836 = vmul.f32 %v5742, %v439
      %v5837 = vmul.f32 %v5746, %v440
      %v5838 = vmul.f32 %v5750, %v441
      %v5839 = vmul.f32 %v5754, %v438
      %v5840 = vmul.f32 %v5758, %v439
      %v5841 = vmul.f32 %v5762, %v440
      %v5842 = vmul.f32 %v5766, %v441
      %v5843 = vmul.f32 %v5770, %v438
      %v5844 = vmul.f32 %v5774, %v439
      %v5845 = vmul.f32 %v5778, %v440
      %v5846 = vmul.f32 %v5782, %v441
      %v5847 = vpack.c.bf16 %v5819, %v5815
      %v5848 = vpack.c.bf16 %v5820, %v5816
      %v5849 = vpack.c.bf16 %v5821, %v5817
      %v5850 = vpack.c.bf16 %v5822, %v5818
      %v5851 = vpack.c.bf16 %v5827, %v5823
      %v5852 = vpack.c.bf16 %v5828, %v5824
      %v5853 = vpack.c.bf16 %v5829, %v5825
      %v5854 = vpack.c.bf16 %v5830, %v5826
      %v5855 = vpack.c.bf16 %v5835, %v5831
      %v5856 = vpack.c.bf16 %v5836, %v5832
      %v5857 = vpack.c.bf16 %v5837, %v5833
      %v5858 = vpack.c.bf16 %v5838, %v5834
      %v5859 = vpack.c.bf16 %v5843, %v5839
      %v5860 = vpack.c.bf16 %v5844, %v5840
      %v5861 = vpack.c.bf16 %v5845, %v5841
      %v5862 = vpack.c.bf16 %v5846, %v5842
      %5863 = vmatprep.subr.bf16.mxu0 0
      %5864 = vmatpush1.bf16.msra.mxu0 %v5072
      %5865 = vmatprep.subr.bf16.mxu0 0
      %5866 = vmatpush1.bf16.msra.mxu0 %v5073
      %5867 = vmatprep.subr.bf16.mxu0 0
      %5868 = vmatpush1.bf16.msra.mxu0 %v5074
      %5869 = vmatprep.subr.bf16.mxu0 0
      %5870 = vmatpush1.bf16.msra.mxu0 %v5075
      %5871 = vmatprep.subr.bf16.mxu0 0
      %5872 = vmatpush1.bf16.msra.mxu0 %v5076
      %5873 = vmatprep.subr.bf16.mxu0 0
      %5874 = vmatpush1.bf16.msra.mxu0 %v5077
      %5875 = vmatprep.subr.bf16.mxu0 0
      %5876 = vmatpush1.bf16.msra.mxu0 %v5078
      %5877 = vmatprep.subr.bf16.mxu0 0
      %5878 = vmatpush1.bf16.msra.mxu0 %v5079
      %5879 = vmatprep.subr.bf16.mxu0 0
      %5880 = vmatpush1.bf16.msra.mxu0 %v5080
      %5881 = vmatprep.subr.bf16.mxu0 0
      %5882 = vmatpush1.bf16.msra.mxu0 %v5081
      %5883 = vmatprep.subr.bf16.mxu0 0
      %5884 = vmatpush1.bf16.msra.mxu0 %v5082
      %5885 = vmatprep.subr.bf16.mxu0 0
      %5886 = vmatpush1.bf16.msra.mxu0 %v5083
      %5887 = vmatprep.subr.bf16.mxu0 0
      %5888 = vmatpush1.bf16.msra.mxu0 %v5084
      %5889 = vmatprep.subr.bf16.mxu0 0
      %5890 = vmatpush1.bf16.msra.mxu0 %v5085
      %5891 = vmatprep.subr.bf16.mxu0 0
      %5892 = vmatpush1.bf16.msra.mxu0 %v5086
      %5893 = vmatprep.subr.bf16.mxu0 0
      %5894 = vmatpush1.bf16.msra.mxu0 %v5087
      %5895 = vmatprep.mubr.bf16.mxu0 %v5848
      %5896 = vmatmul.mubr.bf16.gmra.mrb[0].mxu0 %v5847
      %v5897 = vpop.f32.mrb[0].mxu0
      %v5898 = vadd.f32 0.0, %v5897
      %v5899 = vpop.f32.mrb[0].mxu0
      %v5900 = vpop.f32.mrb[0].mxu0
      %v5901 = vadd.f32 0.0, %v5900
      %v5902 = vpop.f32.mrb[0].mxu0
      %5903 = vmatprep.mubr.bf16.mxu0 %v5852
      %5904 = vmatmul.mubr.bf16.gmra.mrb[0].mxu0 %v5851
      %v5905 = vpop.f32.mrb[0].mxu0
      %v5906 = vadd.f32 0.0, %v5905
      %v5907 = vpop.f32.mrb[0].mxu0
      %v5908 = vpop.f32.mrb[0].mxu0
      %v5909 = vadd.f32 0.0, %v5908
      %v5910 = vpop.f32.mrb[0].mxu0
      %5911 = vmatprep.mubr.bf16.mxu0 %v5856
      %5912 = vmatmul.mubr.bf16.gmra.mrb[0].mxu0 %v5855
      %v5913 = vpop.f32.mrb[0].mxu0
      %v5914 = vadd.f32 0.0, %v5913
      %v5915 = vpop.f32.mrb[0].mxu0
      %v5916 = vpop.f32.mrb[0].mxu0
      %v5917 = vadd.f32 0.0, %v5916
      %v5918 = vpop.f32.mrb[0].mxu0
      %5919 = vmatprep.mubr.bf16.mxu0 %v5860
      %5920 = vmatmul.mubr.bf16.gmra.mrb[0].mxu0 %v5859
      %v5921 = vpop.f32.mrb[0].mxu0
      %v5922 = vadd.f32 0.0, %v5921
      %v5923 = vpop.f32.mrb[0].mxu0
      %v5924 = vpop.f32.mrb[0].mxu0
      %v5925 = vadd.f32 0.0, %v5924
      %v5926 = vpop.f32.mrb[0].mxu0
      %5927 = vdwg.mxu0
      %5928 = vmatprep.subr.bf16.mxu0 0
      %5929 = vmatpush1.bf16.msra.mxu0 %v5088
      %5930 = vmatprep.subr.bf16.mxu0 0
      %5931 = vmatpush1.bf16.msra.mxu0 %v5089
      %5932 = vmatprep.subr.bf16.mxu0 0
      %5933 = vmatpush1.bf16.msra.mxu0 %v5090
      %5934 = vmatprep.subr.bf16.mxu0 0
      %5935 = vmatpush1.bf16.msra.mxu0 %v5091
      %5936 = vmatprep.subr.bf16.mxu0 0
      %5937 = vmatpush1.bf16.msra.mxu0 %v5092
      %5938 = vmatprep.subr.bf16.mxu0 0
      %5939 = vmatpush1.bf16.msra.mxu0 %v5093
      %5940 = vmatprep.subr.bf16.mxu0 0
      %5941 = vmatpush1.bf16.msra.mxu0 %v5094
      %5942 = vmatprep.subr.bf16.mxu0 0
      %5943 = vmatpush1.bf16.msra.mxu0 %v5095
      %5944 = vmatprep.subr.bf16.mxu0 0
      %5945 = vmatpush1.bf16.msra.mxu0 %v5096
      %5946 = vmatprep.subr.bf16.mxu0 0
      %5947 = vmatpush1.bf16.msra.mxu0 %v5097
      %5948 = vmatprep.subr.bf16.mxu0 0
      %5949 = vmatpush1.bf16.msra.mxu0 %v5098
      %5950 = vmatprep.subr.bf16.mxu0 0
      %5951 = vmatpush1.bf16.msra.mxu0 %v5099
      %5952 = vmatprep.subr.bf16.mxu0 0
      %5953 = vmatpush1.bf16.msra.mxu0 %v5100
      %5954 = vmatprep.subr.bf16.mxu0 0
      %5955 = vmatpush1.bf16.msra.mxu0 %v5101
      %5956 = vmatprep.subr.bf16.mxu0 0
      %5957 = vmatpush1.bf16.msra.mxu0 %v5102
      %5958 = vmatprep.subr.bf16.mxu0 0
      %5959 = vmatpush1.bf16.msra.mxu0 %v5103
      %5960 = vmatprep.mubr.bf16.mxu0 %v5850
      %5961 = vmatmul.mubr.bf16.gmra.mrb[0].mxu0 %v5849
      %v5962 = vpop.f32.mrb[0].mxu0
      %v5963 = vadd.f32 %v5898, %v5962
      %v5964 = vpop.f32.mrb[0].mxu0
      %v5965 = vpop.f32.mrb[0].mxu0
      %v5966 = vadd.f32 %v5901, %v5965
      %v5967 = vpop.f32.mrb[0].mxu0
      %5968 = vmatprep.mubr.bf16.mxu0 %v5854
      %5969 = vmatmul.mubr.bf16.gmra.mrb[0].mxu0 %v5853
      %v5970 = vpop.f32.mrb[0].mxu0
      %v5971 = vadd.f32 %v5906, %v5970
      %v5972 = vpop.f32.mrb[0].mxu0
      %v5973 = vpop.f32.mrb[0].mxu0
      %v5974 = vadd.f32 %v5909, %v5973
      %v5975 = vpop.f32.mrb[0].mxu0
      %5976 = vmatprep.mubr.bf16.mxu0 %v5858
      %5977 = vmatmul.mubr.bf16.gmra.mrb[0].mxu0 %v5857
      %v5978 = vpop.f32.mrb[0].mxu0
      %v5979 = vadd.f32 %v5914, %v5978
      %v5980 = vpop.f32.mrb[0].mxu0
      %v5981 = vpop.f32.mrb[0].mxu0
      %v5982 = vadd.f32 %v5917, %v5981
      %v5983 = vpop.f32.mrb[0].mxu0
      %5984 = vmatprep.mubr.bf16.mxu0 %v5862
      %5985 = vmatmul.mubr.bf16.gmra.mrb[0].mxu0 %v5861
      %v5986 = vpop.f32.mrb[0].mxu0
      %v5987 = vadd.f32 %v5922, %v5986
      %v5988 = vpop.f32.mrb[0].mxu0
      %v5989 = vpop.f32.mrb[0].mxu0
      %v5990 = vadd.f32 %v5925, %v5989
      %v5991 = vpop.f32.mrb[0].mxu0
      %5992 = vdwg.mxu0
      %s5993 = scalar_lea.vmem %s3, 448
      %v5994 = vld [vmem:[%s5993] sm:$0xf]
      %v5995 = vld [vmem:[%s5993 + $0x4] sm:$0xf]
      %v5996 = vld [vmem:[%s5993 + $0x8] sm:$0xf]
      %v5997 = vld [vmem:[%s5993 + $0xc] sm:$0xf]
      %v5998 = vld [vmem:[%s5993 + $0x10] sm:$0xf]
      %v5999 = vld [vmem:[%s5993 + $0x14] sm:$0xf]
      %v6000 = vld [vmem:[%s5993 + $0x18] sm:$0xf]
      %v6001 = vld [vmem:[%s5993 + $0x1c] sm:$0xf]
      %v6002 = vld [vmem:[%s5993 + $0x20] sm:$0xf]
      %v6003 = vld [vmem:[%s5993 + $0x24] sm:$0xf]
      %v6004 = vld [vmem:[%s5993 + $0x28] sm:$0xf]
      %v6005 = vld [vmem:[%s5993 + $0x2c] sm:$0xf]
      %v6006 = vld [vmem:[%s5993 + $0x30] sm:$0xf]
      %v6007 = vld [vmem:[%s5993 + $0x34] sm:$0xf]
      %v6008 = vld [vmem:[%s5993 + $0x38] sm:$0xf]
      %v6009 = vld [vmem:[%s5993 + $0x3c] sm:$0xf]
      %s6010 = scalar_lea.vmem %s2, 128
      %v6011 = vld [vmem:[%s6010] sm:$0xf]
      %v6012 = vld [vmem:[%s6010 + $0x4] sm:$0xf]
      %v6013 = vld [vmem:[%s6010 + $0x8] sm:$0xf]
      %v6014 = vld [vmem:[%s6010 + $0xc] sm:$0xf]
      %v6015 = vld [vmem:[%s6010 + $0x10] sm:$0xf]
      %v6016 = vld [vmem:[%s6010 + $0x14] sm:$0xf]
      %v6017 = vld [vmem:[%s6010 + $0x18] sm:$0xf]
      %v6018 = vld [vmem:[%s6010 + $0x1c] sm:$0xf]
      %v6019 = vpack.c.bf16 %v5966, %v5963
      %v6020 = vpack.c.bf16 %v5974, %v5971
      %v6021 = vpack.c.bf16 %v5982, %v5979
      %v6022 = vpack.c.bf16 %v5990, %v5987
      %v6039 = vunpack.c.l.b16 %v5994
      %v6040 = vunpack.c.l.b16 %v5995
      %v6041 = vunpack.c.l.b16 %v5996
      %v6042 = vunpack.c.l.b16 %v5997
      %v6043 = vunpack.c.l.b16 %v5998
      %v6044 = vunpack.c.l.b16 %v5999
      %v6045 = vunpack.c.l.b16 %v6000
      %v6046 = vunpack.c.l.b16 %v6001
      %v6047 = vunpack.c.l.b16 %v6002
      %v6048 = vunpack.c.l.b16 %v6003
      %v6049 = vunpack.c.l.b16 %v6004
      %v6050 = vunpack.c.l.b16 %v6005
      %v6051 = vunpack.c.l.b16 %v6006
      %v6052 = vunpack.c.l.b16 %v6007
      %v6053 = vunpack.c.l.b16 %v6008
      %v6054 = vunpack.c.l.b16 %v6009
      %v6055 = vpack.c.b16 %v6040, %v6039
      %v6056 = vpack.c.b16 %v6042, %v6041
      %v6057 = vpack.c.b16 %v6044, %v6043
      %v6058 = vpack.c.b16 %v6046, %v6045
      %v6059 = vpack.c.b16 %v6048, %v6047
      %v6060 = vpack.c.b16 %v6050, %v6049
      %v6061 = vpack.c.b16 %v6052, %v6051
      %v6062 = vpack.c.b16 %v6054, %v6053
      %v6064 = vsel %vm2936, %v6055, 0
      %v6067 = vsel %vm2936, %v6056, 0
      %v6070 = vsel %vm2936, %v6057, 0
      %v6073 = vsel %vm2936, %v6058, 0
      %v6076 = vsel %vm2936, %v6059, 0
      %v6079 = vsel %vm2936, %v6060, 0
      %v6082 = vsel %vm2936, %v6061, 0
      %v6085 = vsel %vm2936, %v6062, 0
      %6087 = vmatprep.subr.bf16.mxu0 0
      %6088 = vmatpush1.bf16.msra.mxu0 %v6019
      %6089 = vmatprep.subr.bf16.mxu0 0
      %6090 = vmatpush1.bf16.msra.mxu0 %v6020
      %6091 = vmatprep.subr.bf16.mxu0 0
      %6092 = vmatpush1.bf16.msra.mxu0 %v6021
      %6093 = vmatprep.subr.bf16.mxu0 0
      %6094 = vmatpush1.bf16.msra.mxu0 %v6022
      %6095 = vmatprep.subr.bf16.mxu0 0
      %6096 = vmatpush1.bf16.msra.mxu0 0
      %6097 = vmatprep.subr.bf16.mxu0 0
      %6098 = vmatpush1.bf16.msra.mxu0 0
      %6099 = vmatprep.subr.bf16.mxu0 0
      %6100 = vmatpush1.bf16.msra.mxu0 0
      %6101 = vmatprep.subr.bf16.mxu0 0
      %6102 = vmatpush1.bf16.msra.mxu0 0
      %6103 = vmatprep.subr.bf16.mxu0 0
      %6104 = vmatpush1.bf16.msra.mxu0 0
      %6105 = vmatprep.subr.bf16.mxu0 0
      %6106 = vmatpush1.bf16.msra.mxu0 0
      %6107 = vmatprep.subr.bf16.mxu0 0
      %6108 = vmatpush1.bf16.msra.mxu0 0
      %6109 = vmatprep.subr.bf16.mxu0 0
      %6110 = vmatpush1.bf16.msra.mxu0 0
      %6111 = vmatprep.subr.bf16.mxu0 0
      %6112 = vmatpush1.bf16.msra.mxu0 0
      %6113 = vmatprep.subr.bf16.mxu0 0
      %6114 = vmatpush1.bf16.msra.mxu0 0
      %6115 = vmatprep.subr.bf16.mxu0 0
      %6116 = vmatpush1.bf16.msra.mxu0 0
      %6117 = vmatprep.subr.bf16.mxu0 0
      %6118 = vmatpush1.bf16.msra.mxu0 0
      %6119 = vmatprep.mubr.bf16.mxu0 0
      %6120 = vmatmul.mubr.bf16.gmra.mrb[0].mxu0 %v6064
      %v6121 = vpop.f32.mrb[0].mxu0
      %v6122 = vadd.f32 0.0, %v6121
      %v6123 = vpop.f32.mrb[0].mxu0
      %v6124 = vpop.f32.mrb[0].mxu0
      %v6125 = vadd.f32 0.0, %v6124
      %v6126 = vpop.f32.mrb[0].mxu0
      %6127 = vmatprep.mubr.bf16.mxu0 0
      %6128 = vmatmul.mubr.bf16.gmra.mrb[0].mxu0 %v6067
      %v6129 = vpop.f32.mrb[0].mxu0
      %v6130 = vadd.f32 0.0, %v6129
      %v6131 = vpop.f32.mrb[0].mxu0
      %v6132 = vpop.f32.mrb[0].mxu0
      %v6133 = vadd.f32 0.0, %v6132
      %v6134 = vpop.f32.mrb[0].mxu0
      %6135 = vmatprep.mubr.bf16.mxu0 0
      %6136 = vmatmul.mubr.bf16.gmra.mrb[0].mxu0 %v6070
      %v6137 = vpop.f32.mrb[0].mxu0
      %v6138 = vadd.f32 0.0, %v6137
      %v6139 = vpop.f32.mrb[0].mxu0
      %v6140 = vpop.f32.mrb[0].mxu0
      %v6141 = vadd.f32 0.0, %v6140
      %v6142 = vpop.f32.mrb[0].mxu0
      %6143 = vmatprep.mubr.bf16.mxu0 0
      %6144 = vmatmul.mubr.bf16.gmra.mrb[0].mxu0 %v6073
      %v6145 = vpop.f32.mrb[0].mxu0
      %v6146 = vadd.f32 0.0, %v6145
      %v6147 = vpop.f32.mrb[0].mxu0
      %v6148 = vpop.f32.mrb[0].mxu0
      %v6149 = vadd.f32 0.0, %v6148
      %v6150 = vpop.f32.mrb[0].mxu0
      %6151 = vmatprep.mubr.bf16.mxu0 0
      %6152 = vmatmul.mubr.bf16.gmra.mrb[0].mxu0 %v6076
      %v6153 = vpop.f32.mrb[0].mxu0
      %v6154 = vadd.f32 0.0, %v6153
      %v6155 = vpop.f32.mrb[0].mxu0
      %v6156 = vpop.f32.mrb[0].mxu0
      %v6157 = vadd.f32 0.0, %v6156
      %v6158 = vpop.f32.mrb[0].mxu0
      %6159 = vmatprep.mubr.bf16.mxu0 0
      %6160 = vmatmul.mubr.bf16.gmra.mrb[0].mxu0 %v6079
      %v6161 = vpop.f32.mrb[0].mxu0
      %v6162 = vadd.f32 0.0, %v6161
      %v6163 = vpop.f32.mrb[0].mxu0
      %v6164 = vpop.f32.mrb[0].mxu0
      %v6165 = vadd.f32 0.0, %v6164
      %v6166 = vpop.f32.mrb[0].mxu0
      %6167 = vmatprep.mubr.bf16.mxu0 0
      %6168 = vmatmul.mubr.bf16.gmra.mrb[0].mxu0 %v6082
      %v6169 = vpop.f32.mrb[0].mxu0
      %v6170 = vadd.f32 0.0, %v6169
      %v6171 = vpop.f32.mrb[0].mxu0
      %v6172 = vpop.f32.mrb[0].mxu0
      %v6173 = vadd.f32 0.0, %v6172
      %v6174 = vpop.f32.mrb[0].mxu0
      %6175 = vmatprep.mubr.bf16.mxu0 0
      %6176 = vmatmul.mubr.bf16.gmra.mrb[0].mxu0 %v6085
      %v6177 = vpop.f32.mrb[0].mxu0
      %v6178 = vadd.f32 0.0, %v6177
      %v6179 = vpop.f32.mrb[0].mxu0
      %v6180 = vpop.f32.mrb[0].mxu0
      %v6181 = vadd.f32 0.0, %v6180
      %v6182 = vpop.f32.mrb[0].mxu0
      %6183 = vdwg.mxu0
      %v6184 = vpack.c.bf16 %v6125, %v6122
      %v6185 = vpack.c.bf16 %v6133, %v6130
      %v6186 = vpack.c.bf16 %v6141, %v6138
      %v6187 = vpack.c.bf16 %v6149, %v6146
      %v6188 = vpack.c.bf16 %v6157, %v6154
      %v6189 = vpack.c.bf16 %v6165, %v6162
      %v6190 = vpack.c.bf16 %v6173, %v6170
      %v6191 = vpack.c.bf16 %v6181, %v6178
      %v6200 = vunpack.c.l.b16 %v6011
      %v6201 = vunpack.c.l.b16 %v6012
      %v6202 = vunpack.c.l.b16 %v6013
      %v6203 = vunpack.c.l.b16 %v6014
      %v6204 = vunpack.c.l.b16 %v6015
      %v6205 = vunpack.c.l.b16 %v6016
      %v6206 = vunpack.c.l.b16 %v6017
      %v6207 = vunpack.c.l.b16 %v6018
      %v6208 = vpack.c.b16 %v6201, %v6200
      %v6209 = vpack.c.b16 %v6203, %v6202
      %v6210 = vpack.c.b16 %v6205, %v6204
      %v6211 = vpack.c.b16 %v6207, %v6206
      %v6217 = vsel %vm2936, %v6184, 0
      %v6220 = vsel %vm2936, %v6185, 0
      %v6223 = vsel %vm2936, %v6186, 0
      %v6226 = vsel %vm2936, %v6187, 0
      %v6229 = vsel %vm2936, %v6188, 0
      %v6232 = vsel %vm2936, %v6189, 0
      %v6235 = vsel %vm2936, %v6190, 0
      %v6238 = vsel %vm2936, %v6191, 0
      %6240 = vmatprep.subr.bf16.mxu0 0
      %6241 = vmatpush1.bf16.msra.mxu0 %v6208
      %6242 = vmatprep.subr.bf16.mxu0 0
      %6243 = vmatpush1.bf16.msra.mxu0 %v6209
      %6244 = vmatprep.subr.bf16.mxu0 0
      %6245 = vmatpush1.bf16.msra.mxu0 %v6210
      %6246 = vmatprep.subr.bf16.mxu0 0
      %6247 = vmatpush1.bf16.msra.mxu0 %v6211
      %6248 = vmatprep.subr.bf16.mxu0 0
      %6249 = vmatpush1.bf16.msra.mxu0 0
      %6250 = vmatprep.subr.bf16.mxu0 0
      %6251 = vmatpush1.bf16.msra.mxu0 0
      %6252 = vmatprep.subr.bf16.mxu0 0
      %6253 = vmatpush1.bf16.msra.mxu0 0
      %6254 = vmatprep.subr.bf16.mxu0 0
      %6255 = vmatpush1.bf16.msra.mxu0 0
      %6256 = vmatprep.subr.bf16.mxu0 0
      %6257 = vmatpush1.bf16.msra.mxu0 0
      %6258 = vmatprep.subr.bf16.mxu0 0
      %6259 = vmatpush1.bf16.msra.mxu0 0
      %6260 = vmatprep.subr.bf16.mxu0 0
      %6261 = vmatpush1.bf16.msra.mxu0 0
      %6262 = vmatprep.subr.bf16.mxu0 0
      %6263 = vmatpush1.bf16.msra.mxu0 0
      %6264 = vmatprep.subr.bf16.mxu0 0
      %6265 = vmatpush1.bf16.msra.mxu0 0
      %6266 = vmatprep.subr.bf16.mxu0 0
      %6267 = vmatpush1.bf16.msra.mxu0 0
      %6268 = vmatprep.subr.bf16.mxu0 0
      %6269 = vmatpush1.bf16.msra.mxu0 0
      %6270 = vmatprep.subr.bf16.mxu0 0
      %6271 = vmatpush1.bf16.msra.mxu0 0
      %6272 = vmatprep.mubr.bf16.mxu0 0
      %6273 = vmatmul.mubr.bf16.gmra.mrb[0].mxu0 %v6217
      %v6274 = vpop.f32.mrb[0].mxu0
      %v6275 = vadd.f32 0.0, %v6274
      %v6276 = vpop.f32.mrb[0].mxu0
      %v6277 = vpop.f32.mrb[0].mxu0
      %v6278 = vadd.f32 0.0, %v6277
      %v6279 = vpop.f32.mrb[0].mxu0
      %6280 = vmatprep.mubr.bf16.mxu0 0
      %6281 = vmatmul.mubr.bf16.gmra.mrb[0].mxu0 %v6220
      %v6282 = vpop.f32.mrb[0].mxu0
      %v6283 = vadd.f32 0.0, %v6282
      %v6284 = vpop.f32.mrb[0].mxu0
      %v6285 = vpop.f32.mrb[0].mxu0
      %v6286 = vadd.f32 0.0, %v6285
      %v6287 = vpop.f32.mrb[0].mxu0
      %6288 = vmatprep.mubr.bf16.mxu0 0
      %6289 = vmatmul.mubr.bf16.gmra.mrb[0].mxu0 %v6223
      %v6290 = vpop.f32.mrb[0].mxu0
      %v6291 = vadd.f32 0.0, %v6290
      %v6292 = vpop.f32.mrb[0].mxu0
      %v6293 = vpop.f32.mrb[0].mxu0
      %v6294 = vadd.f32 0.0, %v6293
      %v6295 = vpop.f32.mrb[0].mxu0
      %6296 = vmatprep.mubr.bf16.mxu0 0
      %6297 = vmatmul.mubr.bf16.gmra.mrb[0].mxu0 %v6226
      %v6298 = vpop.f32.mrb[0].mxu0
      %v6299 = vadd.f32 0.0, %v6298
      %v6300 = vpop.f32.mrb[0].mxu0
      %v6301 = vpop.f32.mrb[0].mxu0
      %v6302 = vadd.f32 0.0, %v6301
      %v6303 = vpop.f32.mrb[0].mxu0
      %6304 = vmatprep.mubr.bf16.mxu0 0
      %6305 = vmatmul.mubr.bf16.gmra.mrb[0].mxu0 %v6229
      %v6306 = vpop.f32.mrb[0].mxu0
      %v6307 = vadd.f32 0.0, %v6306
      %v6308 = vpop.f32.mrb[0].mxu0
      %v6309 = vpop.f32.mrb[0].mxu0
      %v6310 = vadd.f32 0.0, %v6309
      %v6311 = vpop.f32.mrb[0].mxu0
      %6312 = vmatprep.mubr.bf16.mxu0 0
      %6313 = vmatmul.mubr.bf16.gmra.mrb[0].mxu0 %v6232
      %v6314 = vpop.f32.mrb[0].mxu0
      %v6315 = vadd.f32 0.0, %v6314
      %v6316 = vpop.f32.mrb[0].mxu0
      %v6317 = vpop.f32.mrb[0].mxu0
      %v6318 = vadd.f32 0.0, %v6317
      %v6319 = vpop.f32.mrb[0].mxu0
      %6320 = vmatprep.mubr.bf16.mxu0 0
      %6321 = vmatmul.mubr.bf16.gmra.mrb[0].mxu0 %v6235
      %v6322 = vpop.f32.mrb[0].mxu0
      %v6323 = vadd.f32 0.0, %v6322
      %v6324 = vpop.f32.mrb[0].mxu0
      %v6325 = vpop.f32.mrb[0].mxu0
      %v6326 = vadd.f32 0.0, %v6325
      %v6327 = vpop.f32.mrb[0].mxu0
      %6328 = vmatprep.mubr.bf16.mxu0 0
      %6329 = vmatmul.mubr.bf16.gmra.mrb[0].mxu0 %v6238
      %v6330 = vpop.f32.mrb[0].mxu0
      %v6331 = vadd.f32 0.0, %v6330
      %v6332 = vpop.f32.mrb[0].mxu0
      %v6333 = vpop.f32.mrb[0].mxu0
      %v6334 = vadd.f32 0.0, %v6333
      %v6335 = vpop.f32.mrb[0].mxu0
      %6336 = vdwg.mxu0
      %v6337 = vpack.c.bf16 %v6278, %v6275
      %v6338 = vpack.c.bf16 %v6286, %v6283
      %v6339 = vpack.c.bf16 %v6294, %v6291
      %v6340 = vpack.c.bf16 %v6302, %v6299
      %v6341 = vpack.c.bf16 %v6310, %v6307
      %v6342 = vpack.c.bf16 %v6318, %v6315
      %v6343 = vpack.c.bf16 %v6326, %v6323
      %v6344 = vpack.c.bf16 %v6334, %v6331
      %s6345 = scalar_lea.vmem %s3, 64
      %v6346 = vld [vmem:[%s6345] sm:$0xf]
      %v6347 = vld [vmem:[%s6345 + $0x4] sm:$0xf]
      %v6348 = vld [vmem:[%s6345 + $0x8] sm:$0xf]
      %v6349 = vld [vmem:[%s6345 + $0xc] sm:$0xf]
      %v6350 = vld [vmem:[%s6345 + $0x10] sm:$0xf]
      %v6351 = vld [vmem:[%s6345 + $0x14] sm:$0xf]
      %v6352 = vld [vmem:[%s6345 + $0x18] sm:$0xf]
      %v6353 = vld [vmem:[%s6345 + $0x1c] sm:$0xf]
      %v6354 = vld [vmem:[%s6345 + $0x20] sm:$0xf]
      %v6355 = vld [vmem:[%s6345 + $0x24] sm:$0xf]
      %v6356 = vld [vmem:[%s6345 + $0x28] sm:$0xf]
      %v6357 = vld [vmem:[%s6345 + $0x2c] sm:$0xf]
      %v6358 = vld [vmem:[%s6345 + $0x30] sm:$0xf]
      %v6359 = vld [vmem:[%s6345 + $0x34] sm:$0xf]
      %v6360 = vld [vmem:[%s6345 + $0x38] sm:$0xf]
      %v6361 = vld [vmem:[%s6345 + $0x3c] sm:$0xf]
      %v6362 = vlaneseq
      %v6363 = vshrl.u32 %v6362, 7
      %v6364 = vsub.s32 2, %v6363
      %v6365 = vrot.slane %v434, %v6364
      %v6382 = vunpack.c.l.b16 %v6346
      %v6383 = vunpack.c.l.b16 %v6347
      %v6384 = vunpack.c.l.b16 %v6348
      %v6385 = vunpack.c.l.b16 %v6349
      %v6386 = vunpack.c.l.b16 %v6350
      %v6387 = vunpack.c.l.b16 %v6351
      %v6388 = vunpack.c.l.b16 %v6352
      %v6389 = vunpack.c.l.b16 %v6353
      %v6390 = vunpack.c.l.b16 %v6354
      %v6391 = vunpack.c.l.b16 %v6355
      %v6392 = vunpack.c.l.b16 %v6356
      %v6393 = vunpack.c.l.b16 %v6357
      %v6394 = vunpack.c.l.b16 %v6358
      %v6395 = vunpack.c.l.b16 %v6359
      %v6396 = vunpack.c.l.b16 %v6360
      %v6397 = vunpack.c.l.b16 %v6361
      %v6398 = vpack.c.b16 %v6383, %v6382
      %v6399 = vpack.c.b16 %v6385, %v6384
      %v6400 = vpack.c.b16 %v6387, %v6386
      %v6401 = vpack.c.b16 %v6389, %v6388
      %v6402 = vpack.c.b16 %v6391, %v6390
      %v6403 = vpack.c.b16 %v6393, %v6392
      %v6404 = vpack.c.b16 %v6395, %v6394
      %v6405 = vpack.c.b16 %v6397, %v6396
      %6414 = vmatprep.subr.bf16.mxu0 0
      %6415 = vmatpush1.bf16.msra.mxu0 %v6398
      %6416 = vmatprep.subr.bf16.mxu0 0
      %6417 = vmatpush1.bf16.msra.mxu0 %v6399
      %6418 = vmatprep.subr.bf16.mxu0 0
      %6419 = vmatpush1.bf16.msra.mxu0 %v6400
      %6420 = vmatprep.subr.bf16.mxu0 0
      %6421 = vmatpush1.bf16.msra.mxu0 %v6401
      %6422 = vmatprep.subr.bf16.mxu0 0
      %6423 = vmatpush1.bf16.msra.mxu0 %v6402
      %6424 = vmatprep.subr.bf16.mxu0 0
      %6425 = vmatpush1.bf16.msra.mxu0 %v6403
      %6426 = vmatprep.subr.bf16.mxu0 0
      %6427 = vmatpush1.bf16.msra.mxu0 %v6404
      %6428 = vmatprep.subr.bf16.mxu0 0
      %6429 = vmatpush1.bf16.msra.mxu0 %v6405
      %6430 = vmatprep.subr.bf16.mxu0 0
      %6431 = vmatpush1.bf16.msra.mxu0 0
      %6432 = vmatprep.subr.bf16.mxu0 0
      %6433 = vmatpush1.bf16.msra.mxu0 0
      %6434 = vmatprep.subr.bf16.mxu0 0
      %6435 = vmatpush1.bf16.msra.mxu0 0
      %6436 = vmatprep.subr.bf16.mxu0 0
      %6437 = vmatpush1.bf16.msra.mxu0 0
      %6438 = vmatprep.subr.bf16.mxu0 0
      %6439 = vmatpush1.bf16.msra.mxu0 0
      %6440 = vmatprep.subr.bf16.mxu0 0
      %6441 = vmatpush1.bf16.msra.mxu0 0
      %6442 = vmatprep.subr.bf16.mxu0 0
      %6443 = vmatpush1.bf16.msra.mxu0 0
      %6444 = vmatprep.subr.bf16.mxu0 0
      %6445 = vmatpush1.bf16.msra.mxu0 0
      %6446 = vmatprep.mubr.bf16.mxu0 0
      %6447 = vmatmul.mubr.bf16.gmra.mrb[0].mxu0 %v6337
      %v6448 = vpop.f32.mrb[0].mxu0
      %v6449 = vadd.f32 %v6365, %v6448
      %v6450 = vpop.f32.mrb[0].mxu0
      %v6451 = vpop.f32.mrb[0].mxu0
      %v6452 = vadd.f32 %v6365, %v6451
      %v6453 = vpop.f32.mrb[0].mxu0
      %6454 = vmatprep.mubr.bf16.mxu0 0
      %6455 = vmatmul.mubr.bf16.gmra.mrb[0].mxu0 %v6338
      %v6456 = vpop.f32.mrb[0].mxu0
      %v6457 = vadd.f32 %v6365, %v6456
      %v6458 = vpop.f32.mrb[0].mxu0
      %v6459 = vpop.f32.mrb[0].mxu0
      %v6460 = vadd.f32 %v6365, %v6459
      %v6461 = vpop.f32.mrb[0].mxu0
      %6462 = vmatprep.mubr.bf16.mxu0 0
      %6463 = vmatmul.mubr.bf16.gmra.mrb[0].mxu0 %v6339
      %v6464 = vpop.f32.mrb[0].mxu0
      %v6465 = vadd.f32 %v6365, %v6464
      %v6466 = vpop.f32.mrb[0].mxu0
      %v6467 = vpop.f32.mrb[0].mxu0
      %v6468 = vadd.f32 %v6365, %v6467
      %v6469 = vpop.f32.mrb[0].mxu0
      %6470 = vmatprep.mubr.bf16.mxu0 0
      %6471 = vmatmul.mubr.bf16.gmra.mrb[0].mxu0 %v6340
      %v6472 = vpop.f32.mrb[0].mxu0
      %v6473 = vadd.f32 %v6365, %v6472
      %v6474 = vpop.f32.mrb[0].mxu0
      %v6475 = vpop.f32.mrb[0].mxu0
      %v6476 = vadd.f32 %v6365, %v6475
      %v6477 = vpop.f32.mrb[0].mxu0
      %6478 = vmatprep.mubr.bf16.mxu0 0
      %6479 = vmatmul.mubr.bf16.gmra.mrb[0].mxu0 %v6341
      %v6480 = vpop.f32.mrb[0].mxu0
      %v6481 = vadd.f32 %v6365, %v6480
      %v6482 = vpop.f32.mrb[0].mxu0
      %v6483 = vpop.f32.mrb[0].mxu0
      %v6484 = vadd.f32 %v6365, %v6483
      %v6485 = vpop.f32.mrb[0].mxu0
      %6486 = vmatprep.mubr.bf16.mxu0 0
      %6487 = vmatmul.mubr.bf16.gmra.mrb[0].mxu0 %v6342
      %v6488 = vpop.f32.mrb[0].mxu0
      %v6489 = vadd.f32 %v6365, %v6488
      %v6490 = vpop.f32.mrb[0].mxu0
      %v6491 = vpop.f32.mrb[0].mxu0
      %v6492 = vadd.f32 %v6365, %v6491
      %v6493 = vpop.f32.mrb[0].mxu0
      %6494 = vmatprep.mubr.bf16.mxu0 0
      %6495 = vmatmul.mubr.bf16.gmra.mrb[0].mxu0 %v6343
      %v6496 = vpop.f32.mrb[0].mxu0
      %v6497 = vadd.f32 %v6365, %v6496
      %v6498 = vpop.f32.mrb[0].mxu0
      %v6499 = vpop.f32.mrb[0].mxu0
      %v6500 = vadd.f32 %v6365, %v6499
      %v6501 = vpop.f32.mrb[0].mxu0
      %6502 = vmatprep.mubr.bf16.mxu0 0
      %6503 = vmatmul.mubr.bf16.gmra.mrb[0].mxu0 %v6344
      %v6504 = vpop.f32.mrb[0].mxu0
      %v6505 = vadd.f32 %v6365, %v6504
      %v6506 = vpop.f32.mrb[0].mxu0
      %v6507 = vpop.f32.mrb[0].mxu0
      %v6508 = vadd.f32 %v6365, %v6507
      %v6509 = vpop.f32.mrb[0].mxu0
      %6510 = vdwg.mxu0
      %v6511 = vld [vmem:[%s3] sm:$0xf]
      %v6512 = vld [vmem:[%s3 + $0x4] sm:$0xf]
      %v6513 = vld [vmem:[%s3 + $0x8] sm:$0xf]
      %v6514 = vld [vmem:[%s3 + $0xc] sm:$0xf]
      %v6515 = vld [vmem:[%s3 + $0x10] sm:$0xf]
      %v6516 = vld [vmem:[%s3 + $0x14] sm:$0xf]
      %v6517 = vld [vmem:[%s3 + $0x18] sm:$0xf]
      %v6518 = vld [vmem:[%s3 + $0x1c] sm:$0xf]
      %v6519 = vld [vmem:[%s3 + $0x20] sm:$0xf]
      %v6520 = vld [vmem:[%s3 + $0x24] sm:$0xf]
      %v6521 = vld [vmem:[%s3 + $0x28] sm:$0xf]
      %v6522 = vld [vmem:[%s3 + $0x2c] sm:$0xf]
      %v6523 = vld [vmem:[%s3 + $0x30] sm:$0xf]
      %v6524 = vld [vmem:[%s3 + $0x34] sm:$0xf]
      %v6525 = vld [vmem:[%s3 + $0x38] sm:$0xf]
      %v6526 = vld [vmem:[%s3 + $0x3c] sm:$0xf]
      %v6543 = vunpack.c.l.b16 %v6511
      %v6544 = vunpack.c.l.b16 %v6512
      %v6545 = vunpack.c.l.b16 %v6513
      %v6546 = vunpack.c.l.b16 %v6514
      %v6547 = vunpack.c.l.b16 %v6515
      %v6548 = vunpack.c.l.b16 %v6516
      %v6549 = vunpack.c.l.b16 %v6517
      %v6550 = vunpack.c.l.b16 %v6518
      %v6551 = vunpack.c.l.b16 %v6519
      %v6552 = vunpack.c.l.b16 %v6520
      %v6553 = vunpack.c.l.b16 %v6521
      %v6554 = vunpack.c.l.b16 %v6522
      %v6555 = vunpack.c.l.b16 %v6523
      %v6556 = vunpack.c.l.b16 %v6524
      %v6557 = vunpack.c.l.b16 %v6525
      %v6558 = vunpack.c.l.b16 %v6526
      %v6559 = vpack.c.b16 %v6544, %v6543
      %v6560 = vpack.c.b16 %v6546, %v6545
      %v6561 = vpack.c.b16 %v6548, %v6547
      %v6562 = vpack.c.b16 %v6550, %v6549
      %v6563 = vpack.c.b16 %v6552, %v6551
      %v6564 = vpack.c.b16 %v6554, %v6553
      %v6565 = vpack.c.b16 %v6556, %v6555
      %v6566 = vpack.c.b16 %v6558, %v6557
      %6575 = vmatprep.subr.bf16.mxu0 0
      %6576 = vmatpush1.bf16.msra.mxu0 %v6559
      %6577 = vmatprep.subr.bf16.mxu0 0
      %6578 = vmatpush1.bf16.msra.mxu0 %v6560
      %6579 = vmatprep.subr.bf16.mxu0 0
      %6580 = vmatpush1.bf16.msra.mxu0 %v6561
      %6581 = vmatprep.subr.bf16.mxu0 0
      %6582 = vmatpush1.bf16.msra.mxu0 %v6562
      %6583 = vmatprep.subr.bf16.mxu0 0
      %6584 = vmatpush1.bf16.msra.mxu0 %v6563
      %6585 = vmatprep.subr.bf16.mxu0 0
      %6586 = vmatpush1.bf16.msra.mxu0 %v6564
      %6587 = vmatprep.subr.bf16.mxu0 0
      %6588 = vmatpush1.bf16.msra.mxu0 %v6565
      %6589 = vmatprep.subr.bf16.mxu0 0
      %6590 = vmatpush1.bf16.msra.mxu0 %v6566
      %6591 = vmatprep.subr.bf16.mxu0 0
      %6592 = vmatpush1.bf16.msra.mxu0 0
      %6593 = vmatprep.subr.bf16.mxu0 0
      %6594 = vmatpush1.bf16.msra.mxu0 0
      %6595 = vmatprep.subr.bf16.mxu0 0
      %6596 = vmatpush1.bf16.msra.mxu0 0
      %6597 = vmatprep.subr.bf16.mxu0 0
      %6598 = vmatpush1.bf16.msra.mxu0 0
      %6599 = vmatprep.subr.bf16.mxu0 0
      %6600 = vmatpush1.bf16.msra.mxu0 0
      %6601 = vmatprep.subr.bf16.mxu0 0
      %6602 = vmatpush1.bf16.msra.mxu0 0
      %6603 = vmatprep.subr.bf16.mxu0 0
      %6604 = vmatpush1.bf16.msra.mxu0 0
      %6605 = vmatprep.subr.bf16.mxu0 0
      %6606 = vmatpush1.bf16.msra.mxu0 0
      %6607 = vmatprep.mubr.bf16.mxu0 0
      %6608 = vmatmul.mubr.bf16.gmra.mrb[0].mxu0 %v6337
      %v6609 = vpop.f32.mrb[0].mxu0
      %v6610 = vadd.f32 0.0, %v6609
      %v6611 = vpop.f32.mrb[0].mxu0
      %v6612 = vpop.f32.mrb[0].mxu0
      %v6613 = vadd.f32 0.0, %v6612
      %v6614 = vpop.f32.mrb[0].mxu0
      %6615 = vmatprep.mubr.bf16.mxu0 0
      %6616 = vmatmul.mubr.bf16.gmra.mrb[0].mxu0 %v6338
      %v6617 = vpop.f32.mrb[0].mxu0
      %v6618 = vadd.f32 0.0, %v6617
      %v6619 = vpop.f32.mrb[0].mxu0
      %v6620 = vpop.f32.mrb[0].mxu0
      %v6621 = vadd.f32 0.0, %v6620
      %v6622 = vpop.f32.mrb[0].mxu0
      %6623 = vmatprep.mubr.bf16.mxu0 0
      %6624 = vmatmul.mubr.bf16.gmra.mrb[0].mxu0 %v6339
      %v6625 = vpop.f32.mrb[0].mxu0
      %v6626 = vadd.f32 0.0, %v6625
      %v6627 = vpop.f32.mrb[0].mxu0
      %v6628 = vpop.f32.mrb[0].mxu0
      %v6629 = vadd.f32 0.0, %v6628
      %v6630 = vpop.f32.mrb[0].mxu0
      %6631 = vmatprep.mubr.bf16.mxu0 0
      %6632 = vmatmul.mubr.bf16.gmra.mrb[0].mxu0 %v6340
      %v6633 = vpop.f32.mrb[0].mxu0
      %v6634 = vadd.f32 0.0, %v6633
      %v6635 = vpop.f32.mrb[0].mxu0
      %v6636 = vpop.f32.mrb[0].mxu0
      %v6637 = vadd.f32 0.0, %v6636
      %v6638 = vpop.f32.mrb[0].mxu0
      %6639 = vmatprep.mubr.bf16.mxu0 0
      %6640 = vmatmul.mubr.bf16.gmra.mrb[0].mxu0 %v6341
      %v6641 = vpop.f32.mrb[0].mxu0
      %v6642 = vadd.f32 0.0, %v6641
      %v6643 = vpop.f32.mrb[0].mxu0
      %v6644 = vpop.f32.mrb[0].mxu0
      %v6645 = vadd.f32 0.0, %v6644
      %v6646 = vpop.f32.mrb[0].mxu0
      %6647 = vmatprep.mubr.bf16.mxu0 0
      %6648 = vmatmul.mubr.bf16.gmra.mrb[0].mxu0 %v6342
      %v6649 = vpop.f32.mrb[0].mxu0
      %v6650 = vadd.f32 0.0, %v6649
      %v6651 = vpop.f32.mrb[0].mxu0
      %v6652 = vpop.f32.mrb[0].mxu0
      %v6653 = vadd.f32 0.0, %v6652
      %v6654 = vpop.f32.mrb[0].mxu0
      %6655 = vmatprep.mubr.bf16.mxu0 0
      %6656 = vmatmul.mubr.bf16.gmra.mrb[0].mxu0 %v6343
      %v6657 = vpop.f32.mrb[0].mxu0
      %v6658 = vadd.f32 0.0, %v6657
      %v6659 = vpop.f32.mrb[0].mxu0
      %v6660 = vpop.f32.mrb[0].mxu0
      %v6661 = vadd.f32 0.0, %v6660
      %v6662 = vpop.f32.mrb[0].mxu0
      %6663 = vmatprep.mubr.bf16.mxu0 0
      %6664 = vmatmul.mubr.bf16.gmra.mrb[0].mxu0 %v6344
      %v6665 = vpop.f32.mrb[0].mxu0
      %v6666 = vadd.f32 0.0, %v6665
      %v6667 = vpop.f32.mrb[0].mxu0
      %v6668 = vpop.f32.mrb[0].mxu0
      %v6669 = vadd.f32 0.0, %v6668
      %v6670 = vpop.f32.mrb[0].mxu0
      %6671 = vdwg.mxu0
      %v6672 = vrot.slane %v6610, 7
      %v6673 = vrot.slane %v6613, 7
      %v6674 = vrot.slane %v6618, 7
      %v6675 = vrot.slane %v6621, 7
      %v6676 = vrot.slane %v6626, 7
      %v6677 = vrot.slane %v6629, 7
      %v6678 = vrot.slane %v6634, 7
      %v6679 = vrot.slane %v6637, 7
      %v6680 = vrot.slane %v6642, 7
      %v6681 = vrot.slane %v6645, 7
      %v6682 = vrot.slane %v6650, 7
      %v6683 = vrot.slane %v6653, 7
      %v6684 = vrot.slane %v6658, 7
      %v6685 = vrot.slane %v6661, 7
      %v6686 = vrot.slane %v6666, 7
      %v6687 = vrot.slane %v6669, 7
      %v6688 = vsel %vm977, %v6686, %v6687
      %v6689 = vsel %vm977, %v6685, %v6686
      %v6690 = vsel %vm977, %v6684, %v6685
      %v6691 = vsel %vm977, %v6683, %v6684
      %v6692 = vsel %vm977, %v6682, %v6683
      %v6693 = vsel %vm977, %v6681, %v6682
      %v6694 = vsel %vm977, %v6680, %v6681
      %v6695 = vsel %vm977, %v6679, %v6680
      %v6696 = vsel %vm977, %v6678, %v6679
      %v6697 = vsel %vm977, %v6677, %v6678
      %v6698 = vsel %vm977, %v6676, %v6677
      %v6699 = vsel %vm977, %v6675, %v6676
      %v6700 = vsel %vm977, %v6674, %v6675
      %v6701 = vsel %vm977, %v6673, %v6674
      %v6702 = vsel %vm977, %v6672, %v6673
      %v6703 = vsel %vm977, %v6687, %v6672
      %v6704 = vmul.f32 %v1012, %v6703
      %v6705 = vmul.f32 %v1012, %v6702
      %v6706 = vmul.f32 %v1012, %v6701
      %v6707 = vmul.f32 %v1012, %v6700
      %v6708 = vmul.f32 %v1012, %v6699
      %v6709 = vmul.f32 %v1012, %v6698
      %v6710 = vmul.f32 %v1012, %v6697
      %v6711 = vmul.f32 %v1012, %v6696
      %v6712 = vmul.f32 %v1012, %v6695
      %v6713 = vmul.f32 %v1012, %v6694
      %v6714 = vmul.f32 %v1012, %v6693
      %v6715 = vmul.f32 %v1012, %v6692
      %v6716 = vmul.f32 %v1012, %v6691
      %v6717 = vmul.f32 %v1012, %v6690
      %v6718 = vmul.f32 %v1012, %v6689
      %v6719 = vmul.f32 %v1012, %v6688
      %v6720 = vrot.slane %v6610, 1
      %v6721 = vrot.slane %v6613, 1
      %v6722 = vrot.slane %v6618, 1
      %v6723 = vrot.slane %v6621, 1
      %v6724 = vrot.slane %v6626, 1
      %v6725 = vrot.slane %v6629, 1
      %v6726 = vrot.slane %v6634, 1
      %v6727 = vrot.slane %v6637, 1
      %v6728 = vrot.slane %v6642, 1
      %v6729 = vrot.slane %v6645, 1
      %v6730 = vrot.slane %v6650, 1
      %v6731 = vrot.slane %v6653, 1
      %v6732 = vrot.slane %v6658, 1
      %v6733 = vrot.slane %v6661, 1
      %v6734 = vrot.slane %v6666, 1
      %v6735 = vrot.slane %v6669, 1
      %v6736 = vsel %vm1079, %v6734, %v6735
      %v6737 = vsel %vm1079, %v6733, %v6734
      %v6738 = vsel %vm1079, %v6732, %v6733
      %v6739 = vsel %vm1079, %v6731, %v6732
      %v6740 = vsel %vm1079, %v6730, %v6731
      %v6741 = vsel %vm1079, %v6729, %v6730
      %v6742 = vsel %vm1079, %v6728, %v6729
      %v6743 = vsel %vm1079, %v6727, %v6728
      %v6744 = vsel %vm1079, %v6726, %v6727
      %v6745 = vsel %vm1079, %v6725, %v6726
      %v6746 = vsel %vm1079, %v6724, %v6725
      %v6747 = vsel %vm1079, %v6723, %v6724
      %v6748 = vsel %vm1079, %v6722, %v6723
      %v6749 = vsel %vm1079, %v6721, %v6722
      %v6750 = vsel %vm1079, %v6720, %v6721
      %v6751 = vsel %vm1079, %v6735, %v6720
      %v6752 = vmul.f32 %v1114, %v6750
      %v6753 = vmul.f32 %v1114, %v6749
      %v6754 = vmul.f32 %v1114, %v6748
      %v6755 = vmul.f32 %v1114, %v6747
      %v6756 = vmul.f32 %v1114, %v6746
      %v6757 = vmul.f32 %v1114, %v6745
      %v6758 = vmul.f32 %v1114, %v6744
      %v6759 = vmul.f32 %v1114, %v6743
      %v6760 = vmul.f32 %v1114, %v6742
      %v6761 = vmul.f32 %v1114, %v6741
      %v6762 = vmul.f32 %v1114, %v6740
      %v6763 = vmul.f32 %v1114, %v6739
      %v6764 = vmul.f32 %v1114, %v6738
      %v6765 = vmul.f32 %v1114, %v6737
      %v6766 = vmul.f32 %v1114, %v6736
      %v6767 = vmul.f32 %v1114, %v6751
      %v6768 = vadd.f32 %v6704, %v6752
      %v6769 = vadd.f32 %v6705, %v6753
      %v6770 = vadd.f32 %v6706, %v6754
      %v6771 = vadd.f32 %v6707, %v6755
      %v6772 = vadd.f32 %v6708, %v6756
      %v6773 = vadd.f32 %v6709, %v6757
      %v6774 = vadd.f32 %v6710, %v6758
      %v6775 = vadd.f32 %v6711, %v6759
      %v6776 = vadd.f32 %v6712, %v6760
      %v6777 = vadd.f32 %v6713, %v6761
      %v6778 = vadd.f32 %v6714, %v6762
      %v6779 = vadd.f32 %v6715, %v6763
      %v6780 = vadd.f32 %v6716, %v6764
      %v6781 = vadd.f32 %v6717, %v6765
      %v6782 = vadd.f32 %v6718, %v6766
      %v6783 = vadd.f32 %v6719, %v6767
      %v6784 = vmul.f32 %v3301, %v6768
      %v6785 = vmul.f32 %v3305, %v6769
      %v6786 = vmul.f32 %v3309, %v6770
      %v6787 = vmul.f32 %v3313, %v6771
      %v6788 = vmul.f32 %v3317, %v6772
      %v6789 = vmul.f32 %v3321, %v6773
      %v6790 = vmul.f32 %v3325, %v6774
      %v6791 = vmul.f32 %v3329, %v6775
      %v6792 = vmul.f32 %v3333, %v6776
      %v6793 = vmul.f32 %v3337, %v6777
      %v6794 = vmul.f32 %v3341, %v6778
      %v6795 = vmul.f32 %v3345, %v6779
      %v6796 = vmul.f32 %v3349, %v6780
      %v6797 = vmul.f32 %v3353, %v6781
      %v6798 = vmul.f32 %v3357, %v6782
      %v6799 = vmul.f32 %v3361, %v6783
      %v6800 = vadd.f32 %v6449, %v6784
      %v6801 = vadd.f32 %v6452, %v6785
      %v6802 = vadd.f32 %v6457, %v6786
      %v6803 = vadd.f32 %v6460, %v6787
      %v6804 = vadd.f32 %v6465, %v6788
      %v6805 = vadd.f32 %v6468, %v6789
      %v6806 = vadd.f32 %v6473, %v6790
      %v6807 = vadd.f32 %v6476, %v6791
      %v6808 = vadd.f32 %v6481, %v6792
      %v6809 = vadd.f32 %v6484, %v6793
      %v6810 = vadd.f32 %v6489, %v6794
      %v6811 = vadd.f32 %v6492, %v6795
      %v6812 = vadd.f32 %v6497, %v6796
      %v6813 = vadd.f32 %v6500, %v6797
      %v6814 = vadd.f32 %v6505, %v6798
      %v6815 = vadd.f32 %v6508, %v6799
      %s6816 = scalar_lea.vmem %s3, 128
      %v6817 = vld [vmem:[%s6816] sm:$0xf]
      %v6818 = vld [vmem:[%s6816 + $0x4] sm:$0xf]
      %v6819 = vld [vmem:[%s6816 + $0x8] sm:$0xf]
      %v6820 = vld [vmem:[%s6816 + $0xc] sm:$0xf]
      %v6821 = vld [vmem:[%s6816 + $0x10] sm:$0xf]
      %v6822 = vld [vmem:[%s6816 + $0x14] sm:$0xf]
      %v6823 = vld [vmem:[%s6816 + $0x18] sm:$0xf]
      %v6824 = vld [vmem:[%s6816 + $0x1c] sm:$0xf]
      %v6825 = vld [vmem:[%s6816 + $0x20] sm:$0xf]
      %v6826 = vld [vmem:[%s6816 + $0x24] sm:$0xf]
      %v6827 = vld [vmem:[%s6816 + $0x28] sm:$0xf]
      %v6828 = vld [vmem:[%s6816 + $0x2c] sm:$0xf]
      %v6829 = vld [vmem:[%s6816 + $0x30] sm:$0xf]
      %v6830 = vld [vmem:[%s6816 + $0x34] sm:$0xf]
      %v6831 = vld [vmem:[%s6816 + $0x38] sm:$0xf]
      %v6832 = vld [vmem:[%s6816 + $0x3c] sm:$0xf]
      %v6849 = vunpack.c.l.b16 %v6817
      %v6850 = vunpack.c.l.b16 %v6818
      %v6851 = vunpack.c.l.b16 %v6819
      %v6852 = vunpack.c.l.b16 %v6820
      %v6853 = vunpack.c.l.b16 %v6821
      %v6854 = vunpack.c.l.b16 %v6822
      %v6855 = vunpack.c.l.b16 %v6823
      %v6856 = vunpack.c.l.b16 %v6824
      %v6857 = vunpack.c.l.b16 %v6825
      %v6858 = vunpack.c.l.b16 %v6826
      %v6859 = vunpack.c.l.b16 %v6827
      %v6860 = vunpack.c.l.b16 %v6828
      %v6861 = vunpack.c.l.b16 %v6829
      %v6862 = vunpack.c.l.b16 %v6830
      %v6863 = vunpack.c.l.b16 %v6831
      %v6864 = vunpack.c.l.b16 %v6832
      %v6865 = vpack.c.b16 %v6850, %v6849
      %v6866 = vpack.c.b16 %v6852, %v6851
      %v6867 = vpack.c.b16 %v6854, %v6853
      %v6868 = vpack.c.b16 %v6856, %v6855
      %v6869 = vpack.c.b16 %v6858, %v6857
      %v6870 = vpack.c.b16 %v6860, %v6859
      %v6871 = vpack.c.b16 %v6862, %v6861
      %v6872 = vpack.c.b16 %v6864, %v6863
      %6881 = vmatprep.subr.bf16.mxu0 0
      %6882 = vmatpush1.bf16.msra.mxu0 %v6865
      %6883 = vmatprep.subr.bf16.mxu0 0
      %6884 = vmatpush1.bf16.msra.mxu0 %v6866
      %6885 = vmatprep.subr.bf16.mxu0 0
      %6886 = vmatpush1.bf16.msra.mxu0 %v6867
      %6887 = vmatprep.subr.bf16.mxu0 0
      %6888 = vmatpush1.bf16.msra.mxu0 %v6868
      %6889 = vmatprep.subr.bf16.mxu0 0
      %6890 = vmatpush1.bf16.msra.mxu0 %v6869
      %6891 = vmatprep.subr.bf16.mxu0 0
      %6892 = vmatpush1.bf16.msra.mxu0 %v6870
      %6893 = vmatprep.subr.bf16.mxu0 0
      %6894 = vmatpush1.bf16.msra.mxu0 %v6871
      %6895 = vmatprep.subr.bf16.mxu0 0
      %6896 = vmatpush1.bf16.msra.mxu0 %v6872
      %6897 = vmatprep.subr.bf16.mxu0 0
      %6898 = vmatpush1.bf16.msra.mxu0 0
      %6899 = vmatprep.subr.bf16.mxu0 0
      %6900 = vmatpush1.bf16.msra.mxu0 0
      %6901 = vmatprep.subr.bf16.mxu0 0
      %6902 = vmatpush1.bf16.msra.mxu0 0
      %6903 = vmatprep.subr.bf16.mxu0 0
      %6904 = vmatpush1.bf16.msra.mxu0 0
      %6905 = vmatprep.subr.bf16.mxu0 0
      %6906 = vmatpush1.bf16.msra.mxu0 0
      %6907 = vmatprep.subr.bf16.mxu0 0
      %6908 = vmatpush1.bf16.msra.mxu0 0
      %6909 = vmatprep.subr.bf16.mxu0 0
      %6910 = vmatpush1.bf16.msra.mxu0 0
      %6911 = vmatprep.subr.bf16.mxu0 0
      %6912 = vmatpush1.bf16.msra.mxu0 0
      %6913 = vmatprep.mubr.bf16.mxu0 0
      %6914 = vmatmul.mubr.bf16.gmra.mrb[0].mxu0 %v6337
      %v6915 = vpop.f32.mrb[0].mxu0
      %v6916 = vadd.f32 0.0, %v6915
      %v6917 = vpop.f32.mrb[0].mxu0
      %v6918 = vpop.f32.mrb[0].mxu0
      %v6919 = vadd.f32 0.0, %v6918
      %v6920 = vpop.f32.mrb[0].mxu0
      %6921 = vmatprep.mubr.bf16.mxu0 0
      %6922 = vmatmul.mubr.bf16.gmra.mrb[0].mxu0 %v6338
      %v6923 = vpop.f32.mrb[0].mxu0
      %v6924 = vadd.f32 0.0, %v6923
      %v6925 = vpop.f32.mrb[0].mxu0
      %v6926 = vpop.f32.mrb[0].mxu0
      %v6927 = vadd.f32 0.0, %v6926
      %v6928 = vpop.f32.mrb[0].mxu0
      %6929 = vmatprep.mubr.bf16.mxu0 0
      %6930 = vmatmul.mubr.bf16.gmra.mrb[0].mxu0 %v6339
      %v6931 = vpop.f32.mrb[0].mxu0
      %v6932 = vadd.f32 0.0, %v6931
      %v6933 = vpop.f32.mrb[0].mxu0
      %v6934 = vpop.f32.mrb[0].mxu0
      %v6935 = vadd.f32 0.0, %v6934
      %v6936 = vpop.f32.mrb[0].mxu0
      %6937 = vmatprep.mubr.bf16.mxu0 0
      %6938 = vmatmul.mubr.bf16.gmra.mrb[0].mxu0 %v6340
      %v6939 = vpop.f32.mrb[0].mxu0
      %v6940 = vadd.f32 0.0, %v6939
      %v6941 = vpop.f32.mrb[0].mxu0
      %v6942 = vpop.f32.mrb[0].mxu0
      %v6943 = vadd.f32 0.0, %v6942
      %v6944 = vpop.f32.mrb[0].mxu0
      %6945 = vmatprep.mubr.bf16.mxu0 0
      %6946 = vmatmul.mubr.bf16.gmra.mrb[0].mxu0 %v6341
      %v6947 = vpop.f32.mrb[0].mxu0
      %v6948 = vadd.f32 0.0, %v6947
      %v6949 = vpop.f32.mrb[0].mxu0
      %v6950 = vpop.f32.mrb[0].mxu0
      %v6951 = vadd.f32 0.0, %v6950
      %v6952 = vpop.f32.mrb[0].mxu0
      %6953 = vmatprep.mubr.bf16.mxu0 0
      %6954 = vmatmul.mubr.bf16.gmra.mrb[0].mxu0 %v6342
      %v6955 = vpop.f32.mrb[0].mxu0
      %v6956 = vadd.f32 0.0, %v6955
      %v6957 = vpop.f32.mrb[0].mxu0
      %v6958 = vpop.f32.mrb[0].mxu0
      %v6959 = vadd.f32 0.0, %v6958
      %v6960 = vpop.f32.mrb[0].mxu0
      %6961 = vmatprep.mubr.bf16.mxu0 0
      %6962 = vmatmul.mubr.bf16.gmra.mrb[0].mxu0 %v6343
      %v6963 = vpop.f32.mrb[0].mxu0
      %v6964 = vadd.f32 0.0, %v6963
      %v6965 = vpop.f32.mrb[0].mxu0
      %v6966 = vpop.f32.mrb[0].mxu0
      %v6967 = vadd.f32 0.0, %v6966
      %v6968 = vpop.f32.mrb[0].mxu0
      %6969 = vmatprep.mubr.bf16.mxu0 0
      %6970 = vmatmul.mubr.bf16.gmra.mrb[0].mxu0 %v6344
      %v6971 = vpop.f32.mrb[0].mxu0
      %v6972 = vadd.f32 0.0, %v6971
      %v6973 = vpop.f32.mrb[0].mxu0
      %v6974 = vpop.f32.mrb[0].mxu0
      %v6975 = vadd.f32 0.0, %v6974
      %v6976 = vpop.f32.mrb[0].mxu0
      %6977 = vdwg.mxu0
      %v6978 = vrot.slane %v6916, 1
      %v6979 = vrot.slane %v6919, 1
      %v6980 = vrot.slane %v6924, 1
      %v6981 = vrot.slane %v6927, 1
      %v6982 = vrot.slane %v6932, 1
      %v6983 = vrot.slane %v6935, 1
      %v6984 = vrot.slane %v6940, 1
      %v6985 = vrot.slane %v6943, 1
      %v6986 = vrot.slane %v6948, 1
      %v6987 = vrot.slane %v6951, 1
      %v6988 = vrot.slane %v6956, 1
      %v6989 = vrot.slane %v6959, 1
      %v6990 = vrot.slane %v6964, 1
      %v6991 = vrot.slane %v6967, 1
      %v6992 = vrot.slane %v6972, 1
      %v6993 = vrot.slane %v6975, 1
      %v6994 = vsel %vm1079, %v6992, %v6993
      %v6995 = vsel %vm1079, %v6991, %v6992
      %v6996 = vsel %vm1079, %v6990, %v6991
      %v6997 = vsel %vm1079, %v6989, %v6990
      %v6998 = vsel %vm1079, %v6988, %v6989
      %v6999 = vsel %vm1079, %v6987, %v6988
      %v7000 = vsel %vm1079, %v6986, %v6987
      %v7001 = vsel %vm1079, %v6985, %v6986
      %v7002 = vsel %vm1079, %v6984, %v6985
      %v7003 = vsel %vm1079, %v6983, %v6984
      %v7004 = vsel %vm1079, %v6982, %v6983
      %v7005 = vsel %vm1079, %v6981, %v6982
      %v7006 = vsel %vm1079, %v6980, %v6981
      %v7007 = vsel %vm1079, %v6979, %v6980
      %v7008 = vsel %vm1079, %v6978, %v6979
      %v7009 = vsel %vm1079, %v6993, %v6978
      %v7010 = vmul.f32 %v1012, %v7008
      %v7011 = vmul.f32 %v1012, %v7007
      %v7012 = vmul.f32 %v1012, %v7006
      %v7013 = vmul.f32 %v1012, %v7005
      %v7014 = vmul.f32 %v1012, %v7004
      %v7015 = vmul.f32 %v1012, %v7003
      %v7016 = vmul.f32 %v1012, %v7002
      %v7017 = vmul.f32 %v1012, %v7001
      %v7018 = vmul.f32 %v1012, %v7000
      %v7019 = vmul.f32 %v1012, %v6999
      %v7020 = vmul.f32 %v1012, %v6998
      %v7021 = vmul.f32 %v1012, %v6997
      %v7022 = vmul.f32 %v1012, %v6996
      %v7023 = vmul.f32 %v1012, %v6995
      %v7024 = vmul.f32 %v1012, %v6994
      %v7025 = vmul.f32 %v1012, %v7009
      %v7026 = vrot.slane %v6916, 7
      %v7027 = vrot.slane %v6919, 7
      %v7028 = vrot.slane %v6924, 7
      %v7029 = vrot.slane %v6927, 7
      %v7030 = vrot.slane %v6932, 7
      %v7031 = vrot.slane %v6935, 7
      %v7032 = vrot.slane %v6940, 7
      %v7033 = vrot.slane %v6943, 7
      %v7034 = vrot.slane %v6948, 7
      %v7035 = vrot.slane %v6951, 7
      %v7036 = vrot.slane %v6956, 7
      %v7037 = vrot.slane %v6959, 7
      %v7038 = vrot.slane %v6964, 7
      %v7039 = vrot.slane %v6967, 7
      %v7040 = vrot.slane %v6972, 7
      %v7041 = vrot.slane %v6975, 7
      %v7042 = vsel %vm977, %v7040, %v7041
      %v7043 = vsel %vm977, %v7039, %v7040
      %v7044 = vsel %vm977, %v7038, %v7039
      %v7045 = vsel %vm977, %v7037, %v7038
      %v7046 = vsel %vm977, %v7036, %v7037
      %v7047 = vsel %vm977, %v7035, %v7036
      %v7048 = vsel %vm977, %v7034, %v7035
      %v7049 = vsel %vm977, %v7033, %v7034
      %v7050 = vsel %vm977, %v7032, %v7033
      %v7051 = vsel %vm977, %v7031, %v7032
      %v7052 = vsel %vm977, %v7030, %v7031
      %v7053 = vsel %vm977, %v7029, %v7030
      %v7054 = vsel %vm977, %v7028, %v7029
      %v7055 = vsel %vm977, %v7027, %v7028
      %v7056 = vsel %vm977, %v7026, %v7027
      %v7057 = vsel %vm977, %v7041, %v7026
      %v7058 = vmul.f32 %v1114, %v7057
      %v7059 = vmul.f32 %v1114, %v7056
      %v7060 = vmul.f32 %v1114, %v7055
      %v7061 = vmul.f32 %v1114, %v7054
      %v7062 = vmul.f32 %v1114, %v7053
      %v7063 = vmul.f32 %v1114, %v7052
      %v7064 = vmul.f32 %v1114, %v7051
      %v7065 = vmul.f32 %v1114, %v7050
      %v7066 = vmul.f32 %v1114, %v7049
      %v7067 = vmul.f32 %v1114, %v7048
      %v7068 = vmul.f32 %v1114, %v7047
      %v7069 = vmul.f32 %v1114, %v7046
      %v7070 = vmul.f32 %v1114, %v7045
      %v7071 = vmul.f32 %v1114, %v7044
      %v7072 = vmul.f32 %v1114, %v7043
      %v7073 = vmul.f32 %v1114, %v7042
      %v7074 = vadd.f32 %v7010, %v7058
      %v7075 = vadd.f32 %v7011, %v7059
      %v7076 = vadd.f32 %v7012, %v7060
      %v7077 = vadd.f32 %v7013, %v7061
      %v7078 = vadd.f32 %v7014, %v7062
      %v7079 = vadd.f32 %v7015, %v7063
      %v7080 = vadd.f32 %v7016, %v7064
      %v7081 = vadd.f32 %v7017, %v7065
      %v7082 = vadd.f32 %v7018, %v7066
      %v7083 = vadd.f32 %v7019, %v7067
      %v7084 = vadd.f32 %v7020, %v7068
      %v7085 = vadd.f32 %v7021, %v7069
      %v7086 = vadd.f32 %v7022, %v7070
      %v7087 = vadd.f32 %v7023, %v7071
      %v7088 = vadd.f32 %v7024, %v7072
      %v7089 = vadd.f32 %v7025, %v7073
      %v7090 = vmul.f32 %v3639, %v7074
      %v7091 = vmul.f32 %v3643, %v7075
      %v7092 = vmul.f32 %v3647, %v7076
      %v7093 = vmul.f32 %v3651, %v7077
      %v7094 = vmul.f32 %v3655, %v7078
      %v7095 = vmul.f32 %v3659, %v7079
      %v7096 = vmul.f32 %v3663, %v7080
      %v7097 = vmul.f32 %v3667, %v7081
      %v7098 = vmul.f32 %v3671, %v7082
      %v7099 = vmul.f32 %v3675, %v7083
      %v7100 = vmul.f32 %v3679, %v7084
      %v7101 = vmul.f32 %v3683, %v7085
      %v7102 = vmul.f32 %v3687, %v7086
      %v7103 = vmul.f32 %v3691, %v7087
      %v7104 = vmul.f32 %v3695, %v7088
      %v7105 = vmul.f32 %v3699, %v7089
      %v7106 = vadd.f32 %v6800, %v7090
      %v7107 = vadd.f32 %v6801, %v7091
      %v7108 = vadd.f32 %v6802, %v7092
      %v7109 = vadd.f32 %v6803, %v7093
      %v7110 = vadd.f32 %v6804, %v7094
      %v7111 = vadd.f32 %v6805, %v7095
      %v7112 = vadd.f32 %v6806, %v7096
      %v7113 = vadd.f32 %v6807, %v7097
      %v7114 = vadd.f32 %v6808, %v7098
      %v7115 = vadd.f32 %v6809, %v7099
      %v7116 = vadd.f32 %v6810, %v7100
      %v7117 = vadd.f32 %v6811, %v7101
      %v7118 = vadd.f32 %v6812, %v7102
      %v7119 = vadd.f32 %v6813, %v7103
      %v7120 = vadd.f32 %v6814, %v7104
      %v7121 = vadd.f32 %v6815, %v7105
      %v7122 = vmax.f32 %v7106, 0.0
      %v7123 = vmax.f32 %v7107, 0.0
      %v7124 = vmax.f32 %v7108, 0.0
      %v7125 = vmax.f32 %v7109, 0.0
      %v7126 = vmax.f32 %v7110, 0.0
      %v7127 = vmax.f32 %v7111, 0.0
      %v7128 = vmax.f32 %v7112, 0.0
      %v7129 = vmax.f32 %v7113, 0.0
      %v7130 = vmax.f32 %v7114, 0.0
      %v7131 = vmax.f32 %v7115, 0.0
      %v7132 = vmax.f32 %v7116, 0.0
      %v7133 = vmax.f32 %v7117, 0.0
      %v7134 = vmax.f32 %v7118, 0.0
      %v7135 = vmax.f32 %v7119, 0.0
      %v7136 = vmax.f32 %v7120, 0.0
      %v7137 = vmax.f32 %v7121, 0.0
      %v7138 = vld [vmem:[%s5] sm:$0xf]
      %v7139 = vld [vmem:[%s5 + $0x4] sm:$0xf]
      %v7140 = vld [vmem:[%s5 + $0x8] sm:$0xf]
      %v7141 = vld [vmem:[%s5 + $0xc] sm:$0xf]
      %v7142 = vld [vmem:[%s5 + $0x10] sm:$0xf]
      %v7143 = vld [vmem:[%s5 + $0x14] sm:$0xf]
      %v7144 = vld [vmem:[%s5 + $0x18] sm:$0xf]
      %v7145 = vld [vmem:[%s5 + $0x1c] sm:$0xf]
      %v7146 = vld [vmem:[%s5 + $0x20] sm:$0xf]
      %v7147 = vld [vmem:[%s5 + $0x24] sm:$0xf]
      %v7148 = vld [vmem:[%s5 + $0x28] sm:$0xf]
      %v7149 = vld [vmem:[%s5 + $0x2c] sm:$0xf]
      %v7150 = vld [vmem:[%s5 + $0x30] sm:$0xf]
      %v7151 = vld [vmem:[%s5 + $0x34] sm:$0xf]
      %v7152 = vld [vmem:[%s5 + $0x38] sm:$0xf]
      %v7153 = vld [vmem:[%s5 + $0x3c] sm:$0xf]
      %v7154 = vld [vmem:[%s5 + $0x40] sm:$0xf]
      %v7155 = vld [vmem:[%s5 + $0x44] sm:$0xf]
      %v7156 = vld [vmem:[%s5 + $0x48] sm:$0xf]
      %v7157 = vld [vmem:[%s5 + $0x4c] sm:$0xf]
      %v7158 = vld [vmem:[%s5 + $0x50] sm:$0xf]
      %v7159 = vld [vmem:[%s5 + $0x54] sm:$0xf]
      %v7160 = vld [vmem:[%s5 + $0x58] sm:$0xf]
      %v7161 = vld [vmem:[%s5 + $0x5c] sm:$0xf]
      %v7162 = vld [vmem:[%s5 + $0x60] sm:$0xf]
      %v7163 = vld [vmem:[%s5 + $0x64] sm:$0xf]
      %v7164 = vld [vmem:[%s5 + $0x68] sm:$0xf]
      %v7165 = vld [vmem:[%s5 + $0x6c] sm:$0xf]
      %v7166 = vld [vmem:[%s5 + $0x70] sm:$0xf]
      %v7167 = vld [vmem:[%s5 + $0x74] sm:$0xf]
      %v7168 = vld [vmem:[%s5 + $0x78] sm:$0xf]
      %v7169 = vld [vmem:[%s5 + $0x7c] sm:$0xf]
      %s7170 = scalar_lea.vmem %s2, 160
      %v7171 = vld [vmem:[%s7170] sm:$0xf]
      %v7172 = vld [vmem:[%s7170 + $0x4] sm:$0xf]
      %v7173 = vld [vmem:[%s7170 + $0x8] sm:$0xf]
      %v7174 = vld [vmem:[%s7170 + $0xc] sm:$0xf]
      %v7175 = vld [vmem:[%s7170 + $0x10] sm:$0xf]
      %v7176 = vld [vmem:[%s7170 + $0x14] sm:$0xf]
      %v7177 = vld [vmem:[%s7170 + $0x18] sm:$0xf]
      %v7178 = vld [vmem:[%s7170 + $0x1c] sm:$0xf]
      %v7179 = vpack.c.bf16 %v7123, %v7122
      %v7180 = vpack.c.bf16 %v7125, %v7124
      %v7181 = vpack.c.bf16 %v7127, %v7126
      %v7182 = vpack.c.bf16 %v7129, %v7128
      %v7183 = vpack.c.bf16 %v7131, %v7130
      %v7184 = vpack.c.bf16 %v7133, %v7132
      %v7185 = vpack.c.bf16 %v7135, %v7134
      %v7186 = vpack.c.bf16 %v7137, %v7136
      %v7219 = vunpack.c.l.b16 %v7138
      %v7220 = vunpack.c.l.b16 %v7139
      %v7221 = vunpack.c.l.b16 %v7140
      %v7222 = vunpack.c.l.b16 %v7141
      %v7223 = vunpack.c.l.b16 %v7142
      %v7224 = vunpack.c.l.b16 %v7143
      %v7225 = vunpack.c.l.b16 %v7144
      %v7226 = vunpack.c.l.b16 %v7145
      %v7227 = vunpack.c.l.b16 %v7146
      %v7228 = vunpack.c.l.b16 %v7147
      %v7229 = vunpack.c.l.b16 %v7148
      %v7230 = vunpack.c.l.b16 %v7149
      %v7231 = vunpack.c.l.b16 %v7150
      %v7232 = vunpack.c.l.b16 %v7151
      %v7233 = vunpack.c.l.b16 %v7152
      %v7234 = vunpack.c.l.b16 %v7153
      %v7235 = vunpack.c.l.b16 %v7154
      %v7236 = vunpack.c.l.b16 %v7155
      %v7237 = vunpack.c.l.b16 %v7156
      %v7238 = vunpack.c.l.b16 %v7157
      %v7239 = vunpack.c.l.b16 %v7158
      %v7240 = vunpack.c.l.b16 %v7159
      %v7241 = vunpack.c.l.b16 %v7160
      %v7242 = vunpack.c.l.b16 %v7161
      %v7243 = vunpack.c.l.b16 %v7162
      %v7244 = vunpack.c.l.b16 %v7163
      %v7245 = vunpack.c.l.b16 %v7164
      %v7246 = vunpack.c.l.b16 %v7165
      %v7247 = vunpack.c.l.b16 %v7166
      %v7248 = vunpack.c.l.b16 %v7167
      %v7249 = vunpack.c.l.b16 %v7168
      %v7250 = vunpack.c.l.b16 %v7169
      %v7251 = vpack.c.b16 %v7220, %v7219
      %v7252 = vpack.c.b16 %v7222, %v7221
      %v7253 = vpack.c.b16 %v7224, %v7223
      %v7254 = vpack.c.b16 %v7226, %v7225
      %v7255 = vpack.c.b16 %v7228, %v7227
      %v7256 = vpack.c.b16 %v7230, %v7229
      %v7257 = vpack.c.b16 %v7232, %v7231
      %v7258 = vpack.c.b16 %v7234, %v7233
      %v7259 = vpack.c.b16 %v7236, %v7235
      %v7260 = vpack.c.b16 %v7238, %v7237
      %v7261 = vpack.c.b16 %v7240, %v7239
      %v7262 = vpack.c.b16 %v7242, %v7241
      %v7263 = vpack.c.b16 %v7244, %v7243
      %v7264 = vpack.c.b16 %v7246, %v7245
      %v7265 = vpack.c.b16 %v7248, %v7247
      %v7266 = vpack.c.b16 %v7250, %v7249
      %7283 = vmatprep.subr.bf16.mxu0 0
      %7284 = vmatpush1.bf16.msra.mxu0 %v7179
      %7285 = vmatprep.subr.bf16.mxu0 0
      %7286 = vmatpush1.bf16.msra.mxu0 %v7180
      %7287 = vmatprep.subr.bf16.mxu0 0
      %7288 = vmatpush1.bf16.msra.mxu0 %v7181
      %7289 = vmatprep.subr.bf16.mxu0 0
      %7290 = vmatpush1.bf16.msra.mxu0 %v7182
      %7291 = vmatprep.subr.bf16.mxu0 0
      %7292 = vmatpush1.bf16.msra.mxu0 %v7183
      %7293 = vmatprep.subr.bf16.mxu0 0
      %7294 = vmatpush1.bf16.msra.mxu0 %v7184
      %7295 = vmatprep.subr.bf16.mxu0 0
      %7296 = vmatpush1.bf16.msra.mxu0 %v7185
      %7297 = vmatprep.subr.bf16.mxu0 0
      %7298 = vmatpush1.bf16.msra.mxu0 %v7186
      %7299 = vmatprep.subr.bf16.mxu0 0
      %7300 = vmatpush1.bf16.msra.mxu0 0
      %7301 = vmatprep.subr.bf16.mxu0 0
      %7302 = vmatpush1.bf16.msra.mxu0 0
      %7303 = vmatprep.subr.bf16.mxu0 0
      %7304 = vmatpush1.bf16.msra.mxu0 0
      %7305 = vmatprep.subr.bf16.mxu0 0
      %7306 = vmatpush1.bf16.msra.mxu0 0
      %7307 = vmatprep.subr.bf16.mxu0 0
      %7308 = vmatpush1.bf16.msra.mxu0 0
      %7309 = vmatprep.subr.bf16.mxu0 0
      %7310 = vmatpush1.bf16.msra.mxu0 0
      %7311 = vmatprep.subr.bf16.mxu0 0
      %7312 = vmatpush1.bf16.msra.mxu0 0
      %7313 = vmatprep.subr.bf16.mxu0 0
      %7314 = vmatpush1.bf16.msra.mxu0 0
      %7315 = vmatprep.mubr.bf16.mxu0 0
      %7316 = vmatmul.mubr.bf16.gmra.mrb[0].mxu0 %v7251
      %v7317 = vpop.f32.mrb[0].mxu0
      %v7318 = vadd.f32 0.0, %v7317
      %v7319 = vpop.f32.mrb[0].mxu0
      %v7320 = vpop.f32.mrb[0].mxu0
      %v7321 = vadd.f32 0.0, %v7320
      %v7322 = vpop.f32.mrb[0].mxu0
      %7323 = vmatprep.mubr.bf16.mxu0 0
      %7324 = vmatmul.mubr.bf16.gmra.mrb[0].mxu0 %v7252
      %v7325 = vpop.f32.mrb[0].mxu0
      %v7326 = vadd.f32 0.0, %v7325
      %v7327 = vpop.f32.mrb[0].mxu0
      %v7328 = vpop.f32.mrb[0].mxu0
      %v7329 = vadd.f32 0.0, %v7328
      %v7330 = vpop.f32.mrb[0].mxu0
      %7331 = vmatprep.mubr.bf16.mxu0 0
      %7332 = vmatmul.mubr.bf16.gmra.mrb[0].mxu0 %v7253
      %v7333 = vpop.f32.mrb[0].mxu0
      %v7334 = vadd.f32 0.0, %v7333
      %v7335 = vpop.f32.mrb[0].mxu0
      %v7336 = vpop.f32.mrb[0].mxu0
      %v7337 = vadd.f32 0.0, %v7336
      %v7338 = vpop.f32.mrb[0].mxu0
      %7339 = vmatprep.mubr.bf16.mxu0 0
      %7340 = vmatmul.mubr.bf16.gmra.mrb[0].mxu0 %v7254
      %v7341 = vpop.f32.mrb[0].mxu0
      %v7342 = vadd.f32 0.0, %v7341
      %v7343 = vpop.f32.mrb[0].mxu0
      %v7344 = vpop.f32.mrb[0].mxu0
      %v7345 = vadd.f32 0.0, %v7344
      %v7346 = vpop.f32.mrb[0].mxu0
      %7347 = vmatprep.mubr.bf16.mxu0 0
      %7348 = vmatmul.mubr.bf16.gmra.mrb[0].mxu0 %v7255
      %v7349 = vpop.f32.mrb[0].mxu0
      %v7350 = vadd.f32 0.0, %v7349
      %v7351 = vpop.f32.mrb[0].mxu0
      %v7352 = vpop.f32.mrb[0].mxu0
      %v7353 = vadd.f32 0.0, %v7352
      %v7354 = vpop.f32.mrb[0].mxu0
      %7355 = vmatprep.mubr.bf16.mxu0 0
      %7356 = vmatmul.mubr.bf16.gmra.mrb[0].mxu0 %v7256
      %v7357 = vpop.f32.mrb[0].mxu0
      %v7358 = vadd.f32 0.0, %v7357
      %v7359 = vpop.f32.mrb[0].mxu0
      %v7360 = vpop.f32.mrb[0].mxu0
      %v7361 = vadd.f32 0.0, %v7360
      %v7362 = vpop.f32.mrb[0].mxu0
      %7363 = vmatprep.mubr.bf16.mxu0 0
      %7364 = vmatmul.mubr.bf16.gmra.mrb[0].mxu0 %v7257
      %v7365 = vpop.f32.mrb[0].mxu0
      %v7366 = vadd.f32 0.0, %v7365
      %v7367 = vpop.f32.mrb[0].mxu0
      %v7368 = vpop.f32.mrb[0].mxu0
      %v7369 = vadd.f32 0.0, %v7368
      %v7370 = vpop.f32.mrb[0].mxu0
      %7371 = vmatprep.mubr.bf16.mxu0 0
      %7372 = vmatmul.mubr.bf16.gmra.mrb[0].mxu0 %v7258
      %v7373 = vpop.f32.mrb[0].mxu0
      %v7374 = vadd.f32 0.0, %v7373
      %v7375 = vpop.f32.mrb[0].mxu0
      %v7376 = vpop.f32.mrb[0].mxu0
      %v7377 = vadd.f32 0.0, %v7376
      %v7378 = vpop.f32.mrb[0].mxu0
      %7379 = vmatprep.mubr.bf16.mxu0 0
      %7380 = vmatmul.mubr.bf16.gmra.mrb[0].mxu0 %v7259
      %v7381 = vpop.f32.mrb[0].mxu0
      %v7382 = vadd.f32 0.0, %v7381
      %v7383 = vpop.f32.mrb[0].mxu0
      %v7384 = vpop.f32.mrb[0].mxu0
      %v7385 = vadd.f32 0.0, %v7384
      %v7386 = vpop.f32.mrb[0].mxu0
      %7387 = vmatprep.mubr.bf16.mxu0 0
      %7388 = vmatmul.mubr.bf16.gmra.mrb[0].mxu0 %v7260
      %v7389 = vpop.f32.mrb[0].mxu0
      %v7390 = vadd.f32 0.0, %v7389
      %v7391 = vpop.f32.mrb[0].mxu0
      %v7392 = vpop.f32.mrb[0].mxu0
      %v7393 = vadd.f32 0.0, %v7392
      %v7394 = vpop.f32.mrb[0].mxu0
      %7395 = vmatprep.mubr.bf16.mxu0 0
      %7396 = vmatmul.mubr.bf16.gmra.mrb[0].mxu0 %v7261
      %v7397 = vpop.f32.mrb[0].mxu0
      %v7398 = vadd.f32 0.0, %v7397
      %v7399 = vpop.f32.mrb[0].mxu0
      %v7400 = vpop.f32.mrb[0].mxu0
      %v7401 = vadd.f32 0.0, %v7400
      %v7402 = vpop.f32.mrb[0].mxu0
      %7403 = vmatprep.mubr.bf16.mxu0 0
      %7404 = vmatmul.mubr.bf16.gmra.mrb[0].mxu0 %v7262
      %v7405 = vpop.f32.mrb[0].mxu0
      %v7406 = vadd.f32 0.0, %v7405
      %v7407 = vpop.f32.mrb[0].mxu0
      %v7408 = vpop.f32.mrb[0].mxu0
      %v7409 = vadd.f32 0.0, %v7408
      %v7410 = vpop.f32.mrb[0].mxu0
      %7411 = vmatprep.mubr.bf16.mxu0 0
      %7412 = vmatmul.mubr.bf16.gmra.mrb[0].mxu0 %v7263
      %v7413 = vpop.f32.mrb[0].mxu0
      %v7414 = vadd.f32 0.0, %v7413
      %v7415 = vpop.f32.mrb[0].mxu0
      %v7416 = vpop.f32.mrb[0].mxu0
      %v7417 = vadd.f32 0.0, %v7416
      %v7418 = vpop.f32.mrb[0].mxu0
      %7419 = vmatprep.mubr.bf16.mxu0 0
      %7420 = vmatmul.mubr.bf16.gmra.mrb[0].mxu0 %v7264
      %v7421 = vpop.f32.mrb[0].mxu0
      %v7422 = vadd.f32 0.0, %v7421
      %v7423 = vpop.f32.mrb[0].mxu0
      %v7424 = vpop.f32.mrb[0].mxu0
      %v7425 = vadd.f32 0.0, %v7424
      %v7426 = vpop.f32.mrb[0].mxu0
      %7427 = vmatprep.mubr.bf16.mxu0 0
      %7428 = vmatmul.mubr.bf16.gmra.mrb[0].mxu0 %v7265
      %v7429 = vpop.f32.mrb[0].mxu0
      %v7430 = vadd.f32 0.0, %v7429
      %v7431 = vpop.f32.mrb[0].mxu0
      %v7432 = vpop.f32.mrb[0].mxu0
      %v7433 = vadd.f32 0.0, %v7432
      %v7434 = vpop.f32.mrb[0].mxu0
      %7435 = vmatprep.mubr.bf16.mxu0 0
      %7436 = vmatmul.mubr.bf16.gmra.mrb[0].mxu0 %v7266
      %v7437 = vpop.f32.mrb[0].mxu0
      %v7438 = vadd.f32 0.0, %v7437
      %v7439 = vpop.f32.mrb[0].mxu0
      %v7440 = vpop.f32.mrb[0].mxu0
      %v7441 = vadd.f32 0.0, %v7440
      %v7442 = vpop.f32.mrb[0].mxu0
      %7443 = vdwg.mxu0
      %v7444 = vpack.c.bf16 %v7321, %v7318
      %v7445 = vpack.c.bf16 %v7329, %v7326
      %v7446 = vpack.c.bf16 %v7337, %v7334
      %v7447 = vpack.c.bf16 %v7345, %v7342
      %v7448 = vpack.c.bf16 %v7353, %v7350
      %v7449 = vpack.c.bf16 %v7361, %v7358
      %v7450 = vpack.c.bf16 %v7369, %v7366
      %v7451 = vpack.c.bf16 %v7377, %v7374
      %v7452 = vpack.c.bf16 %v7385, %v7382
      %v7453 = vpack.c.bf16 %v7393, %v7390
      %v7454 = vpack.c.bf16 %v7401, %v7398
      %v7455 = vpack.c.bf16 %v7409, %v7406
      %v7456 = vpack.c.bf16 %v7417, %v7414
      %v7457 = vpack.c.bf16 %v7425, %v7422
      %v7458 = vpack.c.bf16 %v7433, %v7430
      %v7459 = vpack.c.bf16 %v7441, %v7438
      %v7468 = vunpack.c.l.b16 %v7171
      %v7469 = vunpack.c.l.b16 %v7172
      %v7470 = vunpack.c.l.b16 %v7173
      %v7471 = vunpack.c.l.b16 %v7174
      %v7472 = vunpack.c.l.b16 %v7175
      %v7473 = vunpack.c.l.b16 %v7176
      %v7474 = vunpack.c.l.b16 %v7177
      %v7475 = vunpack.c.l.b16 %v7178
      %v7476 = vpack.c.b16 %v7469, %v7468
      %v7477 = vpack.c.b16 %v7471, %v7470
      %v7478 = vpack.c.b16 %v7473, %v7472
      %v7479 = vpack.c.b16 %v7475, %v7474
      %v7485 = vsel %vm2936, %v7444, 0
      %v7488 = vsel %vm2936, %v7445, 0
      %v7491 = vsel %vm2936, %v7446, 0
      %v7494 = vsel %vm2936, %v7447, 0
      %v7497 = vsel %vm2936, %v7448, 0
      %v7500 = vsel %vm2936, %v7449, 0
      %v7503 = vsel %vm2936, %v7450, 0
      %v7506 = vsel %vm2936, %v7451, 0
      %v7509 = vsel %vm2936, %v7452, 0
      %v7512 = vsel %vm2936, %v7453, 0
      %v7515 = vsel %vm2936, %v7454, 0
      %v7518 = vsel %vm2936, %v7455, 0
      %v7521 = vsel %vm2936, %v7456, 0
      %v7524 = vsel %vm2936, %v7457, 0
      %v7527 = vsel %vm2936, %v7458, 0
      %v7530 = vsel %vm2936, %v7459, 0
      %7532 = vmatprep.subr.bf16.mxu0 0
      %7533 = vmatpush1.bf16.msra.mxu0 %v7476
      %7534 = vmatprep.subr.bf16.mxu0 0
      %7535 = vmatpush1.bf16.msra.mxu0 %v7477
      %7536 = vmatprep.subr.bf16.mxu0 0
      %7537 = vmatpush1.bf16.msra.mxu0 %v7478
      %7538 = vmatprep.subr.bf16.mxu0 0
      %7539 = vmatpush1.bf16.msra.mxu0 %v7479
      %7540 = vmatprep.subr.bf16.mxu0 0
      %7541 = vmatpush1.bf16.msra.mxu0 0
      %7542 = vmatprep.subr.bf16.mxu0 0
      %7543 = vmatpush1.bf16.msra.mxu0 0
      %7544 = vmatprep.subr.bf16.mxu0 0
      %7545 = vmatpush1.bf16.msra.mxu0 0
      %7546 = vmatprep.subr.bf16.mxu0 0
      %7547 = vmatpush1.bf16.msra.mxu0 0
      %7548 = vmatprep.subr.bf16.mxu0 0
      %7549 = vmatpush1.bf16.msra.mxu0 0
      %7550 = vmatprep.subr.bf16.mxu0 0
      %7551 = vmatpush1.bf16.msra.mxu0 0
      %7552 = vmatprep.subr.bf16.mxu0 0
      %7553 = vmatpush1.bf16.msra.mxu0 0
      %7554 = vmatprep.subr.bf16.mxu0 0
      %7555 = vmatpush1.bf16.msra.mxu0 0
      %7556 = vmatprep.subr.bf16.mxu0 0
      %7557 = vmatpush1.bf16.msra.mxu0 0
      %7558 = vmatprep.subr.bf16.mxu0 0
      %7559 = vmatpush1.bf16.msra.mxu0 0
      %7560 = vmatprep.subr.bf16.mxu0 0
      %7561 = vmatpush1.bf16.msra.mxu0 0
      %7562 = vmatprep.subr.bf16.mxu0 0
      %7563 = vmatpush1.bf16.msra.mxu0 0
      %7564 = vmatprep.mubr.bf16.mxu0 0
      %7565 = vmatmul.mubr.bf16.gmra.mrb[0].mxu0 %v7485
      %v7566 = vpop.f32.mrb[0].mxu0
      %v7567 = vadd.f32 0.0, %v7566
      %v7568 = vpop.f32.mrb[0].mxu0
      %v7569 = vpop.f32.mrb[0].mxu0
      %v7570 = vadd.f32 0.0, %v7569
      %v7571 = vpop.f32.mrb[0].mxu0
      %7572 = vmatprep.mubr.bf16.mxu0 0
      %7573 = vmatmul.mubr.bf16.gmra.mrb[0].mxu0 %v7488
      %v7574 = vpop.f32.mrb[0].mxu0
      %v7575 = vadd.f32 0.0, %v7574
      %v7576 = vpop.f32.mrb[0].mxu0
      %v7577 = vpop.f32.mrb[0].mxu0
      %v7578 = vadd.f32 0.0, %v7577
      %v7579 = vpop.f32.mrb[0].mxu0
      %7580 = vmatprep.mubr.bf16.mxu0 0
      %7581 = vmatmul.mubr.bf16.gmra.mrb[0].mxu0 %v7491
      %v7582 = vpop.f32.mrb[0].mxu0
      %v7583 = vadd.f32 0.0, %v7582
      %v7584 = vpop.f32.mrb[0].mxu0
      %v7585 = vpop.f32.mrb[0].mxu0
      %v7586 = vadd.f32 0.0, %v7585
      %v7587 = vpop.f32.mrb[0].mxu0
      %7588 = vmatprep.mubr.bf16.mxu0 0
      %7589 = vmatmul.mubr.bf16.gmra.mrb[0].mxu0 %v7494
      %v7590 = vpop.f32.mrb[0].mxu0
      %v7591 = vadd.f32 0.0, %v7590
      %v7592 = vpop.f32.mrb[0].mxu0
      %v7593 = vpop.f32.mrb[0].mxu0
      %v7594 = vadd.f32 0.0, %v7593
      %v7595 = vpop.f32.mrb[0].mxu0
      %7596 = vmatprep.mubr.bf16.mxu0 0
      %7597 = vmatmul.mubr.bf16.gmra.mrb[0].mxu0 %v7497
      %v7598 = vpop.f32.mrb[0].mxu0
      %v7599 = vadd.f32 0.0, %v7598
      %v7600 = vpop.f32.mrb[0].mxu0
      %v7601 = vpop.f32.mrb[0].mxu0
      %v7602 = vadd.f32 0.0, %v7601
      %v7603 = vpop.f32.mrb[0].mxu0
      %7604 = vmatprep.mubr.bf16.mxu0 0
      %7605 = vmatmul.mubr.bf16.gmra.mrb[0].mxu0 %v7500
      %v7606 = vpop.f32.mrb[0].mxu0
      %v7607 = vadd.f32 0.0, %v7606
      %v7608 = vpop.f32.mrb[0].mxu0
      %v7609 = vpop.f32.mrb[0].mxu0
      %v7610 = vadd.f32 0.0, %v7609
      %v7611 = vpop.f32.mrb[0].mxu0
      %7612 = vmatprep.mubr.bf16.mxu0 0
      %7613 = vmatmul.mubr.bf16.gmra.mrb[0].mxu0 %v7503
      %v7614 = vpop.f32.mrb[0].mxu0
      %v7615 = vadd.f32 0.0, %v7614
      %v7616 = vpop.f32.mrb[0].mxu0
      %v7617 = vpop.f32.mrb[0].mxu0
      %v7618 = vadd.f32 0.0, %v7617
      %v7619 = vpop.f32.mrb[0].mxu0
      %7620 = vmatprep.mubr.bf16.mxu0 0
      %7621 = vmatmul.mubr.bf16.gmra.mrb[0].mxu0 %v7506
      %v7622 = vpop.f32.mrb[0].mxu0
      %v7623 = vadd.f32 0.0, %v7622
      %v7624 = vpop.f32.mrb[0].mxu0
      %v7625 = vpop.f32.mrb[0].mxu0
      %v7626 = vadd.f32 0.0, %v7625
      %v7627 = vpop.f32.mrb[0].mxu0
      %7628 = vmatprep.mubr.bf16.mxu0 0
      %7629 = vmatmul.mubr.bf16.gmra.mrb[0].mxu0 %v7509
      %v7630 = vpop.f32.mrb[0].mxu0
      %v7631 = vadd.f32 0.0, %v7630
      %v7632 = vpop.f32.mrb[0].mxu0
      %v7633 = vpop.f32.mrb[0].mxu0
      %v7634 = vadd.f32 0.0, %v7633
      %v7635 = vpop.f32.mrb[0].mxu0
      %7636 = vmatprep.mubr.bf16.mxu0 0
      %7637 = vmatmul.mubr.bf16.gmra.mrb[0].mxu0 %v7512
      %v7638 = vpop.f32.mrb[0].mxu0
      %v7639 = vadd.f32 0.0, %v7638
      %v7640 = vpop.f32.mrb[0].mxu0
      %v7641 = vpop.f32.mrb[0].mxu0
      %v7642 = vadd.f32 0.0, %v7641
      %v7643 = vpop.f32.mrb[0].mxu0
      %7644 = vmatprep.mubr.bf16.mxu0 0
      %7645 = vmatmul.mubr.bf16.gmra.mrb[0].mxu0 %v7515
      %v7646 = vpop.f32.mrb[0].mxu0
      %v7647 = vadd.f32 0.0, %v7646
      %v7648 = vpop.f32.mrb[0].mxu0
      %v7649 = vpop.f32.mrb[0].mxu0
      %v7650 = vadd.f32 0.0, %v7649
      %v7651 = vpop.f32.mrb[0].mxu0
      %7652 = vmatprep.mubr.bf16.mxu0 0
      %7653 = vmatmul.mubr.bf16.gmra.mrb[0].mxu0 %v7518
      %v7654 = vpop.f32.mrb[0].mxu0
      %v7655 = vadd.f32 0.0, %v7654
      %v7656 = vpop.f32.mrb[0].mxu0
      %v7657 = vpop.f32.mrb[0].mxu0
      %v7658 = vadd.f32 0.0, %v7657
      %v7659 = vpop.f32.mrb[0].mxu0
      %7660 = vmatprep.mubr.bf16.mxu0 0
      %7661 = vmatmul.mubr.bf16.gmra.mrb[0].mxu0 %v7521
      %v7662 = vpop.f32.mrb[0].mxu0
      %v7663 = vadd.f32 0.0, %v7662
      %v7664 = vpop.f32.mrb[0].mxu0
      %v7665 = vpop.f32.mrb[0].mxu0
      %v7666 = vadd.f32 0.0, %v7665
      %v7667 = vpop.f32.mrb[0].mxu0
      %7668 = vmatprep.mubr.bf16.mxu0 0
      %7669 = vmatmul.mubr.bf16.gmra.mrb[0].mxu0 %v7524
      %v7670 = vpop.f32.mrb[0].mxu0
      %v7671 = vadd.f32 0.0, %v7670
      %v7672 = vpop.f32.mrb[0].mxu0
      %v7673 = vpop.f32.mrb[0].mxu0
      %v7674 = vadd.f32 0.0, %v7673
      %v7675 = vpop.f32.mrb[0].mxu0
      %7676 = vmatprep.mubr.bf16.mxu0 0
      %7677 = vmatmul.mubr.bf16.gmra.mrb[0].mxu0 %v7527
      %v7678 = vpop.f32.mrb[0].mxu0
      %v7679 = vadd.f32 0.0, %v7678
      %v7680 = vpop.f32.mrb[0].mxu0
      %v7681 = vpop.f32.mrb[0].mxu0
      %v7682 = vadd.f32 0.0, %v7681
      %v7683 = vpop.f32.mrb[0].mxu0
      %7684 = vmatprep.mubr.bf16.mxu0 0
      %7685 = vmatmul.mubr.bf16.gmra.mrb[0].mxu0 %v7530
      %v7686 = vpop.f32.mrb[0].mxu0
      %v7687 = vadd.f32 0.0, %v7686
      %v7688 = vpop.f32.mrb[0].mxu0
      %v7689 = vpop.f32.mrb[0].mxu0
      %v7690 = vadd.f32 0.0, %v7689
      %v7691 = vpop.f32.mrb[0].mxu0
      %7692 = vdwg.mxu0
      %v7693 = vpack.c.bf16 %v7570, %v7567
      %v7694 = vpack.c.bf16 %v7578, %v7575
      %v7695 = vpack.c.bf16 %v7586, %v7583
      %v7696 = vpack.c.bf16 %v7594, %v7591
      %v7697 = vpack.c.bf16 %v7602, %v7599
      %v7698 = vpack.c.bf16 %v7610, %v7607
      %v7699 = vpack.c.bf16 %v7618, %v7615
      %v7700 = vpack.c.bf16 %v7626, %v7623
      %v7701 = vpack.c.bf16 %v7634, %v7631
      %v7702 = vpack.c.bf16 %v7642, %v7639
      %v7703 = vpack.c.bf16 %v7650, %v7647
      %v7704 = vpack.c.bf16 %v7658, %v7655
      %v7705 = vpack.c.bf16 %v7666, %v7663
      %v7706 = vpack.c.bf16 %v7674, %v7671
      %v7707 = vpack.c.bf16 %v7682, %v7679
      %v7708 = vpack.c.bf16 %v7690, %v7687
      %s7709 = scalar_lea.vmem %s1, 256
      %v7710 = vld [vmem:[%s7709] sm:$0xf]
      %v7711 = vld [vmem:[%s7709 + $0x4] sm:$0xf]
      %v7712 = vld [vmem:[%s7709 + $0x8] sm:$0xf]
      %v7713 = vld [vmem:[%s7709 + $0xc] sm:$0xf]
      %v7714 = vld [vmem:[%s7709 + $0x10] sm:$0xf]
      %v7715 = vld [vmem:[%s7709 + $0x14] sm:$0xf]
      %v7716 = vld [vmem:[%s7709 + $0x18] sm:$0xf]
      %v7717 = vld [vmem:[%s7709 + $0x1c] sm:$0xf]
      %v7718 = vld [vmem:[%s7709 + $0x20] sm:$0xf]
      %v7719 = vld [vmem:[%s7709 + $0x24] sm:$0xf]
      %v7720 = vld [vmem:[%s7709 + $0x28] sm:$0xf]
      %v7721 = vld [vmem:[%s7709 + $0x2c] sm:$0xf]
      %v7722 = vld [vmem:[%s7709 + $0x30] sm:$0xf]
      %v7723 = vld [vmem:[%s7709 + $0x34] sm:$0xf]
      %v7724 = vld [vmem:[%s7709 + $0x38] sm:$0xf]
      %v7725 = vld [vmem:[%s7709 + $0x3c] sm:$0xf]
      %v7726 = vlaneseq
      %v7727 = vshrl.u32 %v7726, 7
      %v7728 = vsub.s32 3, %v7727
      %v7729 = vrot.slane %v434, %v7728
      %v7746 = vunpack.c.l.b16 %v7710
      %v7747 = vunpack.c.l.b16 %v7711
      %v7748 = vunpack.c.l.b16 %v7712
      %v7749 = vunpack.c.l.b16 %v7713
      %v7750 = vunpack.c.l.b16 %v7714
      %v7751 = vunpack.c.l.b16 %v7715
      %v7752 = vunpack.c.l.b16 %v7716
      %v7753 = vunpack.c.l.b16 %v7717
      %v7754 = vunpack.c.l.b16 %v7718
      %v7755 = vunpack.c.l.b16 %v7719
      %v7756 = vunpack.c.l.b16 %v7720
      %v7757 = vunpack.c.l.b16 %v7721
      %v7758 = vunpack.c.l.b16 %v7722
      %v7759 = vunpack.c.l.b16 %v7723
      %v7760 = vunpack.c.l.b16 %v7724
      %v7761 = vunpack.c.l.b16 %v7725
      %v7762 = vpack.c.b16 %v7747, %v7746
      %v7763 = vpack.c.b16 %v7749, %v7748
      %v7764 = vpack.c.b16 %v7751, %v7750
      %v7765 = vpack.c.b16 %v7753, %v7752
      %v7766 = vpack.c.b16 %v7755, %v7754
      %v7767 = vpack.c.b16 %v7757, %v7756
      %v7768 = vpack.c.b16 %v7759, %v7758
      %v7769 = vpack.c.b16 %v7761, %v7760
      %7778 = vmatprep.subr.bf16.mxu0 0
      %7779 = vmatpush1.bf16.msra.mxu0 %v7762
      %7780 = vmatprep.subr.bf16.mxu0 0
      %7781 = vmatpush1.bf16.msra.mxu0 %v7763
      %7782 = vmatprep.subr.bf16.mxu0 0
      %7783 = vmatpush1.bf16.msra.mxu0 %v7764
      %7784 = vmatprep.subr.bf16.mxu0 0
      %7785 = vmatpush1.bf16.msra.mxu0 %v7765
      %7786 = vmatprep.subr.bf16.mxu0 0
      %7787 = vmatpush1.bf16.msra.mxu0 %v7766
      %7788 = vmatprep.subr.bf16.mxu0 0
      %7789 = vmatpush1.bf16.msra.mxu0 %v7767
      %7790 = vmatprep.subr.bf16.mxu0 0
      %7791 = vmatpush1.bf16.msra.mxu0 %v7768
      %7792 = vmatprep.subr.bf16.mxu0 0
      %7793 = vmatpush1.bf16.msra.mxu0 %v7769
      %7794 = vmatprep.subr.bf16.mxu0 0
      %7795 = vmatpush1.bf16.msra.mxu0 0
      %7796 = vmatprep.subr.bf16.mxu0 0
      %7797 = vmatpush1.bf16.msra.mxu0 0
      %7798 = vmatprep.subr.bf16.mxu0 0
      %7799 = vmatpush1.bf16.msra.mxu0 0
      %7800 = vmatprep.subr.bf16.mxu0 0
      %7801 = vmatpush1.bf16.msra.mxu0 0
      %7802 = vmatprep.subr.bf16.mxu0 0
      %7803 = vmatpush1.bf16.msra.mxu0 0
      %7804 = vmatprep.subr.bf16.mxu0 0
      %7805 = vmatpush1.bf16.msra.mxu0 0
      %7806 = vmatprep.subr.bf16.mxu0 0
      %7807 = vmatpush1.bf16.msra.mxu0 0
      %7808 = vmatprep.subr.bf16.mxu0 0
      %7809 = vmatpush1.bf16.msra.mxu0 0
      %7810 = vmatprep.mubr.bf16.mxu0 0
      %7811 = vmatmul.mubr.bf16.gmra.mrb[0].mxu0 %v7693
      %v7812 = vpop.f32.mrb[0].mxu0
      %v7813 = vadd.f32 %v7729, %v7812
      %v7814 = vpop.f32.mrb[0].mxu0
      %v7815 = vpop.f32.mrb[0].mxu0
      %v7816 = vadd.f32 %v7729, %v7815
      %v7817 = vpop.f32.mrb[0].mxu0
      %7818 = vmatprep.mubr.bf16.mxu0 0
      %7819 = vmatmul.mubr.bf16.gmra.mrb[0].mxu0 %v7694
      %v7820 = vpop.f32.mrb[0].mxu0
      %v7821 = vadd.f32 %v7729, %v7820
      %v7822 = vpop.f32.mrb[0].mxu0
      %v7823 = vpop.f32.mrb[0].mxu0
      %v7824 = vadd.f32 %v7729, %v7823
      %v7825 = vpop.f32.mrb[0].mxu0
      %7826 = vmatprep.mubr.bf16.mxu0 0
      %7827 = vmatmul.mubr.bf16.gmra.mrb[0].mxu0 %v7695
      %v7828 = vpop.f32.mrb[0].mxu0
      %v7829 = vadd.f32 %v7729, %v7828
      %v7830 = vpop.f32.mrb[0].mxu0
      %v7831 = vpop.f32.mrb[0].mxu0
      %v7832 = vadd.f32 %v7729, %v7831
      %v7833 = vpop.f32.mrb[0].mxu0
      %7834 = vmatprep.mubr.bf16.mxu0 0
      %7835 = vmatmul.mubr.bf16.gmra.mrb[0].mxu0 %v7696
      %v7836 = vpop.f32.mrb[0].mxu0
      %v7837 = vadd.f32 %v7729, %v7836
      %v7838 = vpop.f32.mrb[0].mxu0
      %v7839 = vpop.f32.mrb[0].mxu0
      %v7840 = vadd.f32 %v7729, %v7839
      %v7841 = vpop.f32.mrb[0].mxu0
      %7842 = vmatprep.mubr.bf16.mxu0 0
      %7843 = vmatmul.mubr.bf16.gmra.mrb[0].mxu0 %v7697
      %v7844 = vpop.f32.mrb[0].mxu0
      %v7845 = vadd.f32 %v7729, %v7844
      %v7846 = vpop.f32.mrb[0].mxu0
      %v7847 = vpop.f32.mrb[0].mxu0
      %v7848 = vadd.f32 %v7729, %v7847
      %v7849 = vpop.f32.mrb[0].mxu0
      %7850 = vmatprep.mubr.bf16.mxu0 0
      %7851 = vmatmul.mubr.bf16.gmra.mrb[0].mxu0 %v7698
      %v7852 = vpop.f32.mrb[0].mxu0
      %v7853 = vadd.f32 %v7729, %v7852
      %v7854 = vpop.f32.mrb[0].mxu0
      %v7855 = vpop.f32.mrb[0].mxu0
      %v7856 = vadd.f32 %v7729, %v7855
      %v7857 = vpop.f32.mrb[0].mxu0
      %7858 = vmatprep.mubr.bf16.mxu0 0
      %7859 = vmatmul.mubr.bf16.gmra.mrb[0].mxu0 %v7699
      %v7860 = vpop.f32.mrb[0].mxu0
      %v7861 = vadd.f32 %v7729, %v7860
      %v7862 = vpop.f32.mrb[0].mxu0
      %v7863 = vpop.f32.mrb[0].mxu0
      %v7864 = vadd.f32 %v7729, %v7863
      %v7865 = vpop.f32.mrb[0].mxu0
      %7866 = vmatprep.mubr.bf16.mxu0 0
      %7867 = vmatmul.mubr.bf16.gmra.mrb[0].mxu0 %v7700
      %v7868 = vpop.f32.mrb[0].mxu0
      %v7869 = vadd.f32 %v7729, %v7868
      %v7870 = vpop.f32.mrb[0].mxu0
      %v7871 = vpop.f32.mrb[0].mxu0
      %v7872 = vadd.f32 %v7729, %v7871
      %v7873 = vpop.f32.mrb[0].mxu0
      %7874 = vmatprep.mubr.bf16.mxu0 0
      %7875 = vmatmul.mubr.bf16.gmra.mrb[0].mxu0 %v7701
      %v7876 = vpop.f32.mrb[0].mxu0
      %v7877 = vadd.f32 %v7729, %v7876
      %v7878 = vpop.f32.mrb[0].mxu0
      %v7879 = vpop.f32.mrb[0].mxu0
      %v7880 = vadd.f32 %v7729, %v7879
      %v7881 = vpop.f32.mrb[0].mxu0
      %7882 = vmatprep.mubr.bf16.mxu0 0
      %7883 = vmatmul.mubr.bf16.gmra.mrb[0].mxu0 %v7702
      %v7884 = vpop.f32.mrb[0].mxu0
      %v7885 = vadd.f32 %v7729, %v7884
      %v7886 = vpop.f32.mrb[0].mxu0
      %v7887 = vpop.f32.mrb[0].mxu0
      %v7888 = vadd.f32 %v7729, %v7887
      %v7889 = vpop.f32.mrb[0].mxu0
      %7890 = vmatprep.mubr.bf16.mxu0 0
      %7891 = vmatmul.mubr.bf16.gmra.mrb[0].mxu0 %v7703
      %v7892 = vpop.f32.mrb[0].mxu0
      %v7893 = vadd.f32 %v7729, %v7892
      %v7894 = vpop.f32.mrb[0].mxu0
      %v7895 = vpop.f32.mrb[0].mxu0
      %v7896 = vadd.f32 %v7729, %v7895
      %v7897 = vpop.f32.mrb[0].mxu0
      %7898 = vmatprep.mubr.bf16.mxu0 0
      %7899 = vmatmul.mubr.bf16.gmra.mrb[0].mxu0 %v7704
      %v7900 = vpop.f32.mrb[0].mxu0
      %v7901 = vadd.f32 %v7729, %v7900
      %v7902 = vpop.f32.mrb[0].mxu0
      %v7903 = vpop.f32.mrb[0].mxu0
      %v7904 = vadd.f32 %v7729, %v7903
      %v7905 = vpop.f32.mrb[0].mxu0
      %7906 = vmatprep.mubr.bf16.mxu0 0
      %7907 = vmatmul.mubr.bf16.gmra.mrb[0].mxu0 %v7705
      %v7908 = vpop.f32.mrb[0].mxu0
      %v7909 = vadd.f32 %v7729, %v7908
      %v7910 = vpop.f32.mrb[0].mxu0
      %v7911 = vpop.f32.mrb[0].mxu0
      %v7912 = vadd.f32 %v7729, %v7911
      %v7913 = vpop.f32.mrb[0].mxu0
      %7914 = vmatprep.mubr.bf16.mxu0 0
      %7915 = vmatmul.mubr.bf16.gmra.mrb[0].mxu0 %v7706
      %v7916 = vpop.f32.mrb[0].mxu0
      %v7917 = vadd.f32 %v7729, %v7916
      %v7918 = vpop.f32.mrb[0].mxu0
      %v7919 = vpop.f32.mrb[0].mxu0
      %v7920 = vadd.f32 %v7729, %v7919
      %v7921 = vpop.f32.mrb[0].mxu0
      %7922 = vmatprep.mubr.bf16.mxu0 0
      %7923 = vmatmul.mubr.bf16.gmra.mrb[0].mxu0 %v7707
      %v7924 = vpop.f32.mrb[0].mxu0
      %v7925 = vadd.f32 %v7729, %v7924
      %v7926 = vpop.f32.mrb[0].mxu0
      %v7927 = vpop.f32.mrb[0].mxu0
      %v7928 = vadd.f32 %v7729, %v7927
      %v7929 = vpop.f32.mrb[0].mxu0
      %7930 = vmatprep.mubr.bf16.mxu0 0
      %7931 = vmatmul.mubr.bf16.gmra.mrb[0].mxu0 %v7708
      %v7932 = vpop.f32.mrb[0].mxu0
      %v7933 = vadd.f32 %v7729, %v7932
      %v7934 = vpop.f32.mrb[0].mxu0
      %v7935 = vpop.f32.mrb[0].mxu0
      %v7936 = vadd.f32 %v7729, %v7935
      %v7937 = vpop.f32.mrb[0].mxu0
      %7938 = vdwg.mxu0
      %s7939 = scalar_lea.vmem %s1, 192
      %v7940 = vld [vmem:[%s7939] sm:$0xf]
      %v7941 = vld [vmem:[%s7939 + $0x4] sm:$0xf]
      %v7942 = vld [vmem:[%s7939 + $0x8] sm:$0xf]
      %v7943 = vld [vmem:[%s7939 + $0xc] sm:$0xf]
      %v7944 = vld [vmem:[%s7939 + $0x10] sm:$0xf]
      %v7945 = vld [vmem:[%s7939 + $0x14] sm:$0xf]
      %v7946 = vld [vmem:[%s7939 + $0x18] sm:$0xf]
      %v7947 = vld [vmem:[%s7939 + $0x1c] sm:$0xf]
      %v7948 = vld [vmem:[%s7939 + $0x20] sm:$0xf]
      %v7949 = vld [vmem:[%s7939 + $0x24] sm:$0xf]
      %v7950 = vld [vmem:[%s7939 + $0x28] sm:$0xf]
      %v7951 = vld [vmem:[%s7939 + $0x2c] sm:$0xf]
      %v7952 = vld [vmem:[%s7939 + $0x30] sm:$0xf]
      %v7953 = vld [vmem:[%s7939 + $0x34] sm:$0xf]
      %v7954 = vld [vmem:[%s7939 + $0x38] sm:$0xf]
      %v7955 = vld [vmem:[%s7939 + $0x3c] sm:$0xf]
      %v7972 = vunpack.c.l.b16 %v7940
      %v7973 = vunpack.c.l.b16 %v7941
      %v7974 = vunpack.c.l.b16 %v7942
      %v7975 = vunpack.c.l.b16 %v7943
      %v7976 = vunpack.c.l.b16 %v7944
      %v7977 = vunpack.c.l.b16 %v7945
      %v7978 = vunpack.c.l.b16 %v7946
      %v7979 = vunpack.c.l.b16 %v7947
      %v7980 = vunpack.c.l.b16 %v7948
      %v7981 = vunpack.c.l.b16 %v7949
      %v7982 = vunpack.c.l.b16 %v7950
      %v7983 = vunpack.c.l.b16 %v7951
      %v7984 = vunpack.c.l.b16 %v7952
      %v7985 = vunpack.c.l.b16 %v7953
      %v7986 = vunpack.c.l.b16 %v7954
      %v7987 = vunpack.c.l.b16 %v7955
      %v7988 = vpack.c.b16 %v7973, %v7972
      %v7989 = vpack.c.b16 %v7975, %v7974
      %v7990 = vpack.c.b16 %v7977, %v7976
      %v7991 = vpack.c.b16 %v7979, %v7978
      %v7992 = vpack.c.b16 %v7981, %v7980
      %v7993 = vpack.c.b16 %v7983, %v7982
      %v7994 = vpack.c.b16 %v7985, %v7984
      %v7995 = vpack.c.b16 %v7987, %v7986
      %8004 = vmatprep.subr.bf16.mxu0 0
      %8005 = vmatpush1.bf16.msra.mxu0 %v7988
      %8006 = vmatprep.subr.bf16.mxu0 0
      %8007 = vmatpush1.bf16.msra.mxu0 %v7989
      %8008 = vmatprep.subr.bf16.mxu0 0
      %8009 = vmatpush1.bf16.msra.mxu0 %v7990
      %8010 = vmatprep.subr.bf16.mxu0 0
      %8011 = vmatpush1.bf16.msra.mxu0 %v7991
      %8012 = vmatprep.subr.bf16.mxu0 0
      %8013 = vmatpush1.bf16.msra.mxu0 %v7992
      %8014 = vmatprep.subr.bf16.mxu0 0
      %8015 = vmatpush1.bf16.msra.mxu0 %v7993
      %8016 = vmatprep.subr.bf16.mxu0 0
      %8017 = vmatpush1.bf16.msra.mxu0 %v7994
      %8018 = vmatprep.subr.bf16.mxu0 0
      %8019 = vmatpush1.bf16.msra.mxu0 %v7995
      %8020 = vmatprep.subr.bf16.mxu0 0
      %8021 = vmatpush1.bf16.msra.mxu0 0
      %8022 = vmatprep.subr.bf16.mxu0 0
      %8023 = vmatpush1.bf16.msra.mxu0 0
      %8024 = vmatprep.subr.bf16.mxu0 0
      %8025 = vmatpush1.bf16.msra.mxu0 0
      %8026 = vmatprep.subr.bf16.mxu0 0
      %8027 = vmatpush1.bf16.msra.mxu0 0
      %8028 = vmatprep.subr.bf16.mxu0 0
      %8029 = vmatpush1.bf16.msra.mxu0 0
      %8030 = vmatprep.subr.bf16.mxu0 0
      %8031 = vmatpush1.bf16.msra.mxu0 0
      %8032 = vmatprep.subr.bf16.mxu0 0
      %8033 = vmatpush1.bf16.msra.mxu0 0
      %8034 = vmatprep.subr.bf16.mxu0 0
      %8035 = vmatpush1.bf16.msra.mxu0 0
      %8036 = vmatprep.mubr.bf16.mxu0 0
      %8037 = vmatmul.mubr.bf16.gmra.mrb[0].mxu0 %v7693
      %v8038 = vpop.f32.mrb[0].mxu0
      %v8039 = vadd.f32 0.0, %v8038
      %v8040 = vpop.f32.mrb[0].mxu0
      %v8041 = vpop.f32.mrb[0].mxu0
      %v8042 = vadd.f32 0.0, %v8041
      %v8043 = vpop.f32.mrb[0].mxu0
      %8044 = vmatprep.mubr.bf16.mxu0 0
      %8045 = vmatmul.mubr.bf16.gmra.mrb[0].mxu0 %v7694
      %v8046 = vpop.f32.mrb[0].mxu0
      %v8047 = vadd.f32 0.0, %v8046
      %v8048 = vpop.f32.mrb[0].mxu0
      %v8049 = vpop.f32.mrb[0].mxu0
      %v8050 = vadd.f32 0.0, %v8049
      %v8051 = vpop.f32.mrb[0].mxu0
      %8052 = vmatprep.mubr.bf16.mxu0 0
      %8053 = vmatmul.mubr.bf16.gmra.mrb[0].mxu0 %v7695
      %v8054 = vpop.f32.mrb[0].mxu0
      %v8055 = vadd.f32 0.0, %v8054
      %v8056 = vpop.f32.mrb[0].mxu0
      %v8057 = vpop.f32.mrb[0].mxu0
      %v8058 = vadd.f32 0.0, %v8057
      %v8059 = vpop.f32.mrb[0].mxu0
      %8060 = vmatprep.mubr.bf16.mxu0 0
      %8061 = vmatmul.mubr.bf16.gmra.mrb[0].mxu0 %v7696
      %v8062 = vpop.f32.mrb[0].mxu0
      %v8063 = vadd.f32 0.0, %v8062
      %v8064 = vpop.f32.mrb[0].mxu0
      %v8065 = vpop.f32.mrb[0].mxu0
      %v8066 = vadd.f32 0.0, %v8065
      %v8067 = vpop.f32.mrb[0].mxu0
      %8068 = vmatprep.mubr.bf16.mxu0 0
      %8069 = vmatmul.mubr.bf16.gmra.mrb[0].mxu0 %v7697
      %v8070 = vpop.f32.mrb[0].mxu0
      %v8071 = vadd.f32 0.0, %v8070
      %v8072 = vpop.f32.mrb[0].mxu0
      %v8073 = vpop.f32.mrb[0].mxu0
      %v8074 = vadd.f32 0.0, %v8073
      %v8075 = vpop.f32.mrb[0].mxu0
      %8076 = vmatprep.mubr.bf16.mxu0 0
      %8077 = vmatmul.mubr.bf16.gmra.mrb[0].mxu0 %v7698
      %v8078 = vpop.f32.mrb[0].mxu0
      %v8079 = vadd.f32 0.0, %v8078
      %v8080 = vpop.f32.mrb[0].mxu0
      %v8081 = vpop.f32.mrb[0].mxu0
      %v8082 = vadd.f32 0.0, %v8081
      %v8083 = vpop.f32.mrb[0].mxu0
      %8084 = vmatprep.mubr.bf16.mxu0 0
      %8085 = vmatmul.mubr.bf16.gmra.mrb[0].mxu0 %v7699
      %v8086 = vpop.f32.mrb[0].mxu0
      %v8087 = vadd.f32 0.0, %v8086
      %v8088 = vpop.f32.mrb[0].mxu0
      %v8089 = vpop.f32.mrb[0].mxu0
      %v8090 = vadd.f32 0.0, %v8089
      %v8091 = vpop.f32.mrb[0].mxu0
      %8092 = vmatprep.mubr.bf16.mxu0 0
      %8093 = vmatmul.mubr.bf16.gmra.mrb[0].mxu0 %v7700
      %v8094 = vpop.f32.mrb[0].mxu0
      %v8095 = vadd.f32 0.0, %v8094
      %v8096 = vpop.f32.mrb[0].mxu0
      %v8097 = vpop.f32.mrb[0].mxu0
      %v8098 = vadd.f32 0.0, %v8097
      %v8099 = vpop.f32.mrb[0].mxu0
      %8100 = vmatprep.mubr.bf16.mxu0 0
      %8101 = vmatmul.mubr.bf16.gmra.mrb[0].mxu0 %v7701
      %v8102 = vpop.f32.mrb[0].mxu0
      %v8103 = vadd.f32 0.0, %v8102
      %v8104 = vpop.f32.mrb[0].mxu0
      %v8105 = vpop.f32.mrb[0].mxu0
      %v8106 = vadd.f32 0.0, %v8105
      %v8107 = vpop.f32.mrb[0].mxu0
      %8108 = vmatprep.mubr.bf16.mxu0 0
      %8109 = vmatmul.mubr.bf16.gmra.mrb[0].mxu0 %v7702
      %v8110 = vpop.f32.mrb[0].mxu0
      %v8111 = vadd.f32 0.0, %v8110
      %v8112 = vpop.f32.mrb[0].mxu0
      %v8113 = vpop.f32.mrb[0].mxu0
      %v8114 = vadd.f32 0.0, %v8113
      %v8115 = vpop.f32.mrb[0].mxu0
      %8116 = vmatprep.mubr.bf16.mxu0 0
      %8117 = vmatmul.mubr.bf16.gmra.mrb[0].mxu0 %v7703
      %v8118 = vpop.f32.mrb[0].mxu0
      %v8119 = vadd.f32 0.0, %v8118
      %v8120 = vpop.f32.mrb[0].mxu0
      %v8121 = vpop.f32.mrb[0].mxu0
      %v8122 = vadd.f32 0.0, %v8121
      %v8123 = vpop.f32.mrb[0].mxu0
      %8124 = vmatprep.mubr.bf16.mxu0 0
      %8125 = vmatmul.mubr.bf16.gmra.mrb[0].mxu0 %v7704
      %v8126 = vpop.f32.mrb[0].mxu0
      %v8127 = vadd.f32 0.0, %v8126
      %v8128 = vpop.f32.mrb[0].mxu0
      %v8129 = vpop.f32.mrb[0].mxu0
      %v8130 = vadd.f32 0.0, %v8129
      %v8131 = vpop.f32.mrb[0].mxu0
      %8132 = vmatprep.mubr.bf16.mxu0 0
      %8133 = vmatmul.mubr.bf16.gmra.mrb[0].mxu0 %v7705
      %v8134 = vpop.f32.mrb[0].mxu0
      %v8135 = vadd.f32 0.0, %v8134
      %v8136 = vpop.f32.mrb[0].mxu0
      %v8137 = vpop.f32.mrb[0].mxu0
      %v8138 = vadd.f32 0.0, %v8137
      %v8139 = vpop.f32.mrb[0].mxu0
      %8140 = vmatprep.mubr.bf16.mxu0 0
      %8141 = vmatmul.mubr.bf16.gmra.mrb[0].mxu0 %v7706
      %v8142 = vpop.f32.mrb[0].mxu0
      %v8143 = vadd.f32 0.0, %v8142
      %v8144 = vpop.f32.mrb[0].mxu0
      %v8145 = vpop.f32.mrb[0].mxu0
      %v8146 = vadd.f32 0.0, %v8145
      %v8147 = vpop.f32.mrb[0].mxu0
      %8148 = vmatprep.mubr.bf16.mxu0 0
      %8149 = vmatmul.mubr.bf16.gmra.mrb[0].mxu0 %v7707
      %v8150 = vpop.f32.mrb[0].mxu0
      %v8151 = vadd.f32 0.0, %v8150
      %v8152 = vpop.f32.mrb[0].mxu0
      %v8153 = vpop.f32.mrb[0].mxu0
      %v8154 = vadd.f32 0.0, %v8153
      %v8155 = vpop.f32.mrb[0].mxu0
      %8156 = vmatprep.mubr.bf16.mxu0 0
      %8157 = vmatmul.mubr.bf16.gmra.mrb[0].mxu0 %v7708
      %v8158 = vpop.f32.mrb[0].mxu0
      %v8159 = vadd.f32 0.0, %v8158
      %v8160 = vpop.f32.mrb[0].mxu0
      %v8161 = vpop.f32.mrb[0].mxu0
      %v8162 = vadd.f32 0.0, %v8161
      %v8163 = vpop.f32.mrb[0].mxu0
      %8164 = vdwg.mxu0
      %v8165 = vrot.slane %v8039, 7
      %v8166 = vrot.slane %v8042, 7
      %v8167 = vrot.slane %v8047, 7
      %v8168 = vrot.slane %v8050, 7
      %v8169 = vrot.slane %v8055, 7
      %v8170 = vrot.slane %v8058, 7
      %v8171 = vrot.slane %v8063, 7
      %v8172 = vrot.slane %v8066, 7
      %v8173 = vrot.slane %v8071, 7
      %v8174 = vrot.slane %v8074, 7
      %v8175 = vrot.slane %v8079, 7
      %v8176 = vrot.slane %v8082, 7
      %v8177 = vrot.slane %v8087, 7
      %v8178 = vrot.slane %v8090, 7
      %v8179 = vrot.slane %v8095, 7
      %v8180 = vrot.slane %v8098, 7
      %v8181 = vrot.slane %v8103, 7
      %v8182 = vrot.slane %v8106, 7
      %v8183 = vrot.slane %v8111, 7
      %v8184 = vrot.slane %v8114, 7
      %v8185 = vrot.slane %v8119, 7
      %v8186 = vrot.slane %v8122, 7
      %v8187 = vrot.slane %v8127, 7
      %v8188 = vrot.slane %v8130, 7
      %v8189 = vrot.slane %v8135, 7
      %v8190 = vrot.slane %v8138, 7
      %v8191 = vrot.slane %v8143, 7
      %v8192 = vrot.slane %v8146, 7
      %v8193 = vrot.slane %v8151, 7
      %v8194 = vrot.slane %v8154, 7
      %v8195 = vrot.slane %v8159, 7
      %v8196 = vrot.slane %v8162, 7
      %v8197 = vsel %vm977, %v8195, %v8196
      %v8198 = vsel %vm977, %v8194, %v8195
      %v8199 = vsel %vm977, %v8193, %v8194
      %v8200 = vsel %vm977, %v8192, %v8193
      %v8201 = vsel %vm977, %v8191, %v8192
      %v8202 = vsel %vm977, %v8190, %v8191
      %v8203 = vsel %vm977, %v8189, %v8190
      %v8204 = vsel %vm977, %v8188, %v8189
      %v8205 = vsel %vm977, %v8187, %v8188
      %v8206 = vsel %vm977, %v8186, %v8187
      %v8207 = vsel %vm977, %v8185, %v8186
      %v8208 = vsel %vm977, %v8184, %v8185
      %v8209 = vsel %vm977, %v8183, %v8184
      %v8210 = vsel %vm977, %v8182, %v8183
      %v8211 = vsel %vm977, %v8181, %v8182
      %v8212 = vsel %vm977, %v8180, %v8181
      %v8213 = vsel %vm977, %v8179, %v8180
      %v8214 = vsel %vm977, %v8178, %v8179
      %v8215 = vsel %vm977, %v8177, %v8178
      %v8216 = vsel %vm977, %v8176, %v8177
      %v8217 = vsel %vm977, %v8175, %v8176
      %v8218 = vsel %vm977, %v8174, %v8175
      %v8219 = vsel %vm977, %v8173, %v8174
      %v8220 = vsel %vm977, %v8172, %v8173
      %v8221 = vsel %vm977, %v8171, %v8172
      %v8222 = vsel %vm977, %v8170, %v8171
      %v8223 = vsel %vm977, %v8169, %v8170
      %v8224 = vsel %vm977, %v8168, %v8169
      %v8225 = vsel %vm977, %v8167, %v8168
      %v8226 = vsel %vm977, %v8166, %v8167
      %v8227 = vsel %vm977, %v8165, %v8166
      %v8228 = vsel %vm977, %v8196, %v8165
      %v8229 = vmul.f32 %v1012, %v8228
      %v8230 = vmul.f32 %v1012, %v8227
      %v8231 = vmul.f32 %v1012, %v8226
      %v8232 = vmul.f32 %v1012, %v8225
      %v8233 = vmul.f32 %v1012, %v8224
      %v8234 = vmul.f32 %v1012, %v8223
      %v8235 = vmul.f32 %v1012, %v8222
      %v8236 = vmul.f32 %v1012, %v8221
      %v8237 = vmul.f32 %v1012, %v8220
      %v8238 = vmul.f32 %v1012, %v8219
      %v8239 = vmul.f32 %v1012, %v8218
      %v8240 = vmul.f32 %v1012, %v8217
      %v8241 = vmul.f32 %v1012, %v8216
      %v8242 = vmul.f32 %v1012, %v8215
      %v8243 = vmul.f32 %v1012, %v8214
      %v8244 = vmul.f32 %v1012, %v8213
      %v8245 = vmul.f32 %v1012, %v8212
      %v8246 = vmul.f32 %v1012, %v8211
      %v8247 = vmul.f32 %v1012, %v8210
      %v8248 = vmul.f32 %v1012, %v8209
      %v8249 = vmul.f32 %v1012, %v8208
      %v8250 = vmul.f32 %v1012, %v8207
      %v8251 = vmul.f32 %v1012, %v8206
      %v8252 = vmul.f32 %v1012, %v8205
      %v8253 = vmul.f32 %v1012, %v8204
      %v8254 = vmul.f32 %v1012, %v8203
      %v8255 = vmul.f32 %v1012, %v8202
      %v8256 = vmul.f32 %v1012, %v8201
      %v8257 = vmul.f32 %v1012, %v8200
      %v8258 = vmul.f32 %v1012, %v8199
      %v8259 = vmul.f32 %v1012, %v8198
      %v8260 = vmul.f32 %v1012, %v8197
      %v8261 = vrot.slane %v8039, 1
      %v8262 = vrot.slane %v8042, 1
      %v8263 = vrot.slane %v8047, 1
      %v8264 = vrot.slane %v8050, 1
      %v8265 = vrot.slane %v8055, 1
      %v8266 = vrot.slane %v8058, 1
      %v8267 = vrot.slane %v8063, 1
      %v8268 = vrot.slane %v8066, 1
      %v8269 = vrot.slane %v8071, 1
      %v8270 = vrot.slane %v8074, 1
      %v8271 = vrot.slane %v8079, 1
      %v8272 = vrot.slane %v8082, 1
      %v8273 = vrot.slane %v8087, 1
      %v8274 = vrot.slane %v8090, 1
      %v8275 = vrot.slane %v8095, 1
      %v8276 = vrot.slane %v8098, 1
      %v8277 = vrot.slane %v8103, 1
      %v8278 = vrot.slane %v8106, 1
      %v8279 = vrot.slane %v8111, 1
      %v8280 = vrot.slane %v8114, 1
      %v8281 = vrot.slane %v8119, 1
      %v8282 = vrot.slane %v8122, 1
      %v8283 = vrot.slane %v8127, 1
      %v8284 = vrot.slane %v8130, 1
      %v8285 = vrot.slane %v8135, 1
      %v8286 = vrot.slane %v8138, 1
      %v8287 = vrot.slane %v8143, 1
      %v8288 = vrot.slane %v8146, 1
      %v8289 = vrot.slane %v8151, 1
      %v8290 = vrot.slane %v8154, 1
      %v8291 = vrot.slane %v8159, 1
      %v8292 = vrot.slane %v8162, 1
      %v8293 = vsel %vm1079, %v8291, %v8292
      %v8294 = vsel %vm1079, %v8290, %v8291
      %v8295 = vsel %vm1079, %v8289, %v8290
      %v8296 = vsel %vm1079, %v8288, %v8289
      %v8297 = vsel %vm1079, %v8287, %v8288
      %v8298 = vsel %vm1079, %v8286, %v8287
      %v8299 = vsel %vm1079, %v8285, %v8286
      %v8300 = vsel %vm1079, %v8284, %v8285
      %v8301 = vsel %vm1079, %v8283, %v8284
      %v8302 = vsel %vm1079, %v8282, %v8283
      %v8303 = vsel %vm1079, %v8281, %v8282
      %v8304 = vsel %vm1079, %v8280, %v8281
      %v8305 = vsel %vm1079, %v8279, %v8280
      %v8306 = vsel %vm1079, %v8278, %v8279
      %v8307 = vsel %vm1079, %v8277, %v8278
      %v8308 = vsel %vm1079, %v8276, %v8277
      %v8309 = vsel %vm1079, %v8275, %v8276
      %v8310 = vsel %vm1079, %v8274, %v8275
      %v8311 = vsel %vm1079, %v8273, %v8274
      %v8312 = vsel %vm1079, %v8272, %v8273
      %v8313 = vsel %vm1079, %v8271, %v8272
      %v8314 = vsel %vm1079, %v8270, %v8271
      %v8315 = vsel %vm1079, %v8269, %v8270
      %v8316 = vsel %vm1079, %v8268, %v8269
      %v8317 = vsel %vm1079, %v8267, %v8268
      %v8318 = vsel %vm1079, %v8266, %v8267
      %v8319 = vsel %vm1079, %v8265, %v8266
      %v8320 = vsel %vm1079, %v8264, %v8265
      %v8321 = vsel %vm1079, %v8263, %v8264
      %v8322 = vsel %vm1079, %v8262, %v8263
      %v8323 = vsel %vm1079, %v8261, %v8262
      %v8324 = vsel %vm1079, %v8292, %v8261
      %v8325 = vmul.f32 %v1114, %v8323
      %v8326 = vmul.f32 %v1114, %v8322
      %v8327 = vmul.f32 %v1114, %v8321
      %v8328 = vmul.f32 %v1114, %v8320
      %v8329 = vmul.f32 %v1114, %v8319
      %v8330 = vmul.f32 %v1114, %v8318
      %v8331 = vmul.f32 %v1114, %v8317
      %v8332 = vmul.f32 %v1114, %v8316
      %v8333 = vmul.f32 %v1114, %v8315
      %v8334 = vmul.f32 %v1114, %v8314
      %v8335 = vmul.f32 %v1114, %v8313
      %v8336 = vmul.f32 %v1114, %v8312
      %v8337 = vmul.f32 %v1114, %v8311
      %v8338 = vmul.f32 %v1114, %v8310
      %v8339 = vmul.f32 %v1114, %v8309
      %v8340 = vmul.f32 %v1114, %v8308
      %v8341 = vmul.f32 %v1114, %v8307
      %v8342 = vmul.f32 %v1114, %v8306
      %v8343 = vmul.f32 %v1114, %v8305
      %v8344 = vmul.f32 %v1114, %v8304
      %v8345 = vmul.f32 %v1114, %v8303
      %v8346 = vmul.f32 %v1114, %v8302
      %v8347 = vmul.f32 %v1114, %v8301
      %v8348 = vmul.f32 %v1114, %v8300
      %v8349 = vmul.f32 %v1114, %v8299
      %v8350 = vmul.f32 %v1114, %v8298
      %v8351 = vmul.f32 %v1114, %v8297
      %v8352 = vmul.f32 %v1114, %v8296
      %v8353 = vmul.f32 %v1114, %v8295
      %v8354 = vmul.f32 %v1114, %v8294
      %v8355 = vmul.f32 %v1114, %v8293
      %v8356 = vmul.f32 %v1114, %v8324
      %v8357 = vadd.f32 %v8229, %v8325
      %v8358 = vadd.f32 %v8230, %v8326
      %v8359 = vadd.f32 %v8231, %v8327
      %v8360 = vadd.f32 %v8232, %v8328
      %v8361 = vadd.f32 %v8233, %v8329
      %v8362 = vadd.f32 %v8234, %v8330
      %v8363 = vadd.f32 %v8235, %v8331
      %v8364 = vadd.f32 %v8236, %v8332
      %v8365 = vadd.f32 %v8237, %v8333
      %v8366 = vadd.f32 %v8238, %v8334
      %v8367 = vadd.f32 %v8239, %v8335
      %v8368 = vadd.f32 %v8240, %v8336
      %v8369 = vadd.f32 %v8241, %v8337
      %v8370 = vadd.f32 %v8242, %v8338
      %v8371 = vadd.f32 %v8243, %v8339
      %v8372 = vadd.f32 %v8244, %v8340
      %v8373 = vadd.f32 %v8245, %v8341
      %v8374 = vadd.f32 %v8246, %v8342
      %v8375 = vadd.f32 %v8247, %v8343
      %v8376 = vadd.f32 %v8248, %v8344
      %v8377 = vadd.f32 %v8249, %v8345
      %v8378 = vadd.f32 %v8250, %v8346
      %v8379 = vadd.f32 %v8251, %v8347
      %v8380 = vadd.f32 %v8252, %v8348
      %v8381 = vadd.f32 %v8253, %v8349
      %v8382 = vadd.f32 %v8254, %v8350
      %v8383 = vadd.f32 %v8255, %v8351
      %v8384 = vadd.f32 %v8256, %v8352
      %v8385 = vadd.f32 %v8257, %v8353
      %v8386 = vadd.f32 %v8258, %v8354
      %v8387 = vadd.f32 %v8259, %v8355
      %v8388 = vadd.f32 %v8260, %v8356
      %v8389 = vmul.f32 %v1183, %v8357
      %v8390 = vmul.f32 %v1188, %v8358
      %v8391 = vmul.f32 %v1193, %v8359
      %v8392 = vmul.f32 %v1198, %v8360
      %v8393 = vmul.f32 %v1203, %v8361
      %v8394 = vmul.f32 %v1208, %v8362
      %v8395 = vmul.f32 %v1213, %v8363
      %v8396 = vmul.f32 %v1218, %v8364
      %v8397 = vmul.f32 %v1223, %v8365
      %v8398 = vmul.f32 %v1228, %v8366
      %v8399 = vmul.f32 %v1233, %v8367
      %v8400 = vmul.f32 %v1238, %v8368
      %v8401 = vmul.f32 %v1243, %v8369
      %v8402 = vmul.f32 %v1248, %v8370
      %v8403 = vmul.f32 %v1253, %v8371
      %v8404 = vmul.f32 %v1258, %v8372
      %v8405 = vmul.f32 %v1263, %v8373
      %v8406 = vmul.f32 %v1268, %v8374
      %v8407 = vmul.f32 %v1273, %v8375
      %v8408 = vmul.f32 %v1278, %v8376
      %v8409 = vmul.f32 %v1283, %v8377
      %v8410 = vmul.f32 %v1288, %v8378
      %v8411 = vmul.f32 %v1293, %v8379
      %v8412 = vmul.f32 %v1298, %v8380
      %v8413 = vmul.f32 %v1303, %v8381
      %v8414 = vmul.f32 %v1308, %v8382
      %v8415 = vmul.f32 %v1313, %v8383
      %v8416 = vmul.f32 %v1318, %v8384
      %v8417 = vmul.f32 %v1323, %v8385
      %v8418 = vmul.f32 %v1328, %v8386
      %v8419 = vmul.f32 %v1333, %v8387
      %v8420 = vmul.f32 %v1338, %v8388
      %v8421 = vadd.f32 %v7813, %v8389
      %v8422 = vadd.f32 %v7816, %v8390
      %v8423 = vadd.f32 %v7821, %v8391
      %v8424 = vadd.f32 %v7824, %v8392
      %v8425 = vadd.f32 %v7829, %v8393
      %v8426 = vadd.f32 %v7832, %v8394
      %v8427 = vadd.f32 %v7837, %v8395
      %v8428 = vadd.f32 %v7840, %v8396
      %v8429 = vadd.f32 %v7845, %v8397
      %v8430 = vadd.f32 %v7848, %v8398
      %v8431 = vadd.f32 %v7853, %v8399
      %v8432 = vadd.f32 %v7856, %v8400
      %v8433 = vadd.f32 %v7861, %v8401
      %v8434 = vadd.f32 %v7864, %v8402
      %v8435 = vadd.f32 %v7869, %v8403
      %v8436 = vadd.f32 %v7872, %v8404
      %v8437 = vadd.f32 %v7877, %v8405
      %v8438 = vadd.f32 %v7880, %v8406
      %v8439 = vadd.f32 %v7885, %v8407
      %v8440 = vadd.f32 %v7888, %v8408
      %v8441 = vadd.f32 %v7893, %v8409
      %v8442 = vadd.f32 %v7896, %v8410
      %v8443 = vadd.f32 %v7901, %v8411
      %v8444 = vadd.f32 %v7904, %v8412
      %v8445 = vadd.f32 %v7909, %v8413
      %v8446 = vadd.f32 %v7912, %v8414
      %v8447 = vadd.f32 %v7917, %v8415
      %v8448 = vadd.f32 %v7920, %v8416
      %v8449 = vadd.f32 %v7925, %v8417
      %v8450 = vadd.f32 %v7928, %v8418
      %v8451 = vadd.f32 %v7933, %v8419
      %v8452 = vadd.f32 %v7936, %v8420
      %s8453 = scalar_lea.vmem %s1, 320
      %v8454 = vld [vmem:[%s8453] sm:$0xf]
      %v8455 = vld [vmem:[%s8453 + $0x4] sm:$0xf]
      %v8456 = vld [vmem:[%s8453 + $0x8] sm:$0xf]
      %v8457 = vld [vmem:[%s8453 + $0xc] sm:$0xf]
      %v8458 = vld [vmem:[%s8453 + $0x10] sm:$0xf]
      %v8459 = vld [vmem:[%s8453 + $0x14] sm:$0xf]
      %v8460 = vld [vmem:[%s8453 + $0x18] sm:$0xf]
      %v8461 = vld [vmem:[%s8453 + $0x1c] sm:$0xf]
      %v8462 = vld [vmem:[%s8453 + $0x20] sm:$0xf]
      %v8463 = vld [vmem:[%s8453 + $0x24] sm:$0xf]
      %v8464 = vld [vmem:[%s8453 + $0x28] sm:$0xf]
      %v8465 = vld [vmem:[%s8453 + $0x2c] sm:$0xf]
      %v8466 = vld [vmem:[%s8453 + $0x30] sm:$0xf]
      %v8467 = vld [vmem:[%s8453 + $0x34] sm:$0xf]
      %v8468 = vld [vmem:[%s8453 + $0x38] sm:$0xf]
      %v8469 = vld [vmem:[%s8453 + $0x3c] sm:$0xf]
      %v8486 = vunpack.c.l.b16 %v8454
      %v8487 = vunpack.c.l.b16 %v8455
      %v8488 = vunpack.c.l.b16 %v8456
      %v8489 = vunpack.c.l.b16 %v8457
      %v8490 = vunpack.c.l.b16 %v8458
      %v8491 = vunpack.c.l.b16 %v8459
      %v8492 = vunpack.c.l.b16 %v8460
      %v8493 = vunpack.c.l.b16 %v8461
      %v8494 = vunpack.c.l.b16 %v8462
      %v8495 = vunpack.c.l.b16 %v8463
      %v8496 = vunpack.c.l.b16 %v8464
      %v8497 = vunpack.c.l.b16 %v8465
      %v8498 = vunpack.c.l.b16 %v8466
      %v8499 = vunpack.c.l.b16 %v8467
      %v8500 = vunpack.c.l.b16 %v8468
      %v8501 = vunpack.c.l.b16 %v8469
      %v8502 = vpack.c.b16 %v8487, %v8486
      %v8503 = vpack.c.b16 %v8489, %v8488
      %v8504 = vpack.c.b16 %v8491, %v8490
      %v8505 = vpack.c.b16 %v8493, %v8492
      %v8506 = vpack.c.b16 %v8495, %v8494
      %v8507 = vpack.c.b16 %v8497, %v8496
      %v8508 = vpack.c.b16 %v8499, %v8498
      %v8509 = vpack.c.b16 %v8501, %v8500
      %8518 = vmatprep.subr.bf16.mxu0 0
      %8519 = vmatpush1.bf16.msra.mxu0 %v8502
      %8520 = vmatprep.subr.bf16.mxu0 0
      %8521 = vmatpush1.bf16.msra.mxu0 %v8503
      %8522 = vmatprep.subr.bf16.mxu0 0
      %8523 = vmatpush1.bf16.msra.mxu0 %v8504
      %8524 = vmatprep.subr.bf16.mxu0 0
      %8525 = vmatpush1.bf16.msra.mxu0 %v8505
      %8526 = vmatprep.subr.bf16.mxu0 0
      %8527 = vmatpush1.bf16.msra.mxu0 %v8506
      %8528 = vmatprep.subr.bf16.mxu0 0
      %8529 = vmatpush1.bf16.msra.mxu0 %v8507
      %8530 = vmatprep.subr.bf16.mxu0 0
      %8531 = vmatpush1.bf16.msra.mxu0 %v8508
      %8532 = vmatprep.subr.bf16.mxu0 0
      %8533 = vmatpush1.bf16.msra.mxu0 %v8509
      %8534 = vmatprep.subr.bf16.mxu0 0
      %8535 = vmatpush1.bf16.msra.mxu0 0
      %8536 = vmatprep.subr.bf16.mxu0 0
      %8537 = vmatpush1.bf16.msra.mxu0 0
      %8538 = vmatprep.subr.bf16.mxu0 0
      %8539 = vmatpush1.bf16.msra.mxu0 0
      %8540 = vmatprep.subr.bf16.mxu0 0
      %8541 = vmatpush1.bf16.msra.mxu0 0
      %8542 = vmatprep.subr.bf16.mxu0 0
      %8543 = vmatpush1.bf16.msra.mxu0 0
      %8544 = vmatprep.subr.bf16.mxu0 0
      %8545 = vmatpush1.bf16.msra.mxu0 0
      %8546 = vmatprep.subr.bf16.mxu0 0
      %8547 = vmatpush1.bf16.msra.mxu0 0
      %8548 = vmatprep.subr.bf16.mxu0 0
      %8549 = vmatpush1.bf16.msra.mxu0 0
      %8550 = vmatprep.mubr.bf16.mxu0 0
      %8551 = vmatmul.mubr.bf16.gmra.mrb[0].mxu0 %v7693
      %v8552 = vpop.f32.mrb[0].mxu0
      %v8553 = vadd.f32 0.0, %v8552
      %v8554 = vpop.f32.mrb[0].mxu0
      %v8555 = vpop.f32.mrb[0].mxu0
      %v8556 = vadd.f32 0.0, %v8555
      %v8557 = vpop.f32.mrb[0].mxu0
      %8558 = vmatprep.mubr.bf16.mxu0 0
      %8559 = vmatmul.mubr.bf16.gmra.mrb[0].mxu0 %v7694
      %v8560 = vpop.f32.mrb[0].mxu0
      %v8561 = vadd.f32 0.0, %v8560
      %v8562 = vpop.f32.mrb[0].mxu0
      %v8563 = vpop.f32.mrb[0].mxu0
      %v8564 = vadd.f32 0.0, %v8563
      %v8565 = vpop.f32.mrb[0].mxu0
      %8566 = vmatprep.mubr.bf16.mxu0 0
      %8567 = vmatmul.mubr.bf16.gmra.mrb[0].mxu0 %v7695
      %v8568 = vpop.f32.mrb[0].mxu0
      %v8569 = vadd.f32 0.0, %v8568
      %v8570 = vpop.f32.mrb[0].mxu0
      %v8571 = vpop.f32.mrb[0].mxu0
      %v8572 = vadd.f32 0.0, %v8571
      %v8573 = vpop.f32.mrb[0].mxu0
      %8574 = vmatprep.mubr.bf16.mxu0 0
      %8575 = vmatmul.mubr.bf16.gmra.mrb[0].mxu0 %v7696
      %v8576 = vpop.f32.mrb[0].mxu0
      %v8577 = vadd.f32 0.0, %v8576
      %v8578 = vpop.f32.mrb[0].mxu0
      %v8579 = vpop.f32.mrb[0].mxu0
      %v8580 = vadd.f32 0.0, %v8579
      %v8581 = vpop.f32.mrb[0].mxu0
      %8582 = vmatprep.mubr.bf16.mxu0 0
      %8583 = vmatmul.mubr.bf16.gmra.mrb[0].mxu0 %v7697
      %v8584 = vpop.f32.mrb[0].mxu0
      %v8585 = vadd.f32 0.0, %v8584
      %v8586 = vpop.f32.mrb[0].mxu0
      %v8587 = vpop.f32.mrb[0].mxu0
      %v8588 = vadd.f32 0.0, %v8587
      %v8589 = vpop.f32.mrb[0].mxu0
      %8590 = vmatprep.mubr.bf16.mxu0 0
      %8591 = vmatmul.mubr.bf16.gmra.mrb[0].mxu0 %v7698
      %v8592 = vpop.f32.mrb[0].mxu0
      %v8593 = vadd.f32 0.0, %v8592
      %v8594 = vpop.f32.mrb[0].mxu0
      %v8595 = vpop.f32.mrb[0].mxu0
      %v8596 = vadd.f32 0.0, %v8595
      %v8597 = vpop.f32.mrb[0].mxu0
      %8598 = vmatprep.mubr.bf16.mxu0 0
      %8599 = vmatmul.mubr.bf16.gmra.mrb[0].mxu0 %v7699
      %v8600 = vpop.f32.mrb[0].mxu0
      %v8601 = vadd.f32 0.0, %v8600
      %v8602 = vpop.f32.mrb[0].mxu0
      %v8603 = vpop.f32.mrb[0].mxu0
      %v8604 = vadd.f32 0.0, %v8603
      %v8605 = vpop.f32.mrb[0].mxu0
      %8606 = vmatprep.mubr.bf16.mxu0 0
      %8607 = vmatmul.mubr.bf16.gmra.mrb[0].mxu0 %v7700
      %v8608 = vpop.f32.mrb[0].mxu0
      %v8609 = vadd.f32 0.0, %v8608
      %v8610 = vpop.f32.mrb[0].mxu0
      %v8611 = vpop.f32.mrb[0].mxu0
      %v8612 = vadd.f32 0.0, %v8611
      %v8613 = vpop.f32.mrb[0].mxu0
      %8614 = vmatprep.mubr.bf16.mxu0 0
      %8615 = vmatmul.mubr.bf16.gmra.mrb[0].mxu0 %v7701
      %v8616 = vpop.f32.mrb[0].mxu0
      %v8617 = vadd.f32 0.0, %v8616
      %v8618 = vpop.f32.mrb[0].mxu0
      %v8619 = vpop.f32.mrb[0].mxu0
      %v8620 = vadd.f32 0.0, %v8619
      %v8621 = vpop.f32.mrb[0].mxu0
      %8622 = vmatprep.mubr.bf16.mxu0 0
      %8623 = vmatmul.mubr.bf16.gmra.mrb[0].mxu0 %v7702
      %v8624 = vpop.f32.mrb[0].mxu0
      %v8625 = vadd.f32 0.0, %v8624
      %v8626 = vpop.f32.mrb[0].mxu0
      %v8627 = vpop.f32.mrb[0].mxu0
      %v8628 = vadd.f32 0.0, %v8627
      %v8629 = vpop.f32.mrb[0].mxu0
      %8630 = vmatprep.mubr.bf16.mxu0 0
      %8631 = vmatmul.mubr.bf16.gmra.mrb[0].mxu0 %v7703
      %v8632 = vpop.f32.mrb[0].mxu0
      %v8633 = vadd.f32 0.0, %v8632
      %v8634 = vpop.f32.mrb[0].mxu0
      %v8635 = vpop.f32.mrb[0].mxu0
      %v8636 = vadd.f32 0.0, %v8635
      %v8637 = vpop.f32.mrb[0].mxu0
      %8638 = vmatprep.mubr.bf16.mxu0 0
      %8639 = vmatmul.mubr.bf16.gmra.mrb[0].mxu0 %v7704
      %v8640 = vpop.f32.mrb[0].mxu0
      %v8641 = vadd.f32 0.0, %v8640
      %v8642 = vpop.f32.mrb[0].mxu0
      %v8643 = vpop.f32.mrb[0].mxu0
      %v8644 = vadd.f32 0.0, %v8643
      %v8645 = vpop.f32.mrb[0].mxu0
      %8646 = vmatprep.mubr.bf16.mxu0 0
      %8647 = vmatmul.mubr.bf16.gmra.mrb[0].mxu0 %v7705
      %v8648 = vpop.f32.mrb[0].mxu0
      %v8649 = vadd.f32 0.0, %v8648
      %v8650 = vpop.f32.mrb[0].mxu0
      %v8651 = vpop.f32.mrb[0].mxu0
      %v8652 = vadd.f32 0.0, %v8651
      %v8653 = vpop.f32.mrb[0].mxu0
      %8654 = vmatprep.mubr.bf16.mxu0 0
      %8655 = vmatmul.mubr.bf16.gmra.mrb[0].mxu0 %v7706
      %v8656 = vpop.f32.mrb[0].mxu0
      %v8657 = vadd.f32 0.0, %v8656
      %v8658 = vpop.f32.mrb[0].mxu0
      %v8659 = vpop.f32.mrb[0].mxu0
      %v8660 = vadd.f32 0.0, %v8659
      %v8661 = vpop.f32.mrb[0].mxu0
      %8662 = vmatprep.mubr.bf16.mxu0 0
      %8663 = vmatmul.mubr.bf16.gmra.mrb[0].mxu0 %v7707
      %v8664 = vpop.f32.mrb[0].mxu0
      %v8665 = vadd.f32 0.0, %v8664
      %v8666 = vpop.f32.mrb[0].mxu0
      %v8667 = vpop.f32.mrb[0].mxu0
      %v8668 = vadd.f32 0.0, %v8667
      %v8669 = vpop.f32.mrb[0].mxu0
      %8670 = vmatprep.mubr.bf16.mxu0 0
      %8671 = vmatmul.mubr.bf16.gmra.mrb[0].mxu0 %v7708
      %v8672 = vpop.f32.mrb[0].mxu0
      %v8673 = vadd.f32 0.0, %v8672
      %v8674 = vpop.f32.mrb[0].mxu0
      %v8675 = vpop.f32.mrb[0].mxu0
      %v8676 = vadd.f32 0.0, %v8675
      %v8677 = vpop.f32.mrb[0].mxu0
      %8678 = vdwg.mxu0
      %v8679 = vrot.slane %v8553, 1
      %v8680 = vrot.slane %v8556, 1
      %v8681 = vrot.slane %v8561, 1
      %v8682 = vrot.slane %v8564, 1
      %v8683 = vrot.slane %v8569, 1
      %v8684 = vrot.slane %v8572, 1
      %v8685 = vrot.slane %v8577, 1
      %v8686 = vrot.slane %v8580, 1
      %v8687 = vrot.slane %v8585, 1
      %v8688 = vrot.slane %v8588, 1
      %v8689 = vrot.slane %v8593, 1
      %v8690 = vrot.slane %v8596, 1
      %v8691 = vrot.slane %v8601, 1
      %v8692 = vrot.slane %v8604, 1
      %v8693 = vrot.slane %v8609, 1
      %v8694 = vrot.slane %v8612, 1
      %v8695 = vrot.slane %v8617, 1
      %v8696 = vrot.slane %v8620, 1
      %v8697 = vrot.slane %v8625, 1
      %v8698 = vrot.slane %v8628, 1
      %v8699 = vrot.slane %v8633, 1
      %v8700 = vrot.slane %v8636, 1
      %v8701 = vrot.slane %v8641, 1
      %v8702 = vrot.slane %v8644, 1
      %v8703 = vrot.slane %v8649, 1
      %v8704 = vrot.slane %v8652, 1
      %v8705 = vrot.slane %v8657, 1
      %v8706 = vrot.slane %v8660, 1
      %v8707 = vrot.slane %v8665, 1
      %v8708 = vrot.slane %v8668, 1
      %v8709 = vrot.slane %v8673, 1
      %v8710 = vrot.slane %v8676, 1
      %v8711 = vsel %vm1079, %v8709, %v8710
      %v8712 = vsel %vm1079, %v8708, %v8709
      %v8713 = vsel %vm1079, %v8707, %v8708
      %v8714 = vsel %vm1079, %v8706, %v8707
      %v8715 = vsel %vm1079, %v8705, %v8706
      %v8716 = vsel %vm1079, %v8704, %v8705
      %v8717 = vsel %vm1079, %v8703, %v8704
      %v8718 = vsel %vm1079, %v8702, %v8703
      %v8719 = vsel %vm1079, %v8701, %v8702
      %v8720 = vsel %vm1079, %v8700, %v8701
      %v8721 = vsel %vm1079, %v8699, %v8700
      %v8722 = vsel %vm1079, %v8698, %v8699
      %v8723 = vsel %vm1079, %v8697, %v8698
      %v8724 = vsel %vm1079, %v8696, %v8697
      %v8725 = vsel %vm1079, %v8695, %v8696
      %v8726 = vsel %vm1079, %v8694, %v8695
      %v8727 = vsel %vm1079, %v8693, %v8694
      %v8728 = vsel %vm1079, %v8692, %v8693
      %v8729 = vsel %vm1079, %v8691, %v8692
      %v8730 = vsel %vm1079, %v8690, %v8691
      %v8731 = vsel %vm1079, %v8689, %v8690
      %v8732 = vsel %vm1079, %v8688, %v8689
      %v8733 = vsel %vm1079, %v8687, %v8688
      %v8734 = vsel %vm1079, %v8686, %v8687
      %v8735 = vsel %vm1079, %v8685, %v8686
      %v8736 = vsel %vm1079, %v8684, %v8685
      %v8737 = vsel %vm1079, %v8683, %v8684
      %v8738 = vsel %vm1079, %v8682, %v8683
      %v8739 = vsel %vm1079, %v8681, %v8682
      %v8740 = vsel %vm1079, %v8680, %v8681
      %v8741 = vsel %vm1079, %v8679, %v8680
      %v8742 = vsel %vm1079, %v8710, %v8679
      %v8743 = vmul.f32 %v1012, %v8741
      %v8744 = vmul.f32 %v1012, %v8740
      %v8745 = vmul.f32 %v1012, %v8739
      %v8746 = vmul.f32 %v1012, %v8738
      %v8747 = vmul.f32 %v1012, %v8737
      %v8748 = vmul.f32 %v1012, %v8736
      %v8749 = vmul.f32 %v1012, %v8735
      %v8750 = vmul.f32 %v1012, %v8734
      %v8751 = vmul.f32 %v1012, %v8733
      %v8752 = vmul.f32 %v1012, %v8732
      %v8753 = vmul.f32 %v1012, %v8731
      %v8754 = vmul.f32 %v1012, %v8730
      %v8755 = vmul.f32 %v1012, %v8729
      %v8756 = vmul.f32 %v1012, %v8728
      %v8757 = vmul.f32 %v1012, %v8727
      %v8758 = vmul.f32 %v1012, %v8726
      %v8759 = vmul.f32 %v1012, %v8725
      %v8760 = vmul.f32 %v1012, %v8724
      %v8761 = vmul.f32 %v1012, %v8723
      %v8762 = vmul.f32 %v1012, %v8722
      %v8763 = vmul.f32 %v1012, %v8721
      %v8764 = vmul.f32 %v1012, %v8720
      %v8765 = vmul.f32 %v1012, %v8719
      %v8766 = vmul.f32 %v1012, %v8718
      %v8767 = vmul.f32 %v1012, %v8717
      %v8768 = vmul.f32 %v1012, %v8716
      %v8769 = vmul.f32 %v1012, %v8715
      %v8770 = vmul.f32 %v1012, %v8714
      %v8771 = vmul.f32 %v1012, %v8713
      %v8772 = vmul.f32 %v1012, %v8712
      %v8773 = vmul.f32 %v1012, %v8711
      %v8774 = vmul.f32 %v1012, %v8742
      %v8775 = vrot.slane %v8553, 7
      %v8776 = vrot.slane %v8556, 7
      %v8777 = vrot.slane %v8561, 7
      %v8778 = vrot.slane %v8564, 7
      %v8779 = vrot.slane %v8569, 7
      %v8780 = vrot.slane %v8572, 7
      %v8781 = vrot.slane %v8577, 7
      %v8782 = vrot.slane %v8580, 7
      %v8783 = vrot.slane %v8585, 7
      %v8784 = vrot.slane %v8588, 7
      %v8785 = vrot.slane %v8593, 7
      %v8786 = vrot.slane %v8596, 7
      %v8787 = vrot.slane %v8601, 7
      %v8788 = vrot.slane %v8604, 7
      %v8789 = vrot.slane %v8609, 7
      %v8790 = vrot.slane %v8612, 7
      %v8791 = vrot.slane %v8617, 7
      %v8792 = vrot.slane %v8620, 7
      %v8793 = vrot.slane %v8625, 7
      %v8794 = vrot.slane %v8628, 7
      %v8795 = vrot.slane %v8633, 7
      %v8796 = vrot.slane %v8636, 7
      %v8797 = vrot.slane %v8641, 7
      %v8798 = vrot.slane %v8644, 7
      %v8799 = vrot.slane %v8649, 7
      %v8800 = vrot.slane %v8652, 7
      %v8801 = vrot.slane %v8657, 7
      %v8802 = vrot.slane %v8660, 7
      %v8803 = vrot.slane %v8665, 7
      %v8804 = vrot.slane %v8668, 7
      %v8805 = vrot.slane %v8673, 7
      %v8806 = vrot.slane %v8676, 7
      %v8807 = vsel %vm977, %v8805, %v8806
      %v8808 = vsel %vm977, %v8804, %v8805
      %v8809 = vsel %vm977, %v8803, %v8804
      %v8810 = vsel %vm977, %v8802, %v8803
      %v8811 = vsel %vm977, %v8801, %v8802
      %v8812 = vsel %vm977, %v8800, %v8801
      %v8813 = vsel %vm977, %v8799, %v8800
      %v8814 = vsel %vm977, %v8798, %v8799
      %v8815 = vsel %vm977, %v8797, %v8798
      %v8816 = vsel %vm977, %v8796, %v8797
      %v8817 = vsel %vm977, %v8795, %v8796
      %v8818 = vsel %vm977, %v8794, %v8795
      %v8819 = vsel %vm977, %v8793, %v8794
      %v8820 = vsel %vm977, %v8792, %v8793
      %v8821 = vsel %vm977, %v8791, %v8792
      %v8822 = vsel %vm977, %v8790, %v8791
      %v8823 = vsel %vm977, %v8789, %v8790
      %v8824 = vsel %vm977, %v8788, %v8789
      %v8825 = vsel %vm977, %v8787, %v8788
      %v8826 = vsel %vm977, %v8786, %v8787
      %v8827 = vsel %vm977, %v8785, %v8786
      %v8828 = vsel %vm977, %v8784, %v8785
      %v8829 = vsel %vm977, %v8783, %v8784
      %v8830 = vsel %vm977, %v8782, %v8783
      %v8831 = vsel %vm977, %v8781, %v8782
      %v8832 = vsel %vm977, %v8780, %v8781
      %v8833 = vsel %vm977, %v8779, %v8780
      %v8834 = vsel %vm977, %v8778, %v8779
      %v8835 = vsel %vm977, %v8777, %v8778
      %v8836 = vsel %vm977, %v8776, %v8777
      %v8837 = vsel %vm977, %v8775, %v8776
      %v8838 = vsel %vm977, %v8806, %v8775
      %v8839 = vmul.f32 %v1114, %v8838
      %v8840 = vmul.f32 %v1114, %v8837
      %v8841 = vmul.f32 %v1114, %v8836
      %v8842 = vmul.f32 %v1114, %v8835
      %v8843 = vmul.f32 %v1114, %v8834
      %v8844 = vmul.f32 %v1114, %v8833
      %v8845 = vmul.f32 %v1114, %v8832
      %v8846 = vmul.f32 %v1114, %v8831
      %v8847 = vmul.f32 %v1114, %v8830
      %v8848 = vmul.f32 %v1114, %v8829
      %v8849 = vmul.f32 %v1114, %v8828
      %v8850 = vmul.f32 %v1114, %v8827
      %v8851 = vmul.f32 %v1114, %v8826
      %v8852 = vmul.f32 %v1114, %v8825
      %v8853 = vmul.f32 %v1114, %v8824
      %v8854 = vmul.f32 %v1114, %v8823
      %v8855 = vmul.f32 %v1114, %v8822
      %v8856 = vmul.f32 %v1114, %v8821
      %v8857 = vmul.f32 %v1114, %v8820
      %v8858 = vmul.f32 %v1114, %v8819
      %v8859 = vmul.f32 %v1114, %v8818
      %v8860 = vmul.f32 %v1114, %v8817
      %v8861 = vmul.f32 %v1114, %v8816
      %v8862 = vmul.f32 %v1114, %v8815
      %v8863 = vmul.f32 %v1114, %v8814
      %v8864 = vmul.f32 %v1114, %v8813
      %v8865 = vmul.f32 %v1114, %v8812
      %v8866 = vmul.f32 %v1114, %v8811
      %v8867 = vmul.f32 %v1114, %v8810
      %v8868 = vmul.f32 %v1114, %v8809
      %v8869 = vmul.f32 %v1114, %v8808
      %v8870 = vmul.f32 %v1114, %v8807
      %v8871 = vadd.f32 %v8743, %v8839
      %v8872 = vadd.f32 %v8744, %v8840
      %v8873 = vadd.f32 %v8745, %v8841
      %v8874 = vadd.f32 %v8746, %v8842
      %v8875 = vadd.f32 %v8747, %v8843
      %v8876 = vadd.f32 %v8748, %v8844
      %v8877 = vadd.f32 %v8749, %v8845
      %v8878 = vadd.f32 %v8750, %v8846
      %v8879 = vadd.f32 %v8751, %v8847
      %v8880 = vadd.f32 %v8752, %v8848
      %v8881 = vadd.f32 %v8753, %v8849
      %v8882 = vadd.f32 %v8754, %v8850
      %v8883 = vadd.f32 %v8755, %v8851
      %v8884 = vadd.f32 %v8756, %v8852
      %v8885 = vadd.f32 %v8757, %v8853
      %v8886 = vadd.f32 %v8758, %v8854
      %v8887 = vadd.f32 %v8759, %v8855
      %v8888 = vadd.f32 %v8760, %v8856
      %v8889 = vadd.f32 %v8761, %v8857
      %v8890 = vadd.f32 %v8762, %v8858
      %v8891 = vadd.f32 %v8763, %v8859
      %v8892 = vadd.f32 %v8764, %v8860
      %v8893 = vadd.f32 %v8765, %v8861
      %v8894 = vadd.f32 %v8766, %v8862
      %v8895 = vadd.f32 %v8767, %v8863
      %v8896 = vadd.f32 %v8768, %v8864
      %v8897 = vadd.f32 %v8769, %v8865
      %v8898 = vadd.f32 %v8770, %v8866
      %v8899 = vadd.f32 %v8771, %v8867
      %v8900 = vadd.f32 %v8772, %v8868
      %v8901 = vadd.f32 %v8773, %v8869
      %v8902 = vadd.f32 %v8774, %v8870
      %v8903 = vmul.f32 %v1856, %v8871
      %v8904 = vmul.f32 %v1860, %v8872
      %v8905 = vmul.f32 %v1864, %v8873
      %v8906 = vmul.f32 %v1868, %v8874
      %v8907 = vmul.f32 %v1872, %v8875
      %v8908 = vmul.f32 %v1876, %v8876
      %v8909 = vmul.f32 %v1880, %v8877
      %v8910 = vmul.f32 %v1884, %v8878
      %v8911 = vmul.f32 %v1888, %v8879
      %v8912 = vmul.f32 %v1892, %v8880
      %v8913 = vmul.f32 %v1896, %v8881
      %v8914 = vmul.f32 %v1900, %v8882
      %v8915 = vmul.f32 %v1904, %v8883
      %v8916 = vmul.f32 %v1908, %v8884
      %v8917 = vmul.f32 %v1912, %v8885
      %v8918 = vmul.f32 %v1916, %v8886
      %v8919 = vmul.f32 %v1920, %v8887
      %v8920 = vmul.f32 %v1924, %v8888
      %v8921 = vmul.f32 %v1928, %v8889
      %v8922 = vmul.f32 %v1932, %v8890
      %v8923 = vmul.f32 %v1936, %v8891
      %v8924 = vmul.f32 %v1940, %v8892
      %v8925 = vmul.f32 %v1944, %v8893
      %v8926 = vmul.f32 %v1948, %v8894
      %v8927 = vmul.f32 %v1952, %v8895
      %v8928 = vmul.f32 %v1956, %v8896
      %v8929 = vmul.f32 %v1960, %v8897
      %v8930 = vmul.f32 %v1964, %v8898
      %v8931 = vmul.f32 %v1968, %v8899
      %v8932 = vmul.f32 %v1972, %v8900
      %v8933 = vmul.f32 %v1976, %v8901
      %v8934 = vmul.f32 %v1980, %v8902
      %v8935 = vadd.f32 %v8421, %v8903
      %v8936 = vadd.f32 %v8422, %v8904
      %v8937 = vadd.f32 %v8423, %v8905
      %v8938 = vadd.f32 %v8424, %v8906
      %v8939 = vadd.f32 %v8425, %v8907
      %v8940 = vadd.f32 %v8426, %v8908
      %v8941 = vadd.f32 %v8427, %v8909
      %v8942 = vadd.f32 %v8428, %v8910
      %v8943 = vadd.f32 %v8429, %v8911
      %v8944 = vadd.f32 %v8430, %v8912
      %v8945 = vadd.f32 %v8431, %v8913
      %v8946 = vadd.f32 %v8432, %v8914
      %v8947 = vadd.f32 %v8433, %v8915
      %v8948 = vadd.f32 %v8434, %v8916
      %v8949 = vadd.f32 %v8435, %v8917
      %v8950 = vadd.f32 %v8436, %v8918
      %v8951 = vadd.f32 %v8437, %v8919
      %v8952 = vadd.f32 %v8438, %v8920
      %v8953 = vadd.f32 %v8439, %v8921
      %v8954 = vadd.f32 %v8440, %v8922
      %v8955 = vadd.f32 %v8441, %v8923
      %v8956 = vadd.f32 %v8442, %v8924
      %v8957 = vadd.f32 %v8443, %v8925
      %v8958 = vadd.f32 %v8444, %v8926
      %v8959 = vadd.f32 %v8445, %v8927
      %v8960 = vadd.f32 %v8446, %v8928
      %v8961 = vadd.f32 %v8447, %v8929
      %v8962 = vadd.f32 %v8448, %v8930
      %v8963 = vadd.f32 %v8449, %v8931
      %v8964 = vadd.f32 %v8450, %v8932
      %v8965 = vadd.f32 %v8451, %v8933
      %v8966 = vadd.f32 %v8452, %v8934
      %v8967 = vsub.f32 0.0, %v8935
      %v8968 = vsub.f32 0.0, %v8936
      %v8969 = vsub.f32 0.0, %v8937
      %v8970 = vsub.f32 0.0, %v8938
      %v8971 = vsub.f32 0.0, %v8939
      %v8972 = vsub.f32 0.0, %v8940
      %v8973 = vsub.f32 0.0, %v8941
      %v8974 = vsub.f32 0.0, %v8942
      %v8975 = vsub.f32 0.0, %v8943
      %v8976 = vsub.f32 0.0, %v8944
      %v8977 = vsub.f32 0.0, %v8945
      %v8978 = vsub.f32 0.0, %v8946
      %v8979 = vsub.f32 0.0, %v8947
      %v8980 = vsub.f32 0.0, %v8948
      %v8981 = vsub.f32 0.0, %v8949
      %v8982 = vsub.f32 0.0, %v8950
      %v8983 = vsub.f32 0.0, %v8951
      %v8984 = vsub.f32 0.0, %v8952
      %v8985 = vsub.f32 0.0, %v8953
      %v8986 = vsub.f32 0.0, %v8954
      %v8987 = vsub.f32 0.0, %v8955
      %v8988 = vsub.f32 0.0, %v8956
      %v8989 = vsub.f32 0.0, %v8957
      %v8990 = vsub.f32 0.0, %v8958
      %v8991 = vsub.f32 0.0, %v8959
      %v8992 = vsub.f32 0.0, %v8960
      %v8993 = vsub.f32 0.0, %v8961
      %v8994 = vsub.f32 0.0, %v8962
      %v8995 = vsub.f32 0.0, %v8963
      %v8996 = vsub.f32 0.0, %v8964
      %v8997 = vsub.f32 0.0, %v8965
      %v8998 = vsub.f32 0.0, %v8966
      %v8999 = vmul.f32 %v8967, 1.442695
      %v9000 = vpow.pop %v8999
      %v9001 = vmul.f32 %v8968, 1.442695
      %v9002 = vpow.pop %v9001
      %v9003 = vmul.f32 %v8969, 1.442695
      %v9004 = vpow.pop %v9003
      %v9005 = vmul.f32 %v8970, 1.442695
      %v9006 = vpow.pop %v9005
      %v9007 = vmul.f32 %v8971, 1.442695
      %v9008 = vpow.pop %v9007
      %v9009 = vmul.f32 %v8972, 1.442695
      %v9010 = vpow.pop %v9009
      %v9011 = vmul.f32 %v8973, 1.442695
      %v9012 = vpow.pop %v9011
      %v9013 = vmul.f32 %v8974, 1.442695
      %v9014 = vpow.pop %v9013
      %v9015 = vmul.f32 %v8975, 1.442695
      %v9016 = vpow.pop %v9015
      %v9017 = vmul.f32 %v8976, 1.442695
      %v9018 = vpow.pop %v9017
      %v9019 = vmul.f32 %v8977, 1.442695
      %v9020 = vpow.pop %v9019
      %v9021 = vmul.f32 %v8978, 1.442695
      %v9022 = vpow.pop %v9021
      %v9023 = vmul.f32 %v8979, 1.442695
      %v9024 = vpow.pop %v9023
      %v9025 = vmul.f32 %v8980, 1.442695
      %v9026 = vpow.pop %v9025
      %v9027 = vmul.f32 %v8981, 1.442695
      %v9028 = vpow.pop %v9027
      %v9029 = vmul.f32 %v8982, 1.442695
      %v9030 = vpow.pop %v9029
      %v9031 = vmul.f32 %v8983, 1.442695
      %v9032 = vpow.pop %v9031
      %v9033 = vmul.f32 %v8984, 1.442695
      %v9034 = vpow.pop %v9033
      %v9035 = vmul.f32 %v8985, 1.442695
      %v9036 = vpow.pop %v9035
      %v9037 = vmul.f32 %v8986, 1.442695
      %v9038 = vpow.pop %v9037
      %v9039 = vmul.f32 %v8987, 1.442695
      %v9040 = vpow.pop %v9039
      %v9041 = vmul.f32 %v8988, 1.442695
      %v9042 = vpow.pop %v9041
      %v9043 = vmul.f32 %v8989, 1.442695
      %v9044 = vpow.pop %v9043
      %v9045 = vmul.f32 %v8990, 1.442695
      %v9046 = vpow.pop %v9045
      %v9047 = vmul.f32 %v8991, 1.442695
      %v9048 = vpow.pop %v9047
      %v9049 = vmul.f32 %v8992, 1.442695
      %v9050 = vpow.pop %v9049
      %v9051 = vmul.f32 %v8993, 1.442695
      %v9052 = vpow.pop %v9051
      %v9053 = vmul.f32 %v8994, 1.442695
      %v9054 = vpow.pop %v9053
      %v9055 = vmul.f32 %v8995, 1.442695
      %v9056 = vpow.pop %v9055
      %v9057 = vmul.f32 %v8996, 1.442695
      %v9058 = vpow.pop %v9057
      %v9059 = vmul.f32 %v8997, 1.442695
      %v9060 = vpow.pop %v9059
      %v9061 = vmul.f32 %v8998, 1.442695
      %v9062 = vpow.pop %v9061
      %v9063 = vadd.f32 %v9000, 1.0
      %v9064 = vadd.f32 %v9002, 1.0
      %v9065 = vadd.f32 %v9004, 1.0
      %v9066 = vadd.f32 %v9006, 1.0
      %v9067 = vadd.f32 %v9008, 1.0
      %v9068 = vadd.f32 %v9010, 1.0
      %v9069 = vadd.f32 %v9012, 1.0
      %v9070 = vadd.f32 %v9014, 1.0
      %v9071 = vadd.f32 %v9016, 1.0
      %v9072 = vadd.f32 %v9018, 1.0
      %v9073 = vadd.f32 %v9020, 1.0
      %v9074 = vadd.f32 %v9022, 1.0
      %v9075 = vadd.f32 %v9024, 1.0
      %v9076 = vadd.f32 %v9026, 1.0
      %v9077 = vadd.f32 %v9028, 1.0
      %v9078 = vadd.f32 %v9030, 1.0
      %v9079 = vadd.f32 %v9032, 1.0
      %v9080 = vadd.f32 %v9034, 1.0
      %v9081 = vadd.f32 %v9036, 1.0
      %v9082 = vadd.f32 %v9038, 1.0
      %v9083 = vadd.f32 %v9040, 1.0
      %v9084 = vadd.f32 %v9042, 1.0
      %v9085 = vadd.f32 %v9044, 1.0
      %v9086 = vadd.f32 %v9046, 1.0
      %v9087 = vadd.f32 %v9048, 1.0
      %v9088 = vadd.f32 %v9050, 1.0
      %v9089 = vadd.f32 %v9052, 1.0
      %v9090 = vadd.f32 %v9054, 1.0
      %v9091 = vadd.f32 %v9056, 1.0
      %v9092 = vadd.f32 %v9058, 1.0
      %v9093 = vadd.f32 %v9060, 1.0
      %v9094 = vadd.f32 %v9062, 1.0
      %v9095 = vrcp.pop %v9063
      %v9096 = vrcp.pop %v9064
      %v9097 = vrcp.pop %v9065
      %v9098 = vrcp.pop %v9066
      %v9099 = vrcp.pop %v9067
      %v9100 = vrcp.pop %v9068
      %v9101 = vrcp.pop %v9069
      %v9102 = vrcp.pop %v9070
      %v9103 = vrcp.pop %v9071
      %v9104 = vrcp.pop %v9072
      %v9105 = vrcp.pop %v9073
      %v9106 = vrcp.pop %v9074
      %v9107 = vrcp.pop %v9075
      %v9108 = vrcp.pop %v9076
      %v9109 = vrcp.pop %v9077
      %v9110 = vrcp.pop %v9078
      %v9111 = vrcp.pop %v9079
      %v9112 = vrcp.pop %v9080
      %v9113 = vrcp.pop %v9081
      %v9114 = vrcp.pop %v9082
      %v9115 = vrcp.pop %v9083
      %v9116 = vrcp.pop %v9084
      %v9117 = vrcp.pop %v9085
      %v9118 = vrcp.pop %v9086
      %v9119 = vrcp.pop %v9087
      %v9120 = vrcp.pop %v9088
      %v9121 = vrcp.pop %v9089
      %v9122 = vrcp.pop %v9090
      %v9123 = vrcp.pop %v9091
      %v9124 = vrcp.pop %v9092
      %v9125 = vrcp.pop %v9093
      %v9126 = vrcp.pop %v9094
      %9127 = vst [vmem:[%s393] sm:$0xff] %v9095
      %9128 = vst [vmem:[%s393 + $0x8] sm:$0xff] %v9096
      %9129 = vst [vmem:[%s393 + $0x10] sm:$0xff] %v9097
      %9130 = vst [vmem:[%s393 + $0x18] sm:$0xff] %v9098
      %9131 = vst [vmem:[%s393 + $0x20] sm:$0xff] %v9099
      %9132 = vst [vmem:[%s393 + $0x28] sm:$0xff] %v9100
      %9133 = vst [vmem:[%s393 + $0x30] sm:$0xff] %v9101
      %9134 = vst [vmem:[%s393 + $0x38] sm:$0xff] %v9102
      %9135 = vst [vmem:[%s393 + $0x40] sm:$0xff] %v9103
      %9136 = vst [vmem:[%s393 + $0x48] sm:$0xff] %v9104
      %9137 = vst [vmem:[%s393 + $0x50] sm:$0xff] %v9105
      %9138 = vst [vmem:[%s393 + $0x58] sm:$0xff] %v9106
      %9139 = vst [vmem:[%s393 + $0x60] sm:$0xff] %v9107
      %9140 = vst [vmem:[%s393 + $0x68] sm:$0xff] %v9108
      %9141 = vst [vmem:[%s393 + $0x70] sm:$0xff] %v9109
      %9142 = vst [vmem:[%s393 + $0x78] sm:$0xff] %v9110
      %9143 = vst [vmem:[%s393 + $0x80] sm:$0xff] %v9111
      %9144 = vst [vmem:[%s393 + $0x88] sm:$0xff] %v9112
      %9145 = vst [vmem:[%s393 + $0x90] sm:$0xff] %v9113
      %9146 = vst [vmem:[%s393 + $0x98] sm:$0xff] %v9114
      %9147 = vst [vmem:[%s393 + $0xa0] sm:$0xff] %v9115
      %9148 = vst [vmem:[%s393 + $0xa8] sm:$0xff] %v9116
      %9149 = vst [vmem:[%s393 + $0xb0] sm:$0xff] %v9117
      %9150 = vst [vmem:[%s393 + $0xb8] sm:$0xff] %v9118
      %9151 = vst [vmem:[%s393 + $0xc0] sm:$0xff] %v9119
      %9152 = vst [vmem:[%s393 + $0xc8] sm:$0xff] %v9120
      %9153 = vst [vmem:[%s393 + $0xd0] sm:$0xff] %v9121
      %9154 = vst [vmem:[%s393 + $0xd8] sm:$0xff] %v9122
      %9155 = vst [vmem:[%s393 + $0xe0] sm:$0xff] %v9123
      %9156 = vst [vmem:[%s393 + $0xe8] sm:$0xff] %v9124
      %9157 = vst [vmem:[%s393 + $0xf0] sm:$0xff] %v9125
      %9158 = vst [vmem:[%s393 + $0xf8] sm:$0xff] %v9126
      %s9159 = smul.u32 8, %s22
      %p9160 = scmp.lt.s32.totalorder %s9159, 15
      %s9161 = scalar_select %p9160, %s9159, 15
      %s9162 = smul.addr %s9161, 4
      %s9163 = smul.addr %s9162, 8
      %s9164 = scalar_lea.vmem %s11, %s9163
      // Predicated region
      $region65: #{autoencoder_forward.1} parent=63 // pred_check
        %p9165 = pneg %p276
      $region66: #{autoencoder_forward.1} parent=63 // pred_check_branch
        %9167 = sbr.rel (%p9165) target = $region68
      $region67: #{autoencoder_forward.1} parent=63 // pred_region
        %s9168 = smul.u32 8, %s22
      $region68: #{autoencoder_forward.1} parent=63 // pred_fallthru
        _
    $region64: #{autoencoder_forward.1} parent=5 // pred_fallthru
      _
    %p9169 = scmp.le.s32.totalorder 2, %s17
    // Predicated region
    $region69: #{autoencoder_forward.1} parent=5 // pred_check
      %p9170 = pneg %p9169
    $region70: #{autoencoder_forward.1} parent=5 // pred_check_branch
      %9172 = sbr.rel (%p9170) target = $region72
    $region71: #{autoencoder_forward.1} parent=5 // pred_region
      %s9173 = ssub.s32 %s17, 2
      // Predicated region
      $region73: #{autoencoder_forward.1} parent=71 // pred_check
        %p9174 = pneg %p282
      $region74: #{autoencoder_forward.1} parent=71 // pred_check_branch
        %9176 = sbr.rel (%p9174) target = $region76
      $region75: #{autoencoder_forward.1} parent=71 // pred_region
        %s9177 = smul.u32 8, %s23
        %p9178 = scmp.lt.s32.totalorder %s9177, 15
        %s9179 = scalar_select %p9178, %s9177, 15
        %s9180 = smul.addr %s9179, 4
        %s9181 = smul.addr %s9180, 8
        %s9182 = scalar_lea.vmem %s11, %s9181
      $region76: #{autoencoder_forward.1} parent=71 // pred_fallthru
        _
    $region72: #{autoencoder_forward.1} parent=5 // pred_fallthru
      _
  $region6: #{autoencoder_forward.1} parent=0 // loop_footer
    %s21 = sadd.s32 1, %s17
  $region7: #{autoencoder_forward.1} parent=0 // loop_footer_branch
    %16 = sbr.rel target = $region3
  $region8: #{autoencoder_forward.1} parent=0 // loop_exit
    _

</llo_original>
